<compile_context>
chip_gen: v7x
topology: tpu7x:2x2x1
jax: 0.10.0
libtpu: 0.0.40
codegen_flags: <defaults>
</compile_context>

<pallas_src>
import functools

import jax
import jax.numpy as jnp
import numpy as np
from jax.experimental import pallas as pl
from jax.experimental.pallas import tpu as pltpu

# Set to jnp.bfloat16 on v6e/v7x to run the conv/dense GEMM operands in bf16
# (f32 accumulation is kept); halves weight DMA and doubles MXU rate.  Kept at
# f32 here so the strict 5e-3 check vs. the Precision.HIGHEST reference passes.
GEMM_DTYPE = jnp.float32

_LANE = 128      # vreg lane width
_SUBLANE = 8     # vreg sublane width


def _round_up(x, m):
    return (x + m - 1) // m * m


def _pick_tile_m(m, cap=512):
    """Largest multiple-of-8 divisor of m that is <= cap (fallback: m)."""
    start = min(cap, m) // _SUBLANE * _SUBLANE
    for t in range(start, 0, -_SUBLANE):
        if m % t == 0:
            return t
    return m


def _vmem_limit(need_bytes):
    # Floor at the smallest default scoped limit (16 MiB, v5e); cap at v7x
    # physical VMEM.  TODO(synk): raise the cap for very large H*W on v5e/v6e.
    return int(min(max(need_bytes, 16 * 2**20), 64 * 2**20))


# ----------------------------------------------------------------------------
# kernel A: conv1 + bias + ReLU -> time gate -> conv2 + bias -> residual,
#           plus per-sample BN partial sums.  One grid step == one sample.
# ----------------------------------------------------------------------------
def _make_fused_kernel(h, w, c_in_pad, c_pad):
    hw = h * w
    taps = [(dy, dx) for dy in range(3) for dx in range(3)]

    def kernel(x_ref, ts_ref, w1_ref, b1_ref, wd_ref, bd_ref, w2_ref, b2_ref,
               ypre_ref, psum_ref, psumsq_ref, acc_ref, xparam_ref):
        gemm_dt = w1_ref.dtype

        # ---- conv3x3(x_img): 9 shifted-window GEMMs, f32 VMEM accumulator ----
        for t, (dy, dx) in enumerate(taps):
            win = x_ref[dy:dy + h, dx:dx + w, :]                  # (h, w, c_in_pad)
            contrib = jnp.dot(
                win.reshape(hw, c_in_pad).astype(gemm_dt), w1_ref[t],
                preferred_element_type=jnp.float32)
            if t == 0:
                acc_ref[...] = contrib                            # no zero-fill pass
            else:
                acc_ref[...] += contrib
        x_param = jnp.maximum(acc_ref[...] + b1_ref[...], 0.0)    # (hw, c_pad)

        # ---- time gate: relu(dense(x_ts)); one tiny GEMM per sample ----
        tp = jnp.dot(ts_ref[...].astype(gemm_dt), wd_ref[...],
                     preferred_element_type=jnp.float32) + bd_ref[...]
        tp = jnp.maximum(tp, 0.0)                                 # (1, c_pad)
        x_param = x_param * tp           # single broadcasted multiply (no batch loop)

        # ---- stash x_param in a zero-padded VMEM scratch (halo for conv2) ----
        xparam_ref[...] = jnp.zeros_like(xparam_ref)
        xparam_ref[1:h + 1, 1:w + 1, :] = x_param.reshape(h, w, c_pad)

        # ---- conv3x3(x_param): 9 shifted-window GEMMs from VMEM ----
        for t, (dy, dx) in enumerate(taps):
            win = xparam_ref[dy:dy + h, dx:dx + w, :]             # (h, w, c_pad)
            contrib = jnp.dot(
                win.reshape(hw, c_pad).astype(gemm_dt), w2_ref[t],
                preferred_element_type=jnp.float32)
            if t == 0:
                acc_ref[...] = contrib
            else:
                acc_ref[...] += contrib

        # ---- bias + residual; emit pre-BN activations + BN partial stats ----
        y = acc_ref[...] + b2_ref[...] + x_param                  # x_param is the residual
        ypre_ref[...] = y                                         # lane-dense store
        psum_ref[...] = jnp.sum(y, axis=0, keepdims=True)
        psumsq_ref[...] = jnp.sum(y * y, axis=0, keepdims=True)

    return kernel


# ----------------------------------------------------------------------------
# kernel B: batchnorm apply (biased var from sum / sum-of-squares) + ReLU.
# Row-tiled over N*H*W; stats arrays are tiny and re-read per tile.
# ----------------------------------------------------------------------------
def _make_bn_kernel(count):
    inv_count = 1.0 / float(count)

    def kernel(ypre_ref, psum_ref, psumsq_ref, gamma_ref, beta_ref, out_ref):
        mean = jnp.sum(psum_ref[...], axis=0) * inv_count         # (1, c_pad)
        ex2 = jnp.sum(psumsq_ref[...], axis=0) * inv_count
        # var = E[y^2] - E[y]^2 in f32 (mild stability loss vs two-pass; fine
        # at these magnitudes and well inside the test tolerance).
        var = ex2 - mean * mean
        inv_std = jax.lax.rsqrt(var + 1e-5)
        scale = gamma_ref[...] * inv_std
        shift = beta_ref[...] - mean * scale
        out_ref[...] = jnp.maximum(ypre_ref[...] * scale + shift, 0.0)

    return kernel


# ----------------------------------------------------------------------------
# wrapper
# ----------------------------------------------------------------------------
@functools.partial(jax.jit, static_argnames=("out_ch",))
def time_embedding_forward(x_img_nchw, x_ts, params, *, out_ch):
    n, c_in, h, w = x_img_nchw.shape
    t_dim = x_ts.shape[-1]
    c_pad = params["w1"].shape[-1]
    c_in_pad = params["w1"].shape[1]
    t_pad = params["wd"].shape[0]
    hw = h * w
    m_rows = n * hw
    f32 = 4
    gemm_bytes = jnp.dtype(params["w1"].dtype).itemsize
    assert n == 1 or hw % _SUBLANE == 0, "H*W must be a multiple of 8 when N > 1"

    # --- plain-JAX layout glue (NCHW -> NHWC, zero pad for the 3x3 halo) ---
    # TODO(synk): in an NHWC pipeline both transposes disappear entirely.
    x_nhwc = jnp.transpose(x_img_nchw, (0, 2, 3, 1)).astype(jnp.float32)
    x_pad = jnp.pad(x_nhwc, ((0, 0), (1, 1), (1, 1), (0, c_in_pad - c_in)))
    x_ts_f = jnp.pad(x_ts.astype(jnp.float32),
                     ((0, 0), (0, t_pad - t_dim))).reshape(n, 1, t_pad)

    # ---------------- kernel A: fused conv1 + gate + conv2 + residual -------
    in_bytes_a = (f32 * ((h + 2) * (w + 2) * c_in_pad + t_pad + 4 * c_pad)
                  + gemm_bytes * (9 * c_in_pad * c_pad + t_pad * c_pad
                                  + 9 * c_pad * c_pad))
    out_bytes_a = f32 * (hw * c_pad + 2 * c_pad)
    scratch_bytes_a = f32 * (hw * c_pad + (h + 2) * (w + 2) * c_pad)
    need_a = 2 * (in_bytes_a + out_bytes_a) + scratch_bytes_a + (2 << 20)

    y_pre, psum, psumsq = pl.pallas_call(
        _make_fused_kernel(h, w, c_in_pad, c_pad),
        grid=(n,),
        in_specs=[
            pl.BlockSpec((None, h + 2, w + 2, c_in_pad), lambda b: (b, 0, 0, 0)),
            pl.BlockSpec((None, 1, t_pad), lambda b: (b, 0, 0)),
            pl.BlockSpec((9, c_in_pad, c_pad), lambda b: (0, 0, 0)),
            pl.BlockSpec((1, c_pad), lambda b: (0, 0)),
            pl.BlockSpec((t_pad, c_pad), lambda b: (0, 0)),
            pl.BlockSpec((1, c_pad), lambda b: (0, 0)),
            pl.BlockSpec((9, c_pad, c_pad), lambda b: (0, 0, 0)),
            pl.BlockSpec((1, c_pad), lambda b: (0, 0)),
        ],
        out_specs=(
            pl.BlockSpec((hw, c_pad), lambda b: (b, 0)),          # y_pre rows
            pl.BlockSpec((None, 1, c_pad), lambda b: (b, 0, 0)),  # per-sample sum
            pl.BlockSpec((None, 1, c_pad), lambda b: (b, 0, 0)),  # per-sample sumsq
        ),
        out_shape=(
            jax.ShapeDtypeStruct((m_rows, c_pad), jnp.float32),
            jax.ShapeDtypeStruct((n, 1, c_pad), jnp.float32),
            jax.ShapeDtypeStruct((n, 1, c_pad), jnp.float32),
        ),
        scratch_shapes=[
            pltpu.VMEM((hw, c_pad), jnp.float32),                 # GEMM accumulator
            pltpu.VMEM((h + 2, w + 2, c_pad), jnp.float32),       # padded x_param
        ],
        compiler_params=pltpu.CompilerParams(
            dimension_semantics=("parallel",),
            vmem_limit_bytes=_vmem_limit(need_a)),
    )(x_pad, x_ts_f, params["w1"], params["b1"], params["wd"], params["bd"],
      params["w2"], params["b2"])

    # ---------------- kernel B: batchnorm apply + ReLU (row-tiled) ----------
    tile_m = _pick_tile_m(m_rows)
    need_b = 2 * f32 * (2 * tile_m * c_pad + 2 * n * c_pad + 2 * c_pad) + (2 << 20)
    out2d = pl.pallas_call(
        _make_bn_kernel(m_rows),
        grid=(m_rows // tile_m,),
        in_specs=[
            pl.BlockSpec((tile_m, c_pad), lambda i: (i, 0)),
            pl.BlockSpec((n, 1, c_pad), lambda i: (0, 0, 0)),
            pl.BlockSpec((n, 1, c_pad), lambda i: (0, 0, 0)),
            pl.BlockSpec((1, c_pad), lambda i: (0, 0)),
            pl.BlockSpec((1, c_pad), lambda i: (0, 0)),
        ],
        out_specs=pl.BlockSpec((tile_m, c_pad), lambda i: (i, 0)),
        out_shape=jax.ShapeDtypeStruct((m_rows, c_pad), jnp.float32),
        compiler_params=pltpu.CompilerParams(
            dimension_semantics=("parallel",),
            vmem_limit_bytes=_vmem_limit(need_b)),
    )(y_pre, psum, psumsq, params["gamma"], params["beta"])

    out = out2d.reshape(n, h, w, c_pad)[..., :out_ch]
    return jnp.transpose(out, (0, 3, 1, 2))                       # back to NCHW


# ----------------------------------------------------------------------------
# parameter init: channel-padded kernel params + unpadded reference params
# ----------------------------------------------------------------------------
def init_params(key, c_in, c_out, t_dim, gemm_dtype=GEMM_DTYPE):
    c_pad = _round_up(c_out, _LANE)        # lane-dense output channels
    c_in_pad = _round_up(c_in, _SUBLANE)
    t_pad = _round_up(t_dim, _SUBLANE)

    ks = jax.random.split(key, 6)
    w1 = jax.random.normal(ks[0], (3, 3, c_in, c_out), jnp.float32) * 0.1
    b1 = jax.random.normal(ks[1], (c_out,), jnp.float32) * 0.1
    wd = jax.random.normal(ks[2], (t_dim, c_out), jnp.float32) * 0.1
    bd = jax.random.normal(ks[3], (c_out,), jnp.float32) * 0.1
    w2 = jax.random.normal(ks[4], (3, 3, c_out, c_out), jnp.float32) * 0.1
    b2 = jax.random.normal(ks[5], (c_out,), jnp.float32) * 0.1
    gamma = jnp.ones((c_out,), jnp.float32)
    beta = jnp.zeros((c_out,), jnp.float32)

    # tap-major packing: weight index [dy, dx] -> row dy*3+dx (matches kernel)
    w1_p = jnp.zeros((3, 3, c_in_pad, c_pad), jnp.float32)
    w1_p = w1_p.at[:, :, :c_in, :c_out].set(w1).reshape(9, c_in_pad, c_pad)
    w2_p = jnp.zeros((3, 3, c_pad, c_pad), jnp.float32)
    w2_p = w2_p.at[:, :, :c_out, :c_out].set(w2).reshape(9, c_pad, c_pad)
    wd_p = jnp.zeros((t_pad, c_pad), jnp.float32).at[:t_dim, :c_out].set(wd)

    def row(v):  # (c_out,) -> (1, c_pad), zero-padded lanes
        return jnp.pad(v, (0, c_pad - c_out))[None, :]

    params = {
        "w1": w1_p.astype(gemm_dtype), "b1": row(b1),
        "wd": wd_p.astype(gemm_dtype), "bd": row(bd),
        "w2": w2_p.astype(gemm_dtype), "b2": row(b2),
        "gamma": row(gamma), "beta": row(beta),
    }
    ref_params = {"w1_hwio": w1, "b1": b1, "wd": wd, "bd": bd,
                  "w2_hwio": w2, "b2": b2, "gamma": gamma, "beta": beta}
    return params, ref_params


# ----------------------------------------------------------------------------
# pure-JAX reference (Precision.HIGHEST) for the correctness check
# ----------------------------------------------------------------------------
def reference(x_img_nchw, x_ts, p):
    x = jnp.transpose(x_img_nchw, (0, 2, 3, 1)).astype(jnp.float32)
    dn1 = jax.lax.conv_dimension_numbers(x.shape, p["w1_hwio"].shape,
                                         ("NHWC", "HWIO", "NHWC"))
    xp = jax.lax.conv_general_dilated(
        x, p["w1_hwio"], (1, 1), "SAME", dimension_numbers=dn1,
        precision=jax.lax.Precision.HIGHEST)
    xp = jnp.maximum(xp + p["b1"][None, None, None, :], 0.0)
    tp = jnp.maximum(
        jnp.dot(x_ts.astype(jnp.float32), p["wd"],
                precision=jax.lax.Precision.HIGHEST) + p["bd"], 0.0)
    xp = xp * tp[:, None, None, :]
    dn2 = jax.lax.conv_dimension_numbers(xp.shape, p["w2_hwio"].shape,
                                         ("NHWC", "HWIO", "NHWC"))
    y = jax.lax.conv_general_dilated(
        xp, p["w2_hwio"], (1, 1), "SAME", dimension_numbers=dn2,
        precision=jax.lax.Precision.HIGHEST)
    y = y + p["b2"][None, None, None, :] + xp
    mean = jnp.mean(y, axis=(0, 1, 2), keepdims=True)
    var = jnp.mean(jnp.square(y - mean), axis=(0, 1, 2), keepdims=True)
    y = ((y - mean) * jax.lax.rsqrt(var + 1e-5)
         * p["gamma"][None, None, None, :] + p["beta"][None, None, None, :])
    return jnp.transpose(jnp.maximum(y, 0.0), (0, 3, 1, 2))


# ----------------------------------------------------------------------------
if __name__ == "__main__":
    N, C_IN, H, W = 2, 4, 16, 16      # x_img: NCHW
    OUT_CH = 8
    T_DIM = 8                         # feature dim of x_ts

    key = jax.random.PRNGKey(0)
    k_img, k_ts, k_par = jax.random.split(key, 3)

    x_img = jax.random.normal(k_img, (N, C_IN, H, W), jnp.float32)
    x_ts = jax.random.randint(k_ts, (N, T_DIM), 0, 10, jnp.int32)  # .float() in fwd
    params, ref_params = init_params(k_par, C_IN, OUT_CH, T_DIM)

    out = time_embedding_forward(x_img, x_ts, params, out_ch=OUT_CH)
    out = jax.block_until_ready(out)

    ref = jax.block_until_ready(reference(x_img, x_ts, ref_params))
    np.testing.assert_allclose(np.asarray(out), np.asarray(ref),
                               rtol=5e-3, atol=5e-3)
    assert out.shape == (N, OUT_CH, H, W)

    print("KERNEL_OK")
</pallas_src>

<mosaic_0001>
module attributes {stable_mosaic.version = 11 : i64} {
  func.func @kernel(%arg0: i32, %arg1: memref<1x18x18x8xf32, #tpu.memory_space<vmem>>, %arg2: memref<1x1x8xf32, #tpu.memory_space<vmem>>, %arg3: memref<9x8x128xf32, #tpu.memory_space<vmem>>, %arg4: memref<1x128xf32, #tpu.memory_space<vmem>>, %arg5: memref<8x128xf32, #tpu.memory_space<vmem>>, %arg6: memref<1x128xf32, #tpu.memory_space<vmem>>, %arg7: memref<9x128x128xf32, #tpu.memory_space<vmem>>, %arg8: memref<1x128xf32, #tpu.memory_space<vmem>>, %arg9: memref<256x128xf32, #tpu.memory_space<vmem>>, %arg10: memref<1x1x128xf32, #tpu.memory_space<vmem>>, %arg11: memref<1x1x128xf32, #tpu.memory_space<vmem>>, %arg12: memref<256x128xf32, #tpu.memory_space<vmem>>, %arg13: memref<18x18x128xf32, #tpu.memory_space<vmem>>) attributes {dimension_semantics = [#tpu.dimension_semantics<parallel>], iteration_bounds = array<i64: 2>, scalar_prefetch = 0 : i64, scratch_operands = 2 : i64, tpu.core_type = #tpu.core_type<tc>, window_params = [{transform_indices = @transform_0, window_bounds = array<i64: 1, 18, 18, 8>}, {transform_indices = @transform_1, window_bounds = array<i64: 1, 1, 8>}, {pipeline_mode = #tpu.pipeline_mode<synchronous>, transform_indices = @transform_2, window_bounds = array<i64: 9, 8, 128>}, {pipeline_mode = #tpu.pipeline_mode<synchronous>, transform_indices = @transform_3, window_bounds = array<i64: 1, 128>}, {pipeline_mode = #tpu.pipeline_mode<synchronous>, transform_indices = @transform_4, window_bounds = array<i64: 8, 128>}, {pipeline_mode = #tpu.pipeline_mode<synchronous>, transform_indices = @transform_5, window_bounds = array<i64: 1, 128>}, {pipeline_mode = #tpu.pipeline_mode<synchronous>, transform_indices = @transform_6, window_bounds = array<i64: 9, 128, 128>}, {pipeline_mode = #tpu.pipeline_mode<synchronous>, transform_indices = @transform_7, window_bounds = array<i64: 1, 128>}, {transform_indices = @transform_8, window_bounds = array<i64: 256, 128>}, {transform_indices = @transform_9, window_bounds = array<i64: 1, 1, 128>}, {transform_indices = @transform_10, window_bounds = array<i64: 1, 1, 128>}]} {
    %c0 = arith.constant 0 : index
    %c0_0 = arith.constant 0 : index
    %c0_1 = arith.constant 0 : index
    %c0_2 = arith.constant 0 : index
    %0 = vector.load %arg1[%c0, %c0_0, %c0_1, %c0_2] : memref<1x18x18x8xf32, #tpu.memory_space<vmem>>, vector<1x16x16x8xf32>
    %1 = vector.shape_cast %0 : vector<1x16x16x8xf32> to vector<16x16x8xf32>
    %2 = vector.shape_cast %1 : vector<16x16x8xf32> to vector<256x8xf32>
    %c0_3 = arith.constant 0 : index
    %c0_4 = arith.constant 0 : index
    %c0_5 = arith.constant 0 : index
    %3 = vector.load %arg3[%c0_3, %c0_4, %c0_5] : memref<9x8x128xf32, #tpu.memory_space<vmem>>, vector<1x8x128xf32>
    %4 = vector.shape_cast %3 : vector<1x8x128xf32> to vector<8x128xf32>
    %cst = arith.constant dense<0.000000e+00> : vector<256x128xf32>
    %5 = tpu.matmul %2, %4, %cst {dimension_numbers = #tpu.dot_dimension_numbers<[1], [0], [0], [1], [0, 0, 1, 1], [], []>} : vector<256x8xf32>, vector<8x128xf32>, vector<256x128xf32> -> vector<256x128xf32>
    %c0_6 = arith.constant 0 : index
    %c0_7 = arith.constant 0 : index
    %6 = vector.load %arg12[%c0_6, %c0_7] : memref<256x128xf32, #tpu.memory_space<vmem>>, vector<256x128xf32>
    tpu.vector_store %arg12[%c0_6, %c0_7], %5 {strides = array<i32>} : memref<256x128xf32, #tpu.memory_space<vmem>>, vector<256x128xf32>,
    %c0_8 = arith.constant 0 : index
    %c0_9 = arith.constant 0 : index
    %c1 = arith.constant 1 : index
    %c0_10 = arith.constant 0 : index
    %7 = vector.load %arg1[%c0_8, %c0_9, %c1, %c0_10] : memref<1x18x18x8xf32, #tpu.memory_space<vmem>>, vector<1x16x16x8xf32>
    %8 = vector.shape_cast %7 : vector<1x16x16x8xf32> to vector<16x16x8xf32>
    %9 = vector.shape_cast %8 : vector<16x16x8xf32> to vector<256x8xf32>
    %c1_11 = arith.constant 1 : index
    %c0_12 = arith.constant 0 : index
    %c0_13 = arith.constant 0 : index
    %10 = vector.load %arg3[%c1_11, %c0_12, %c0_13] : memref<9x8x128xf32, #tpu.memory_space<vmem>>, vector<1x8x128xf32>
    %11 = vector.shape_cast %10 : vector<1x8x128xf32> to vector<8x128xf32>
    %cst_14 = arith.constant dense<0.000000e+00> : vector<256x128xf32>
    %12 = tpu.matmul %9, %11, %cst_14 {dimension_numbers = #tpu.dot_dimension_numbers<[1], [0], [0], [1], [0, 0, 1, 1], [], []>} : vector<256x8xf32>, vector<8x128xf32>, vector<256x128xf32> -> vector<256x128xf32>
    %c0_15 = arith.constant 0 : index
    %c0_16 = arith.constant 0 : index
    %13 = vector.load %arg12[%c0_15, %c0_16] : memref<256x128xf32, #tpu.memory_space<vmem>>, vector<256x128xf32>
    %14 = arith.addf %13, %12 : vector<256x128xf32>
    %c0_17 = arith.constant 0 : index
    %c0_18 = arith.constant 0 : index
    %15 = vector.load %arg12[%c0_17, %c0_18] : memref<256x128xf32, #tpu.memory_space<vmem>>, vector<256x128xf32>
    tpu.vector_store %arg12[%c0_17, %c0_18], %14 {strides = array<i32>} : memref<256x128xf32, #tpu.memory_space<vmem>>, vector<256x128xf32>,
    %c0_19 = arith.constant 0 : index
    %c0_20 = arith.constant 0 : index
    %c2 = arith.constant 2 : index
    %c0_21 = arith.constant 0 : index
    %16 = vector.load %arg1[%c0_19, %c0_20, %c2, %c0_21] : memref<1x18x18x8xf32, #tpu.memory_space<vmem>>, vector<1x16x16x8xf32>
    %17 = vector.shape_cast %16 : vector<1x16x16x8xf32> to vector<16x16x8xf32>
    %18 = vector.shape_cast %17 : vector<16x16x8xf32> to vector<256x8xf32>
    %c2_22 = arith.constant 2 : index
    %c0_23 = arith.constant 0 : index
    %c0_24 = arith.constant 0 : index
    %19 = vector.load %arg3[%c2_22, %c0_23, %c0_24] : memref<9x8x128xf32, #tpu.memory_space<vmem>>, vector<1x8x128xf32>
    %20 = vector.shape_cast %19 : vector<1x8x128xf32> to vector<8x128xf32>
    %cst_25 = arith.constant dense<0.000000e+00> : vector<256x128xf32>
    %21 = tpu.matmul %18, %20, %cst_25 {dimension_numbers = #tpu.dot_dimension_numbers<[1], [0], [0], [1], [0, 0, 1, 1], [], []>} : vector<256x8xf32>, vector<8x128xf32>, vector<256x128xf32> -> vector<256x128xf32>
    %c0_26 = arith.constant 0 : index
    %c0_27 = arith.constant 0 : index
    %22 = vector.load %arg12[%c0_26, %c0_27] : memref<256x128xf32, #tpu.memory_space<vmem>>, vector<256x128xf32>
    %23 = arith.addf %22, %21 : vector<256x128xf32>
    %c0_28 = arith.constant 0 : index
    %c0_29 = arith.constant 0 : index
    %24 = vector.load %arg12[%c0_28, %c0_29] : memref<256x128xf32, #tpu.memory_space<vmem>>, vector<256x128xf32>
    tpu.vector_store %arg12[%c0_28, %c0_29], %23 {strides = array<i32>} : memref<256x128xf32, #tpu.memory_space<vmem>>, vector<256x128xf32>,
    %c0_30 = arith.constant 0 : index
    %c1_31 = arith.constant 1 : index
    %c0_32 = arith.constant 0 : index
    %c0_33 = arith.constant 0 : index
    %25 = vector.load %arg1[%c0_30, %c1_31, %c0_32, %c0_33] : memref<1x18x18x8xf32, #tpu.memory_space<vmem>>, vector<1x16x16x8xf32>
    %26 = vector.shape_cast %25 : vector<1x16x16x8xf32> to vector<16x16x8xf32>
    %27 = vector.shape_cast %26 : vector<16x16x8xf32> to vector<256x8xf32>
    %c3 = arith.constant 3 : index
    %c0_34 = arith.constant 0 : index
    %c0_35 = arith.constant 0 : index
    %28 = vector.load %arg3[%c3, %c0_34, %c0_35] : memref<9x8x128xf32, #tpu.memory_space<vmem>>, vector<1x8x128xf32>
    %29 = vector.shape_cast %28 : vector<1x8x128xf32> to vector<8x128xf32>
    %cst_36 = arith.constant dense<0.000000e+00> : vector<256x128xf32>
    %30 = tpu.matmul %27, %29, %cst_36 {dimension_numbers = #tpu.dot_dimension_numbers<[1], [0], [0], [1], [0, 0, 1, 1], [], []>} : vector<256x8xf32>, vector<8x128xf32>, vector<256x128xf32> -> vector<256x128xf32>
    %c0_37 = arith.constant 0 : index
    %c0_38 = arith.constant 0 : index
    %31 = vector.load %arg12[%c0_37, %c0_38] : memref<256x128xf32, #tpu.memory_space<vmem>>, vector<256x128xf32>
    %32 = arith.addf %31, %30 : vector<256x128xf32>
    %c0_39 = arith.constant 0 : index
    %c0_40 = arith.constant 0 : index
    %33 = vector.load %arg12[%c0_39, %c0_40] : memref<256x128xf32, #tpu.memory_space<vmem>>, vector<256x128xf32>
    tpu.vector_store %arg12[%c0_39, %c0_40], %32 {strides = array<i32>} : memref<256x128xf32, #tpu.memory_space<vmem>>, vector<256x128xf32>,
    %c0_41 = arith.constant 0 : index
    %c1_42 = arith.constant 1 : index
    %c1_43 = arith.constant 1 : index
    %c0_44 = arith.constant 0 : index
    %34 = vector.load %arg1[%c0_41, %c1_42, %c1_43, %c0_44] : memref<1x18x18x8xf32, #tpu.memory_space<vmem>>, vector<1x16x16x8xf32>
    %35 = vector.shape_cast %34 : vector<1x16x16x8xf32> to vector<16x16x8xf32>
    %36 = vector.shape_cast %35 : vector<16x16x8xf32> to vector<256x8xf32>
    %c4 = arith.constant 4 : index
    %c0_45 = arith.constant 0 : index
    %c0_46 = arith.constant 0 : index
    %37 = vector.load %arg3[%c4, %c0_45, %c0_46] : memref<9x8x128xf32, #tpu.memory_space<vmem>>, vector<1x8x128xf32>
    %38 = vector.shape_cast %37 : vector<1x8x128xf32> to vector<8x128xf32>
    %cst_47 = arith.constant dense<0.000000e+00> : vector<256x128xf32>
    %39 = tpu.matmul %36, %38, %cst_47 {dimension_numbers = #tpu.dot_dimension_numbers<[1], [0], [0], [1], [0, 0, 1, 1], [], []>} : vector<256x8xf32>, vector<8x128xf32>, vector<256x128xf32> -> vector<256x128xf32>
    %c0_48 = arith.constant 0 : index
    %c0_49 = arith.constant 0 : index
    %40 = vector.load %arg12[%c0_48, %c0_49] : memref<256x128xf32, #tpu.memory_space<vmem>>, vector<256x128xf32>
    %41 = arith.addf %40, %39 : vector<256x128xf32>
    %c0_50 = arith.constant 0 : index
    %c0_51 = arith.constant 0 : index
    %42 = vector.load %arg12[%c0_50, %c0_51] : memref<256x128xf32, #tpu.memory_space<vmem>>, vector<256x128xf32>
    tpu.vector_store %arg12[%c0_50, %c0_51], %41 {strides = array<i32>} : memref<256x128xf32, #tpu.memory_space<vmem>>, vector<256x128xf32>,
    %c0_52 = arith.constant 0 : index
    %c1_53 = arith.constant 1 : index
    %c2_54 = arith.constant 2 : index
    %c0_55 = arith.constant 0 : index
    %43 = vector.load %arg1[%c0_52, %c1_53, %c2_54, %c0_55] : memref<1x18x18x8xf32, #tpu.memory_space<vmem>>, vector<1x16x16x8xf32>
    %44 = vector.shape_cast %43 : vector<1x16x16x8xf32> to vector<16x16x8xf32>
    %45 = vector.shape_cast %44 : vector<16x16x8xf32> to vector<256x8xf32>
    %c5 = arith.constant 5 : index
    %c0_56 = arith.constant 0 : index
    %c0_57 = arith.constant 0 : index
    %46 = vector.load %arg3[%c5, %c0_56, %c0_57] : memref<9x8x128xf32, #tpu.memory_space<vmem>>, vector<1x8x128xf32>
    %47 = vector.shape_cast %46 : vector<1x8x128xf32> to vector<8x128xf32>
    %cst_58 = arith.constant dense<0.000000e+00> : vector<256x128xf32>
    %48 = tpu.matmul %45, %47, %cst_58 {dimension_numbers = #tpu.dot_dimension_numbers<[1], [0], [0], [1], [0, 0, 1, 1], [], []>} : vector<256x8xf32>, vector<8x128xf32>, vector<256x128xf32> -> vector<256x128xf32>
    %c0_59 = arith.constant 0 : index
    %c0_60 = arith.constant 0 : index
    %49 = vector.load %arg12[%c0_59, %c0_60] : memref<256x128xf32, #tpu.memory_space<vmem>>, vector<256x128xf32>
    %50 = arith.addf %49, %48 : vector<256x128xf32>
    %c0_61 = arith.constant 0 : index
    %c0_62 = arith.constant 0 : index
    %51 = vector.load %arg12[%c0_61, %c0_62] : memref<256x128xf32, #tpu.memory_space<vmem>>, vector<256x128xf32>
    tpu.vector_store %arg12[%c0_61, %c0_62], %50 {strides = array<i32>} : memref<256x128xf32, #tpu.memory_space<vmem>>, vector<256x128xf32>,
    %c0_63 = arith.constant 0 : index
    %c2_64 = arith.constant 2 : index
    %c0_65 = arith.constant 0 : index
    %c0_66 = arith.constant 0 : index
    %52 = vector.load %arg1[%c0_63, %c2_64, %c0_65, %c0_66] : memref<1x18x18x8xf32, #tpu.memory_space<vmem>>, vector<1x16x16x8xf32>
    %53 = vector.shape_cast %52 : vector<1x16x16x8xf32> to vector<16x16x8xf32>
    %54 = vector.shape_cast %53 : vector<16x16x8xf32> to vector<256x8xf32>
    %c6 = arith.constant 6 : index
    %c0_67 = arith.constant 0 : index
    %c0_68 = arith.constant 0 : index
    %55 = vector.load %arg3[%c6, %c0_67, %c0_68] : memref<9x8x128xf32, #tpu.memory_space<vmem>>, vector<1x8x128xf32>
    %56 = vector.shape_cast %55 : vector<1x8x128xf32> to vector<8x128xf32>
    %cst_69 = arith.constant dense<0.000000e+00> : vector<256x128xf32>
    %57 = tpu.matmul %54, %56, %cst_69 {dimension_numbers = #tpu.dot_dimension_numbers<[1], [0], [0], [1], [0, 0, 1, 1], [], []>} : vector<256x8xf32>, vector<8x128xf32>, vector<256x128xf32> -> vector<256x128xf32>
    %c0_70 = arith.constant 0 : index
    %c0_71 = arith.constant 0 : index
    %58 = vector.load %arg12[%c0_70, %c0_71] : memref<256x128xf32, #tpu.memory_space<vmem>>, vector<256x128xf32>
    %59 = arith.addf %58, %57 : vector<256x128xf32>
    %c0_72 = arith.constant 0 : index
    %c0_73 = arith.constant 0 : index
    %60 = vector.load %arg12[%c0_72, %c0_73] : memref<256x128xf32, #tpu.memory_space<vmem>>, vector<256x128xf32>
    tpu.vector_store %arg12[%c0_72, %c0_73], %59 {strides = array<i32>} : memref<256x128xf32, #tpu.memory_space<vmem>>, vector<256x128xf32>,
    %c0_74 = arith.constant 0 : index
    %c2_75 = arith.constant 2 : index
    %c1_76 = arith.constant 1 : index
    %c0_77 = arith.constant 0 : index
    %61 = vector.load %arg1[%c0_74, %c2_75, %c1_76, %c0_77] : memref<1x18x18x8xf32, #tpu.memory_space<vmem>>, vector<1x16x16x8xf32>
    %62 = vector.shape_cast %61 : vector<1x16x16x8xf32> to vector<16x16x8xf32>
    %63 = vector.shape_cast %62 : vector<16x16x8xf32> to vector<256x8xf32>
    %c7 = arith.constant 7 : index
    %c0_78 = arith.constant 0 : index
    %c0_79 = arith.constant 0 : index
    %64 = vector.load %arg3[%c7, %c0_78, %c0_79] : memref<9x8x128xf32, #tpu.memory_space<vmem>>, vector<1x8x128xf32>
    %65 = vector.shape_cast %64 : vector<1x8x128xf32> to vector<8x128xf32>
    %cst_80 = arith.constant dense<0.000000e+00> : vector<256x128xf32>
    %66 = tpu.matmul %63, %65, %cst_80 {dimension_numbers = #tpu.dot_dimension_numbers<[1], [0], [0], [1], [0, 0, 1, 1], [], []>} : vector<256x8xf32>, vector<8x128xf32>, vector<256x128xf32> -> vector<256x128xf32>
    %c0_81 = arith.constant 0 : index
    %c0_82 = arith.constant 0 : index
    %67 = vector.load %arg12[%c0_81, %c0_82] : memref<256x128xf32, #tpu.memory_space<vmem>>, vector<256x128xf32>
    %68 = arith.addf %67, %66 : vector<256x128xf32>
    %c0_83 = arith.constant 0 : index
    %c0_84 = arith.constant 0 : index
    %69 = vector.load %arg12[%c0_83, %c0_84] : memref<256x128xf32, #tpu.memory_space<vmem>>, vector<256x128xf32>
    tpu.vector_store %arg12[%c0_83, %c0_84], %68 {strides = array<i32>} : memref<256x128xf32, #tpu.memory_space<vmem>>, vector<256x128xf32>,
    %c0_85 = arith.constant 0 : index
    %c2_86 = arith.constant 2 : index
    %c2_87 = arith.constant 2 : index
    %c0_88 = arith.constant 0 : index
    %70 = vector.load %arg1[%c0_85, %c2_86, %c2_87, %c0_88] : memref<1x18x18x8xf32, #tpu.memory_space<vmem>>, vector<1x16x16x8xf32>
    %71 = vector.shape_cast %70 : vector<1x16x16x8xf32> to vector<16x16x8xf32>
    %72 = vector.shape_cast %71 : vector<16x16x8xf32> to vector<256x8xf32>
    %c8 = arith.constant 8 : index
    %c0_89 = arith.constant 0 : index
    %c0_90 = arith.constant 0 : index
    %73 = vector.load %arg3[%c8, %c0_89, %c0_90] : memref<9x8x128xf32, #tpu.memory_space<vmem>>, vector<1x8x128xf32>
    %74 = vector.shape_cast %73 : vector<1x8x128xf32> to vector<8x128xf32>
    %cst_91 = arith.constant dense<0.000000e+00> : vector<256x128xf32>
    %75 = tpu.matmul %72, %74, %cst_91 {dimension_numbers = #tpu.dot_dimension_numbers<[1], [0], [0], [1], [0, 0, 1, 1], [], []>} : vector<256x8xf32>, vector<8x128xf32>, vector<256x128xf32> -> vector<256x128xf32>
    %c0_92 = arith.constant 0 : index
    %c0_93 = arith.constant 0 : index
    %76 = vector.load %arg12[%c0_92, %c0_93] : memref<256x128xf32, #tpu.memory_space<vmem>>, vector<256x128xf32>
    %77 = arith.addf %76, %75 : vector<256x128xf32>
    %c0_94 = arith.constant 0 : index
    %c0_95 = arith.constant 0 : index
    %78 = vector.load %arg12[%c0_94, %c0_95] : memref<256x128xf32, #tpu.memory_space<vmem>>, vector<256x128xf32>
    tpu.vector_store %arg12[%c0_94, %c0_95], %77 {strides = array<i32>} : memref<256x128xf32, #tpu.memory_space<vmem>>, vector<256x128xf32>,
    %c0_96 = arith.constant 0 : index
    %c0_97 = arith.constant 0 : index
    %79 = vector.load %arg12[%c0_96, %c0_97] : memref<256x128xf32, #tpu.memory_space<vmem>>, vector<256x128xf32>
    %c0_98 = arith.constant 0 : index
    %c0_99 = arith.constant 0 : index
    %80 = vector.load %arg4[%c0_98, %c0_99] : memref<1x128xf32, #tpu.memory_space<vmem>>, vector<1x128xf32>
    %81 = vector.broadcast %80 : vector<1x128xf32> to vector<256x128xf32>
    %82 = arith.addf %79, %81 : vector<256x128xf32>
    %cst_100 = arith.constant 0.000000e+00 : f32
    %83 = vector.broadcast %cst_100 : f32 to vector<256x128xf32>
    %84 = arith.maximumf %82, %83 : vector<256x128xf32>
    %c0_101 = arith.constant 0 : index
    %c0_102 = arith.constant 0 : index
    %c0_103 = arith.constant 0 : index
    %85 = vector.load %arg2[%c0_101, %c0_102, %c0_103] : memref<1x1x8xf32, #tpu.memory_space<vmem>>, vector<1x1x8xf32>
    %86 = vector.shape_cast %85 : vector<1x1x8xf32> to vector<1x8xf32>
    %c0_104 = arith.constant 0 : index
    %c0_105 = arith.constant 0 : index
    %87 = vector.load %arg5[%c0_104, %c0_105] : memref<8x128xf32, #tpu.memory_space<vmem>>, vector<8x128xf32>
    %cst_106 = arith.constant dense<0.000000e+00> : vector<1x128xf32>
    %88 = tpu.matmul %86, %87, %cst_106 {dimension_numbers = #tpu.dot_dimension_numbers<[1], [0], [0], [1], [0, 0, 1, 1], [], []>} : vector<1x8xf32>, vector<8x128xf32>, vector<1x128xf32> -> vector<1x128xf32>
    %c0_107 = arith.constant 0 : index
    %c0_108 = arith.constant 0 : index
    %89 = vector.load %arg6[%c0_107, %c0_108] : memref<1x128xf32, #tpu.memory_space<vmem>>, vector<1x128xf32>
    %90 = arith.addf %88, %89 : vector<1x128xf32>
    %cst_109 = arith.constant 0.000000e+00 : f32
    %91 = vector.broadcast %cst_109 : f32 to vector<1x128xf32>
    %92 = arith.maximumf %90, %91 : vector<1x128xf32>
    %93 = vector.broadcast %92 : vector<1x128xf32> to vector<256x128xf32>
    %94 = arith.mulf %84, %93 : vector<256x128xf32>
    %cst_110 = arith.constant 0.000000e+00 : f32
    %95 = vector.broadcast %cst_110 : f32 to vector<18x18x128xf32>
    %c0_111 = arith.constant 0 : index
    %c0_112 = arith.constant 0 : index
    %c0_113 = arith.constant 0 : index
    %96 = vector.load %arg13[%c0_111, %c0_112, %c0_113] : memref<18x18x128xf32, #tpu.memory_space<vmem>>, vector<18x18x128xf32>
    tpu.vector_store %arg13[%c0_111, %c0_112, %c0_113], %95 {strides = array<i32>} : memref<18x18x128xf32, #tpu.memory_space<vmem>>, vector<18x18x128xf32>,
    %97 = vector.shape_cast %94 : vector<256x128xf32> to vector<16x16x128xf32>
    %c1_114 = arith.constant 1 : index
    %c1_115 = arith.constant 1 : index
    %c0_116 = arith.constant 0 : index
    %98 = vector.load %arg13[%c1_114, %c1_115, %c0_116] : memref<18x18x128xf32, #tpu.memory_space<vmem>>, vector<16x16x128xf32>
    tpu.vector_store %arg13[%c1_114, %c1_115, %c0_116], %97 {strides = array<i32>} : memref<18x18x128xf32, #tpu.memory_space<vmem>>, vector<16x16x128xf32>,
    %c0_117 = arith.constant 0 : index
    %c0_118 = arith.constant 0 : index
    %c0_119 = arith.constant 0 : index
    %99 = vector.load %arg13[%c0_117, %c0_118, %c0_119] : memref<18x18x128xf32, #tpu.memory_space<vmem>>, vector<16x16x128xf32>
    %100 = vector.shape_cast %99 : vector<16x16x128xf32> to vector<256x128xf32>
    %c0_120 = arith.constant 0 : index
    %c0_121 = arith.constant 0 : index
    %c0_122 = arith.constant 0 : index
    %101 = vector.load %arg7[%c0_120, %c0_121, %c0_122] : memref<9x128x128xf32, #tpu.memory_space<vmem>>, vector<1x128x128xf32>
    %102 = vector.shape_cast %101 : vector<1x128x128xf32> to vector<128x128xf32>
    %cst_123 = arith.constant dense<0.000000e+00> : vector<256x128xf32>
    %103 = tpu.matmul %100, %102, %cst_123 {dimension_numbers = #tpu.dot_dimension_numbers<[1], [0], [0], [1], [0, 0, 1, 1], [], []>} : vector<256x128xf32>, vector<128x128xf32>, vector<256x128xf32> -> vector<256x128xf32>
    %c0_124 = arith.constant 0 : index
    %c0_125 = arith.constant 0 : index
    %104 = vector.load %arg12[%c0_124, %c0_125] : memref<256x128xf32, #tpu.memory_space<vmem>>, vector<256x128xf32>
    tpu.vector_store %arg12[%c0_124, %c0_125], %103 {strides = array<i32>} : memref<256x128xf32, #tpu.memory_space<vmem>>, vector<256x128xf32>,
    %c0_126 = arith.constant 0 : index
    %c1_127 = arith.constant 1 : index
    %c0_128 = arith.constant 0 : index
    %105 = vector.load %arg13[%c0_126, %c1_127, %c0_128] : memref<18x18x128xf32, #tpu.memory_space<vmem>>, vector<16x16x128xf32>
    %106 = vector.shape_cast %105 : vector<16x16x128xf32> to vector<256x128xf32>
    %c1_129 = arith.constant 1 : index
    %c0_130 = arith.constant 0 : index
    %c0_131 = arith.constant 0 : index
    %107 = vector.load %arg7[%c1_129, %c0_130, %c0_131] : memref<9x128x128xf32, #tpu.memory_space<vmem>>, vector<1x128x128xf32>
    %108 = vector.shape_cast %107 : vector<1x128x128xf32> to vector<128x128xf32>
    %cst_132 = arith.constant dense<0.000000e+00> : vector<256x128xf32>
    %109 = tpu.matmul %106, %108, %cst_132 {dimension_numbers = #tpu.dot_dimension_numbers<[1], [0], [0], [1], [0, 0, 1, 1], [], []>} : vector<256x128xf32>, vector<128x128xf32>, vector<256x128xf32> -> vector<256x128xf32>
    %c0_133 = arith.constant 0 : index
    %c0_134 = arith.constant 0 : index
    %110 = vector.load %arg12[%c0_133, %c0_134] : memref<256x128xf32, #tpu.memory_space<vmem>>, vector<256x128xf32>
    %111 = arith.addf %110, %109 : vector<256x128xf32>
    %c0_135 = arith.constant 0 : index
    %c0_136 = arith.constant 0 : index
    %112 = vector.load %arg12[%c0_135, %c0_136] : memref<256x128xf32, #tpu.memory_space<vmem>>, vector<256x128xf32>
    tpu.vector_store %arg12[%c0_135, %c0_136], %111 {strides = array<i32>} : memref<256x128xf32, #tpu.memory_space<vmem>>, vector<256x128xf32>,
    %c0_137 = arith.constant 0 : index
    %c2_138 = arith.constant 2 : index
    %c0_139 = arith.constant 0 : index
    %113 = vector.load %arg13[%c0_137, %c2_138, %c0_139] : memref<18x18x128xf32, #tpu.memory_space<vmem>>, vector<16x16x128xf32>
    %114 = vector.shape_cast %113 : vector<16x16x128xf32> to vector<256x128xf32>
    %c2_140 = arith.constant 2 : index
    %c0_141 = arith.constant 0 : index
    %c0_142 = arith.constant 0 : index
    %115 = vector.load %arg7[%c2_140, %c0_141, %c0_142] : memref<9x128x128xf32, #tpu.memory_space<vmem>>, vector<1x128x128xf32>
    %116 = vector.shape_cast %115 : vector<1x128x128xf32> to vector<128x128xf32>
    %cst_143 = arith.constant dense<0.000000e+00> : vector<256x128xf32>
    %117 = tpu.matmul %114, %116, %cst_143 {dimension_numbers = #tpu.dot_dimension_numbers<[1], [0], [0], [1], [0, 0, 1, 1], [], []>} : vector<256x128xf32>, vector<128x128xf32>, vector<256x128xf32> -> vector<256x128xf32>
    %c0_144 = arith.constant 0 : index
    %c0_145 = arith.constant 0 : index
    %118 = vector.load %arg12[%c0_144, %c0_145] : memref<256x128xf32, #tpu.memory_space<vmem>>, vector<256x128xf32>
    %119 = arith.addf %118, %117 : vector<256x128xf32>
    %c0_146 = arith.constant 0 : index
    %c0_147 = arith.constant 0 : index
    %120 = vector.load %arg12[%c0_146, %c0_147] : memref<256x128xf32, #tpu.memory_space<vmem>>, vector<256x128xf32>
    tpu.vector_store %arg12[%c0_146, %c0_147], %119 {strides = array<i32>} : memref<256x128xf32, #tpu.memory_space<vmem>>, vector<256x128xf32>,
    %c1_148 = arith.constant 1 : index
    %c0_149 = arith.constant 0 : index
    %c0_150 = arith.constant 0 : index
    %121 = vector.load %arg13[%c1_148, %c0_149, %c0_150] : memref<18x18x128xf32, #tpu.memory_space<vmem>>, vector<16x16x128xf32>
    %122 = vector.shape_cast %121 : vector<16x16x128xf32> to vector<256x128xf32>
    %c3_151 = arith.constant 3 : index
    %c0_152 = arith.constant 0 : index
    %c0_153 = arith.constant 0 : index
    %123 = vector.load %arg7[%c3_151, %c0_152, %c0_153] : memref<9x128x128xf32, #tpu.memory_space<vmem>>, vector<1x128x128xf32>
    %124 = vector.shape_cast %123 : vector<1x128x128xf32> to vector<128x128xf32>
    %cst_154 = arith.constant dense<0.000000e+00> : vector<256x128xf32>
    %125 = tpu.matmul %122, %124, %cst_154 {dimension_numbers = #tpu.dot_dimension_numbers<[1], [0], [0], [1], [0, 0, 1, 1], [], []>} : vector<256x128xf32>, vector<128x128xf32>, vector<256x128xf32> -> vector<256x128xf32>
    %c0_155 = arith.constant 0 : index
    %c0_156 = arith.constant 0 : index
    %126 = vector.load %arg12[%c0_155, %c0_156] : memref<256x128xf32, #tpu.memory_space<vmem>>, vector<256x128xf32>
    %127 = arith.addf %126, %125 : vector<256x128xf32>
    %c0_157 = arith.constant 0 : index
    %c0_158 = arith.constant 0 : index
    %128 = vector.load %arg12[%c0_157, %c0_158] : memref<256x128xf32, #tpu.memory_space<vmem>>, vector<256x128xf32>
    tpu.vector_store %arg12[%c0_157, %c0_158], %127 {strides = array<i32>} : memref<256x128xf32, #tpu.memory_space<vmem>>, vector<256x128xf32>,
    %c1_159 = arith.constant 1 : index
    %c1_160 = arith.constant 1 : index
    %c0_161 = arith.constant 0 : index
    %129 = vector.load %arg13[%c1_159, %c1_160, %c0_161] : memref<18x18x128xf32, #tpu.memory_space<vmem>>, vector<16x16x128xf32>
    %130 = vector.shape_cast %129 : vector<16x16x128xf32> to vector<256x128xf32>
    %c4_162 = arith.constant 4 : index
    %c0_163 = arith.constant 0 : index
    %c0_164 = arith.constant 0 : index
    %131 = vector.load %arg7[%c4_162, %c0_163, %c0_164] : memref<9x128x128xf32, #tpu.memory_space<vmem>>, vector<1x128x128xf32>
    %132 = vector.shape_cast %131 : vector<1x128x128xf32> to vector<128x128xf32>
    %cst_165 = arith.constant dense<0.000000e+00> : vector<256x128xf32>
    %133 = tpu.matmul %130, %132, %cst_165 {dimension_numbers = #tpu.dot_dimension_numbers<[1], [0], [0], [1], [0, 0, 1, 1], [], []>} : vector<256x128xf32>, vector<128x128xf32>, vector<256x128xf32> -> vector<256x128xf32>
    %c0_166 = arith.constant 0 : index
    %c0_167 = arith.constant 0 : index
    %134 = vector.load %arg12[%c0_166, %c0_167] : memref<256x128xf32, #tpu.memory_space<vmem>>, vector<256x128xf32>
    %135 = arith.addf %134, %133 : vector<256x128xf32>
    %c0_168 = arith.constant 0 : index
    %c0_169 = arith.constant 0 : index
    %136 = vector.load %arg12[%c0_168, %c0_169] : memref<256x128xf32, #tpu.memory_space<vmem>>, vector<256x128xf32>
    tpu.vector_store %arg12[%c0_168, %c0_169], %135 {strides = array<i32>} : memref<256x128xf32, #tpu.memory_space<vmem>>, vector<256x128xf32>,
    %c1_170 = arith.constant 1 : index
    %c2_171 = arith.constant 2 : index
    %c0_172 = arith.constant 0 : index
    %137 = vector.load %arg13[%c1_170, %c2_171, %c0_172] : memref<18x18x128xf32, #tpu.memory_space<vmem>>, vector<16x16x128xf32>
    %138 = vector.shape_cast %137 : vector<16x16x128xf32> to vector<256x128xf32>
    %c5_173 = arith.constant 5 : index
    %c0_174 = arith.constant 0 : index
    %c0_175 = arith.constant 0 : index
    %139 = vector.load %arg7[%c5_173, %c0_174, %c0_175] : memref<9x128x128xf32, #tpu.memory_space<vmem>>, vector<1x128x128xf32>
    %140 = vector.shape_cast %139 : vector<1x128x128xf32> to vector<128x128xf32>
    %cst_176 = arith.constant dense<0.000000e+00> : vector<256x128xf32>
    %141 = tpu.matmul %138, %140, %cst_176 {dimension_numbers = #tpu.dot_dimension_numbers<[1], [0], [0], [1], [0, 0, 1, 1], [], []>} : vector<256x128xf32>, vector<128x128xf32>, vector<256x128xf32> -> vector<256x128xf32>
    %c0_177 = arith.constant 0 : index
    %c0_178 = arith.constant 0 : index
    %142 = vector.load %arg12[%c0_177, %c0_178] : memref<256x128xf32, #tpu.memory_space<vmem>>, vector<256x128xf32>
    %143 = arith.addf %142, %141 : vector<256x128xf32>
    %c0_179 = arith.constant 0 : index
    %c0_180 = arith.constant 0 : index
    %144 = vector.load %arg12[%c0_179, %c0_180] : memref<256x128xf32, #tpu.memory_space<vmem>>, vector<256x128xf32>
    tpu.vector_store %arg12[%c0_179, %c0_180], %143 {strides = array<i32>} : memref<256x128xf32, #tpu.memory_space<vmem>>, vector<256x128xf32>,
    %c2_181 = arith.constant 2 : index
    %c0_182 = arith.constant 0 : index
    %c0_183 = arith.constant 0 : index
    %145 = vector.load %arg13[%c2_181, %c0_182, %c0_183] : memref<18x18x128xf32, #tpu.memory_space<vmem>>, vector<16x16x128xf32>
    %146 = vector.shape_cast %145 : vector<16x16x128xf32> to vector<256x128xf32>
    %c6_184 = arith.constant 6 : index
    %c0_185 = arith.constant 0 : index
    %c0_186 = arith.constant 0 : index
    %147 = vector.load %arg7[%c6_184, %c0_185, %c0_186] : memref<9x128x128xf32, #tpu.memory_space<vmem>>, vector<1x128x128xf32>
    %148 = vector.shape_cast %147 : vector<1x128x128xf32> to vector<128x128xf32>
    %cst_187 = arith.constant dense<0.000000e+00> : vector<256x128xf32>
    %149 = tpu.matmul %146, %148, %cst_187 {dimension_numbers = #tpu.dot_dimension_numbers<[1], [0], [0], [1], [0, 0, 1, 1], [], []>} : vector<256x128xf32>, vector<128x128xf32>, vector<256x128xf32> -> vector<256x128xf32>
    %c0_188 = arith.constant 0 : index
    %c0_189 = arith.constant 0 : index
    %150 = vector.load %arg12[%c0_188, %c0_189] : memref<256x128xf32, #tpu.memory_space<vmem>>, vector<256x128xf32>
    %151 = arith.addf %150, %149 : vector<256x128xf32>
    %c0_190 = arith.constant 0 : index
    %c0_191 = arith.constant 0 : index
    %152 = vector.load %arg12[%c0_190, %c0_191] : memref<256x128xf32, #tpu.memory_space<vmem>>, vector<256x128xf32>
    tpu.vector_store %arg12[%c0_190, %c0_191], %151 {strides = array<i32>} : memref<256x128xf32, #tpu.memory_space<vmem>>, vector<256x128xf32>,
    %c2_192 = arith.constant 2 : index
    %c1_193 = arith.constant 1 : index
    %c0_194 = arith.constant 0 : index
    %153 = vector.load %arg13[%c2_192, %c1_193, %c0_194] : memref<18x18x128xf32, #tpu.memory_space<vmem>>, vector<16x16x128xf32>
    %154 = vector.shape_cast %153 : vector<16x16x128xf32> to vector<256x128xf32>
    %c7_195 = arith.constant 7 : index
    %c0_196 = arith.constant 0 : index
    %c0_197 = arith.constant 0 : index
    %155 = vector.load %arg7[%c7_195, %c0_196, %c0_197] : memref<9x128x128xf32, #tpu.memory_space<vmem>>, vector<1x128x128xf32>
    %156 = vector.shape_cast %155 : vector<1x128x128xf32> to vector<128x128xf32>
    %cst_198 = arith.constant dense<0.000000e+00> : vector<256x128xf32>
    %157 = tpu.matmul %154, %156, %cst_198 {dimension_numbers = #tpu.dot_dimension_numbers<[1], [0], [0], [1], [0, 0, 1, 1], [], []>} : vector<256x128xf32>, vector<128x128xf32>, vector<256x128xf32> -> vector<256x128xf32>
    %c0_199 = arith.constant 0 : index
    %c0_200 = arith.constant 0 : index
    %158 = vector.load %arg12[%c0_199, %c0_200] : memref<256x128xf32, #tpu.memory_space<vmem>>, vector<256x128xf32>
    %159 = arith.addf %158, %157 : vector<256x128xf32>
    %c0_201 = arith.constant 0 : index
    %c0_202 = arith.constant 0 : index
    %160 = vector.load %arg12[%c0_201, %c0_202] : memref<256x128xf32, #tpu.memory_space<vmem>>, vector<256x128xf32>
    tpu.vector_store %arg12[%c0_201, %c0_202], %159 {strides = array<i32>} : memref<256x128xf32, #tpu.memory_space<vmem>>, vector<256x128xf32>,
    %c2_203 = arith.constant 2 : index
    %c2_204 = arith.constant 2 : index
    %c0_205 = arith.constant 0 : index
    %161 = vector.load %arg13[%c2_203, %c2_204, %c0_205] : memref<18x18x128xf32, #tpu.memory_space<vmem>>, vector<16x16x128xf32>
    %162 = vector.shape_cast %161 : vector<16x16x128xf32> to vector<256x128xf32>
    %c8_206 = arith.constant 8 : index
    %c0_207 = arith.constant 0 : index
    %c0_208 = arith.constant 0 : index
    %163 = vector.load %arg7[%c8_206, %c0_207, %c0_208] : memref<9x128x128xf32, #tpu.memory_space<vmem>>, vector<1x128x128xf32>
    %164 = vector.shape_cast %163 : vector<1x128x128xf32> to vector<128x128xf32>
    %cst_209 = arith.constant dense<0.000000e+00> : vector<256x128xf32>
    %165 = tpu.matmul %162, %164, %cst_209 {dimension_numbers = #tpu.dot_dimension_numbers<[1], [0], [0], [1], [0, 0, 1, 1], [], []>} : vector<256x128xf32>, vector<128x128xf32>, vector<256x128xf32> -> vector<256x128xf32>
    %c0_210 = arith.constant 0 : index
    %c0_211 = arith.constant 0 : index
    %166 = vector.load %arg12[%c0_210, %c0_211] : memref<256x128xf32, #tpu.memory_space<vmem>>, vector<256x128xf32>
    %167 = arith.addf %166, %165 : vector<256x128xf32>
    %c0_212 = arith.constant 0 : index
    %c0_213 = arith.constant 0 : index
    %168 = vector.load %arg12[%c0_212, %c0_213] : memref<256x128xf32, #tpu.memory_space<vmem>>, vector<256x128xf32>
    tpu.vector_store %arg12[%c0_212, %c0_213], %167 {strides = array<i32>} : memref<256x128xf32, #tpu.memory_space<vmem>>, vector<256x128xf32>,
    %c0_214 = arith.constant 0 : index
    %c0_215 = arith.constant 0 : index
    %169 = vector.load %arg12[%c0_214, %c0_215] : memref<256x128xf32, #tpu.memory_space<vmem>>, vector<256x128xf32>
    %c0_216 = arith.constant 0 : index
    %c0_217 = arith.constant 0 : index
    %170 = vector.load %arg8[%c0_216, %c0_217] : memref<1x128xf32, #tpu.memory_space<vmem>>, vector<1x128xf32>
    %171 = vector.broadcast %170 : vector<1x128xf32> to vector<256x128xf32>
    %172 = arith.addf %169, %171 : vector<256x128xf32>
    %173 = arith.addf %172, %94 : vector<256x128xf32>
    %c0_218 = arith.constant 0 : index
    %c0_219 = arith.constant 0 : index
    %174 = vector.load %arg9[%c0_218, %c0_219] : memref<256x128xf32, #tpu.memory_space<vmem>>, vector<256x128xf32>
    tpu.vector_store %arg9[%c0_218, %c0_219], %173 {strides = array<i32>} : memref<256x128xf32, #tpu.memory_space<vmem>>, vector<256x128xf32>,
    %cst_220 = arith.constant dense<0.000000e+00> : vector<128xf32>
    %175 = vector.multi_reduction <add>, %173, %cst_220 [0] : vector<256x128xf32> to vector<128xf32>
    %176 = vector.shape_cast %175 : vector<128xf32> to vector<1x128xf32>
    %c0_221 = arith.constant 0 : index
    %c0_222 = arith.constant 0 : index
    %c0_223 = arith.constant 0 : index
    %177 = vector.load %arg10[%c0_221, %c0_222, %c0_223] : memref<1x1x128xf32, #tpu.memory_space<vmem>>, vector<1x1x128xf32>
    %178 = vector.shape_cast %177 : vector<1x1x128xf32> to vector<1x128xf32>
    %179 = vector.shape_cast %176 : vector<1x128xf32> to vector<1x1x128xf32>
    tpu.vector_store %arg10[%c0_221, %c0_222, %c0_223], %179 {strides = array<i32>} : memref<1x1x128xf32, #tpu.memory_space<vmem>>, vector<1x1x128xf32>,
    %180 = arith.mulf %173, %173 : vector<256x128xf32>
    %cst_224 = arith.constant dense<0.000000e+00> : vector<128xf32>
    %181 = vector.multi_reduction <add>, %180, %cst_224 [0] : vector<256x128xf32> to vector<128xf32>
    %182 = vector.shape_cast %181 : vector<128xf32> to vector<1x128xf32>
    %c0_225 = arith.constant 0 : index
    %c0_226 = arith.constant 0 : index
    %c0_227 = arith.constant 0 : index
    %183 = vector.load %arg11[%c0_225, %c0_226, %c0_227] : memref<1x1x128xf32, #tpu.memory_space<vmem>>, vector<1x1x128xf32>
    %184 = vector.shape_cast %183 : vector<1x1x128xf32> to vector<1x128xf32>
    %185 = vector.shape_cast %182 : vector<1x128xf32> to vector<1x1x128xf32>
    tpu.vector_store %arg11[%c0_225, %c0_226, %c0_227], %185 {strides = array<i32>} : memref<1x1x128xf32, #tpu.memory_space<vmem>>, vector<1x1x128xf32>,
    return
  }
  func.func @transform_0(%arg0: i32) -> (i32, i32, i32, i32) {
    %c0_i32 = arith.constant 0 : i32
    %c0_i32_0 = arith.constant 0 : i32
    %c0_i32_1 = arith.constant 0 : i32
    %c0_i32_2 = arith.constant 0 : i32
    return %arg0, %c0_i32, %c0_i32_0, %c0_i32_1 : i32, i32, i32, i32
  }
  func.func @transform_1(%arg0: i32) -> (i32, i32, i32) {
    %c0_i32 = arith.constant 0 : i32
    %c0_i32_0 = arith.constant 0 : i32
    %c0_i32_1 = arith.constant 0 : i32
    return %arg0, %c0_i32, %c0_i32_0 : i32, i32, i32
  }
  func.func @transform_2(%arg0: i32) -> (i32, i32, i32) {
    %c0_i32 = arith.constant 0 : i32
    %c0_i32_0 = arith.constant 0 : i32
    %c0_i32_1 = arith.constant 0 : i32
    %c0_i32_2 = arith.constant 0 : i32
    return %c0_i32, %c0_i32_0, %c0_i32_1 : i32, i32, i32
  }
  func.func @transform_3(%arg0: i32) -> (i32, i32) {
    %c0_i32 = arith.constant 0 : i32
    %c0_i32_0 = arith.constant 0 : i32
    %c0_i32_1 = arith.constant 0 : i32
    return %c0_i32, %c0_i32_0 : i32, i32
  }
  func.func @transform_4(%arg0: i32) -> (i32, i32) {
    %c0_i32 = arith.constant 0 : i32
    %c0_i32_0 = arith.constant 0 : i32
    %c0_i32_1 = arith.constant 0 : i32
    return %c0_i32, %c0_i32_0 : i32, i32
  }
  func.func @transform_5(%arg0: i32) -> (i32, i32) {
    %c0_i32 = arith.constant 0 : i32
    %c0_i32_0 = arith.constant 0 : i32
    %c0_i32_1 = arith.constant 0 : i32
    return %c0_i32, %c0_i32_0 : i32, i32
  }
  func.func @transform_6(%arg0: i32) -> (i32, i32, i32) {
    %c0_i32 = arith.constant 0 : i32
    %c0_i32_0 = arith.constant 0 : i32
    %c0_i32_1 = arith.constant 0 : i32
    %c0_i32_2 = arith.constant 0 : i32
    return %c0_i32, %c0_i32_0, %c0_i32_1 : i32, i32, i32
  }
  func.func @transform_7(%arg0: i32) -> (i32, i32) {
    %c0_i32 = arith.constant 0 : i32
    %c0_i32_0 = arith.constant 0 : i32
    %c0_i32_1 = arith.constant 0 : i32
    return %c0_i32, %c0_i32_0 : i32, i32
  }
  func.func @transform_8(%arg0: i32) -> (i32, i32) {
    %c0_i32 = arith.constant 0 : i32
    %c0_i32_0 = arith.constant 0 : i32
    return %arg0, %c0_i32 : i32, i32
  }
  func.func @transform_9(%arg0: i32) -> (i32, i32, i32) {
    %c0_i32 = arith.constant 0 : i32
    %c0_i32_0 = arith.constant 0 : i32
    %c0_i32_1 = arith.constant 0 : i32
    return %arg0, %c0_i32, %c0_i32_0 : i32, i32, i32
  }
  func.func @transform_10(%arg0: i32) -> (i32, i32, i32) {
    %c0_i32 = arith.constant 0 : i32
    %c0_i32_0 = arith.constant 0 : i32
    %c0_i32_1 = arith.constant 0 : i32
    return %arg0, %c0_i32, %c0_i32_0 : i32, i32, i32
  }
}

module attributes {stable_mosaic.version = 11 : i64} {
  func.func @kernel(%arg0: i32, %arg1: memref<512x128xf32, #tpu.memory_space<vmem>>, %arg2: memref<2x1x128xf32, #tpu.memory_space<vmem>>, %arg3: memref<2x1x128xf32, #tpu.memory_space<vmem>>, %arg4: memref<1x128xf32, #tpu.memory_space<vmem>>, %arg5: memref<1x128xf32, #tpu.memory_space<vmem>>, %arg6: memref<512x128xf32, #tpu.memory_space<vmem>>) attributes {dimension_semantics = [#tpu.dimension_semantics<parallel>], iteration_bounds = array<i64: 1>, scalar_prefetch = 0 : i64, scratch_operands = 0 : i64, tpu.core_type = #tpu.core_type<tc>, window_params = [{transform_indices = @transform_0, window_bounds = array<i64: 512, 128>}, {pipeline_mode = #tpu.pipeline_mode<synchronous>, transform_indices = @transform_1, window_bounds = array<i64: 2, 1, 128>}, {pipeline_mode = #tpu.pipeline_mode<synchronous>, transform_indices = @transform_2, window_bounds = array<i64: 2, 1, 128>}, {pipeline_mode = #tpu.pipeline_mode<synchronous>, transform_indices = @transform_3, window_bounds = array<i64: 1, 128>}, {pipeline_mode = #tpu.pipeline_mode<synchronous>, transform_indices = @transform_4, window_bounds = array<i64: 1, 128>}, {transform_indices = @transform_5, window_bounds = array<i64: 512, 128>}]} {
    %c0 = arith.constant 0 : index
    %c0_0 = arith.constant 0 : index
    %c0_1 = arith.constant 0 : index
    %0 = vector.load %arg2[%c0, %c0_0, %c0_1] : memref<2x1x128xf32, #tpu.memory_space<vmem>>, vector<2x1x128xf32>
    %cst = arith.constant dense<0.000000e+00> : vector<1x128xf32>
    %1 = vector.multi_reduction <add>, %0, %cst [0] : vector<2x1x128xf32> to vector<1x128xf32>
    %cst_2 = arith.constant 0.001953125 : f32
    %2 = vector.broadcast %cst_2 : f32 to vector<1x128xf32>
    %3 = arith.mulf %1, %2 : vector<1x128xf32>
    %c0_3 = arith.constant 0 : index
    %c0_4 = arith.constant 0 : index
    %c0_5 = arith.constant 0 : index
    %4 = vector.load %arg3[%c0_3, %c0_4, %c0_5] : memref<2x1x128xf32, #tpu.memory_space<vmem>>, vector<2x1x128xf32>
    %cst_6 = arith.constant dense<0.000000e+00> : vector<1x128xf32>
    %5 = vector.multi_reduction <add>, %4, %cst_6 [0] : vector<2x1x128xf32> to vector<1x128xf32>
    %cst_7 = arith.constant 0.001953125 : f32
    %6 = vector.broadcast %cst_7 : f32 to vector<1x128xf32>
    %7 = arith.mulf %5, %6 : vector<1x128xf32>
    %8 = arith.mulf %3, %3 : vector<1x128xf32>
    %9 = arith.subf %7, %8 : vector<1x128xf32>
    %cst_8 = arith.constant 9.99999974E-6 : f32
    %10 = vector.broadcast %cst_8 : f32 to vector<1x128xf32>
    %11 = arith.addf %9, %10 : vector<1x128xf32>
    %12 = math.rsqrt %11 : vector<1x128xf32>
    %c0_9 = arith.constant 0 : index
    %c0_10 = arith.constant 0 : index
    %13 = vector.load %arg4[%c0_9, %c0_10] : memref<1x128xf32, #tpu.memory_space<vmem>>, vector<1x128xf32>
    %14 = arith.mulf %13, %12 : vector<1x128xf32>
    %c0_11 = arith.constant 0 : index
    %c0_12 = arith.constant 0 : index
    %15 = vector.load %arg5[%c0_11, %c0_12] : memref<1x128xf32, #tpu.memory_space<vmem>>, vector<1x128xf32>
    %16 = arith.mulf %3, %14 : vector<1x128xf32>
    %17 = arith.subf %15, %16 : vector<1x128xf32>
    %c0_13 = arith.constant 0 : index
    %c0_14 = arith.constant 0 : index
    %18 = vector.load %arg1[%c0_13, %c0_14] : memref<512x128xf32, #tpu.memory_space<vmem>>, vector<512x128xf32>
    %19 = vector.broadcast %14 : vector<1x128xf32> to vector<512x128xf32>
    %20 = arith.mulf %18, %19 : vector<512x128xf32>
    %21 = vector.broadcast %17 : vector<1x128xf32> to vector<512x128xf32>
    %22 = arith.addf %20, %21 : vector<512x128xf32>
    %cst_15 = arith.constant 0.000000e+00 : f32
    %23 = vector.broadcast %cst_15 : f32 to vector<512x128xf32>
    %24 = arith.maximumf %22, %23 : vector<512x128xf32>
    %c0_16 = arith.constant 0 : index
    %c0_17 = arith.constant 0 : index
    %25 = vector.load %arg6[%c0_16, %c0_17] : memref<512x128xf32, #tpu.memory_space<vmem>>, vector<512x128xf32>
    tpu.vector_store %arg6[%c0_16, %c0_17], %24 {strides = array<i32>} : memref<512x128xf32, #tpu.memory_space<vmem>>, vector<512x128xf32>,
    return
  }
  func.func @transform_0(%arg0: i32) -> (i32, i32) {
    %c0_i32 = arith.constant 0 : i32
    %c0_i32_0 = arith.constant 0 : i32
    return %arg0, %c0_i32 : i32, i32
  }
  func.func @transform_1(%arg0: i32) -> (i32, i32, i32) {
    %c0_i32 = arith.constant 0 : i32
    %c0_i32_0 = arith.constant 0 : i32
    %c0_i32_1 = arith.constant 0 : i32
    %c0_i32_2 = arith.constant 0 : i32
    return %c0_i32, %c0_i32_0, %c0_i32_1 : i32, i32, i32
  }
  func.func @transform_2(%arg0: i32) -> (i32, i32, i32) {
    %c0_i32 = arith.constant 0 : i32
    %c0_i32_0 = arith.constant 0 : i32
    %c0_i32_1 = arith.constant 0 : i32
    %c0_i32_2 = arith.constant 0 : i32
    return %c0_i32, %c0_i32_0, %c0_i32_1 : i32, i32, i32
  }
  func.func @transform_3(%arg0: i32) -> (i32, i32) {
    %c0_i32 = arith.constant 0 : i32
    %c0_i32_0 = arith.constant 0 : i32
    %c0_i32_1 = arith.constant 0 : i32
    return %c0_i32, %c0_i32_0 : i32, i32
  }
  func.func @transform_4(%arg0: i32) -> (i32, i32) {
    %c0_i32 = arith.constant 0 : i32
    %c0_i32_0 = arith.constant 0 : i32
    %c0_i32_1 = arith.constant 0 : i32
    return %c0_i32, %c0_i32_0 : i32, i32
  }
  func.func @transform_5(%arg0: i32) -> (i32, i32) {
    %c0_i32 = arith.constant 0 : i32
    %c0_i32_0 = arith.constant 0 : i32
    return %arg0, %c0_i32 : i32, i32
  }
}

</mosaic_0001>

<llo_original>
// kernel: time_embedding_forward.3
$region0: #{time_embedding_forward.3}
  #allocation0 [shape = 'u32[]', space=smem, size = 0x4, offset = 0x4, fixed_abs, tag = 'smem constant byte address 0x4 - core index']
  #allocation1 [shape = 'u32[144,128]{1,0:T(1,128)}', space=vmem, size = 0x12000, scoped, tag = 'internal scratch']
  %s0 = inlined_call_operand.vmem [shape: f32[512,128], index: 0, kind: input, shape index: {}]
  %s1 = inlined_call_operand.vmem [shape: f32[2,1,128], index: 1, kind: input, shape index: {}]
  %s2 = inlined_call_operand.vmem [shape: f32[2,1,128], index: 2, kind: input, shape index: {}]
  %s3 = inlined_call_operand.vmem [shape: f32[1,128], index: 3, kind: input, shape index: {}]
  %s4 = inlined_call_operand.vmem [shape: f32[1,128], index: 4, kind: input, shape index: {}]
  %s5 = inlined_call_operand.vmem [shape: f32[512,128], index: 5, kind: output, shape index: {}]
  %s6 = sld [smem:[#allocation0]]
  $region30: #{time_embedding_forward.3} parent=0
    _
  %s8 = ssub.s32 1, %s6
  %s9 = scalar_select 0, %s8, %s6
  // Predicated region
  $region2: #{time_embedding_forward.3} parent=0 // pred_check
    _
  $region3: #{time_embedding_forward.3} parent=0 // pred_check_branch
    %11 = sbr.rel (0) target = $region5
  $region4: #{time_embedding_forward.3} parent=0 // pred_region
    _
  $region5: #{time_embedding_forward.3} parent=0 // pred_fallthru
    _
  // Predicated region
  $region6: #{time_embedding_forward.3} parent=0 // pred_check
    _
  $region7: #{time_embedding_forward.3} parent=0 // pred_check_branch
    %13 = sbr.rel (0) target = $region9
  $region8: #{time_embedding_forward.3} parent=0 // pred_region
    _
  $region9: #{time_embedding_forward.3} parent=0 // pred_fallthru
    _
  // Predicated region
  $region10: #{time_embedding_forward.3} parent=0 // pred_check
    _
  $region11: #{time_embedding_forward.3} parent=0 // pred_check_branch
    %15 = sbr.rel (0) target = $region13
  $region12: #{time_embedding_forward.3} parent=0 // pred_region
    _
  $region13: #{time_embedding_forward.3} parent=0 // pred_fallthru
    _
  // Predicated region
  $region14: #{time_embedding_forward.3} parent=0 // pred_check
    _
  $region15: #{time_embedding_forward.3} parent=0 // pred_check_branch
    %17 = sbr.rel (0) target = $region17
  $region16: #{time_embedding_forward.3} parent=0 // pred_region
    _
  $region17: #{time_embedding_forward.3} parent=0 // pred_fallthru
    _
  // Predicated region
  $region18: #{time_embedding_forward.3} parent=0 // pred_check
    _
  $region19: #{time_embedding_forward.3} parent=0 // pred_check_branch
    %19 = sbr.rel (0) target = $region21
  $region20: #{time_embedding_forward.3} parent=0 // pred_region
    _
  $region21: #{time_embedding_forward.3} parent=0 // pred_fallthru
    _
  %v20 = vld [vmem:[%s1] sm:$0x1]
  %v21 = vld [vmem:[%s1 + $0x1] sm:$0x1]
  %vm22 = vcmask 1040384
  %v23 = vsel %vm22, %v20, 0.0
  %v24 = vsel %vm22, %v21, 0.0
  %v25 = vadd.f32 %v23, %v24
  %v26 = vmul.f32 %v25, 0.001953125
  %v27 = vld [vmem:[%s2] sm:$0x1]
  %v28 = vld [vmem:[%s2 + $0x1] sm:$0x1]
  %v29 = vsel %vm22, %v27, 0.0
  %v30 = vsel %vm22, %v28, 0.0
  %v31 = vadd.f32 %v29, %v30
  %v32 = vmul.f32 %v31, 0.001953125
  %v33 = vmul.f32 %v26, %v26
  %v34 = vsub.f32 %v32, %v33
  %v35 = vadd.f32 %v34, 1e-05
  %v36 = vrsqrt.pop %v35
  %v37 = vld [vmem:[%s3] sm:$0x1]
  %v38 = vmul.f32 %v37, %v36
  %v39 = vld [vmem:[%s4] sm:$0x1]
  %v40 = vmul.f32 %v26, %v38
  %v41 = vsub.f32 %v39, %v40
  %v42 = vld [vmem:[%s0] sm:$0xff]
  %v43 = vld [vmem:[%s0 + $0x8] sm:$0xff]
  %v44 = vld [vmem:[%s0 + $0x10] sm:$0xff]
  %v45 = vld [vmem:[%s0 + $0x18] sm:$0xff]
  %v46 = vld [vmem:[%s0 + $0x20] sm:$0xff]
  %v47 = vld [vmem:[%s0 + $0x28] sm:$0xff]
  %v48 = vld [vmem:[%s0 + $0x30] sm:$0xff]
  %v49 = vld [vmem:[%s0 + $0x38] sm:$0xff]
  %v50 = vld [vmem:[%s0 + $0x40] sm:$0xff]
  %v51 = vld [vmem:[%s0 + $0x48] sm:$0xff]
  %v52 = vld [vmem:[%s0 + $0x50] sm:$0xff]
  %v53 = vld [vmem:[%s0 + $0x58] sm:$0xff]
  %v54 = vld [vmem:[%s0 + $0x60] sm:$0xff]
  %v55 = vld [vmem:[%s0 + $0x68] sm:$0xff]
  %v56 = vld [vmem:[%s0 + $0x70] sm:$0xff]
  %v57 = vld [vmem:[%s0 + $0x78] sm:$0xff]
  %v58 = vld [vmem:[%s0 + $0x80] sm:$0xff]
  %v59 = vld [vmem:[%s0 + $0x88] sm:$0xff]
  %v60 = vld [vmem:[%s0 + $0x90] sm:$0xff]
  %v61 = vld [vmem:[%s0 + $0x98] sm:$0xff]
  %v62 = vld [vmem:[%s0 + $0xa0] sm:$0xff]
  %v63 = vld [vmem:[%s0 + $0xa8] sm:$0xff]
  %v64 = vld [vmem:[%s0 + $0xb0] sm:$0xff]
  %v65 = vld [vmem:[%s0 + $0xb8] sm:$0xff]
  %v66 = vld [vmem:[%s0 + $0xc0] sm:$0xff]
  %v67 = vld [vmem:[%s0 + $0xc8] sm:$0xff]
  %v68 = vld [vmem:[%s0 + $0xd0] sm:$0xff]
  %v69 = vld [vmem:[%s0 + $0xd8] sm:$0xff]
  %v70 = vld [vmem:[%s0 + $0xe0] sm:$0xff]
  %v71 = vld [vmem:[%s0 + $0xe8] sm:$0xff]
  %v72 = vld [vmem:[%s0 + $0xf0] sm:$0xff]
  %v73 = vld [vmem:[%s0 + $0xf8] sm:$0xff]
  %v74 = vld [vmem:[%s0 + $0x100] sm:$0xff]
  %v75 = vld [vmem:[%s0 + $0x108] sm:$0xff]
  %v76 = vld [vmem:[%s0 + $0x110] sm:$0xff]
  %v77 = vld [vmem:[%s0 + $0x118] sm:$0xff]
  %v78 = vld [vmem:[%s0 + $0x120] sm:$0xff]
  %v79 = vld [vmem:[%s0 + $0x128] sm:$0xff]
  %v80 = vld [vmem:[%s0 + $0x130] sm:$0xff]
  %v81 = vld [vmem:[%s0 + $0x138] sm:$0xff]
  %v82 = vld [vmem:[%s0 + $0x140] sm:$0xff]
  %v83 = vld [vmem:[%s0 + $0x148] sm:$0xff]
  %v84 = vld [vmem:[%s0 + $0x150] sm:$0xff]
  %v85 = vld [vmem:[%s0 + $0x158] sm:$0xff]
  %v86 = vld [vmem:[%s0 + $0x160] sm:$0xff]
  %v87 = vld [vmem:[%s0 + $0x168] sm:$0xff]
  %v88 = vld [vmem:[%s0 + $0x170] sm:$0xff]
  %v89 = vld [vmem:[%s0 + $0x178] sm:$0xff]
  %v90 = vld [vmem:[%s0 + $0x180] sm:$0xff]
  %v91 = vld [vmem:[%s0 + $0x188] sm:$0xff]
  %v92 = vld [vmem:[%s0 + $0x190] sm:$0xff]
  %v93 = vld [vmem:[%s0 + $0x198] sm:$0xff]
  %v94 = vld [vmem:[%s0 + $0x1a0] sm:$0xff]
  %v95 = vld [vmem:[%s0 + $0x1a8] sm:$0xff]
  %v96 = vld [vmem:[%s0 + $0x1b0] sm:$0xff]
  %v97 = vld [vmem:[%s0 + $0x1b8] sm:$0xff]
  %v98 = vld [vmem:[%s0 + $0x1c0] sm:$0xff]
  %v99 = vld [vmem:[%s0 + $0x1c8] sm:$0xff]
  %v100 = vld [vmem:[%s0 + $0x1d0] sm:$0xff]
  %v101 = vld [vmem:[%s0 + $0x1d8] sm:$0xff]
  %v102 = vld [vmem:[%s0 + $0x1e0] sm:$0xff]
  %v103 = vld [vmem:[%s0 + $0x1e8] sm:$0xff]
  %v104 = vld [vmem:[%s0 + $0x1f0] sm:$0xff]
  %v105 = vld [vmem:[%s0 + $0x1f8] sm:$0xff]
  %v107 = vlaneseq
  %v108 = vshrl.u32 %v107, 7
  %v109 = vsub.s32 0, %v108
  %v110 = vrot.slane %v38, %v109
  %v112 = vmul.f32 %v42, %v110
  %v113 = vmul.f32 %v43, %v110
  %v114 = vmul.f32 %v44, %v110
  %v115 = vmul.f32 %v45, %v110
  %v116 = vmul.f32 %v46, %v110
  %v117 = vmul.f32 %v47, %v110
  %v118 = vmul.f32 %v48, %v110
  %v119 = vmul.f32 %v49, %v110
  %v120 = vmul.f32 %v50, %v110
  %v121 = vmul.f32 %v51, %v110
  %v122 = vmul.f32 %v52, %v110
  %v123 = vmul.f32 %v53, %v110
  %v124 = vmul.f32 %v54, %v110
  %v125 = vmul.f32 %v55, %v110
  %v126 = vmul.f32 %v56, %v110
  %v127 = vmul.f32 %v57, %v110
  %v128 = vmul.f32 %v58, %v110
  %v129 = vmul.f32 %v59, %v110
  %v130 = vmul.f32 %v60, %v110
  %v131 = vmul.f32 %v61, %v110
  %v132 = vmul.f32 %v62, %v110
  %v133 = vmul.f32 %v63, %v110
  %v134 = vmul.f32 %v64, %v110
  %v135 = vmul.f32 %v65, %v110
  %v136 = vmul.f32 %v66, %v110
  %v137 = vmul.f32 %v67, %v110
  %v138 = vmul.f32 %v68, %v110
  %v139 = vmul.f32 %v69, %v110
  %v140 = vmul.f32 %v70, %v110
  %v141 = vmul.f32 %v71, %v110
  %v142 = vmul.f32 %v72, %v110
  %v143 = vmul.f32 %v73, %v110
  %v144 = vmul.f32 %v74, %v110
  %v145 = vmul.f32 %v75, %v110
  %v146 = vmul.f32 %v76, %v110
  %v147 = vmul.f32 %v77, %v110
  %v148 = vmul.f32 %v78, %v110
  %v149 = vmul.f32 %v79, %v110
  %v150 = vmul.f32 %v80, %v110
  %v151 = vmul.f32 %v81, %v110
  %v152 = vmul.f32 %v82, %v110
  %v153 = vmul.f32 %v83, %v110
  %v154 = vmul.f32 %v84, %v110
  %v155 = vmul.f32 %v85, %v110
  %v156 = vmul.f32 %v86, %v110
  %v157 = vmul.f32 %v87, %v110
  %v158 = vmul.f32 %v88, %v110
  %v159 = vmul.f32 %v89, %v110
  %v160 = vmul.f32 %v90, %v110
  %v161 = vmul.f32 %v91, %v110
  %v162 = vmul.f32 %v92, %v110
  %v163 = vmul.f32 %v93, %v110
  %v164 = vmul.f32 %v94, %v110
  %v165 = vmul.f32 %v95, %v110
  %v166 = vmul.f32 %v96, %v110
  %v167 = vmul.f32 %v97, %v110
  %v168 = vmul.f32 %v98, %v110
  %v169 = vmul.f32 %v99, %v110
  %v170 = vmul.f32 %v100, %v110
  %v171 = vmul.f32 %v101, %v110
  %v172 = vmul.f32 %v102, %v110
  %v173 = vmul.f32 %v103, %v110
  %v174 = vmul.f32 %v104, %v110
  %v175 = vmul.f32 %v105, %v110
  %v177 = vlaneseq
  %v178 = vshrl.u32 %v177, 7
  %v179 = vsub.s32 0, %v178
  %v180 = vrot.slane %v41, %v179
  %v182 = vadd.f32 %v112, %v180
  %v183 = vadd.f32 %v113, %v180
  %v184 = vadd.f32 %v114, %v180
  %v185 = vadd.f32 %v115, %v180
  %v186 = vadd.f32 %v116, %v180
  %v187 = vadd.f32 %v117, %v180
  %v188 = vadd.f32 %v118, %v180
  %v189 = vadd.f32 %v119, %v180
  %v190 = vadd.f32 %v120, %v180
  %v191 = vadd.f32 %v121, %v180
  %v192 = vadd.f32 %v122, %v180
  %v193 = vadd.f32 %v123, %v180
  %v194 = vadd.f32 %v124, %v180
  %v195 = vadd.f32 %v125, %v180
  %v196 = vadd.f32 %v126, %v180
  %v197 = vadd.f32 %v127, %v180
  %v198 = vadd.f32 %v128, %v180
  %v199 = vadd.f32 %v129, %v180
  %v200 = vadd.f32 %v130, %v180
  %v201 = vadd.f32 %v131, %v180
  %v202 = vadd.f32 %v132, %v180
  %v203 = vadd.f32 %v133, %v180
  %v204 = vadd.f32 %v134, %v180
  %v205 = vadd.f32 %v135, %v180
  %v206 = vadd.f32 %v136, %v180
  %v207 = vadd.f32 %v137, %v180
  %v208 = vadd.f32 %v138, %v180
  %v209 = vadd.f32 %v139, %v180
  %v210 = vadd.f32 %v140, %v180
  %v211 = vadd.f32 %v141, %v180
  %v212 = vadd.f32 %v142, %v180
  %v213 = vadd.f32 %v143, %v180
  %v214 = vadd.f32 %v144, %v180
  %v215 = vadd.f32 %v145, %v180
  %v216 = vadd.f32 %v146, %v180
  %v217 = vadd.f32 %v147, %v180
  %v218 = vadd.f32 %v148, %v180
  %v219 = vadd.f32 %v149, %v180
  %v220 = vadd.f32 %v150, %v180
  %v221 = vadd.f32 %v151, %v180
  %v222 = vadd.f32 %v152, %v180
  %v223 = vadd.f32 %v153, %v180
  %v224 = vadd.f32 %v154, %v180
  %v225 = vadd.f32 %v155, %v180
  %v226 = vadd.f32 %v156, %v180
  %v227 = vadd.f32 %v157, %v180
  %v228 = vadd.f32 %v158, %v180
  %v229 = vadd.f32 %v159, %v180
  %v230 = vadd.f32 %v160, %v180
  %v231 = vadd.f32 %v161, %v180
  %v232 = vadd.f32 %v162, %v180
  %v233 = vadd.f32 %v163, %v180
  %v234 = vadd.f32 %v164, %v180
  %v235 = vadd.f32 %v165, %v180
  %v236 = vadd.f32 %v166, %v180
  %v237 = vadd.f32 %v167, %v180
  %v238 = vadd.f32 %v168, %v180
  %v239 = vadd.f32 %v169, %v180
  %v240 = vadd.f32 %v170, %v180
  %v241 = vadd.f32 %v171, %v180
  %v242 = vadd.f32 %v172, %v180
  %v243 = vadd.f32 %v173, %v180
  %v244 = vadd.f32 %v174, %v180
  %v245 = vadd.f32 %v175, %v180
  %v246 = vmax.f32 %v182, 0.0
  %v247 = vmax.f32 %v183, 0.0
  %v248 = vmax.f32 %v184, 0.0
  %v249 = vmax.f32 %v185, 0.0
  %v250 = vmax.f32 %v186, 0.0
  %v251 = vmax.f32 %v187, 0.0
  %v252 = vmax.f32 %v188, 0.0
  %v253 = vmax.f32 %v189, 0.0
  %v254 = vmax.f32 %v190, 0.0
  %v255 = vmax.f32 %v191, 0.0
  %v256 = vmax.f32 %v192, 0.0
  %v257 = vmax.f32 %v193, 0.0
  %v258 = vmax.f32 %v194, 0.0
  %v259 = vmax.f32 %v195, 0.0
  %v260 = vmax.f32 %v196, 0.0
  %v261 = vmax.f32 %v197, 0.0
  %v262 = vmax.f32 %v198, 0.0
  %v263 = vmax.f32 %v199, 0.0
  %v264 = vmax.f32 %v200, 0.0
  %v265 = vmax.f32 %v201, 0.0
  %v266 = vmax.f32 %v202, 0.0
  %v267 = vmax.f32 %v203, 0.0
  %v268 = vmax.f32 %v204, 0.0
  %v269 = vmax.f32 %v205, 0.0
  %v270 = vmax.f32 %v206, 0.0
  %v271 = vmax.f32 %v207, 0.0
  %v272 = vmax.f32 %v208, 0.0
  %v273 = vmax.f32 %v209, 0.0
  %v274 = vmax.f32 %v210, 0.0
  %v275 = vmax.f32 %v211, 0.0
  %v276 = vmax.f32 %v212, 0.0
  %v277 = vmax.f32 %v213, 0.0
  %v278 = vmax.f32 %v214, 0.0
  %v279 = vmax.f32 %v215, 0.0
  %v280 = vmax.f32 %v216, 0.0
  %v281 = vmax.f32 %v217, 0.0
  %v282 = vmax.f32 %v218, 0.0
  %v283 = vmax.f32 %v219, 0.0
  %v284 = vmax.f32 %v220, 0.0
  %v285 = vmax.f32 %v221, 0.0
  %v286 = vmax.f32 %v222, 0.0
  %v287 = vmax.f32 %v223, 0.0
  %v288 = vmax.f32 %v224, 0.0
  %v289 = vmax.f32 %v225, 0.0
  %v290 = vmax.f32 %v226, 0.0
  %v291 = vmax.f32 %v227, 0.0
  %v292 = vmax.f32 %v228, 0.0
  %v293 = vmax.f32 %v229, 0.0
  %v294 = vmax.f32 %v230, 0.0
  %v295 = vmax.f32 %v231, 0.0
  %v296 = vmax.f32 %v232, 0.0
  %v297 = vmax.f32 %v233, 0.0
  %v298 = vmax.f32 %v234, 0.0
  %v299 = vmax.f32 %v235, 0.0
  %v300 = vmax.f32 %v236, 0.0
  %v301 = vmax.f32 %v237, 0.0
  %v302 = vmax.f32 %v238, 0.0
  %v303 = vmax.f32 %v239, 0.0
  %v304 = vmax.f32 %v240, 0.0
  %v305 = vmax.f32 %v241, 0.0
  %v306 = vmax.f32 %v242, 0.0
  %v307 = vmax.f32 %v243, 0.0
  %v308 = vmax.f32 %v244, 0.0
  %v309 = vmax.f32 %v245, 0.0
  %310 = vst [vmem:[%s5] sm:$0xff] %v246
  %311 = vst [vmem:[%s5 + $0x8] sm:$0xff] %v247
  %312 = vst [vmem:[%s5 + $0x10] sm:$0xff] %v248
  %313 = vst [vmem:[%s5 + $0x18] sm:$0xff] %v249
  %314 = vst [vmem:[%s5 + $0x20] sm:$0xff] %v250
  %315 = vst [vmem:[%s5 + $0x28] sm:$0xff] %v251
  %316 = vst [vmem:[%s5 + $0x30] sm:$0xff] %v252
  %317 = vst [vmem:[%s5 + $0x38] sm:$0xff] %v253
  %318 = vst [vmem:[%s5 + $0x40] sm:$0xff] %v254
  %319 = vst [vmem:[%s5 + $0x48] sm:$0xff] %v255
  %320 = vst [vmem:[%s5 + $0x50] sm:$0xff] %v256
  %321 = vst [vmem:[%s5 + $0x58] sm:$0xff] %v257
  %322 = vst [vmem:[%s5 + $0x60] sm:$0xff] %v258
  %323 = vst [vmem:[%s5 + $0x68] sm:$0xff] %v259
  %324 = vst [vmem:[%s5 + $0x70] sm:$0xff] %v260
  %325 = vst [vmem:[%s5 + $0x78] sm:$0xff] %v261
  %326 = vst [vmem:[%s5 + $0x80] sm:$0xff] %v262
  %327 = vst [vmem:[%s5 + $0x88] sm:$0xff] %v263
  %328 = vst [vmem:[%s5 + $0x90] sm:$0xff] %v264
  %329 = vst [vmem:[%s5 + $0x98] sm:$0xff] %v265
  %330 = vst [vmem:[%s5 + $0xa0] sm:$0xff] %v266
  %331 = vst [vmem:[%s5 + $0xa8] sm:$0xff] %v267
  %332 = vst [vmem:[%s5 + $0xb0] sm:$0xff] %v268
  %333 = vst [vmem:[%s5 + $0xb8] sm:$0xff] %v269
  %334 = vst [vmem:[%s5 + $0xc0] sm:$0xff] %v270
  %335 = vst [vmem:[%s5 + $0xc8] sm:$0xff] %v271
  %336 = vst [vmem:[%s5 + $0xd0] sm:$0xff] %v272
  %337 = vst [vmem:[%s5 + $0xd8] sm:$0xff] %v273
  %338 = vst [vmem:[%s5 + $0xe0] sm:$0xff] %v274
  %339 = vst [vmem:[%s5 + $0xe8] sm:$0xff] %v275
  %340 = vst [vmem:[%s5 + $0xf0] sm:$0xff] %v276
  %341 = vst [vmem:[%s5 + $0xf8] sm:$0xff] %v277
  %342 = vst [vmem:[%s5 + $0x100] sm:$0xff] %v278
  %343 = vst [vmem:[%s5 + $0x108] sm:$0xff] %v279
  %344 = vst [vmem:[%s5 + $0x110] sm:$0xff] %v280
  %345 = vst [vmem:[%s5 + $0x118] sm:$0xff] %v281
  %346 = vst [vmem:[%s5 + $0x120] sm:$0xff] %v282
  %347 = vst [vmem:[%s5 + $0x128] sm:$0xff] %v283
  %348 = vst [vmem:[%s5 + $0x130] sm:$0xff] %v284
  %349 = vst [vmem:[%s5 + $0x138] sm:$0xff] %v285
  %350 = vst [vmem:[%s5 + $0x140] sm:$0xff] %v286
  %351 = vst [vmem:[%s5 + $0x148] sm:$0xff] %v287
  %352 = vst [vmem:[%s5 + $0x150] sm:$0xff] %v288
  %353 = vst [vmem:[%s5 + $0x158] sm:$0xff] %v289
  %354 = vst [vmem:[%s5 + $0x160] sm:$0xff] %v290
  %355 = vst [vmem:[%s5 + $0x168] sm:$0xff] %v291
  %356 = vst [vmem:[%s5 + $0x170] sm:$0xff] %v292
  %357 = vst [vmem:[%s5 + $0x178] sm:$0xff] %v293
  %358 = vst [vmem:[%s5 + $0x180] sm:$0xff] %v294
  %359 = vst [vmem:[%s5 + $0x188] sm:$0xff] %v295
  %360 = vst [vmem:[%s5 + $0x190] sm:$0xff] %v296
  %361 = vst [vmem:[%s5 + $0x198] sm:$0xff] %v297
  %362 = vst [vmem:[%s5 + $0x1a0] sm:$0xff] %v298
  %363 = vst [vmem:[%s5 + $0x1a8] sm:$0xff] %v299
  %364 = vst [vmem:[%s5 + $0x1b0] sm:$0xff] %v300
  %365 = vst [vmem:[%s5 + $0x1b8] sm:$0xff] %v301
  %366 = vst [vmem:[%s5 + $0x1c0] sm:$0xff] %v302
  %367 = vst [vmem:[%s5 + $0x1c8] sm:$0xff] %v303
  %368 = vst [vmem:[%s5 + $0x1d0] sm:$0xff] %v304
  %369 = vst [vmem:[%s5 + $0x1d8] sm:$0xff] %v305
  %370 = vst [vmem:[%s5 + $0x1e0] sm:$0xff] %v306
  %371 = vst [vmem:[%s5 + $0x1e8] sm:$0xff] %v307
  %372 = vst [vmem:[%s5 + $0x1f0] sm:$0xff] %v308
  %373 = vst [vmem:[%s5 + $0x1f8] sm:$0xff] %v309
  // Predicated region
  $region22: #{time_embedding_forward.3} parent=0 // pred_check
    _
  $region23: #{time_embedding_forward.3} parent=0 // pred_check_branch
    %375 = sbr.rel (0) target = $region25
  $region24: #{time_embedding_forward.3} parent=0 // pred_region
    _
  $region25: #{time_embedding_forward.3} parent=0 // pred_fallthru
    _
  // Predicated region
  $region26: #{time_embedding_forward.3} parent=0 // pred_check
    _
  $region27: #{time_embedding_forward.3} parent=0 // pred_check_branch
    %377 = sbr.rel (0) target = $region29
  $region28: #{time_embedding_forward.3} parent=0 // pred_region
    _
  $region29: #{time_embedding_forward.3} parent=0 // pred_fallthru
    _

// kernel: time_embedding_forward.2
$region0: #{time_embedding_forward.2}
  #allocation0 [shape = 'u32[]', space=smem, size = 0x4, offset = 0x4, fixed_abs, tag = 'smem constant byte address 0x4 - core index']
  #allocation1 [shape = 'u32[144,128]{1,0:T(1,128)}', space=vmem, size = 0x12000, scoped, tag = 'internal scratch']
  #allocation2 [shape = 'f32[256,128]{1,0:T(8,128)}', space=vmem, size = 0x20000, scoped, tag = 'scratch operand']
  #allocation3 [shape = 'f32[18,18,128]{2,1,0:T(8,128)}', space=vmem, size = 0x36000, scoped, tag = 'scratch operand']
  %s0 = inlined_call_operand.vmem [shape: f32[2,18,18,8], index: 0, kind: input, shape index: {}]
  %s1 = inlined_call_operand.vmem [shape: f32[2,1,8], index: 1, kind: input, shape index: {}]
  %s2 = inlined_call_operand.vmem [shape: f32[9,8,128], index: 2, kind: input, shape index: {}]
  %s3 = inlined_call_operand.vmem [shape: f32[1,128], index: 3, kind: input, shape index: {}]
  %s4 = inlined_call_operand.vmem [shape: f32[8,128], index: 4, kind: input, shape index: {}]
  %s5 = inlined_call_operand.vmem [shape: f32[1,128], index: 5, kind: input, shape index: {}]
  %s6 = inlined_call_operand.vmem [shape: f32[9,128,128], index: 6, kind: input, shape index: {}]
  %s7 = inlined_call_operand.vmem [shape: f32[1,128], index: 7, kind: input, shape index: {}]
  %s8 = inlined_call_operand.vmem [shape: f32[512,128], index: 8, kind: output, shape index: {0}]
  %s9 = inlined_call_operand.vmem [shape: f32[2,1,128], index: 9, kind: output, shape index: {1}]
  %s10 = inlined_call_operand.vmem [shape: f32[2,1,128], index: 10, kind: output, shape index: {2}]
  %11 = xla_tuple %s8, %s9, %s10
  %s12 = sld [smem:[#allocation0]]
  $region81: #{time_embedding_forward.2} parent=0
    _
  %s14 = ssub.s32 1, %s12
  %s15 = scalar_select 0, %s14, %s12
  loop: start=0, step=1, limit=4
  $region2: #{time_embedding_forward.2} parent=0 // loop_pre_header
    _
  $region3: #{time_embedding_forward.2} parent=0 // loop_header
    %s17 = sphi 0, %s21
    %p18 = scmp.ge.s32.totalorder %s17, 4
    %s27 = sphi 0, %s29
    %s30 = sphi 0, %s27
    %s31 = sphi 0, %s30
    %s47 = sphi 0, %s31
    %s53 = sphi 0, %s55
    %s56 = sphi 0, %s53
    %s57 = sphi 0, %s56
    %s73 = sphi 0, %s57
    %s77 = sphi 0, %s77
    %s79 = sphi 0, %s77
    %s80 = sphi 0, %s79
    %s94 = sphi 0, %s80
    %s98 = sphi 0, %s98
    %s100 = sphi 0, %s98
    %s101 = sphi 0, %s100
    %s115 = sphi 0, %s101
    %s119 = sphi 0, %s119
    %s121 = sphi 0, %s119
    %s122 = sphi 0, %s121
    %s136 = sphi 0, %s122
    %s140 = sphi 0, %s140
    %s142 = sphi 0, %s140
    %s143 = sphi 0, %s142
    %s157 = sphi 0, %s143
    %s161 = sphi 0, %s161
    %s163 = sphi 0, %s161
    %s164 = sphi 0, %s163
    %s178 = sphi 0, %s164
    %s182 = sphi 0, %s182
    %s184 = sphi 0, %s182
    %s185 = sphi 0, %s184
    %s199 = sphi 0, %s185
    %s205 = sphi 0, %s207
    %s208 = sphi 0, %s205
    %s209 = sphi 0, %s208
    %s225 = sphi 0, %s209
    %s231 = sphi 0, %s233
    %s234 = sphi 0, %s231
    %s235 = sphi 0, %s234
    %s251 = sphi 0, %s235
    %s257 = sphi 0, %s259
    %s260 = sphi 0, %s257
    %s261 = sphi 0, %s260
    %s277 = sphi 0, %s261
  $region4: #{time_embedding_forward.2} parent=0 // loop_header_branch
    %20 = sbr.rel (%p18) target = $region8
  $region5: #{time_embedding_forward.2} parent=0 // loop_body
    %s22 = ssub.s32 %s17, 1
    %s23 = ssub.s32 %s17, 2
    %s24 = sadd.s32 %s17, 1
    %s25 = ssub.s32 %s17, %s24
    %p26 = scmp.eq.s32.totalorder %s25, 0
    %s28 = sadd.s32 %s27, 1
    %s29 = scalar_select %p26, %s27, %s28
    %p32 = pneg %p26
    %p33 = scmp.eq.s32.totalorder %s17, 1
    %p34 = por %p32, %p33
    %p35 = scmp.ne.s32.totalorder %s27, %s30
    %p36 = scmp.eq.s32.totalorder %s17, 0
    %p37 = por %p35, %p36
    %p38 = scmp.ne.s32.totalorder %s27, %s30
    %p39 = scmp.eq.s32.totalorder %s22, 1
    %p40 = por %p38, %p39
    %p41 = scmp.ne.s32.totalorder %s30, %s31
    %p42 = scmp.eq.s32.totalorder %s22, 0
    %p43 = por %p41, %p42
    %p44 = scmp.ne.s32.totalorder %s30, %s31
    %p45 = scmp.eq.s32.totalorder %s23, 1
    %p46 = por %p44, %p45
    %p48 = scmp.ne.s32.totalorder %s31, %s47
    %p49 = scmp.eq.s32.totalorder %s23, 0
    %p50 = por %p48, %p49
    %s51 = ssub.s32 %s17, %s24
    %p52 = scmp.eq.s32.totalorder %s51, 0
    %s54 = sadd.s32 %s53, 1
    %s55 = scalar_select %p52, %s53, %s54
    %p58 = pneg %p52
    %p59 = scmp.eq.s32.totalorder %s17, 1
    %p60 = por %p58, %p59
    %p61 = scmp.ne.s32.totalorder %s53, %s56
    %p62 = scmp.eq.s32.totalorder %s17, 0
    %p63 = por %p61, %p62
    %p64 = scmp.ne.s32.totalorder %s53, %s56
    %p65 = scmp.eq.s32.totalorder %s22, 1
    %p66 = por %p64, %p65
    %p67 = scmp.ne.s32.totalorder %s56, %s57
    %p68 = scmp.eq.s32.totalorder %s22, 0
    %p69 = por %p67, %p68
    %p70 = scmp.ne.s32.totalorder %s56, %s57
    %p71 = scmp.eq.s32.totalorder %s23, 1
    %p72 = por %p70, %p71
    %p74 = scmp.ne.s32.totalorder %s57, %s73
    %p75 = scmp.eq.s32.totalorder %s23, 0
    %p76 = por %p74, %p75
    %s78 = sadd.s32 %s77, 1
    %p81 = scmp.eq.s32.totalorder %s17, 1
    %p82 = scmp.ne.s32.totalorder %s77, %s79
    %p83 = scmp.eq.s32.totalorder %s17, 0
    %p84 = por %p82, %p83
    %p85 = scmp.ne.s32.totalorder %s77, %s79
    %p86 = scmp.eq.s32.totalorder %s22, 1
    %p87 = por %p85, %p86
    %p88 = scmp.ne.s32.totalorder %s79, %s80
    %p89 = scmp.eq.s32.totalorder %s22, 0
    %p90 = por %p88, %p89
    %p91 = scmp.ne.s32.totalorder %s79, %s80
    %p92 = scmp.eq.s32.totalorder %s23, 1
    %p93 = por %p91, %p92
    %p95 = scmp.ne.s32.totalorder %s80, %s94
    %p96 = scmp.eq.s32.totalorder %s23, 0
    %p97 = por %p95, %p96
    %s99 = sadd.s32 %s98, 1
    %p102 = scmp.eq.s32.totalorder %s17, 1
    %p103 = scmp.ne.s32.totalorder %s98, %s100
    %p104 = scmp.eq.s32.totalorder %s17, 0
    %p105 = por %p103, %p104
    %p106 = scmp.ne.s32.totalorder %s98, %s100
    %p107 = scmp.eq.s32.totalorder %s22, 1
    %p108 = por %p106, %p107
    %p109 = scmp.ne.s32.totalorder %s100, %s101
    %p110 = scmp.eq.s32.totalorder %s22, 0
    %p111 = por %p109, %p110
    %p112 = scmp.ne.s32.totalorder %s100, %s101
    %p113 = scmp.eq.s32.totalorder %s23, 1
    %p114 = por %p112, %p113
    %p116 = scmp.ne.s32.totalorder %s101, %s115
    %p117 = scmp.eq.s32.totalorder %s23, 0
    %p118 = por %p116, %p117
    %s120 = sadd.s32 %s119, 1
    %p123 = scmp.eq.s32.totalorder %s17, 1
    %p124 = scmp.ne.s32.totalorder %s119, %s121
    %p125 = scmp.eq.s32.totalorder %s17, 0
    %p126 = por %p124, %p125
    %p127 = scmp.ne.s32.totalorder %s119, %s121
    %p128 = scmp.eq.s32.totalorder %s22, 1
    %p129 = por %p127, %p128
    %p130 = scmp.ne.s32.totalorder %s121, %s122
    %p131 = scmp.eq.s32.totalorder %s22, 0
    %p132 = por %p130, %p131
    %p133 = scmp.ne.s32.totalorder %s121, %s122
    %p134 = scmp.eq.s32.totalorder %s23, 1
    %p135 = por %p133, %p134
    %p137 = scmp.ne.s32.totalorder %s122, %s136
    %p138 = scmp.eq.s32.totalorder %s23, 0
    %p139 = por %p137, %p138
    %s141 = sadd.s32 %s140, 1
    %p144 = scmp.eq.s32.totalorder %s17, 1
    %p145 = scmp.ne.s32.totalorder %s140, %s142
    %p146 = scmp.eq.s32.totalorder %s17, 0
    %p147 = por %p145, %p146
    %p148 = scmp.ne.s32.totalorder %s140, %s142
    %p149 = scmp.eq.s32.totalorder %s22, 1
    %p150 = por %p148, %p149
    %p151 = scmp.ne.s32.totalorder %s142, %s143
    %p152 = scmp.eq.s32.totalorder %s22, 0
    %p153 = por %p151, %p152
    %p154 = scmp.ne.s32.totalorder %s142, %s143
    %p155 = scmp.eq.s32.totalorder %s23, 1
    %p156 = por %p154, %p155
    %p158 = scmp.ne.s32.totalorder %s143, %s157
    %p159 = scmp.eq.s32.totalorder %s23, 0
    %p160 = por %p158, %p159
    %s162 = sadd.s32 %s161, 1
    %p165 = scmp.eq.s32.totalorder %s17, 1
    %p166 = scmp.ne.s32.totalorder %s161, %s163
    %p167 = scmp.eq.s32.totalorder %s17, 0
    %p168 = por %p166, %p167
    %p169 = scmp.ne.s32.totalorder %s161, %s163
    %p170 = scmp.eq.s32.totalorder %s22, 1
    %p171 = por %p169, %p170
    %p172 = scmp.ne.s32.totalorder %s163, %s164
    %p173 = scmp.eq.s32.totalorder %s22, 0
    %p174 = por %p172, %p173
    %p175 = scmp.ne.s32.totalorder %s163, %s164
    %p176 = scmp.eq.s32.totalorder %s23, 1
    %p177 = por %p175, %p176
    %p179 = scmp.ne.s32.totalorder %s164, %s178
    %p180 = scmp.eq.s32.totalorder %s23, 0
    %p181 = por %p179, %p180
    %s183 = sadd.s32 %s182, 1
    %p186 = scmp.eq.s32.totalorder %s17, 1
    %p187 = scmp.ne.s32.totalorder %s182, %s184
    %p188 = scmp.eq.s32.totalorder %s17, 0
    %p189 = por %p187, %p188
    %p190 = scmp.ne.s32.totalorder %s182, %s184
    %p191 = scmp.eq.s32.totalorder %s22, 1
    %p192 = por %p190, %p191
    %p193 = scmp.ne.s32.totalorder %s184, %s185
    %p194 = scmp.eq.s32.totalorder %s22, 0
    %p195 = por %p193, %p194
    %p196 = scmp.ne.s32.totalorder %s184, %s185
    %p197 = scmp.eq.s32.totalorder %s23, 1
    %p198 = por %p196, %p197
    %p200 = scmp.ne.s32.totalorder %s185, %s199
    %p201 = scmp.eq.s32.totalorder %s23, 0
    %p202 = por %p200, %p201
    %s203 = ssub.s32 %s17, %s24
    %p204 = scmp.eq.s32.totalorder %s203, 0
    %s206 = sadd.s32 %s205, 1
    %s207 = scalar_select %p204, %s205, %s206
    %p210 = pneg %p204
    %p211 = scmp.eq.s32.totalorder %s17, 1
    %p212 = por %p210, %p211
    %p213 = scmp.ne.s32.totalorder %s205, %s208
    %p214 = scmp.eq.s32.totalorder %s17, 0
    %p215 = por %p213, %p214
    %p216 = scmp.ne.s32.totalorder %s205, %s208
    %p217 = scmp.eq.s32.totalorder %s22, 1
    %p218 = por %p216, %p217
    %p219 = scmp.ne.s32.totalorder %s208, %s209
    %p220 = scmp.eq.s32.totalorder %s22, 0
    %p221 = por %p219, %p220
    %p222 = scmp.ne.s32.totalorder %s208, %s209
    %p223 = scmp.eq.s32.totalorder %s23, 1
    %p224 = por %p222, %p223
    %p226 = scmp.ne.s32.totalorder %s209, %s225
    %p227 = scmp.eq.s32.totalorder %s23, 0
    %p228 = por %p226, %p227
    %s229 = ssub.s32 %s17, %s24
    %p230 = scmp.eq.s32.totalorder %s229, 0
    %s232 = sadd.s32 %s231, 1
    %s233 = scalar_select %p230, %s231, %s232
    %p236 = pneg %p230
    %p237 = scmp.eq.s32.totalorder %s17, 1
    %p238 = por %p236, %p237
    %p239 = scmp.ne.s32.totalorder %s231, %s234
    %p240 = scmp.eq.s32.totalorder %s17, 0
    %p241 = por %p239, %p240
    %p242 = scmp.ne.s32.totalorder %s231, %s234
    %p243 = scmp.eq.s32.totalorder %s22, 1
    %p244 = por %p242, %p243
    %p245 = scmp.ne.s32.totalorder %s234, %s235
    %p246 = scmp.eq.s32.totalorder %s22, 0
    %p247 = por %p245, %p246
    %p248 = scmp.ne.s32.totalorder %s234, %s235
    %p249 = scmp.eq.s32.totalorder %s23, 1
    %p250 = por %p248, %p249
    %p252 = scmp.ne.s32.totalorder %s235, %s251
    %p253 = scmp.eq.s32.totalorder %s23, 0
    %p254 = por %p252, %p253
    %s255 = ssub.s32 %s17, %s24
    %p256 = scmp.eq.s32.totalorder %s255, 0
    %s258 = sadd.s32 %s257, 1
    %s259 = scalar_select %p256, %s257, %s258
    %p262 = pneg %p256
    %p263 = scmp.eq.s32.totalorder %s17, 1
    %p264 = por %p262, %p263
    %p265 = scmp.ne.s32.totalorder %s257, %s260
    %p266 = scmp.eq.s32.totalorder %s17, 0
    %p267 = por %p265, %p266
    %p268 = scmp.ne.s32.totalorder %s257, %s260
    %p269 = scmp.eq.s32.totalorder %s22, 1
    %p270 = por %p268, %p269
    %p271 = scmp.ne.s32.totalorder %s260, %s261
    %p272 = scmp.eq.s32.totalorder %s22, 0
    %p273 = por %p271, %p272
    %p274 = scmp.ne.s32.totalorder %s260, %s261
    %p275 = scmp.eq.s32.totalorder %s23, 1
    %p276 = por %p274, %p275
    %p278 = scmp.ne.s32.totalorder %s261, %s277
    %p279 = scmp.eq.s32.totalorder %s23, 0
    %p280 = por %p278, %p279
    %p281 = scmp.le.s32.totalorder 1, %s17
    %p282 = scmp.lt.s32.totalorder %s17, 3
    %p283 = pnand %p281, %p282
    %p284 = pneg %p283
    // Predicated region
    $region9: #{time_embedding_forward.2} parent=5 // pred_check
      _
    $region10: #{time_embedding_forward.2} parent=5 // pred_check_branch
      %286 = sbr.rel (%p283) target = $region12
    $region11: #{time_embedding_forward.2} parent=5 // pred_region
      %s287 = ssub.s32 %s17, 1
      // Predicated region
      $region13: #{time_embedding_forward.2} parent=11 // pred_check
        %p288 = pneg %p90
      $region14: #{time_embedding_forward.2} parent=11 // pred_check_branch
        %290 = sbr.rel (%p288) target = $region16
      $region15: #{time_embedding_forward.2} parent=11 // pred_region
        _
      $region16: #{time_embedding_forward.2} parent=11 // pred_fallthru
        _
      // Predicated region
      $region17: #{time_embedding_forward.2} parent=11 // pred_check
        %p291 = pneg %p111
      $region18: #{time_embedding_forward.2} parent=11 // pred_check_branch
        %293 = sbr.rel (%p291) target = $region20
      $region19: #{time_embedding_forward.2} parent=11 // pred_region
        _
      $region20: #{time_embedding_forward.2} parent=11 // pred_fallthru
        _
      // Predicated region
      $region21: #{time_embedding_forward.2} parent=11 // pred_check
        %p294 = pneg %p132
      $region22: #{time_embedding_forward.2} parent=11 // pred_check_branch
        %296 = sbr.rel (%p294) target = $region24
      $region23: #{time_embedding_forward.2} parent=11 // pred_region
        _
      $region24: #{time_embedding_forward.2} parent=11 // pred_fallthru
        _
      // Predicated region
      $region25: #{time_embedding_forward.2} parent=11 // pred_check
        %p297 = pneg %p153
      $region26: #{time_embedding_forward.2} parent=11 // pred_check_branch
        %299 = sbr.rel (%p297) target = $region28
      $region27: #{time_embedding_forward.2} parent=11 // pred_region
        _
      $region28: #{time_embedding_forward.2} parent=11 // pred_fallthru
        _
      // Predicated region
      $region29: #{time_embedding_forward.2} parent=11 // pred_check
        %p300 = pneg %p174
      $region30: #{time_embedding_forward.2} parent=11 // pred_check_branch
        %302 = sbr.rel (%p300) target = $region32
      $region31: #{time_embedding_forward.2} parent=11 // pred_region
        _
      $region32: #{time_embedding_forward.2} parent=11 // pred_fallthru
        _
      // Predicated region
      $region33: #{time_embedding_forward.2} parent=11 // pred_check
        %p303 = pneg %p195
      $region34: #{time_embedding_forward.2} parent=11 // pred_check_branch
        %305 = sbr.rel (%p303) target = $region36
      $region35: #{time_embedding_forward.2} parent=11 // pred_region
        _
      $region36: #{time_embedding_forward.2} parent=11 // pred_fallthru
        _
    $region12: #{time_embedding_forward.2} parent=5 // pred_fallthru
      _
    %p306 = scmp.lt.s32.totalorder %s17, 2
    // Predicated region
    $region37: #{time_embedding_forward.2} parent=5 // pred_check
      %p307 = pneg %p306
    $region38: #{time_embedding_forward.2} parent=5 // pred_check_branch
      %309 = sbr.rel (%p307) target = $region40
    $region39: #{time_embedding_forward.2} parent=5 // pred_region
      // Predicated region
      $region41: #{time_embedding_forward.2} parent=39 // pred_check
        %p310 = pneg %p37
      $region42: #{time_embedding_forward.2} parent=39 // pred_check_branch
        %312 = sbr.rel (%p310) target = $region44
      $region43: #{time_embedding_forward.2} parent=39 // pred_region
        %p313 = scmp.lt.s32.totalorder %s17, 1
        %s314 = scalar_select %p313, %s17, 1
        %s315 = smul.addr %s314, 54
        %s316 = smul.addr %s315, 8
        %s317 = scalar_lea.vmem %s0, %s316
      $region44: #{time_embedding_forward.2} parent=39 // pred_fallthru
        _
      // Predicated region
      $region45: #{time_embedding_forward.2} parent=39 // pred_check
        %p318 = pneg %p63
      $region46: #{time_embedding_forward.2} parent=39 // pred_check_branch
        %320 = sbr.rel (%p318) target = $region48
      $region47: #{time_embedding_forward.2} parent=39 // pred_region
        %p321 = scmp.lt.s32.totalorder %s17, 1
        %s322 = scalar_select %p321, %s17, 1
        %s323 = scalar_lea.vmem %s1, %s322
      $region48: #{time_embedding_forward.2} parent=39 // pred_fallthru
        _
    $region40: #{time_embedding_forward.2} parent=5 // pred_fallthru
      _
    %p324 = scmp.le.s32.totalorder 1, %s17
    %p325 = scmp.lt.s32.totalorder %s17, 3
    %p326 = pnand %p324, %p325
    %p327 = pneg %p326
    // Predicated region
    $region49: #{time_embedding_forward.2} parent=5 // pred_check
      _
    $region50: #{time_embedding_forward.2} parent=5 // pred_check_branch
      %329 = sbr.rel (%p326) target = $region52
    $region51: #{time_embedding_forward.2} parent=5 // pred_region
      %s330 = ssub.s32 %s17, 1
      %p331 = scmp.lt.s32.totalorder %s22, 1
      %s332 = scalar_select %p331, %s22, 1
      %s333 = smul.addr %s332, 54
      %s334 = smul.addr %s333, 8
      %s335 = scalar_lea.vmem %s0, %s334
      %p336 = pneg %p43
      %p337 = pneg %p40
      %p338 = scmp.lt.s32.totalorder %s22, 1
      %s339 = scalar_select %p338, %s22, 1
      %s340 = scalar_lea.vmem %s1, %s339
      %p341 = pneg %p69
      %p342 = pneg %p66
      %p343 = pneg %p90
      %p344 = pneg %p87
      %p345 = pneg %p111
      %p346 = pneg %p108
      %p347 = pneg %p132
      %p348 = pneg %p129
      %p349 = pneg %p153
      %p350 = pneg %p150
      %p351 = pneg %p174
      %p352 = pneg %p171
      %p353 = pneg %p195
      %p354 = pneg %p192
      %p355 = pneg %p221
      %p356 = pneg %p218
      %s357 = smul.u32 32, %s22
      %p358 = scmp.lt.s32.totalorder %s357, 63
      %s359 = scalar_select %p358, %s357, 63
      %s360 = smul.addr %s359, 8
      %s361 = scalar_lea.vmem %s8, %s360
      %p362 = pneg %p247
      %p363 = pneg %p244
      %p364 = scmp.lt.s32.totalorder %s22, 1
      %s365 = scalar_select %p364, %s22, 1
      %s366 = scalar_lea.vmem %s9, %s365
      %p367 = pneg %p273
      %p368 = pneg %p270
      %p369 = scmp.lt.s32.totalorder %s22, 1
      %s370 = scalar_select %p369, %s22, 1
      %s371 = scalar_lea.vmem %s10, %s370
      %p372 = scmp.lt.s32.totalorder %s22, 1
      %s373 = scalar_select %p372, %s22, 1
      %s374 = smul.addr %s373, 54
      %s375 = smul.addr %s374, 8
      %s376 = scalar_lea.vmem %s0, %s375
      %p377 = scmp.lt.s32.totalorder %s22, 1
      %s378 = scalar_select %p377, %s22, 1
      %s379 = scalar_lea.vmem %s1, %s378
      %s380 = smul.u32 32, %s22
      %p381 = scmp.lt.s32.totalorder %s380, 63
      %s382 = scalar_select %p381, %s380, 63
      %s383 = smul.addr %s382, 8
      %s384 = scalar_lea.vmem %s8, %s383
      %s385 = smul.u32 32, %s22
      %p386 = scmp.lt.s32.totalorder %s22, 1
      %s387 = scalar_select %p386, %s22, 1
      %s388 = scalar_lea.vmem %s9, %s387
      %p389 = scmp.lt.s32.totalorder %s22, 1
      %s390 = scalar_select %p389, %s22, 1
      %s391 = scalar_lea.vmem %s10, %s390
      %v392 = vld [vmem:[%s376] sm:$0xff]
      %v393 = vld [vmem:[%s376 + $0x8] sm:$0xff]
      %v394 = vld [vmem:[%s376 + $0x18] sm:$0xff]
      %v395 = vld [vmem:[%s376 + $0x20] sm:$0xff]
      %v396 = vld [vmem:[%s376 + $0x30] sm:$0xff]
      %v397 = vld [vmem:[%s376 + $0x38] sm:$0xff]
      %v398 = vld [vmem:[%s376 + $0x48] sm:$0xff]
      %v399 = vld [vmem:[%s376 + $0x50] sm:$0xff]
      %v400 = vld [vmem:[%s376 + $0x60] sm:$0xff]
      %v401 = vld [vmem:[%s376 + $0x68] sm:$0xff]
      %v402 = vld [vmem:[%s376 + $0x78] sm:$0xff]
      %v403 = vld [vmem:[%s376 + $0x80] sm:$0xff]
      %v404 = vld [vmem:[%s376 + $0x90] sm:$0xff]
      %v405 = vld [vmem:[%s376 + $0x98] sm:$0xff]
      %v406 = vld [vmem:[%s376 + $0xa8] sm:$0xff]
      %v407 = vld [vmem:[%s376 + $0xb0] sm:$0xff]
      %v408 = vld [vmem:[%s376 + $0xc0] sm:$0xff]
      %v409 = vld [vmem:[%s376 + $0xc8] sm:$0xff]
      %v410 = vld [vmem:[%s376 + $0xd8] sm:$0xff]
      %v411 = vld [vmem:[%s376 + $0xe0] sm:$0xff]
      %v412 = vld [vmem:[%s376 + $0xf0] sm:$0xff]
      %v413 = vld [vmem:[%s376 + $0xf8] sm:$0xff]
      %v414 = vld [vmem:[%s376 + $0x108] sm:$0xff]
      %v415 = vld [vmem:[%s376 + $0x110] sm:$0xff]
      %v416 = vld [vmem:[%s376 + $0x120] sm:$0xff]
      %v417 = vld [vmem:[%s376 + $0x128] sm:$0xff]
      %v418 = vld [vmem:[%s376 + $0x138] sm:$0xff]
      %v419 = vld [vmem:[%s376 + $0x140] sm:$0xff]
      %v420 = vld [vmem:[%s376 + $0x150] sm:$0xff]
      %v421 = vld [vmem:[%s376 + $0x158] sm:$0xff]
      %v422 = vld [vmem:[%s376 + $0x168] sm:$0xff]
      %v423 = vld [vmem:[%s376 + $0x170] sm:$0xff]
      %v424 = vld [vmem:[%s2] sm:$0xff]
      %vm425 = vcmask 64512
      %v427 = vsel %vm425, %v392, 0
      %v430 = vsel %vm425, %v393, 0
      %v433 = vsel %vm425, %v394, 0
      %v436 = vsel %vm425, %v395, 0
      %v439 = vsel %vm425, %v396, 0
      %v442 = vsel %vm425, %v397, 0
      %v445 = vsel %vm425, %v398, 0
      %v448 = vsel %vm425, %v399, 0
      %v451 = vsel %vm425, %v400, 0
      %v454 = vsel %vm425, %v401, 0
      %v457 = vsel %vm425, %v402, 0
      %v460 = vsel %vm425, %v403, 0
      %v463 = vsel %vm425, %v404, 0
      %v466 = vsel %vm425, %v405, 0
      %v469 = vsel %vm425, %v406, 0
      %v472 = vsel %vm425, %v407, 0
      %v475 = vsel %vm425, %v408, 0
      %v478 = vsel %vm425, %v409, 0
      %v481 = vsel %vm425, %v410, 0
      %v484 = vsel %vm425, %v411, 0
      %v487 = vsel %vm425, %v412, 0
      %v490 = vsel %vm425, %v413, 0
      %v493 = vsel %vm425, %v414, 0
      %v496 = vsel %vm425, %v415, 0
      %v499 = vsel %vm425, %v416, 0
      %v502 = vsel %vm425, %v417, 0
      %v505 = vsel %vm425, %v418, 0
      %v508 = vsel %vm425, %v419, 0
      %v511 = vsel %vm425, %v420, 0
      %v514 = vsel %vm425, %v421, 0
      %v517 = vsel %vm425, %v422, 0
      %v520 = vsel %vm425, %v423, 0
      %522 = vmatprep.subr.mxu0 0.0
      %523 = vmatpush1.msra.mxu0 %v424
      %524 = vmatprep.subr.mxu0 0.0
      %525 = vmatpush1.msra.mxu0 0.0
      %526 = vmatprep.subr.mxu0 0.0
      %527 = vmatpush1.msra.mxu0 0.0
      %528 = vmatprep.subr.mxu0 0.0
      %529 = vmatpush1.msra.mxu0 0.0
      %530 = vmatprep.subr.mxu0 0.0
      %531 = vmatpush1.msra.mxu0 0.0
      %532 = vmatprep.subr.mxu0 0.0
      %533 = vmatpush1.msra.mxu0 0.0
      %534 = vmatprep.subr.mxu0 0.0
      %535 = vmatpush1.msra.mxu0 0.0
      %536 = vmatprep.subr.mxu0 0.0
      %537 = vmatpush1.msra.mxu0 0.0
      %538 = vmatprep.subr.mxu0 0.0
      %539 = vmatpush1.msra.mxu0 0.0
      %540 = vmatprep.subr.mxu0 0.0
      %541 = vmatpush1.msra.mxu0 0.0
      %542 = vmatprep.subr.mxu0 0.0
      %543 = vmatpush1.msra.mxu0 0.0
      %544 = vmatprep.subr.mxu0 0.0
      %545 = vmatpush1.msra.mxu0 0.0
      %546 = vmatprep.subr.mxu0 0.0
      %547 = vmatpush1.msra.mxu0 0.0
      %548 = vmatprep.subr.mxu0 0.0
      %549 = vmatpush1.msra.mxu0 0.0
      %550 = vmatprep.subr.mxu0 0.0
      %551 = vmatpush1.msra.mxu0 0.0
      %552 = vmatprep.subr.mxu0 0.0
      %553 = vmatpush1.msra.mxu0 0.0
      %554 = vmatprep.subr.mxu0 0.0
      %555 = vmatpush1.msra.mxu0 0.0
      %556 = vmatprep.subr.mxu0 0.0
      %557 = vmatpush1.msra.mxu0 0.0
      %558 = vmatprep.subr.mxu0 0.0
      %559 = vmatpush1.msra.mxu0 0.0
      %560 = vmatprep.subr.mxu0 0.0
      %561 = vmatpush1.msra.mxu0 0.0
      %562 = vmatprep.subr.mxu0 0.0
      %563 = vmatpush1.msra.mxu0 0.0
      %564 = vmatprep.subr.mxu0 0.0
      %565 = vmatpush1.msra.mxu0 0.0
      %566 = vmatprep.subr.mxu0 0.0
      %567 = vmatpush1.msra.mxu0 0.0
      %568 = vmatprep.subr.mxu0 0.0
      %569 = vmatpush1.msra.mxu0 0.0
      %570 = vmatprep.subr.mxu0 0.0
      %571 = vmatpush1.msra.mxu0 0.0
      %572 = vmatprep.subr.mxu0 0.0
      %573 = vmatpush1.msra.mxu0 0.0
      %574 = vmatprep.subr.mxu0 0.0
      %575 = vmatpush1.msra.mxu0 0.0
      %576 = vmatprep.subr.mxu0 0.0
      %577 = vmatpush1.msra.mxu0 0.0
      %578 = vmatprep.subr.mxu0 0.0
      %579 = vmatpush1.msra.mxu0 0.0
      %580 = vmatprep.subr.mxu0 0.0
      %581 = vmatpush1.msra.mxu0 0.0
      %582 = vmatprep.subr.mxu0 0.0
      %583 = vmatpush1.msra.mxu0 0.0
      %584 = vmatprep.subr.mxu0 0.0
      %585 = vmatpush1.msra.mxu0 0.0
      %586 = vmatprep.mubr.f32.mxu0 0.0
      %587 = vmatmul.mubr.f32.gmra.mrb[0].mxu0 %v427
      %v588 = vpop.f32.mrb[0].mxu0
      %v589 = vadd.f32 0.0, %v588
      %v590 = vpop.f32.mrb[0].mxu0
      %591 = vmatprep.mubr.f32.mxu0 0.0
      %592 = vmatmul.mubr.f32.gmra.mrb[0].mxu0 %v430
      %v593 = vpop.f32.mrb[0].mxu0
      %v594 = vadd.f32 0.0, %v593
      %v595 = vpop.f32.mrb[0].mxu0
      %596 = vmatprep.mubr.f32.mxu0 0.0
      %597 = vmatmul.mubr.f32.gmra.mrb[0].mxu0 %v433
      %v598 = vpop.f32.mrb[0].mxu0
      %v599 = vadd.f32 0.0, %v598
      %v600 = vpop.f32.mrb[0].mxu0
      %601 = vmatprep.mubr.f32.mxu0 0.0
      %602 = vmatmul.mubr.f32.gmra.mrb[0].mxu0 %v436
      %v603 = vpop.f32.mrb[0].mxu0
      %v604 = vadd.f32 0.0, %v603
      %v605 = vpop.f32.mrb[0].mxu0
      %606 = vmatprep.mubr.f32.mxu0 0.0
      %607 = vmatmul.mubr.f32.gmra.mrb[0].mxu0 %v439
      %v608 = vpop.f32.mrb[0].mxu0
      %v609 = vadd.f32 0.0, %v608
      %v610 = vpop.f32.mrb[0].mxu0
      %611 = vmatprep.mubr.f32.mxu0 0.0
      %612 = vmatmul.mubr.f32.gmra.mrb[0].mxu0 %v442
      %v613 = vpop.f32.mrb[0].mxu0
      %v614 = vadd.f32 0.0, %v613
      %v615 = vpop.f32.mrb[0].mxu0
      %616 = vmatprep.mubr.f32.mxu0 0.0
      %617 = vmatmul.mubr.f32.gmra.mrb[0].mxu0 %v445
      %v618 = vpop.f32.mrb[0].mxu0
      %v619 = vadd.f32 0.0, %v618
      %v620 = vpop.f32.mrb[0].mxu0
      %621 = vmatprep.mubr.f32.mxu0 0.0
      %622 = vmatmul.mubr.f32.gmra.mrb[0].mxu0 %v448
      %v623 = vpop.f32.mrb[0].mxu0
      %v624 = vadd.f32 0.0, %v623
      %v625 = vpop.f32.mrb[0].mxu0
      %626 = vmatprep.mubr.f32.mxu0 0.0
      %627 = vmatmul.mubr.f32.gmra.mrb[0].mxu0 %v451
      %v628 = vpop.f32.mrb[0].mxu0
      %v629 = vadd.f32 0.0, %v628
      %v630 = vpop.f32.mrb[0].mxu0
      %631 = vmatprep.mubr.f32.mxu0 0.0
      %632 = vmatmul.mubr.f32.gmra.mrb[0].mxu0 %v454
      %v633 = vpop.f32.mrb[0].mxu0
      %v634 = vadd.f32 0.0, %v633
      %v635 = vpop.f32.mrb[0].mxu0
      %636 = vmatprep.mubr.f32.mxu0 0.0
      %637 = vmatmul.mubr.f32.gmra.mrb[0].mxu0 %v457
      %v638 = vpop.f32.mrb[0].mxu0
      %v639 = vadd.f32 0.0, %v638
      %v640 = vpop.f32.mrb[0].mxu0
      %641 = vmatprep.mubr.f32.mxu0 0.0
      %642 = vmatmul.mubr.f32.gmra.mrb[0].mxu0 %v460
      %v643 = vpop.f32.mrb[0].mxu0
      %v644 = vadd.f32 0.0, %v643
      %v645 = vpop.f32.mrb[0].mxu0
      %646 = vmatprep.mubr.f32.mxu0 0.0
      %647 = vmatmul.mubr.f32.gmra.mrb[0].mxu0 %v463
      %v648 = vpop.f32.mrb[0].mxu0
      %v649 = vadd.f32 0.0, %v648
      %v650 = vpop.f32.mrb[0].mxu0
      %651 = vmatprep.mubr.f32.mxu0 0.0
      %652 = vmatmul.mubr.f32.gmra.mrb[0].mxu0 %v466
      %v653 = vpop.f32.mrb[0].mxu0
      %v654 = vadd.f32 0.0, %v653
      %v655 = vpop.f32.mrb[0].mxu0
      %656 = vmatprep.mubr.f32.mxu0 0.0
      %657 = vmatmul.mubr.f32.gmra.mrb[0].mxu0 %v469
      %v658 = vpop.f32.mrb[0].mxu0
      %v659 = vadd.f32 0.0, %v658
      %v660 = vpop.f32.mrb[0].mxu0
      %661 = vmatprep.mubr.f32.mxu0 0.0
      %662 = vmatmul.mubr.f32.gmra.mrb[0].mxu0 %v472
      %v663 = vpop.f32.mrb[0].mxu0
      %v664 = vadd.f32 0.0, %v663
      %v665 = vpop.f32.mrb[0].mxu0
      %666 = vmatprep.mubr.f32.mxu0 0.0
      %667 = vmatmul.mubr.f32.gmra.mrb[0].mxu0 %v475
      %v668 = vpop.f32.mrb[0].mxu0
      %v669 = vadd.f32 0.0, %v668
      %v670 = vpop.f32.mrb[0].mxu0
      %671 = vmatprep.mubr.f32.mxu0 0.0
      %672 = vmatmul.mubr.f32.gmra.mrb[0].mxu0 %v478
      %v673 = vpop.f32.mrb[0].mxu0
      %v674 = vadd.f32 0.0, %v673
      %v675 = vpop.f32.mrb[0].mxu0
      %676 = vmatprep.mubr.f32.mxu0 0.0
      %677 = vmatmul.mubr.f32.gmra.mrb[0].mxu0 %v481
      %v678 = vpop.f32.mrb[0].mxu0
      %v679 = vadd.f32 0.0, %v678
      %v680 = vpop.f32.mrb[0].mxu0
      %681 = vmatprep.mubr.f32.mxu0 0.0
      %682 = vmatmul.mubr.f32.gmra.mrb[0].mxu0 %v484
      %v683 = vpop.f32.mrb[0].mxu0
      %v684 = vadd.f32 0.0, %v683
      %v685 = vpop.f32.mrb[0].mxu0
      %686 = vmatprep.mubr.f32.mxu0 0.0
      %687 = vmatmul.mubr.f32.gmra.mrb[0].mxu0 %v487
      %v688 = vpop.f32.mrb[0].mxu0
      %v689 = vadd.f32 0.0, %v688
      %v690 = vpop.f32.mrb[0].mxu0
      %691 = vmatprep.mubr.f32.mxu0 0.0
      %692 = vmatmul.mubr.f32.gmra.mrb[0].mxu0 %v490
      %v693 = vpop.f32.mrb[0].mxu0
      %v694 = vadd.f32 0.0, %v693
      %v695 = vpop.f32.mrb[0].mxu0
      %696 = vmatprep.mubr.f32.mxu0 0.0
      %697 = vmatmul.mubr.f32.gmra.mrb[0].mxu0 %v493
      %v698 = vpop.f32.mrb[0].mxu0
      %v699 = vadd.f32 0.0, %v698
      %v700 = vpop.f32.mrb[0].mxu0
      %701 = vmatprep.mubr.f32.mxu0 0.0
      %702 = vmatmul.mubr.f32.gmra.mrb[0].mxu0 %v496
      %v703 = vpop.f32.mrb[0].mxu0
      %v704 = vadd.f32 0.0, %v703
      %v705 = vpop.f32.mrb[0].mxu0
      %706 = vmatprep.mubr.f32.mxu0 0.0
      %707 = vmatmul.mubr.f32.gmra.mrb[0].mxu0 %v499
      %v708 = vpop.f32.mrb[0].mxu0
      %v709 = vadd.f32 0.0, %v708
      %v710 = vpop.f32.mrb[0].mxu0
      %711 = vmatprep.mubr.f32.mxu0 0.0
      %712 = vmatmul.mubr.f32.gmra.mrb[0].mxu0 %v502
      %v713 = vpop.f32.mrb[0].mxu0
      %v714 = vadd.f32 0.0, %v713
      %v715 = vpop.f32.mrb[0].mxu0
      %716 = vmatprep.mubr.f32.mxu0 0.0
      %717 = vmatmul.mubr.f32.gmra.mrb[0].mxu0 %v505
      %v718 = vpop.f32.mrb[0].mxu0
      %v719 = vadd.f32 0.0, %v718
      %v720 = vpop.f32.mrb[0].mxu0
      %721 = vmatprep.mubr.f32.mxu0 0.0
      %722 = vmatmul.mubr.f32.gmra.mrb[0].mxu0 %v508
      %v723 = vpop.f32.mrb[0].mxu0
      %v724 = vadd.f32 0.0, %v723
      %v725 = vpop.f32.mrb[0].mxu0
      %726 = vmatprep.mubr.f32.mxu0 0.0
      %727 = vmatmul.mubr.f32.gmra.mrb[0].mxu0 %v511
      %v728 = vpop.f32.mrb[0].mxu0
      %v729 = vadd.f32 0.0, %v728
      %v730 = vpop.f32.mrb[0].mxu0
      %731 = vmatprep.mubr.f32.mxu0 0.0
      %732 = vmatmul.mubr.f32.gmra.mrb[0].mxu0 %v514
      %v733 = vpop.f32.mrb[0].mxu0
      %v734 = vadd.f32 0.0, %v733
      %v735 = vpop.f32.mrb[0].mxu0
      %736 = vmatprep.mubr.f32.mxu0 0.0
      %737 = vmatmul.mubr.f32.gmra.mrb[0].mxu0 %v517
      %v738 = vpop.f32.mrb[0].mxu0
      %v739 = vadd.f32 0.0, %v738
      %v740 = vpop.f32.mrb[0].mxu0
      %741 = vmatprep.mubr.f32.mxu0 0.0
      %742 = vmatmul.mubr.f32.gmra.mrb[0].mxu0 %v520
      %v743 = vpop.f32.mrb[0].mxu0
      %v744 = vadd.f32 0.0, %v743
      %v745 = vpop.f32.mrb[0].mxu0
      %746 = vdwg.mxu0
      %747 = vst [vmem:[#allocation2] sm:$0xff] %v589
      %748 = vst [vmem:[#allocation2 + $0x8] sm:$0xff] %v594
      %749 = vst [vmem:[#allocation2 + $0x10] sm:$0xff] %v599
      %750 = vst [vmem:[#allocation2 + $0x18] sm:$0xff] %v604
      %751 = vst [vmem:[#allocation2 + $0x20] sm:$0xff] %v609
      %752 = vst [vmem:[#allocation2 + $0x28] sm:$0xff] %v614
      %753 = vst [vmem:[#allocation2 + $0x30] sm:$0xff] %v619
      %754 = vst [vmem:[#allocation2 + $0x38] sm:$0xff] %v624
      %755 = vst [vmem:[#allocation2 + $0x40] sm:$0xff] %v629
      %756 = vst [vmem:[#allocation2 + $0x48] sm:$0xff] %v634
      %757 = vst [vmem:[#allocation2 + $0x50] sm:$0xff] %v639
      %758 = vst [vmem:[#allocation2 + $0x58] sm:$0xff] %v644
      %759 = vst [vmem:[#allocation2 + $0x60] sm:$0xff] %v649
      %760 = vst [vmem:[#allocation2 + $0x68] sm:$0xff] %v654
      %761 = vst [vmem:[#allocation2 + $0x70] sm:$0xff] %v659
      %762 = vst [vmem:[#allocation2 + $0x78] sm:$0xff] %v664
      %763 = vst [vmem:[#allocation2 + $0x80] sm:$0xff] %v669
      %764 = vst [vmem:[#allocation2 + $0x88] sm:$0xff] %v674
      %765 = vst [vmem:[#allocation2 + $0x90] sm:$0xff] %v679
      %766 = vst [vmem:[#allocation2 + $0x98] sm:$0xff] %v684
      %767 = vst [vmem:[#allocation2 + $0xa0] sm:$0xff] %v689
      %768 = vst [vmem:[#allocation2 + $0xa8] sm:$0xff] %v694
      %769 = vst [vmem:[#allocation2 + $0xb0] sm:$0xff] %v699
      %770 = vst [vmem:[#allocation2 + $0xb8] sm:$0xff] %v704
      %771 = vst [vmem:[#allocation2 + $0xc0] sm:$0xff] %v709
      %772 = vst [vmem:[#allocation2 + $0xc8] sm:$0xff] %v714
      %773 = vst [vmem:[#allocation2 + $0xd0] sm:$0xff] %v719
      %774 = vst [vmem:[#allocation2 + $0xd8] sm:$0xff] %v724
      %775 = vst [vmem:[#allocation2 + $0xe0] sm:$0xff] %v729
      %776 = vst [vmem:[#allocation2 + $0xe8] sm:$0xff] %v734
      %777 = vst [vmem:[#allocation2 + $0xf0] sm:$0xff] %v739
      %778 = vst [vmem:[#allocation2 + $0xf8] sm:$0xff] %v744
      %v779 = vld [vmem:[%s376 + $0x1] sm:$0xff]
      %v780 = vld [vmem:[%s376 + $0x9] sm:$0xff]
      %v781 = vld [vmem:[%s376 + $0x19] sm:$0xff]
      %v782 = vld [vmem:[%s376 + $0x21] sm:$0xff]
      %v783 = vld [vmem:[%s376 + $0x31] sm:$0xff]
      %v784 = vld [vmem:[%s376 + $0x39] sm:$0xff]
      %v785 = vld [vmem:[%s376 + $0x49] sm:$0xff]
      %v786 = vld [vmem:[%s376 + $0x51] sm:$0xff]
      %v787 = vld [vmem:[%s376 + $0x61] sm:$0xff]
      %v788 = vld [vmem:[%s376 + $0x69] sm:$0xff]
      %v789 = vld [vmem:[%s376 + $0x79] sm:$0xff]
      %v790 = vld [vmem:[%s376 + $0x81] sm:$0xff]
      %v791 = vld [vmem:[%s376 + $0x91] sm:$0xff]
      %v792 = vld [vmem:[%s376 + $0x99] sm:$0xff]
      %v793 = vld [vmem:[%s376 + $0xa9] sm:$0xff]
      %v794 = vld [vmem:[%s376 + $0xb1] sm:$0xff]
      %v795 = vld [vmem:[%s376 + $0xc1] sm:$0xff]
      %v796 = vld [vmem:[%s376 + $0xc9] sm:$0xff]
      %v797 = vld [vmem:[%s376 + $0xd9] sm:$0xff]
      %v798 = vld [vmem:[%s376 + $0xe1] sm:$0xff]
      %v799 = vld [vmem:[%s376 + $0xf1] sm:$0xff]
      %v800 = vld [vmem:[%s376 + $0xf9] sm:$0xff]
      %v801 = vld [vmem:[%s376 + $0x109] sm:$0xff]
      %v802 = vld [vmem:[%s376 + $0x111] sm:$0xff]
      %v803 = vld [vmem:[%s376 + $0x121] sm:$0xff]
      %v804 = vld [vmem:[%s376 + $0x129] sm:$0xff]
      %v805 = vld [vmem:[%s376 + $0x139] sm:$0xff]
      %v806 = vld [vmem:[%s376 + $0x141] sm:$0xff]
      %v807 = vld [vmem:[%s376 + $0x151] sm:$0xff]
      %v808 = vld [vmem:[%s376 + $0x159] sm:$0xff]
      %v809 = vld [vmem:[%s376 + $0x169] sm:$0xff]
      %v810 = vld [vmem:[%s376 + $0x171] sm:$0xff]
      %s811 = scalar_lea.vmem %s2, 8
      %v812 = vld [vmem:[%s811] sm:$0xff]
      %v814 = vsel %vm425, %v779, 0
      %v817 = vsel %vm425, %v780, 0
      %v820 = vsel %vm425, %v781, 0
      %v823 = vsel %vm425, %v782, 0
      %v826 = vsel %vm425, %v783, 0
      %v829 = vsel %vm425, %v784, 0
      %v832 = vsel %vm425, %v785, 0
      %v835 = vsel %vm425, %v786, 0
      %v838 = vsel %vm425, %v787, 0
      %v841 = vsel %vm425, %v788, 0
      %v844 = vsel %vm425, %v789, 0
      %v847 = vsel %vm425, %v790, 0
      %v850 = vsel %vm425, %v791, 0
      %v853 = vsel %vm425, %v792, 0
      %v856 = vsel %vm425, %v793, 0
      %v859 = vsel %vm425, %v794, 0
      %v862 = vsel %vm425, %v795, 0
      %v865 = vsel %vm425, %v796, 0
      %v868 = vsel %vm425, %v797, 0
      %v871 = vsel %vm425, %v798, 0
      %v874 = vsel %vm425, %v799, 0
      %v877 = vsel %vm425, %v800, 0
      %v880 = vsel %vm425, %v801, 0
      %v883 = vsel %vm425, %v802, 0
      %v886 = vsel %vm425, %v803, 0
      %v889 = vsel %vm425, %v804, 0
      %v892 = vsel %vm425, %v805, 0
      %v895 = vsel %vm425, %v806, 0
      %v898 = vsel %vm425, %v807, 0
      %v901 = vsel %vm425, %v808, 0
      %v904 = vsel %vm425, %v809, 0
      %v907 = vsel %vm425, %v810, 0
      %909 = vmatprep.subr.mxu0 0.0
      %910 = vmatpush1.msra.mxu0 %v812
      %911 = vmatprep.subr.mxu0 0.0
      %912 = vmatpush1.msra.mxu0 0.0
      %913 = vmatprep.subr.mxu0 0.0
      %914 = vmatpush1.msra.mxu0 0.0
      %915 = vmatprep.subr.mxu0 0.0
      %916 = vmatpush1.msra.mxu0 0.0
      %917 = vmatprep.subr.mxu0 0.0
      %918 = vmatpush1.msra.mxu0 0.0
      %919 = vmatprep.subr.mxu0 0.0
      %920 = vmatpush1.msra.mxu0 0.0
      %921 = vmatprep.subr.mxu0 0.0
      %922 = vmatpush1.msra.mxu0 0.0
      %923 = vmatprep.subr.mxu0 0.0
      %924 = vmatpush1.msra.mxu0 0.0
      %925 = vmatprep.subr.mxu0 0.0
      %926 = vmatpush1.msra.mxu0 0.0
      %927 = vmatprep.subr.mxu0 0.0
      %928 = vmatpush1.msra.mxu0 0.0
      %929 = vmatprep.subr.mxu0 0.0
      %930 = vmatpush1.msra.mxu0 0.0
      %931 = vmatprep.subr.mxu0 0.0
      %932 = vmatpush1.msra.mxu0 0.0
      %933 = vmatprep.subr.mxu0 0.0
      %934 = vmatpush1.msra.mxu0 0.0
      %935 = vmatprep.subr.mxu0 0.0
      %936 = vmatpush1.msra.mxu0 0.0
      %937 = vmatprep.subr.mxu0 0.0
      %938 = vmatpush1.msra.mxu0 0.0
      %939 = vmatprep.subr.mxu0 0.0
      %940 = vmatpush1.msra.mxu0 0.0
      %941 = vmatprep.subr.mxu0 0.0
      %942 = vmatpush1.msra.mxu0 0.0
      %943 = vmatprep.subr.mxu0 0.0
      %944 = vmatpush1.msra.mxu0 0.0
      %945 = vmatprep.subr.mxu0 0.0
      %946 = vmatpush1.msra.mxu0 0.0
      %947 = vmatprep.subr.mxu0 0.0
      %948 = vmatpush1.msra.mxu0 0.0
      %949 = vmatprep.subr.mxu0 0.0
      %950 = vmatpush1.msra.mxu0 0.0
      %951 = vmatprep.subr.mxu0 0.0
      %952 = vmatpush1.msra.mxu0 0.0
      %953 = vmatprep.subr.mxu0 0.0
      %954 = vmatpush1.msra.mxu0 0.0
      %955 = vmatprep.subr.mxu0 0.0
      %956 = vmatpush1.msra.mxu0 0.0
      %957 = vmatprep.subr.mxu0 0.0
      %958 = vmatpush1.msra.mxu0 0.0
      %959 = vmatprep.subr.mxu0 0.0
      %960 = vmatpush1.msra.mxu0 0.0
      %961 = vmatprep.subr.mxu0 0.0
      %962 = vmatpush1.msra.mxu0 0.0
      %963 = vmatprep.subr.mxu0 0.0
      %964 = vmatpush1.msra.mxu0 0.0
      %965 = vmatprep.subr.mxu0 0.0
      %966 = vmatpush1.msra.mxu0 0.0
      %967 = vmatprep.subr.mxu0 0.0
      %968 = vmatpush1.msra.mxu0 0.0
      %969 = vmatprep.subr.mxu0 0.0
      %970 = vmatpush1.msra.mxu0 0.0
      %971 = vmatprep.subr.mxu0 0.0
      %972 = vmatpush1.msra.mxu0 0.0
      %973 = vmatprep.mubr.f32.mxu0 0.0
      %974 = vmatmul.mubr.f32.gmra.mrb[0].mxu0 %v814
      %v975 = vpop.f32.mrb[0].mxu0
      %v976 = vadd.f32 0.0, %v975
      %v977 = vpop.f32.mrb[0].mxu0
      %978 = vmatprep.mubr.f32.mxu0 0.0
      %979 = vmatmul.mubr.f32.gmra.mrb[0].mxu0 %v817
      %v980 = vpop.f32.mrb[0].mxu0
      %v981 = vadd.f32 0.0, %v980
      %v982 = vpop.f32.mrb[0].mxu0
      %983 = vmatprep.mubr.f32.mxu0 0.0
      %984 = vmatmul.mubr.f32.gmra.mrb[0].mxu0 %v820
      %v985 = vpop.f32.mrb[0].mxu0
      %v986 = vadd.f32 0.0, %v985
      %v987 = vpop.f32.mrb[0].mxu0
      %988 = vmatprep.mubr.f32.mxu0 0.0
      %989 = vmatmul.mubr.f32.gmra.mrb[0].mxu0 %v823
      %v990 = vpop.f32.mrb[0].mxu0
      %v991 = vadd.f32 0.0, %v990
      %v992 = vpop.f32.mrb[0].mxu0
      %993 = vmatprep.mubr.f32.mxu0 0.0
      %994 = vmatmul.mubr.f32.gmra.mrb[0].mxu0 %v826
      %v995 = vpop.f32.mrb[0].mxu0
      %v996 = vadd.f32 0.0, %v995
      %v997 = vpop.f32.mrb[0].mxu0
      %998 = vmatprep.mubr.f32.mxu0 0.0
      %999 = vmatmul.mubr.f32.gmra.mrb[0].mxu0 %v829
      %v1000 = vpop.f32.mrb[0].mxu0
      %v1001 = vadd.f32 0.0, %v1000
      %v1002 = vpop.f32.mrb[0].mxu0
      %1003 = vmatprep.mubr.f32.mxu0 0.0
      %1004 = vmatmul.mubr.f32.gmra.mrb[0].mxu0 %v832
      %v1005 = vpop.f32.mrb[0].mxu0
      %v1006 = vadd.f32 0.0, %v1005
      %v1007 = vpop.f32.mrb[0].mxu0
      %1008 = vmatprep.mubr.f32.mxu0 0.0
      %1009 = vmatmul.mubr.f32.gmra.mrb[0].mxu0 %v835
      %v1010 = vpop.f32.mrb[0].mxu0
      %v1011 = vadd.f32 0.0, %v1010
      %v1012 = vpop.f32.mrb[0].mxu0
      %1013 = vmatprep.mubr.f32.mxu0 0.0
      %1014 = vmatmul.mubr.f32.gmra.mrb[0].mxu0 %v838
      %v1015 = vpop.f32.mrb[0].mxu0
      %v1016 = vadd.f32 0.0, %v1015
      %v1017 = vpop.f32.mrb[0].mxu0
      %1018 = vmatprep.mubr.f32.mxu0 0.0
      %1019 = vmatmul.mubr.f32.gmra.mrb[0].mxu0 %v841
      %v1020 = vpop.f32.mrb[0].mxu0
      %v1021 = vadd.f32 0.0, %v1020
      %v1022 = vpop.f32.mrb[0].mxu0
      %1023 = vmatprep.mubr.f32.mxu0 0.0
      %1024 = vmatmul.mubr.f32.gmra.mrb[0].mxu0 %v844
      %v1025 = vpop.f32.mrb[0].mxu0
      %v1026 = vadd.f32 0.0, %v1025
      %v1027 = vpop.f32.mrb[0].mxu0
      %1028 = vmatprep.mubr.f32.mxu0 0.0
      %1029 = vmatmul.mubr.f32.gmra.mrb[0].mxu0 %v847
      %v1030 = vpop.f32.mrb[0].mxu0
      %v1031 = vadd.f32 0.0, %v1030
      %v1032 = vpop.f32.mrb[0].mxu0
      %1033 = vmatprep.mubr.f32.mxu0 0.0
      %1034 = vmatmul.mubr.f32.gmra.mrb[0].mxu0 %v850
      %v1035 = vpop.f32.mrb[0].mxu0
      %v1036 = vadd.f32 0.0, %v1035
      %v1037 = vpop.f32.mrb[0].mxu0
      %1038 = vmatprep.mubr.f32.mxu0 0.0
      %1039 = vmatmul.mubr.f32.gmra.mrb[0].mxu0 %v853
      %v1040 = vpop.f32.mrb[0].mxu0
      %v1041 = vadd.f32 0.0, %v1040
      %v1042 = vpop.f32.mrb[0].mxu0
      %1043 = vmatprep.mubr.f32.mxu0 0.0
      %1044 = vmatmul.mubr.f32.gmra.mrb[0].mxu0 %v856
      %v1045 = vpop.f32.mrb[0].mxu0
      %v1046 = vadd.f32 0.0, %v1045
      %v1047 = vpop.f32.mrb[0].mxu0
      %1048 = vmatprep.mubr.f32.mxu0 0.0
      %1049 = vmatmul.mubr.f32.gmra.mrb[0].mxu0 %v859
      %v1050 = vpop.f32.mrb[0].mxu0
      %v1051 = vadd.f32 0.0, %v1050
      %v1052 = vpop.f32.mrb[0].mxu0
      %1053 = vmatprep.mubr.f32.mxu0 0.0
      %1054 = vmatmul.mubr.f32.gmra.mrb[0].mxu0 %v862
      %v1055 = vpop.f32.mrb[0].mxu0
      %v1056 = vadd.f32 0.0, %v1055
      %v1057 = vpop.f32.mrb[0].mxu0
      %1058 = vmatprep.mubr.f32.mxu0 0.0
      %1059 = vmatmul.mubr.f32.gmra.mrb[0].mxu0 %v865
      %v1060 = vpop.f32.mrb[0].mxu0
      %v1061 = vadd.f32 0.0, %v1060
      %v1062 = vpop.f32.mrb[0].mxu0
      %1063 = vmatprep.mubr.f32.mxu0 0.0
      %1064 = vmatmul.mubr.f32.gmra.mrb[0].mxu0 %v868
      %v1065 = vpop.f32.mrb[0].mxu0
      %v1066 = vadd.f32 0.0, %v1065
      %v1067 = vpop.f32.mrb[0].mxu0
      %1068 = vmatprep.mubr.f32.mxu0 0.0
      %1069 = vmatmul.mubr.f32.gmra.mrb[0].mxu0 %v871
      %v1070 = vpop.f32.mrb[0].mxu0
      %v1071 = vadd.f32 0.0, %v1070
      %v1072 = vpop.f32.mrb[0].mxu0
      %1073 = vmatprep.mubr.f32.mxu0 0.0
      %1074 = vmatmul.mubr.f32.gmra.mrb[0].mxu0 %v874
      %v1075 = vpop.f32.mrb[0].mxu0
      %v1076 = vadd.f32 0.0, %v1075
      %v1077 = vpop.f32.mrb[0].mxu0
      %1078 = vmatprep.mubr.f32.mxu0 0.0
      %1079 = vmatmul.mubr.f32.gmra.mrb[0].mxu0 %v877
      %v1080 = vpop.f32.mrb[0].mxu0
      %v1081 = vadd.f32 0.0, %v1080
      %v1082 = vpop.f32.mrb[0].mxu0
      %1083 = vmatprep.mubr.f32.mxu0 0.0
      %1084 = vmatmul.mubr.f32.gmra.mrb[0].mxu0 %v880
      %v1085 = vpop.f32.mrb[0].mxu0
      %v1086 = vadd.f32 0.0, %v1085
      %v1087 = vpop.f32.mrb[0].mxu0
      %1088 = vmatprep.mubr.f32.mxu0 0.0
      %1089 = vmatmul.mubr.f32.gmra.mrb[0].mxu0 %v883
      %v1090 = vpop.f32.mrb[0].mxu0
      %v1091 = vadd.f32 0.0, %v1090
      %v1092 = vpop.f32.mrb[0].mxu0
      %1093 = vmatprep.mubr.f32.mxu0 0.0
      %1094 = vmatmul.mubr.f32.gmra.mrb[0].mxu0 %v886
      %v1095 = vpop.f32.mrb[0].mxu0
      %v1096 = vadd.f32 0.0, %v1095
      %v1097 = vpop.f32.mrb[0].mxu0
      %1098 = vmatprep.mubr.f32.mxu0 0.0
      %1099 = vmatmul.mubr.f32.gmra.mrb[0].mxu0 %v889
      %v1100 = vpop.f32.mrb[0].mxu0
      %v1101 = vadd.f32 0.0, %v1100
      %v1102 = vpop.f32.mrb[0].mxu0
      %1103 = vmatprep.mubr.f32.mxu0 0.0
      %1104 = vmatmul.mubr.f32.gmra.mrb[0].mxu0 %v892
      %v1105 = vpop.f32.mrb[0].mxu0
      %v1106 = vadd.f32 0.0, %v1105
      %v1107 = vpop.f32.mrb[0].mxu0
      %1108 = vmatprep.mubr.f32.mxu0 0.0
      %1109 = vmatmul.mubr.f32.gmra.mrb[0].mxu0 %v895
      %v1110 = vpop.f32.mrb[0].mxu0
      %v1111 = vadd.f32 0.0, %v1110
      %v1112 = vpop.f32.mrb[0].mxu0
      %1113 = vmatprep.mubr.f32.mxu0 0.0
      %1114 = vmatmul.mubr.f32.gmra.mrb[0].mxu0 %v898
      %v1115 = vpop.f32.mrb[0].mxu0
      %v1116 = vadd.f32 0.0, %v1115
      %v1117 = vpop.f32.mrb[0].mxu0
      %1118 = vmatprep.mubr.f32.mxu0 0.0
      %1119 = vmatmul.mubr.f32.gmra.mrb[0].mxu0 %v901
      %v1120 = vpop.f32.mrb[0].mxu0
      %v1121 = vadd.f32 0.0, %v1120
      %v1122 = vpop.f32.mrb[0].mxu0
      %1123 = vmatprep.mubr.f32.mxu0 0.0
      %1124 = vmatmul.mubr.f32.gmra.mrb[0].mxu0 %v904
      %v1125 = vpop.f32.mrb[0].mxu0
      %v1126 = vadd.f32 0.0, %v1125
      %v1127 = vpop.f32.mrb[0].mxu0
      %1128 = vmatprep.mubr.f32.mxu0 0.0
      %1129 = vmatmul.mubr.f32.gmra.mrb[0].mxu0 %v907
      %v1130 = vpop.f32.mrb[0].mxu0
      %v1131 = vadd.f32 0.0, %v1130
      %v1132 = vpop.f32.mrb[0].mxu0
      %1133 = vdwg.mxu0
      %v1134 = vld [vmem:[#allocation2] sm:$0xff]
      %v1135 = vld [vmem:[#allocation2 + $0x8] sm:$0xff]
      %v1136 = vld [vmem:[#allocation2 + $0x10] sm:$0xff]
      %v1137 = vld [vmem:[#allocation2 + $0x18] sm:$0xff]
      %v1138 = vld [vmem:[#allocation2 + $0x20] sm:$0xff]
      %v1139 = vld [vmem:[#allocation2 + $0x28] sm:$0xff]
      %v1140 = vld [vmem:[#allocation2 + $0x30] sm:$0xff]
      %v1141 = vld [vmem:[#allocation2 + $0x38] sm:$0xff]
      %v1142 = vld [vmem:[#allocation2 + $0x40] sm:$0xff]
      %v1143 = vld [vmem:[#allocation2 + $0x48] sm:$0xff]
      %v1144 = vld [vmem:[#allocation2 + $0x50] sm:$0xff]
      %v1145 = vld [vmem:[#allocation2 + $0x58] sm:$0xff]
      %v1146 = vld [vmem:[#allocation2 + $0x60] sm:$0xff]
      %v1147 = vld [vmem:[#allocation2 + $0x68] sm:$0xff]
      %v1148 = vld [vmem:[#allocation2 + $0x70] sm:$0xff]
      %v1149 = vld [vmem:[#allocation2 + $0x78] sm:$0xff]
      %v1150 = vld [vmem:[#allocation2 + $0x80] sm:$0xff]
      %v1151 = vld [vmem:[#allocation2 + $0x88] sm:$0xff]
      %v1152 = vld [vmem:[#allocation2 + $0x90] sm:$0xff]
      %v1153 = vld [vmem:[#allocation2 + $0x98] sm:$0xff]
      %v1154 = vld [vmem:[#allocation2 + $0xa0] sm:$0xff]
      %v1155 = vld [vmem:[#allocation2 + $0xa8] sm:$0xff]
      %v1156 = vld [vmem:[#allocation2 + $0xb0] sm:$0xff]
      %v1157 = vld [vmem:[#allocation2 + $0xb8] sm:$0xff]
      %v1158 = vld [vmem:[#allocation2 + $0xc0] sm:$0xff]
      %v1159 = vld [vmem:[#allocation2 + $0xc8] sm:$0xff]
      %v1160 = vld [vmem:[#allocation2 + $0xd0] sm:$0xff]
      %v1161 = vld [vmem:[#allocation2 + $0xd8] sm:$0xff]
      %v1162 = vld [vmem:[#allocation2 + $0xe0] sm:$0xff]
      %v1163 = vld [vmem:[#allocation2 + $0xe8] sm:$0xff]
      %v1164 = vld [vmem:[#allocation2 + $0xf0] sm:$0xff]
      %v1165 = vld [vmem:[#allocation2 + $0xf8] sm:$0xff]
      %v1166 = vadd.f32 %v1134, %v976
      %v1167 = vadd.f32 %v1135, %v981
      %v1168 = vadd.f32 %v1136, %v986
      %v1169 = vadd.f32 %v1137, %v991
      %v1170 = vadd.f32 %v1138, %v996
      %v1171 = vadd.f32 %v1139, %v1001
      %v1172 = vadd.f32 %v1140, %v1006
      %v1173 = vadd.f32 %v1141, %v1011
      %v1174 = vadd.f32 %v1142, %v1016
      %v1175 = vadd.f32 %v1143, %v1021
      %v1176 = vadd.f32 %v1144, %v1026
      %v1177 = vadd.f32 %v1145, %v1031
      %v1178 = vadd.f32 %v1146, %v1036
      %v1179 = vadd.f32 %v1147, %v1041
      %v1180 = vadd.f32 %v1148, %v1046
      %v1181 = vadd.f32 %v1149, %v1051
      %v1182 = vadd.f32 %v1150, %v1056
      %v1183 = vadd.f32 %v1151, %v1061
      %v1184 = vadd.f32 %v1152, %v1066
      %v1185 = vadd.f32 %v1153, %v1071
      %v1186 = vadd.f32 %v1154, %v1076
      %v1187 = vadd.f32 %v1155, %v1081
      %v1188 = vadd.f32 %v1156, %v1086
      %v1189 = vadd.f32 %v1157, %v1091
      %v1190 = vadd.f32 %v1158, %v1096
      %v1191 = vadd.f32 %v1159, %v1101
      %v1192 = vadd.f32 %v1160, %v1106
      %v1193 = vadd.f32 %v1161, %v1111
      %v1194 = vadd.f32 %v1162, %v1116
      %v1195 = vadd.f32 %v1163, %v1121
      %v1196 = vadd.f32 %v1164, %v1126
      %v1197 = vadd.f32 %v1165, %v1131
      %1198 = vst [vmem:[#allocation2] sm:$0xff] %v1166
      %1199 = vst [vmem:[#allocation2 + $0x8] sm:$0xff] %v1167
      %1200 = vst [vmem:[#allocation2 + $0x10] sm:$0xff] %v1168
      %1201 = vst [vmem:[#allocation2 + $0x18] sm:$0xff] %v1169
      %1202 = vst [vmem:[#allocation2 + $0x20] sm:$0xff] %v1170
      %1203 = vst [vmem:[#allocation2 + $0x28] sm:$0xff] %v1171
      %1204 = vst [vmem:[#allocation2 + $0x30] sm:$0xff] %v1172
      %1205 = vst [vmem:[#allocation2 + $0x38] sm:$0xff] %v1173
      %1206 = vst [vmem:[#allocation2 + $0x40] sm:$0xff] %v1174
      %1207 = vst [vmem:[#allocation2 + $0x48] sm:$0xff] %v1175
      %1208 = vst [vmem:[#allocation2 + $0x50] sm:$0xff] %v1176
      %1209 = vst [vmem:[#allocation2 + $0x58] sm:$0xff] %v1177
      %1210 = vst [vmem:[#allocation2 + $0x60] sm:$0xff] %v1178
      %1211 = vst [vmem:[#allocation2 + $0x68] sm:$0xff] %v1179
      %1212 = vst [vmem:[#allocation2 + $0x70] sm:$0xff] %v1180
      %1213 = vst [vmem:[#allocation2 + $0x78] sm:$0xff] %v1181
      %1214 = vst [vmem:[#allocation2 + $0x80] sm:$0xff] %v1182
      %1215 = vst [vmem:[#allocation2 + $0x88] sm:$0xff] %v1183
      %1216 = vst [vmem:[#allocation2 + $0x90] sm:$0xff] %v1184
      %1217 = vst [vmem:[#allocation2 + $0x98] sm:$0xff] %v1185
      %1218 = vst [vmem:[#allocation2 + $0xa0] sm:$0xff] %v1186
      %1219 = vst [vmem:[#allocation2 + $0xa8] sm:$0xff] %v1187
      %1220 = vst [vmem:[#allocation2 + $0xb0] sm:$0xff] %v1188
      %1221 = vst [vmem:[#allocation2 + $0xb8] sm:$0xff] %v1189
      %1222 = vst [vmem:[#allocation2 + $0xc0] sm:$0xff] %v1190
      %1223 = vst [vmem:[#allocation2 + $0xc8] sm:$0xff] %v1191
      %1224 = vst [vmem:[#allocation2 + $0xd0] sm:$0xff] %v1192
      %1225 = vst [vmem:[#allocation2 + $0xd8] sm:$0xff] %v1193
      %1226 = vst [vmem:[#allocation2 + $0xe0] sm:$0xff] %v1194
      %1227 = vst [vmem:[#allocation2 + $0xe8] sm:$0xff] %v1195
      %1228 = vst [vmem:[#allocation2 + $0xf0] sm:$0xff] %v1196
      %1229 = vst [vmem:[#allocation2 + $0xf8] sm:$0xff] %v1197
      %v1230 = vld [vmem:[%s376 + $0x2] sm:$0xff]
      %v1231 = vld [vmem:[%s376 + $0xa] sm:$0xff]
      %v1232 = vld [vmem:[%s376 + $0x1a] sm:$0xff]
      %v1233 = vld [vmem:[%s376 + $0x22] sm:$0xff]
      %v1234 = vld [vmem:[%s376 + $0x32] sm:$0xff]
      %v1235 = vld [vmem:[%s376 + $0x3a] sm:$0xff]
      %v1236 = vld [vmem:[%s376 + $0x4a] sm:$0xff]
      %v1237 = vld [vmem:[%s376 + $0x52] sm:$0xff]
      %v1238 = vld [vmem:[%s376 + $0x62] sm:$0xff]
      %v1239 = vld [vmem:[%s376 + $0x6a] sm:$0xff]
      %v1240 = vld [vmem:[%s376 + $0x7a] sm:$0xff]
      %v1241 = vld [vmem:[%s376 + $0x82] sm:$0xff]
      %v1242 = vld [vmem:[%s376 + $0x92] sm:$0xff]
      %v1243 = vld [vmem:[%s376 + $0x9a] sm:$0xff]
      %v1244 = vld [vmem:[%s376 + $0xaa] sm:$0xff]
      %v1245 = vld [vmem:[%s376 + $0xb2] sm:$0xff]
      %v1246 = vld [vmem:[%s376 + $0xc2] sm:$0xff]
      %v1247 = vld [vmem:[%s376 + $0xca] sm:$0xff]
      %v1248 = vld [vmem:[%s376 + $0xda] sm:$0xff]
      %v1249 = vld [vmem:[%s376 + $0xe2] sm:$0xff]
      %v1250 = vld [vmem:[%s376 + $0xf2] sm:$0xff]
      %v1251 = vld [vmem:[%s376 + $0xfa] sm:$0xff]
      %v1252 = vld [vmem:[%s376 + $0x10a] sm:$0xff]
      %v1253 = vld [vmem:[%s376 + $0x112] sm:$0xff]
      %v1254 = vld [vmem:[%s376 + $0x122] sm:$0xff]
      %v1255 = vld [vmem:[%s376 + $0x12a] sm:$0xff]
      %v1256 = vld [vmem:[%s376 + $0x13a] sm:$0xff]
      %v1257 = vld [vmem:[%s376 + $0x142] sm:$0xff]
      %v1258 = vld [vmem:[%s376 + $0x152] sm:$0xff]
      %v1259 = vld [vmem:[%s376 + $0x15a] sm:$0xff]
      %v1260 = vld [vmem:[%s376 + $0x16a] sm:$0xff]
      %v1261 = vld [vmem:[%s376 + $0x172] sm:$0xff]
      %s1262 = scalar_lea.vmem %s2, 16
      %v1263 = vld [vmem:[%s1262] sm:$0xff]
      %v1265 = vsel %vm425, %v1230, 0
      %v1268 = vsel %vm425, %v1231, 0
      %v1271 = vsel %vm425, %v1232, 0
      %v1274 = vsel %vm425, %v1233, 0
      %v1277 = vsel %vm425, %v1234, 0
      %v1280 = vsel %vm425, %v1235, 0
      %v1283 = vsel %vm425, %v1236, 0
      %v1286 = vsel %vm425, %v1237, 0
      %v1289 = vsel %vm425, %v1238, 0
      %v1292 = vsel %vm425, %v1239, 0
      %v1295 = vsel %vm425, %v1240, 0
      %v1298 = vsel %vm425, %v1241, 0
      %v1301 = vsel %vm425, %v1242, 0
      %v1304 = vsel %vm425, %v1243, 0
      %v1307 = vsel %vm425, %v1244, 0
      %v1310 = vsel %vm425, %v1245, 0
      %v1313 = vsel %vm425, %v1246, 0
      %v1316 = vsel %vm425, %v1247, 0
      %v1319 = vsel %vm425, %v1248, 0
      %v1322 = vsel %vm425, %v1249, 0
      %v1325 = vsel %vm425, %v1250, 0
      %v1328 = vsel %vm425, %v1251, 0
      %v1331 = vsel %vm425, %v1252, 0
      %v1334 = vsel %vm425, %v1253, 0
      %v1337 = vsel %vm425, %v1254, 0
      %v1340 = vsel %vm425, %v1255, 0
      %v1343 = vsel %vm425, %v1256, 0
      %v1346 = vsel %vm425, %v1257, 0
      %v1349 = vsel %vm425, %v1258, 0
      %v1352 = vsel %vm425, %v1259, 0
      %v1355 = vsel %vm425, %v1260, 0
      %v1358 = vsel %vm425, %v1261, 0
      %1360 = vmatprep.subr.mxu0 0.0
      %1361 = vmatpush1.msra.mxu0 %v1263
      %1362 = vmatprep.subr.mxu0 0.0
      %1363 = vmatpush1.msra.mxu0 0.0
      %1364 = vmatprep.subr.mxu0 0.0
      %1365 = vmatpush1.msra.mxu0 0.0
      %1366 = vmatprep.subr.mxu0 0.0
      %1367 = vmatpush1.msra.mxu0 0.0
      %1368 = vmatprep.subr.mxu0 0.0
      %1369 = vmatpush1.msra.mxu0 0.0
      %1370 = vmatprep.subr.mxu0 0.0
      %1371 = vmatpush1.msra.mxu0 0.0
      %1372 = vmatprep.subr.mxu0 0.0
      %1373 = vmatpush1.msra.mxu0 0.0
      %1374 = vmatprep.subr.mxu0 0.0
      %1375 = vmatpush1.msra.mxu0 0.0
      %1376 = vmatprep.subr.mxu0 0.0
      %1377 = vmatpush1.msra.mxu0 0.0
      %1378 = vmatprep.subr.mxu0 0.0
      %1379 = vmatpush1.msra.mxu0 0.0
      %1380 = vmatprep.subr.mxu0 0.0
      %1381 = vmatpush1.msra.mxu0 0.0
      %1382 = vmatprep.subr.mxu0 0.0
      %1383 = vmatpush1.msra.mxu0 0.0
      %1384 = vmatprep.subr.mxu0 0.0
      %1385 = vmatpush1.msra.mxu0 0.0
      %1386 = vmatprep.subr.mxu0 0.0
      %1387 = vmatpush1.msra.mxu0 0.0
      %1388 = vmatprep.subr.mxu0 0.0
      %1389 = vmatpush1.msra.mxu0 0.0
      %1390 = vmatprep.subr.mxu0 0.0
      %1391 = vmatpush1.msra.mxu0 0.0
      %1392 = vmatprep.subr.mxu0 0.0
      %1393 = vmatpush1.msra.mxu0 0.0
      %1394 = vmatprep.subr.mxu0 0.0
      %1395 = vmatpush1.msra.mxu0 0.0
      %1396 = vmatprep.subr.mxu0 0.0
      %1397 = vmatpush1.msra.mxu0 0.0
      %1398 = vmatprep.subr.mxu0 0.0
      %1399 = vmatpush1.msra.mxu0 0.0
      %1400 = vmatprep.subr.mxu0 0.0
      %1401 = vmatpush1.msra.mxu0 0.0
      %1402 = vmatprep.subr.mxu0 0.0
      %1403 = vmatpush1.msra.mxu0 0.0
      %1404 = vmatprep.subr.mxu0 0.0
      %1405 = vmatpush1.msra.mxu0 0.0
      %1406 = vmatprep.subr.mxu0 0.0
      %1407 = vmatpush1.msra.mxu0 0.0
      %1408 = vmatprep.subr.mxu0 0.0
      %1409 = vmatpush1.msra.mxu0 0.0
      %1410 = vmatprep.subr.mxu0 0.0
      %1411 = vmatpush1.msra.mxu0 0.0
      %1412 = vmatprep.subr.mxu0 0.0
      %1413 = vmatpush1.msra.mxu0 0.0
      %1414 = vmatprep.subr.mxu0 0.0
      %1415 = vmatpush1.msra.mxu0 0.0
      %1416 = vmatprep.subr.mxu0 0.0
      %1417 = vmatpush1.msra.mxu0 0.0
      %1418 = vmatprep.subr.mxu0 0.0
      %1419 = vmatpush1.msra.mxu0 0.0
      %1420 = vmatprep.subr.mxu0 0.0
      %1421 = vmatpush1.msra.mxu0 0.0
      %1422 = vmatprep.subr.mxu0 0.0
      %1423 = vmatpush1.msra.mxu0 0.0
      %1424 = vmatprep.mubr.f32.mxu0 0.0
      %1425 = vmatmul.mubr.f32.gmra.mrb[0].mxu0 %v1265
      %v1426 = vpop.f32.mrb[0].mxu0
      %v1427 = vadd.f32 0.0, %v1426
      %v1428 = vpop.f32.mrb[0].mxu0
      %1429 = vmatprep.mubr.f32.mxu0 0.0
      %1430 = vmatmul.mubr.f32.gmra.mrb[0].mxu0 %v1268
      %v1431 = vpop.f32.mrb[0].mxu0
      %v1432 = vadd.f32 0.0, %v1431
      %v1433 = vpop.f32.mrb[0].mxu0
      %1434 = vmatprep.mubr.f32.mxu0 0.0
      %1435 = vmatmul.mubr.f32.gmra.mrb[0].mxu0 %v1271
      %v1436 = vpop.f32.mrb[0].mxu0
      %v1437 = vadd.f32 0.0, %v1436
      %v1438 = vpop.f32.mrb[0].mxu0
      %1439 = vmatprep.mubr.f32.mxu0 0.0
      %1440 = vmatmul.mubr.f32.gmra.mrb[0].mxu0 %v1274
      %v1441 = vpop.f32.mrb[0].mxu0
      %v1442 = vadd.f32 0.0, %v1441
      %v1443 = vpop.f32.mrb[0].mxu0
      %1444 = vmatprep.mubr.f32.mxu0 0.0
      %1445 = vmatmul.mubr.f32.gmra.mrb[0].mxu0 %v1277
      %v1446 = vpop.f32.mrb[0].mxu0
      %v1447 = vadd.f32 0.0, %v1446
      %v1448 = vpop.f32.mrb[0].mxu0
      %1449 = vmatprep.mubr.f32.mxu0 0.0
      %1450 = vmatmul.mubr.f32.gmra.mrb[0].mxu0 %v1280
      %v1451 = vpop.f32.mrb[0].mxu0
      %v1452 = vadd.f32 0.0, %v1451
      %v1453 = vpop.f32.mrb[0].mxu0
      %1454 = vmatprep.mubr.f32.mxu0 0.0
      %1455 = vmatmul.mubr.f32.gmra.mrb[0].mxu0 %v1283
      %v1456 = vpop.f32.mrb[0].mxu0
      %v1457 = vadd.f32 0.0, %v1456
      %v1458 = vpop.f32.mrb[0].mxu0
      %1459 = vmatprep.mubr.f32.mxu0 0.0
      %1460 = vmatmul.mubr.f32.gmra.mrb[0].mxu0 %v1286
      %v1461 = vpop.f32.mrb[0].mxu0
      %v1462 = vadd.f32 0.0, %v1461
      %v1463 = vpop.f32.mrb[0].mxu0
      %1464 = vmatprep.mubr.f32.mxu0 0.0
      %1465 = vmatmul.mubr.f32.gmra.mrb[0].mxu0 %v1289
      %v1466 = vpop.f32.mrb[0].mxu0
      %v1467 = vadd.f32 0.0, %v1466
      %v1468 = vpop.f32.mrb[0].mxu0
      %1469 = vmatprep.mubr.f32.mxu0 0.0
      %1470 = vmatmul.mubr.f32.gmra.mrb[0].mxu0 %v1292
      %v1471 = vpop.f32.mrb[0].mxu0
      %v1472 = vadd.f32 0.0, %v1471
      %v1473 = vpop.f32.mrb[0].mxu0
      %1474 = vmatprep.mubr.f32.mxu0 0.0
      %1475 = vmatmul.mubr.f32.gmra.mrb[0].mxu0 %v1295
      %v1476 = vpop.f32.mrb[0].mxu0
      %v1477 = vadd.f32 0.0, %v1476
      %v1478 = vpop.f32.mrb[0].mxu0
      %1479 = vmatprep.mubr.f32.mxu0 0.0
      %1480 = vmatmul.mubr.f32.gmra.mrb[0].mxu0 %v1298
      %v1481 = vpop.f32.mrb[0].mxu0
      %v1482 = vadd.f32 0.0, %v1481
      %v1483 = vpop.f32.mrb[0].mxu0
      %1484 = vmatprep.mubr.f32.mxu0 0.0
      %1485 = vmatmul.mubr.f32.gmra.mrb[0].mxu0 %v1301
      %v1486 = vpop.f32.mrb[0].mxu0
      %v1487 = vadd.f32 0.0, %v1486
      %v1488 = vpop.f32.mrb[0].mxu0
      %1489 = vmatprep.mubr.f32.mxu0 0.0
      %1490 = vmatmul.mubr.f32.gmra.mrb[0].mxu0 %v1304
      %v1491 = vpop.f32.mrb[0].mxu0
      %v1492 = vadd.f32 0.0, %v1491
      %v1493 = vpop.f32.mrb[0].mxu0
      %1494 = vmatprep.mubr.f32.mxu0 0.0
      %1495 = vmatmul.mubr.f32.gmra.mrb[0].mxu0 %v1307
      %v1496 = vpop.f32.mrb[0].mxu0
      %v1497 = vadd.f32 0.0, %v1496
      %v1498 = vpop.f32.mrb[0].mxu0
      %1499 = vmatprep.mubr.f32.mxu0 0.0
      %1500 = vmatmul.mubr.f32.gmra.mrb[0].mxu0 %v1310
      %v1501 = vpop.f32.mrb[0].mxu0
      %v1502 = vadd.f32 0.0, %v1501
      %v1503 = vpop.f32.mrb[0].mxu0
      %1504 = vmatprep.mubr.f32.mxu0 0.0
      %1505 = vmatmul.mubr.f32.gmra.mrb[0].mxu0 %v1313
      %v1506 = vpop.f32.mrb[0].mxu0
      %v1507 = vadd.f32 0.0, %v1506
      %v1508 = vpop.f32.mrb[0].mxu0
      %1509 = vmatprep.mubr.f32.mxu0 0.0
      %1510 = vmatmul.mubr.f32.gmra.mrb[0].mxu0 %v1316
      %v1511 = vpop.f32.mrb[0].mxu0
      %v1512 = vadd.f32 0.0, %v1511
      %v1513 = vpop.f32.mrb[0].mxu0
      %1514 = vmatprep.mubr.f32.mxu0 0.0
      %1515 = vmatmul.mubr.f32.gmra.mrb[0].mxu0 %v1319
      %v1516 = vpop.f32.mrb[0].mxu0
      %v1517 = vadd.f32 0.0, %v1516
      %v1518 = vpop.f32.mrb[0].mxu0
      %1519 = vmatprep.mubr.f32.mxu0 0.0
      %1520 = vmatmul.mubr.f32.gmra.mrb[0].mxu0 %v1322
      %v1521 = vpop.f32.mrb[0].mxu0
      %v1522 = vadd.f32 0.0, %v1521
      %v1523 = vpop.f32.mrb[0].mxu0
      %1524 = vmatprep.mubr.f32.mxu0 0.0
      %1525 = vmatmul.mubr.f32.gmra.mrb[0].mxu0 %v1325
      %v1526 = vpop.f32.mrb[0].mxu0
      %v1527 = vadd.f32 0.0, %v1526
      %v1528 = vpop.f32.mrb[0].mxu0
      %1529 = vmatprep.mubr.f32.mxu0 0.0
      %1530 = vmatmul.mubr.f32.gmra.mrb[0].mxu0 %v1328
      %v1531 = vpop.f32.mrb[0].mxu0
      %v1532 = vadd.f32 0.0, %v1531
      %v1533 = vpop.f32.mrb[0].mxu0
      %1534 = vmatprep.mubr.f32.mxu0 0.0
      %1535 = vmatmul.mubr.f32.gmra.mrb[0].mxu0 %v1331
      %v1536 = vpop.f32.mrb[0].mxu0
      %v1537 = vadd.f32 0.0, %v1536
      %v1538 = vpop.f32.mrb[0].mxu0
      %1539 = vmatprep.mubr.f32.mxu0 0.0
      %1540 = vmatmul.mubr.f32.gmra.mrb[0].mxu0 %v1334
      %v1541 = vpop.f32.mrb[0].mxu0
      %v1542 = vadd.f32 0.0, %v1541
      %v1543 = vpop.f32.mrb[0].mxu0
      %1544 = vmatprep.mubr.f32.mxu0 0.0
      %1545 = vmatmul.mubr.f32.gmra.mrb[0].mxu0 %v1337
      %v1546 = vpop.f32.mrb[0].mxu0
      %v1547 = vadd.f32 0.0, %v1546
      %v1548 = vpop.f32.mrb[0].mxu0
      %1549 = vmatprep.mubr.f32.mxu0 0.0
      %1550 = vmatmul.mubr.f32.gmra.mrb[0].mxu0 %v1340
      %v1551 = vpop.f32.mrb[0].mxu0
      %v1552 = vadd.f32 0.0, %v1551
      %v1553 = vpop.f32.mrb[0].mxu0
      %1554 = vmatprep.mubr.f32.mxu0 0.0
      %1555 = vmatmul.mubr.f32.gmra.mrb[0].mxu0 %v1343
      %v1556 = vpop.f32.mrb[0].mxu0
      %v1557 = vadd.f32 0.0, %v1556
      %v1558 = vpop.f32.mrb[0].mxu0
      %1559 = vmatprep.mubr.f32.mxu0 0.0
      %1560 = vmatmul.mubr.f32.gmra.mrb[0].mxu0 %v1346
      %v1561 = vpop.f32.mrb[0].mxu0
      %v1562 = vadd.f32 0.0, %v1561
      %v1563 = vpop.f32.mrb[0].mxu0
      %1564 = vmatprep.mubr.f32.mxu0 0.0
      %1565 = vmatmul.mubr.f32.gmra.mrb[0].mxu0 %v1349
      %v1566 = vpop.f32.mrb[0].mxu0
      %v1567 = vadd.f32 0.0, %v1566
      %v1568 = vpop.f32.mrb[0].mxu0
      %1569 = vmatprep.mubr.f32.mxu0 0.0
      %1570 = vmatmul.mubr.f32.gmra.mrb[0].mxu0 %v1352
      %v1571 = vpop.f32.mrb[0].mxu0
      %v1572 = vadd.f32 0.0, %v1571
      %v1573 = vpop.f32.mrb[0].mxu0
      %1574 = vmatprep.mubr.f32.mxu0 0.0
      %1575 = vmatmul.mubr.f32.gmra.mrb[0].mxu0 %v1355
      %v1576 = vpop.f32.mrb[0].mxu0
      %v1577 = vadd.f32 0.0, %v1576
      %v1578 = vpop.f32.mrb[0].mxu0
      %1579 = vmatprep.mubr.f32.mxu0 0.0
      %1580 = vmatmul.mubr.f32.gmra.mrb[0].mxu0 %v1358
      %v1581 = vpop.f32.mrb[0].mxu0
      %v1582 = vadd.f32 0.0, %v1581
      %v1583 = vpop.f32.mrb[0].mxu0
      %1584 = vdwg.mxu0
      %v1585 = vld [vmem:[#allocation2] sm:$0xff]
      %v1586 = vld [vmem:[#allocation2 + $0x8] sm:$0xff]
      %v1587 = vld [vmem:[#allocation2 + $0x10] sm:$0xff]
      %v1588 = vld [vmem:[#allocation2 + $0x18] sm:$0xff]
      %v1589 = vld [vmem:[#allocation2 + $0x20] sm:$0xff]
      %v1590 = vld [vmem:[#allocation2 + $0x28] sm:$0xff]
      %v1591 = vld [vmem:[#allocation2 + $0x30] sm:$0xff]
      %v1592 = vld [vmem:[#allocation2 + $0x38] sm:$0xff]
      %v1593 = vld [vmem:[#allocation2 + $0x40] sm:$0xff]
      %v1594 = vld [vmem:[#allocation2 + $0x48] sm:$0xff]
      %v1595 = vld [vmem:[#allocation2 + $0x50] sm:$0xff]
      %v1596 = vld [vmem:[#allocation2 + $0x58] sm:$0xff]
      %v1597 = vld [vmem:[#allocation2 + $0x60] sm:$0xff]
      %v1598 = vld [vmem:[#allocation2 + $0x68] sm:$0xff]
      %v1599 = vld [vmem:[#allocation2 + $0x70] sm:$0xff]
      %v1600 = vld [vmem:[#allocation2 + $0x78] sm:$0xff]
      %v1601 = vld [vmem:[#allocation2 + $0x80] sm:$0xff]
      %v1602 = vld [vmem:[#allocation2 + $0x88] sm:$0xff]
      %v1603 = vld [vmem:[#allocation2 + $0x90] sm:$0xff]
      %v1604 = vld [vmem:[#allocation2 + $0x98] sm:$0xff]
      %v1605 = vld [vmem:[#allocation2 + $0xa0] sm:$0xff]
      %v1606 = vld [vmem:[#allocation2 + $0xa8] sm:$0xff]
      %v1607 = vld [vmem:[#allocation2 + $0xb0] sm:$0xff]
      %v1608 = vld [vmem:[#allocation2 + $0xb8] sm:$0xff]
      %v1609 = vld [vmem:[#allocation2 + $0xc0] sm:$0xff]
      %v1610 = vld [vmem:[#allocation2 + $0xc8] sm:$0xff]
      %v1611 = vld [vmem:[#allocation2 + $0xd0] sm:$0xff]
      %v1612 = vld [vmem:[#allocation2 + $0xd8] sm:$0xff]
      %v1613 = vld [vmem:[#allocation2 + $0xe0] sm:$0xff]
      %v1614 = vld [vmem:[#allocation2 + $0xe8] sm:$0xff]
      %v1615 = vld [vmem:[#allocation2 + $0xf0] sm:$0xff]
      %v1616 = vld [vmem:[#allocation2 + $0xf8] sm:$0xff]
      %v1617 = vadd.f32 %v1585, %v1427
      %v1618 = vadd.f32 %v1586, %v1432
      %v1619 = vadd.f32 %v1587, %v1437
      %v1620 = vadd.f32 %v1588, %v1442
      %v1621 = vadd.f32 %v1589, %v1447
      %v1622 = vadd.f32 %v1590, %v1452
      %v1623 = vadd.f32 %v1591, %v1457
      %v1624 = vadd.f32 %v1592, %v1462
      %v1625 = vadd.f32 %v1593, %v1467
      %v1626 = vadd.f32 %v1594, %v1472
      %v1627 = vadd.f32 %v1595, %v1477
      %v1628 = vadd.f32 %v1596, %v1482
      %v1629 = vadd.f32 %v1597, %v1487
      %v1630 = vadd.f32 %v1598, %v1492
      %v1631 = vadd.f32 %v1599, %v1497
      %v1632 = vadd.f32 %v1600, %v1502
      %v1633 = vadd.f32 %v1601, %v1507
      %v1634 = vadd.f32 %v1602, %v1512
      %v1635 = vadd.f32 %v1603, %v1517
      %v1636 = vadd.f32 %v1604, %v1522
      %v1637 = vadd.f32 %v1605, %v1527
      %v1638 = vadd.f32 %v1606, %v1532
      %v1639 = vadd.f32 %v1607, %v1537
      %v1640 = vadd.f32 %v1608, %v1542
      %v1641 = vadd.f32 %v1609, %v1547
      %v1642 = vadd.f32 %v1610, %v1552
      %v1643 = vadd.f32 %v1611, %v1557
      %v1644 = vadd.f32 %v1612, %v1562
      %v1645 = vadd.f32 %v1613, %v1567
      %v1646 = vadd.f32 %v1614, %v1572
      %v1647 = vadd.f32 %v1615, %v1577
      %v1648 = vadd.f32 %v1616, %v1582
      %1649 = vst [vmem:[#allocation2] sm:$0xff] %v1617
      %1650 = vst [vmem:[#allocation2 + $0x8] sm:$0xff] %v1618
      %1651 = vst [vmem:[#allocation2 + $0x10] sm:$0xff] %v1619
      %1652 = vst [vmem:[#allocation2 + $0x18] sm:$0xff] %v1620
      %1653 = vst [vmem:[#allocation2 + $0x20] sm:$0xff] %v1621
      %1654 = vst [vmem:[#allocation2 + $0x28] sm:$0xff] %v1622
      %1655 = vst [vmem:[#allocation2 + $0x30] sm:$0xff] %v1623
      %1656 = vst [vmem:[#allocation2 + $0x38] sm:$0xff] %v1624
      %1657 = vst [vmem:[#allocation2 + $0x40] sm:$0xff] %v1625
      %1658 = vst [vmem:[#allocation2 + $0x48] sm:$0xff] %v1626
      %1659 = vst [vmem:[#allocation2 + $0x50] sm:$0xff] %v1627
      %1660 = vst [vmem:[#allocation2 + $0x58] sm:$0xff] %v1628
      %1661 = vst [vmem:[#allocation2 + $0x60] sm:$0xff] %v1629
      %1662 = vst [vmem:[#allocation2 + $0x68] sm:$0xff] %v1630
      %1663 = vst [vmem:[#allocation2 + $0x70] sm:$0xff] %v1631
      %1664 = vst [vmem:[#allocation2 + $0x78] sm:$0xff] %v1632
      %1665 = vst [vmem:[#allocation2 + $0x80] sm:$0xff] %v1633
      %1666 = vst [vmem:[#allocation2 + $0x88] sm:$0xff] %v1634
      %1667 = vst [vmem:[#allocation2 + $0x90] sm:$0xff] %v1635
      %1668 = vst [vmem:[#allocation2 + $0x98] sm:$0xff] %v1636
      %1669 = vst [vmem:[#allocation2 + $0xa0] sm:$0xff] %v1637
      %1670 = vst [vmem:[#allocation2 + $0xa8] sm:$0xff] %v1638
      %1671 = vst [vmem:[#allocation2 + $0xb0] sm:$0xff] %v1639
      %1672 = vst [vmem:[#allocation2 + $0xb8] sm:$0xff] %v1640
      %1673 = vst [vmem:[#allocation2 + $0xc0] sm:$0xff] %v1641
      %1674 = vst [vmem:[#allocation2 + $0xc8] sm:$0xff] %v1642
      %1675 = vst [vmem:[#allocation2 + $0xd0] sm:$0xff] %v1643
      %1676 = vst [vmem:[#allocation2 + $0xd8] sm:$0xff] %v1644
      %1677 = vst [vmem:[#allocation2 + $0xe0] sm:$0xff] %v1645
      %1678 = vst [vmem:[#allocation2 + $0xe8] sm:$0xff] %v1646
      %1679 = vst [vmem:[#allocation2 + $0xf0] sm:$0xff] %v1647
      %1680 = vst [vmem:[#allocation2 + $0xf8] sm:$0xff] %v1648
      %s1681 = scalar_lea.vmem %s376, 24
      %v1682 = vld [vmem:[%s1681] sm:$0xff]
      %v1683 = vld [vmem:[%s1681 + $0x8] sm:$0xff]
      %v1684 = vld [vmem:[%s1681 + $0x18] sm:$0xff]
      %v1685 = vld [vmem:[%s1681 + $0x20] sm:$0xff]
      %v1686 = vld [vmem:[%s1681 + $0x30] sm:$0xff]
      %v1687 = vld [vmem:[%s1681 + $0x38] sm:$0xff]
      %v1688 = vld [vmem:[%s1681 + $0x48] sm:$0xff]
      %v1689 = vld [vmem:[%s1681 + $0x50] sm:$0xff]
      %v1690 = vld [vmem:[%s1681 + $0x60] sm:$0xff]
      %v1691 = vld [vmem:[%s1681 + $0x68] sm:$0xff]
      %v1692 = vld [vmem:[%s1681 + $0x78] sm:$0xff]
      %v1693 = vld [vmem:[%s1681 + $0x80] sm:$0xff]
      %v1694 = vld [vmem:[%s1681 + $0x90] sm:$0xff]
      %v1695 = vld [vmem:[%s1681 + $0x98] sm:$0xff]
      %v1696 = vld [vmem:[%s1681 + $0xa8] sm:$0xff]
      %v1697 = vld [vmem:[%s1681 + $0xb0] sm:$0xff]
      %v1698 = vld [vmem:[%s1681 + $0xc0] sm:$0xff]
      %v1699 = vld [vmem:[%s1681 + $0xc8] sm:$0xff]
      %v1700 = vld [vmem:[%s1681 + $0xd8] sm:$0xff]
      %v1701 = vld [vmem:[%s1681 + $0xe0] sm:$0xff]
      %v1702 = vld [vmem:[%s1681 + $0xf0] sm:$0xff]
      %v1703 = vld [vmem:[%s1681 + $0xf8] sm:$0xff]
      %v1704 = vld [vmem:[%s1681 + $0x108] sm:$0xff]
      %v1705 = vld [vmem:[%s1681 + $0x110] sm:$0xff]
      %v1706 = vld [vmem:[%s1681 + $0x120] sm:$0xff]
      %v1707 = vld [vmem:[%s1681 + $0x128] sm:$0xff]
      %v1708 = vld [vmem:[%s1681 + $0x138] sm:$0xff]
      %v1709 = vld [vmem:[%s1681 + $0x140] sm:$0xff]
      %v1710 = vld [vmem:[%s1681 + $0x150] sm:$0xff]
      %v1711 = vld [vmem:[%s1681 + $0x158] sm:$0xff]
      %v1712 = vld [vmem:[%s1681 + $0x168] sm:$0xff]
      %v1713 = vld [vmem:[%s1681 + $0x170] sm:$0xff]
      %s1714 = scalar_lea.vmem %s2, 24
      %v1715 = vld [vmem:[%s1714] sm:$0xff]
      %v1717 = vsel %vm425, %v1682, 0
      %v1720 = vsel %vm425, %v1683, 0
      %v1723 = vsel %vm425, %v1684, 0
      %v1726 = vsel %vm425, %v1685, 0
      %v1729 = vsel %vm425, %v1686, 0
      %v1732 = vsel %vm425, %v1687, 0
      %v1735 = vsel %vm425, %v1688, 0
      %v1738 = vsel %vm425, %v1689, 0
      %v1741 = vsel %vm425, %v1690, 0
      %v1744 = vsel %vm425, %v1691, 0
      %v1747 = vsel %vm425, %v1692, 0
      %v1750 = vsel %vm425, %v1693, 0
      %v1753 = vsel %vm425, %v1694, 0
      %v1756 = vsel %vm425, %v1695, 0
      %v1759 = vsel %vm425, %v1696, 0
      %v1762 = vsel %vm425, %v1697, 0
      %v1765 = vsel %vm425, %v1698, 0
      %v1768 = vsel %vm425, %v1699, 0
      %v1771 = vsel %vm425, %v1700, 0
      %v1774 = vsel %vm425, %v1701, 0
      %v1777 = vsel %vm425, %v1702, 0
      %v1780 = vsel %vm425, %v1703, 0
      %v1783 = vsel %vm425, %v1704, 0
      %v1786 = vsel %vm425, %v1705, 0
      %v1789 = vsel %vm425, %v1706, 0
      %v1792 = vsel %vm425, %v1707, 0
      %v1795 = vsel %vm425, %v1708, 0
      %v1798 = vsel %vm425, %v1709, 0
      %v1801 = vsel %vm425, %v1710, 0
      %v1804 = vsel %vm425, %v1711, 0
      %v1807 = vsel %vm425, %v1712, 0
      %v1810 = vsel %vm425, %v1713, 0
      %1812 = vmatprep.subr.mxu0 0.0
      %1813 = vmatpush1.msra.mxu0 %v1715
      %1814 = vmatprep.subr.mxu0 0.0
      %1815 = vmatpush1.msra.mxu0 0.0
      %1816 = vmatprep.subr.mxu0 0.0
      %1817 = vmatpush1.msra.mxu0 0.0
      %1818 = vmatprep.subr.mxu0 0.0
      %1819 = vmatpush1.msra.mxu0 0.0
      %1820 = vmatprep.subr.mxu0 0.0
      %1821 = vmatpush1.msra.mxu0 0.0
      %1822 = vmatprep.subr.mxu0 0.0
      %1823 = vmatpush1.msra.mxu0 0.0
      %1824 = vmatprep.subr.mxu0 0.0
      %1825 = vmatpush1.msra.mxu0 0.0
      %1826 = vmatprep.subr.mxu0 0.0
      %1827 = vmatpush1.msra.mxu0 0.0
      %1828 = vmatprep.subr.mxu0 0.0
      %1829 = vmatpush1.msra.mxu0 0.0
      %1830 = vmatprep.subr.mxu0 0.0
      %1831 = vmatpush1.msra.mxu0 0.0
      %1832 = vmatprep.subr.mxu0 0.0
      %1833 = vmatpush1.msra.mxu0 0.0
      %1834 = vmatprep.subr.mxu0 0.0
      %1835 = vmatpush1.msra.mxu0 0.0
      %1836 = vmatprep.subr.mxu0 0.0
      %1837 = vmatpush1.msra.mxu0 0.0
      %1838 = vmatprep.subr.mxu0 0.0
      %1839 = vmatpush1.msra.mxu0 0.0
      %1840 = vmatprep.subr.mxu0 0.0
      %1841 = vmatpush1.msra.mxu0 0.0
      %1842 = vmatprep.subr.mxu0 0.0
      %1843 = vmatpush1.msra.mxu0 0.0
      %1844 = vmatprep.subr.mxu0 0.0
      %1845 = vmatpush1.msra.mxu0 0.0
      %1846 = vmatprep.subr.mxu0 0.0
      %1847 = vmatpush1.msra.mxu0 0.0
      %1848 = vmatprep.subr.mxu0 0.0
      %1849 = vmatpush1.msra.mxu0 0.0
      %1850 = vmatprep.subr.mxu0 0.0
      %1851 = vmatpush1.msra.mxu0 0.0
      %1852 = vmatprep.subr.mxu0 0.0
      %1853 = vmatpush1.msra.mxu0 0.0
      %1854 = vmatprep.subr.mxu0 0.0
      %1855 = vmatpush1.msra.mxu0 0.0
      %1856 = vmatprep.subr.mxu0 0.0
      %1857 = vmatpush1.msra.mxu0 0.0
      %1858 = vmatprep.subr.mxu0 0.0
      %1859 = vmatpush1.msra.mxu0 0.0
      %1860 = vmatprep.subr.mxu0 0.0
      %1861 = vmatpush1.msra.mxu0 0.0
      %1862 = vmatprep.subr.mxu0 0.0
      %1863 = vmatpush1.msra.mxu0 0.0
      %1864 = vmatprep.subr.mxu0 0.0
      %1865 = vmatpush1.msra.mxu0 0.0
      %1866 = vmatprep.subr.mxu0 0.0
      %1867 = vmatpush1.msra.mxu0 0.0
      %1868 = vmatprep.subr.mxu0 0.0
      %1869 = vmatpush1.msra.mxu0 0.0
      %1870 = vmatprep.subr.mxu0 0.0
      %1871 = vmatpush1.msra.mxu0 0.0
      %1872 = vmatprep.subr.mxu0 0.0
      %1873 = vmatpush1.msra.mxu0 0.0
      %1874 = vmatprep.subr.mxu0 0.0
      %1875 = vmatpush1.msra.mxu0 0.0
      %1876 = vmatprep.mubr.f32.mxu0 0.0
      %1877 = vmatmul.mubr.f32.gmra.mrb[0].mxu0 %v1717
      %v1878 = vpop.f32.mrb[0].mxu0
      %v1879 = vadd.f32 0.0, %v1878
      %v1880 = vpop.f32.mrb[0].mxu0
      %1881 = vmatprep.mubr.f32.mxu0 0.0
      %1882 = vmatmul.mubr.f32.gmra.mrb[0].mxu0 %v1720
      %v1883 = vpop.f32.mrb[0].mxu0
      %v1884 = vadd.f32 0.0, %v1883
      %v1885 = vpop.f32.mrb[0].mxu0
      %1886 = vmatprep.mubr.f32.mxu0 0.0
      %1887 = vmatmul.mubr.f32.gmra.mrb[0].mxu0 %v1723
      %v1888 = vpop.f32.mrb[0].mxu0
      %v1889 = vadd.f32 0.0, %v1888
      %v1890 = vpop.f32.mrb[0].mxu0
      %1891 = vmatprep.mubr.f32.mxu0 0.0
      %1892 = vmatmul.mubr.f32.gmra.mrb[0].mxu0 %v1726
      %v1893 = vpop.f32.mrb[0].mxu0
      %v1894 = vadd.f32 0.0, %v1893
      %v1895 = vpop.f32.mrb[0].mxu0
      %1896 = vmatprep.mubr.f32.mxu0 0.0
      %1897 = vmatmul.mubr.f32.gmra.mrb[0].mxu0 %v1729
      %v1898 = vpop.f32.mrb[0].mxu0
      %v1899 = vadd.f32 0.0, %v1898
      %v1900 = vpop.f32.mrb[0].mxu0
      %1901 = vmatprep.mubr.f32.mxu0 0.0
      %1902 = vmatmul.mubr.f32.gmra.mrb[0].mxu0 %v1732
      %v1903 = vpop.f32.mrb[0].mxu0
      %v1904 = vadd.f32 0.0, %v1903
      %v1905 = vpop.f32.mrb[0].mxu0
      %1906 = vmatprep.mubr.f32.mxu0 0.0
      %1907 = vmatmul.mubr.f32.gmra.mrb[0].mxu0 %v1735
      %v1908 = vpop.f32.mrb[0].mxu0
      %v1909 = vadd.f32 0.0, %v1908
      %v1910 = vpop.f32.mrb[0].mxu0
      %1911 = vmatprep.mubr.f32.mxu0 0.0
      %1912 = vmatmul.mubr.f32.gmra.mrb[0].mxu0 %v1738
      %v1913 = vpop.f32.mrb[0].mxu0
      %v1914 = vadd.f32 0.0, %v1913
      %v1915 = vpop.f32.mrb[0].mxu0
      %1916 = vmatprep.mubr.f32.mxu0 0.0
      %1917 = vmatmul.mubr.f32.gmra.mrb[0].mxu0 %v1741
      %v1918 = vpop.f32.mrb[0].mxu0
      %v1919 = vadd.f32 0.0, %v1918
      %v1920 = vpop.f32.mrb[0].mxu0
      %1921 = vmatprep.mubr.f32.mxu0 0.0
      %1922 = vmatmul.mubr.f32.gmra.mrb[0].mxu0 %v1744
      %v1923 = vpop.f32.mrb[0].mxu0
      %v1924 = vadd.f32 0.0, %v1923
      %v1925 = vpop.f32.mrb[0].mxu0
      %1926 = vmatprep.mubr.f32.mxu0 0.0
      %1927 = vmatmul.mubr.f32.gmra.mrb[0].mxu0 %v1747
      %v1928 = vpop.f32.mrb[0].mxu0
      %v1929 = vadd.f32 0.0, %v1928
      %v1930 = vpop.f32.mrb[0].mxu0
      %1931 = vmatprep.mubr.f32.mxu0 0.0
      %1932 = vmatmul.mubr.f32.gmra.mrb[0].mxu0 %v1750
      %v1933 = vpop.f32.mrb[0].mxu0
      %v1934 = vadd.f32 0.0, %v1933
      %v1935 = vpop.f32.mrb[0].mxu0
      %1936 = vmatprep.mubr.f32.mxu0 0.0
      %1937 = vmatmul.mubr.f32.gmra.mrb[0].mxu0 %v1753
      %v1938 = vpop.f32.mrb[0].mxu0
      %v1939 = vadd.f32 0.0, %v1938
      %v1940 = vpop.f32.mrb[0].mxu0
      %1941 = vmatprep.mubr.f32.mxu0 0.0
      %1942 = vmatmul.mubr.f32.gmra.mrb[0].mxu0 %v1756
      %v1943 = vpop.f32.mrb[0].mxu0
      %v1944 = vadd.f32 0.0, %v1943
      %v1945 = vpop.f32.mrb[0].mxu0
      %1946 = vmatprep.mubr.f32.mxu0 0.0
      %1947 = vmatmul.mubr.f32.gmra.mrb[0].mxu0 %v1759
      %v1948 = vpop.f32.mrb[0].mxu0
      %v1949 = vadd.f32 0.0, %v1948
      %v1950 = vpop.f32.mrb[0].mxu0
      %1951 = vmatprep.mubr.f32.mxu0 0.0
      %1952 = vmatmul.mubr.f32.gmra.mrb[0].mxu0 %v1762
      %v1953 = vpop.f32.mrb[0].mxu0
      %v1954 = vadd.f32 0.0, %v1953
      %v1955 = vpop.f32.mrb[0].mxu0
      %1956 = vmatprep.mubr.f32.mxu0 0.0
      %1957 = vmatmul.mubr.f32.gmra.mrb[0].mxu0 %v1765
      %v1958 = vpop.f32.mrb[0].mxu0
      %v1959 = vadd.f32 0.0, %v1958
      %v1960 = vpop.f32.mrb[0].mxu0
      %1961 = vmatprep.mubr.f32.mxu0 0.0
      %1962 = vmatmul.mubr.f32.gmra.mrb[0].mxu0 %v1768
      %v1963 = vpop.f32.mrb[0].mxu0
      %v1964 = vadd.f32 0.0, %v1963
      %v1965 = vpop.f32.mrb[0].mxu0
      %1966 = vmatprep.mubr.f32.mxu0 0.0
      %1967 = vmatmul.mubr.f32.gmra.mrb[0].mxu0 %v1771
      %v1968 = vpop.f32.mrb[0].mxu0
      %v1969 = vadd.f32 0.0, %v1968
      %v1970 = vpop.f32.mrb[0].mxu0
      %1971 = vmatprep.mubr.f32.mxu0 0.0
      %1972 = vmatmul.mubr.f32.gmra.mrb[0].mxu0 %v1774
      %v1973 = vpop.f32.mrb[0].mxu0
      %v1974 = vadd.f32 0.0, %v1973
      %v1975 = vpop.f32.mrb[0].mxu0
      %1976 = vmatprep.mubr.f32.mxu0 0.0
      %1977 = vmatmul.mubr.f32.gmra.mrb[0].mxu0 %v1777
      %v1978 = vpop.f32.mrb[0].mxu0
      %v1979 = vadd.f32 0.0, %v1978
      %v1980 = vpop.f32.mrb[0].mxu0
      %1981 = vmatprep.mubr.f32.mxu0 0.0
      %1982 = vmatmul.mubr.f32.gmra.mrb[0].mxu0 %v1780
      %v1983 = vpop.f32.mrb[0].mxu0
      %v1984 = vadd.f32 0.0, %v1983
      %v1985 = vpop.f32.mrb[0].mxu0
      %1986 = vmatprep.mubr.f32.mxu0 0.0
      %1987 = vmatmul.mubr.f32.gmra.mrb[0].mxu0 %v1783
      %v1988 = vpop.f32.mrb[0].mxu0
      %v1989 = vadd.f32 0.0, %v1988
      %v1990 = vpop.f32.mrb[0].mxu0
      %1991 = vmatprep.mubr.f32.mxu0 0.0
      %1992 = vmatmul.mubr.f32.gmra.mrb[0].mxu0 %v1786
      %v1993 = vpop.f32.mrb[0].mxu0
      %v1994 = vadd.f32 0.0, %v1993
      %v1995 = vpop.f32.mrb[0].mxu0
      %1996 = vmatprep.mubr.f32.mxu0 0.0
      %1997 = vmatmul.mubr.f32.gmra.mrb[0].mxu0 %v1789
      %v1998 = vpop.f32.mrb[0].mxu0
      %v1999 = vadd.f32 0.0, %v1998
      %v2000 = vpop.f32.mrb[0].mxu0
      %2001 = vmatprep.mubr.f32.mxu0 0.0
      %2002 = vmatmul.mubr.f32.gmra.mrb[0].mxu0 %v1792
      %v2003 = vpop.f32.mrb[0].mxu0
      %v2004 = vadd.f32 0.0, %v2003
      %v2005 = vpop.f32.mrb[0].mxu0
      %2006 = vmatprep.mubr.f32.mxu0 0.0
      %2007 = vmatmul.mubr.f32.gmra.mrb[0].mxu0 %v1795
      %v2008 = vpop.f32.mrb[0].mxu0
      %v2009 = vadd.f32 0.0, %v2008
      %v2010 = vpop.f32.mrb[0].mxu0
      %2011 = vmatprep.mubr.f32.mxu0 0.0
      %2012 = vmatmul.mubr.f32.gmra.mrb[0].mxu0 %v1798
      %v2013 = vpop.f32.mrb[0].mxu0
      %v2014 = vadd.f32 0.0, %v2013
      %v2015 = vpop.f32.mrb[0].mxu0
      %2016 = vmatprep.mubr.f32.mxu0 0.0
      %2017 = vmatmul.mubr.f32.gmra.mrb[0].mxu0 %v1801
      %v2018 = vpop.f32.mrb[0].mxu0
      %v2019 = vadd.f32 0.0, %v2018
      %v2020 = vpop.f32.mrb[0].mxu0
      %2021 = vmatprep.mubr.f32.mxu0 0.0
      %2022 = vmatmul.mubr.f32.gmra.mrb[0].mxu0 %v1804
      %v2023 = vpop.f32.mrb[0].mxu0
      %v2024 = vadd.f32 0.0, %v2023
      %v2025 = vpop.f32.mrb[0].mxu0
      %2026 = vmatprep.mubr.f32.mxu0 0.0
      %2027 = vmatmul.mubr.f32.gmra.mrb[0].mxu0 %v1807
      %v2028 = vpop.f32.mrb[0].mxu0
      %v2029 = vadd.f32 0.0, %v2028
      %v2030 = vpop.f32.mrb[0].mxu0
      %2031 = vmatprep.mubr.f32.mxu0 0.0
      %2032 = vmatmul.mubr.f32.gmra.mrb[0].mxu0 %v1810
      %v2033 = vpop.f32.mrb[0].mxu0
      %v2034 = vadd.f32 0.0, %v2033
      %v2035 = vpop.f32.mrb[0].mxu0
      %2036 = vdwg.mxu0
      %v2037 = vld [vmem:[#allocation2] sm:$0xff]
      %v2038 = vld [vmem:[#allocation2 + $0x8] sm:$0xff]
      %v2039 = vld [vmem:[#allocation2 + $0x10] sm:$0xff]
      %v2040 = vld [vmem:[#allocation2 + $0x18] sm:$0xff]
      %v2041 = vld [vmem:[#allocation2 + $0x20] sm:$0xff]
      %v2042 = vld [vmem:[#allocation2 + $0x28] sm:$0xff]
      %v2043 = vld [vmem:[#allocation2 + $0x30] sm:$0xff]
      %v2044 = vld [vmem:[#allocation2 + $0x38] sm:$0xff]
      %v2045 = vld [vmem:[#allocation2 + $0x40] sm:$0xff]
      %v2046 = vld [vmem:[#allocation2 + $0x48] sm:$0xff]
      %v2047 = vld [vmem:[#allocation2 + $0x50] sm:$0xff]
      %v2048 = vld [vmem:[#allocation2 + $0x58] sm:$0xff]
      %v2049 = vld [vmem:[#allocation2 + $0x60] sm:$0xff]
      %v2050 = vld [vmem:[#allocation2 + $0x68] sm:$0xff]
      %v2051 = vld [vmem:[#allocation2 + $0x70] sm:$0xff]
      %v2052 = vld [vmem:[#allocation2 + $0x78] sm:$0xff]
      %v2053 = vld [vmem:[#allocation2 + $0x80] sm:$0xff]
      %v2054 = vld [vmem:[#allocation2 + $0x88] sm:$0xff]
      %v2055 = vld [vmem:[#allocation2 + $0x90] sm:$0xff]
      %v2056 = vld [vmem:[#allocation2 + $0x98] sm:$0xff]
      %v2057 = vld [vmem:[#allocation2 + $0xa0] sm:$0xff]
      %v2058 = vld [vmem:[#allocation2 + $0xa8] sm:$0xff]
      %v2059 = vld [vmem:[#allocation2 + $0xb0] sm:$0xff]
      %v2060 = vld [vmem:[#allocation2 + $0xb8] sm:$0xff]
      %v2061 = vld [vmem:[#allocation2 + $0xc0] sm:$0xff]
      %v2062 = vld [vmem:[#allocation2 + $0xc8] sm:$0xff]
      %v2063 = vld [vmem:[#allocation2 + $0xd0] sm:$0xff]
      %v2064 = vld [vmem:[#allocation2 + $0xd8] sm:$0xff]
      %v2065 = vld [vmem:[#allocation2 + $0xe0] sm:$0xff]
      %v2066 = vld [vmem:[#allocation2 + $0xe8] sm:$0xff]
      %v2067 = vld [vmem:[#allocation2 + $0xf0] sm:$0xff]
      %v2068 = vld [vmem:[#allocation2 + $0xf8] sm:$0xff]
      %v2069 = vadd.f32 %v2037, %v1879
      %v2070 = vadd.f32 %v2038, %v1884
      %v2071 = vadd.f32 %v2039, %v1889
      %v2072 = vadd.f32 %v2040, %v1894
      %v2073 = vadd.f32 %v2041, %v1899
      %v2074 = vadd.f32 %v2042, %v1904
      %v2075 = vadd.f32 %v2043, %v1909
      %v2076 = vadd.f32 %v2044, %v1914
      %v2077 = vadd.f32 %v2045, %v1919
      %v2078 = vadd.f32 %v2046, %v1924
      %v2079 = vadd.f32 %v2047, %v1929
      %v2080 = vadd.f32 %v2048, %v1934
      %v2081 = vadd.f32 %v2049, %v1939
      %v2082 = vadd.f32 %v2050, %v1944
      %v2083 = vadd.f32 %v2051, %v1949
      %v2084 = vadd.f32 %v2052, %v1954
      %v2085 = vadd.f32 %v2053, %v1959
      %v2086 = vadd.f32 %v2054, %v1964
      %v2087 = vadd.f32 %v2055, %v1969
      %v2088 = vadd.f32 %v2056, %v1974
      %v2089 = vadd.f32 %v2057, %v1979
      %v2090 = vadd.f32 %v2058, %v1984
      %v2091 = vadd.f32 %v2059, %v1989
      %v2092 = vadd.f32 %v2060, %v1994
      %v2093 = vadd.f32 %v2061, %v1999
      %v2094 = vadd.f32 %v2062, %v2004
      %v2095 = vadd.f32 %v2063, %v2009
      %v2096 = vadd.f32 %v2064, %v2014
      %v2097 = vadd.f32 %v2065, %v2019
      %v2098 = vadd.f32 %v2066, %v2024
      %v2099 = vadd.f32 %v2067, %v2029
      %v2100 = vadd.f32 %v2068, %v2034
      %2101 = vst [vmem:[#allocation2] sm:$0xff] %v2069
      %2102 = vst [vmem:[#allocation2 + $0x8] sm:$0xff] %v2070
      %2103 = vst [vmem:[#allocation2 + $0x10] sm:$0xff] %v2071
      %2104 = vst [vmem:[#allocation2 + $0x18] sm:$0xff] %v2072
      %2105 = vst [vmem:[#allocation2 + $0x20] sm:$0xff] %v2073
      %2106 = vst [vmem:[#allocation2 + $0x28] sm:$0xff] %v2074
      %2107 = vst [vmem:[#allocation2 + $0x30] sm:$0xff] %v2075
      %2108 = vst [vmem:[#allocation2 + $0x38] sm:$0xff] %v2076
      %2109 = vst [vmem:[#allocation2 + $0x40] sm:$0xff] %v2077
      %2110 = vst [vmem:[#allocation2 + $0x48] sm:$0xff] %v2078
      %2111 = vst [vmem:[#allocation2 + $0x50] sm:$0xff] %v2079
      %2112 = vst [vmem:[#allocation2 + $0x58] sm:$0xff] %v2080
      %2113 = vst [vmem:[#allocation2 + $0x60] sm:$0xff] %v2081
      %2114 = vst [vmem:[#allocation2 + $0x68] sm:$0xff] %v2082
      %2115 = vst [vmem:[#allocation2 + $0x70] sm:$0xff] %v2083
      %2116 = vst [vmem:[#allocation2 + $0x78] sm:$0xff] %v2084
      %2117 = vst [vmem:[#allocation2 + $0x80] sm:$0xff] %v2085
      %2118 = vst [vmem:[#allocation2 + $0x88] sm:$0xff] %v2086
      %2119 = vst [vmem:[#allocation2 + $0x90] sm:$0xff] %v2087
      %2120 = vst [vmem:[#allocation2 + $0x98] sm:$0xff] %v2088
      %2121 = vst [vmem:[#allocation2 + $0xa0] sm:$0xff] %v2089
      %2122 = vst [vmem:[#allocation2 + $0xa8] sm:$0xff] %v2090
      %2123 = vst [vmem:[#allocation2 + $0xb0] sm:$0xff] %v2091
      %2124 = vst [vmem:[#allocation2 + $0xb8] sm:$0xff] %v2092
      %2125 = vst [vmem:[#allocation2 + $0xc0] sm:$0xff] %v2093
      %2126 = vst [vmem:[#allocation2 + $0xc8] sm:$0xff] %v2094
      %2127 = vst [vmem:[#allocation2 + $0xd0] sm:$0xff] %v2095
      %2128 = vst [vmem:[#allocation2 + $0xd8] sm:$0xff] %v2096
      %2129 = vst [vmem:[#allocation2 + $0xe0] sm:$0xff] %v2097
      %2130 = vst [vmem:[#allocation2 + $0xe8] sm:$0xff] %v2098
      %2131 = vst [vmem:[#allocation2 + $0xf0] sm:$0xff] %v2099
      %2132 = vst [vmem:[#allocation2 + $0xf8] sm:$0xff] %v2100
      %v2133 = vld [vmem:[%s1681 + $0x1] sm:$0xff]
      %v2134 = vld [vmem:[%s1681 + $0x9] sm:$0xff]
      %v2135 = vld [vmem:[%s1681 + $0x19] sm:$0xff]
      %v2136 = vld [vmem:[%s1681 + $0x21] sm:$0xff]
      %v2137 = vld [vmem:[%s1681 + $0x31] sm:$0xff]
      %v2138 = vld [vmem:[%s1681 + $0x39] sm:$0xff]
      %v2139 = vld [vmem:[%s1681 + $0x49] sm:$0xff]
      %v2140 = vld [vmem:[%s1681 + $0x51] sm:$0xff]
      %v2141 = vld [vmem:[%s1681 + $0x61] sm:$0xff]
      %v2142 = vld [vmem:[%s1681 + $0x69] sm:$0xff]
      %v2143 = vld [vmem:[%s1681 + $0x79] sm:$0xff]
      %v2144 = vld [vmem:[%s1681 + $0x81] sm:$0xff]
      %v2145 = vld [vmem:[%s1681 + $0x91] sm:$0xff]
      %v2146 = vld [vmem:[%s1681 + $0x99] sm:$0xff]
      %v2147 = vld [vmem:[%s1681 + $0xa9] sm:$0xff]
      %v2148 = vld [vmem:[%s1681 + $0xb1] sm:$0xff]
      %v2149 = vld [vmem:[%s1681 + $0xc1] sm:$0xff]
      %v2150 = vld [vmem:[%s1681 + $0xc9] sm:$0xff]
      %v2151 = vld [vmem:[%s1681 + $0xd9] sm:$0xff]
      %v2152 = vld [vmem:[%s1681 + $0xe1] sm:$0xff]
      %v2153 = vld [vmem:[%s1681 + $0xf1] sm:$0xff]
      %v2154 = vld [vmem:[%s1681 + $0xf9] sm:$0xff]
      %v2155 = vld [vmem:[%s1681 + $0x109] sm:$0xff]
      %v2156 = vld [vmem:[%s1681 + $0x111] sm:$0xff]
      %v2157 = vld [vmem:[%s1681 + $0x121] sm:$0xff]
      %v2158 = vld [vmem:[%s1681 + $0x129] sm:$0xff]
      %v2159 = vld [vmem:[%s1681 + $0x139] sm:$0xff]
      %v2160 = vld [vmem:[%s1681 + $0x141] sm:$0xff]
      %v2161 = vld [vmem:[%s1681 + $0x151] sm:$0xff]
      %v2162 = vld [vmem:[%s1681 + $0x159] sm:$0xff]
      %v2163 = vld [vmem:[%s1681 + $0x169] sm:$0xff]
      %v2164 = vld [vmem:[%s1681 + $0x171] sm:$0xff]
      %s2165 = scalar_lea.vmem %s2, 32
      %v2166 = vld [vmem:[%s2165] sm:$0xff]
      %v2168 = vsel %vm425, %v2133, 0
      %v2171 = vsel %vm425, %v2134, 0
      %v2174 = vsel %vm425, %v2135, 0
      %v2177 = vsel %vm425, %v2136, 0
      %v2180 = vsel %vm425, %v2137, 0
      %v2183 = vsel %vm425, %v2138, 0
      %v2186 = vsel %vm425, %v2139, 0
      %v2189 = vsel %vm425, %v2140, 0
      %v2192 = vsel %vm425, %v2141, 0
      %v2195 = vsel %vm425, %v2142, 0
      %v2198 = vsel %vm425, %v2143, 0
      %v2201 = vsel %vm425, %v2144, 0
      %v2204 = vsel %vm425, %v2145, 0
      %v2207 = vsel %vm425, %v2146, 0
      %v2210 = vsel %vm425, %v2147, 0
      %v2213 = vsel %vm425, %v2148, 0
      %v2216 = vsel %vm425, %v2149, 0
      %v2219 = vsel %vm425, %v2150, 0
      %v2222 = vsel %vm425, %v2151, 0
      %v2225 = vsel %vm425, %v2152, 0
      %v2228 = vsel %vm425, %v2153, 0
      %v2231 = vsel %vm425, %v2154, 0
      %v2234 = vsel %vm425, %v2155, 0
      %v2237 = vsel %vm425, %v2156, 0
      %v2240 = vsel %vm425, %v2157, 0
      %v2243 = vsel %vm425, %v2158, 0
      %v2246 = vsel %vm425, %v2159, 0
      %v2249 = vsel %vm425, %v2160, 0
      %v2252 = vsel %vm425, %v2161, 0
      %v2255 = vsel %vm425, %v2162, 0
      %v2258 = vsel %vm425, %v2163, 0
      %v2261 = vsel %vm425, %v2164, 0
      %2263 = vmatprep.subr.mxu0 0.0
      %2264 = vmatpush1.msra.mxu0 %v2166
      %2265 = vmatprep.subr.mxu0 0.0
      %2266 = vmatpush1.msra.mxu0 0.0
      %2267 = vmatprep.subr.mxu0 0.0
      %2268 = vmatpush1.msra.mxu0 0.0
      %2269 = vmatprep.subr.mxu0 0.0
      %2270 = vmatpush1.msra.mxu0 0.0
      %2271 = vmatprep.subr.mxu0 0.0
      %2272 = vmatpush1.msra.mxu0 0.0
      %2273 = vmatprep.subr.mxu0 0.0
      %2274 = vmatpush1.msra.mxu0 0.0
      %2275 = vmatprep.subr.mxu0 0.0
      %2276 = vmatpush1.msra.mxu0 0.0
      %2277 = vmatprep.subr.mxu0 0.0
      %2278 = vmatpush1.msra.mxu0 0.0
      %2279 = vmatprep.subr.mxu0 0.0
      %2280 = vmatpush1.msra.mxu0 0.0
      %2281 = vmatprep.subr.mxu0 0.0
      %2282 = vmatpush1.msra.mxu0 0.0
      %2283 = vmatprep.subr.mxu0 0.0
      %2284 = vmatpush1.msra.mxu0 0.0
      %2285 = vmatprep.subr.mxu0 0.0
      %2286 = vmatpush1.msra.mxu0 0.0
      %2287 = vmatprep.subr.mxu0 0.0
      %2288 = vmatpush1.msra.mxu0 0.0
      %2289 = vmatprep.subr.mxu0 0.0
      %2290 = vmatpush1.msra.mxu0 0.0
      %2291 = vmatprep.subr.mxu0 0.0
      %2292 = vmatpush1.msra.mxu0 0.0
      %2293 = vmatprep.subr.mxu0 0.0
      %2294 = vmatpush1.msra.mxu0 0.0
      %2295 = vmatprep.subr.mxu0 0.0
      %2296 = vmatpush1.msra.mxu0 0.0
      %2297 = vmatprep.subr.mxu0 0.0
      %2298 = vmatpush1.msra.mxu0 0.0
      %2299 = vmatprep.subr.mxu0 0.0
      %2300 = vmatpush1.msra.mxu0 0.0
      %2301 = vmatprep.subr.mxu0 0.0
      %2302 = vmatpush1.msra.mxu0 0.0
      %2303 = vmatprep.subr.mxu0 0.0
      %2304 = vmatpush1.msra.mxu0 0.0
      %2305 = vmatprep.subr.mxu0 0.0
      %2306 = vmatpush1.msra.mxu0 0.0
      %2307 = vmatprep.subr.mxu0 0.0
      %2308 = vmatpush1.msra.mxu0 0.0
      %2309 = vmatprep.subr.mxu0 0.0
      %2310 = vmatpush1.msra.mxu0 0.0
      %2311 = vmatprep.subr.mxu0 0.0
      %2312 = vmatpush1.msra.mxu0 0.0
      %2313 = vmatprep.subr.mxu0 0.0
      %2314 = vmatpush1.msra.mxu0 0.0
      %2315 = vmatprep.subr.mxu0 0.0
      %2316 = vmatpush1.msra.mxu0 0.0
      %2317 = vmatprep.subr.mxu0 0.0
      %2318 = vmatpush1.msra.mxu0 0.0
      %2319 = vmatprep.subr.mxu0 0.0
      %2320 = vmatpush1.msra.mxu0 0.0
      %2321 = vmatprep.subr.mxu0 0.0
      %2322 = vmatpush1.msra.mxu0 0.0
      %2323 = vmatprep.subr.mxu0 0.0
      %2324 = vmatpush1.msra.mxu0 0.0
      %2325 = vmatprep.subr.mxu0 0.0
      %2326 = vmatpush1.msra.mxu0 0.0
      %2327 = vmatprep.mubr.f32.mxu0 0.0
      %2328 = vmatmul.mubr.f32.gmra.mrb[0].mxu0 %v2168
      %v2329 = vpop.f32.mrb[0].mxu0
      %v2330 = vadd.f32 0.0, %v2329
      %v2331 = vpop.f32.mrb[0].mxu0
      %2332 = vmatprep.mubr.f32.mxu0 0.0
      %2333 = vmatmul.mubr.f32.gmra.mrb[0].mxu0 %v2171
      %v2334 = vpop.f32.mrb[0].mxu0
      %v2335 = vadd.f32 0.0, %v2334
      %v2336 = vpop.f32.mrb[0].mxu0
      %2337 = vmatprep.mubr.f32.mxu0 0.0
      %2338 = vmatmul.mubr.f32.gmra.mrb[0].mxu0 %v2174
      %v2339 = vpop.f32.mrb[0].mxu0
      %v2340 = vadd.f32 0.0, %v2339
      %v2341 = vpop.f32.mrb[0].mxu0
      %2342 = vmatprep.mubr.f32.mxu0 0.0
      %2343 = vmatmul.mubr.f32.gmra.mrb[0].mxu0 %v2177
      %v2344 = vpop.f32.mrb[0].mxu0
      %v2345 = vadd.f32 0.0, %v2344
      %v2346 = vpop.f32.mrb[0].mxu0
      %2347 = vmatprep.mubr.f32.mxu0 0.0
      %2348 = vmatmul.mubr.f32.gmra.mrb[0].mxu0 %v2180
      %v2349 = vpop.f32.mrb[0].mxu0
      %v2350 = vadd.f32 0.0, %v2349
      %v2351 = vpop.f32.mrb[0].mxu0
      %2352 = vmatprep.mubr.f32.mxu0 0.0
      %2353 = vmatmul.mubr.f32.gmra.mrb[0].mxu0 %v2183
      %v2354 = vpop.f32.mrb[0].mxu0
      %v2355 = vadd.f32 0.0, %v2354
      %v2356 = vpop.f32.mrb[0].mxu0
      %2357 = vmatprep.mubr.f32.mxu0 0.0
      %2358 = vmatmul.mubr.f32.gmra.mrb[0].mxu0 %v2186
      %v2359 = vpop.f32.mrb[0].mxu0
      %v2360 = vadd.f32 0.0, %v2359
      %v2361 = vpop.f32.mrb[0].mxu0
      %2362 = vmatprep.mubr.f32.mxu0 0.0
      %2363 = vmatmul.mubr.f32.gmra.mrb[0].mxu0 %v2189
      %v2364 = vpop.f32.mrb[0].mxu0
      %v2365 = vadd.f32 0.0, %v2364
      %v2366 = vpop.f32.mrb[0].mxu0
      %2367 = vmatprep.mubr.f32.mxu0 0.0
      %2368 = vmatmul.mubr.f32.gmra.mrb[0].mxu0 %v2192
      %v2369 = vpop.f32.mrb[0].mxu0
      %v2370 = vadd.f32 0.0, %v2369
      %v2371 = vpop.f32.mrb[0].mxu0
      %2372 = vmatprep.mubr.f32.mxu0 0.0
      %2373 = vmatmul.mubr.f32.gmra.mrb[0].mxu0 %v2195
      %v2374 = vpop.f32.mrb[0].mxu0
      %v2375 = vadd.f32 0.0, %v2374
      %v2376 = vpop.f32.mrb[0].mxu0
      %2377 = vmatprep.mubr.f32.mxu0 0.0
      %2378 = vmatmul.mubr.f32.gmra.mrb[0].mxu0 %v2198
      %v2379 = vpop.f32.mrb[0].mxu0
      %v2380 = vadd.f32 0.0, %v2379
      %v2381 = vpop.f32.mrb[0].mxu0
      %2382 = vmatprep.mubr.f32.mxu0 0.0
      %2383 = vmatmul.mubr.f32.gmra.mrb[0].mxu0 %v2201
      %v2384 = vpop.f32.mrb[0].mxu0
      %v2385 = vadd.f32 0.0, %v2384
      %v2386 = vpop.f32.mrb[0].mxu0
      %2387 = vmatprep.mubr.f32.mxu0 0.0
      %2388 = vmatmul.mubr.f32.gmra.mrb[0].mxu0 %v2204
      %v2389 = vpop.f32.mrb[0].mxu0
      %v2390 = vadd.f32 0.0, %v2389
      %v2391 = vpop.f32.mrb[0].mxu0
      %2392 = vmatprep.mubr.f32.mxu0 0.0
      %2393 = vmatmul.mubr.f32.gmra.mrb[0].mxu0 %v2207
      %v2394 = vpop.f32.mrb[0].mxu0
      %v2395 = vadd.f32 0.0, %v2394
      %v2396 = vpop.f32.mrb[0].mxu0
      %2397 = vmatprep.mubr.f32.mxu0 0.0
      %2398 = vmatmul.mubr.f32.gmra.mrb[0].mxu0 %v2210
      %v2399 = vpop.f32.mrb[0].mxu0
      %v2400 = vadd.f32 0.0, %v2399
      %v2401 = vpop.f32.mrb[0].mxu0
      %2402 = vmatprep.mubr.f32.mxu0 0.0
      %2403 = vmatmul.mubr.f32.gmra.mrb[0].mxu0 %v2213
      %v2404 = vpop.f32.mrb[0].mxu0
      %v2405 = vadd.f32 0.0, %v2404
      %v2406 = vpop.f32.mrb[0].mxu0
      %2407 = vmatprep.mubr.f32.mxu0 0.0
      %2408 = vmatmul.mubr.f32.gmra.mrb[0].mxu0 %v2216
      %v2409 = vpop.f32.mrb[0].mxu0
      %v2410 = vadd.f32 0.0, %v2409
      %v2411 = vpop.f32.mrb[0].mxu0
      %2412 = vmatprep.mubr.f32.mxu0 0.0
      %2413 = vmatmul.mubr.f32.gmra.mrb[0].mxu0 %v2219
      %v2414 = vpop.f32.mrb[0].mxu0
      %v2415 = vadd.f32 0.0, %v2414
      %v2416 = vpop.f32.mrb[0].mxu0
      %2417 = vmatprep.mubr.f32.mxu0 0.0
      %2418 = vmatmul.mubr.f32.gmra.mrb[0].mxu0 %v2222
      %v2419 = vpop.f32.mrb[0].mxu0
      %v2420 = vadd.f32 0.0, %v2419
      %v2421 = vpop.f32.mrb[0].mxu0
      %2422 = vmatprep.mubr.f32.mxu0 0.0
      %2423 = vmatmul.mubr.f32.gmra.mrb[0].mxu0 %v2225
      %v2424 = vpop.f32.mrb[0].mxu0
      %v2425 = vadd.f32 0.0, %v2424
      %v2426 = vpop.f32.mrb[0].mxu0
      %2427 = vmatprep.mubr.f32.mxu0 0.0
      %2428 = vmatmul.mubr.f32.gmra.mrb[0].mxu0 %v2228
      %v2429 = vpop.f32.mrb[0].mxu0
      %v2430 = vadd.f32 0.0, %v2429
      %v2431 = vpop.f32.mrb[0].mxu0
      %2432 = vmatprep.mubr.f32.mxu0 0.0
      %2433 = vmatmul.mubr.f32.gmra.mrb[0].mxu0 %v2231
      %v2434 = vpop.f32.mrb[0].mxu0
      %v2435 = vadd.f32 0.0, %v2434
      %v2436 = vpop.f32.mrb[0].mxu0
      %2437 = vmatprep.mubr.f32.mxu0 0.0
      %2438 = vmatmul.mubr.f32.gmra.mrb[0].mxu0 %v2234
      %v2439 = vpop.f32.mrb[0].mxu0
      %v2440 = vadd.f32 0.0, %v2439
      %v2441 = vpop.f32.mrb[0].mxu0
      %2442 = vmatprep.mubr.f32.mxu0 0.0
      %2443 = vmatmul.mubr.f32.gmra.mrb[0].mxu0 %v2237
      %v2444 = vpop.f32.mrb[0].mxu0
      %v2445 = vadd.f32 0.0, %v2444
      %v2446 = vpop.f32.mrb[0].mxu0
      %2447 = vmatprep.mubr.f32.mxu0 0.0
      %2448 = vmatmul.mubr.f32.gmra.mrb[0].mxu0 %v2240
      %v2449 = vpop.f32.mrb[0].mxu0
      %v2450 = vadd.f32 0.0, %v2449
      %v2451 = vpop.f32.mrb[0].mxu0
      %2452 = vmatprep.mubr.f32.mxu0 0.0
      %2453 = vmatmul.mubr.f32.gmra.mrb[0].mxu0 %v2243
      %v2454 = vpop.f32.mrb[0].mxu0
      %v2455 = vadd.f32 0.0, %v2454
      %v2456 = vpop.f32.mrb[0].mxu0
      %2457 = vmatprep.mubr.f32.mxu0 0.0
      %2458 = vmatmul.mubr.f32.gmra.mrb[0].mxu0 %v2246
      %v2459 = vpop.f32.mrb[0].mxu0
      %v2460 = vadd.f32 0.0, %v2459
      %v2461 = vpop.f32.mrb[0].mxu0
      %2462 = vmatprep.mubr.f32.mxu0 0.0
      %2463 = vmatmul.mubr.f32.gmra.mrb[0].mxu0 %v2249
      %v2464 = vpop.f32.mrb[0].mxu0
      %v2465 = vadd.f32 0.0, %v2464
      %v2466 = vpop.f32.mrb[0].mxu0
      %2467 = vmatprep.mubr.f32.mxu0 0.0
      %2468 = vmatmul.mubr.f32.gmra.mrb[0].mxu0 %v2252
      %v2469 = vpop.f32.mrb[0].mxu0
      %v2470 = vadd.f32 0.0, %v2469
      %v2471 = vpop.f32.mrb[0].mxu0
      %2472 = vmatprep.mubr.f32.mxu0 0.0
      %2473 = vmatmul.mubr.f32.gmra.mrb[0].mxu0 %v2255
      %v2474 = vpop.f32.mrb[0].mxu0
      %v2475 = vadd.f32 0.0, %v2474
      %v2476 = vpop.f32.mrb[0].mxu0
      %2477 = vmatprep.mubr.f32.mxu0 0.0
      %2478 = vmatmul.mubr.f32.gmra.mrb[0].mxu0 %v2258
      %v2479 = vpop.f32.mrb[0].mxu0
      %v2480 = vadd.f32 0.0, %v2479
      %v2481 = vpop.f32.mrb[0].mxu0
      %2482 = vmatprep.mubr.f32.mxu0 0.0
      %2483 = vmatmul.mubr.f32.gmra.mrb[0].mxu0 %v2261
      %v2484 = vpop.f32.mrb[0].mxu0
      %v2485 = vadd.f32 0.0, %v2484
      %v2486 = vpop.f32.mrb[0].mxu0
      %2487 = vdwg.mxu0
      %v2488 = vld [vmem:[#allocation2] sm:$0xff]
      %v2489 = vld [vmem:[#allocation2 + $0x8] sm:$0xff]
      %v2490 = vld [vmem:[#allocation2 + $0x10] sm:$0xff]
      %v2491 = vld [vmem:[#allocation2 + $0x18] sm:$0xff]
      %v2492 = vld [vmem:[#allocation2 + $0x20] sm:$0xff]
      %v2493 = vld [vmem:[#allocation2 + $0x28] sm:$0xff]
      %v2494 = vld [vmem:[#allocation2 + $0x30] sm:$0xff]
      %v2495 = vld [vmem:[#allocation2 + $0x38] sm:$0xff]
      %v2496 = vld [vmem:[#allocation2 + $0x40] sm:$0xff]
      %v2497 = vld [vmem:[#allocation2 + $0x48] sm:$0xff]
      %v2498 = vld [vmem:[#allocation2 + $0x50] sm:$0xff]
      %v2499 = vld [vmem:[#allocation2 + $0x58] sm:$0xff]
      %v2500 = vld [vmem:[#allocation2 + $0x60] sm:$0xff]
      %v2501 = vld [vmem:[#allocation2 + $0x68] sm:$0xff]
      %v2502 = vld [vmem:[#allocation2 + $0x70] sm:$0xff]
      %v2503 = vld [vmem:[#allocation2 + $0x78] sm:$0xff]
      %v2504 = vld [vmem:[#allocation2 + $0x80] sm:$0xff]
      %v2505 = vld [vmem:[#allocation2 + $0x88] sm:$0xff]
      %v2506 = vld [vmem:[#allocation2 + $0x90] sm:$0xff]
      %v2507 = vld [vmem:[#allocation2 + $0x98] sm:$0xff]
      %v2508 = vld [vmem:[#allocation2 + $0xa0] sm:$0xff]
      %v2509 = vld [vmem:[#allocation2 + $0xa8] sm:$0xff]
      %v2510 = vld [vmem:[#allocation2 + $0xb0] sm:$0xff]
      %v2511 = vld [vmem:[#allocation2 + $0xb8] sm:$0xff]
      %v2512 = vld [vmem:[#allocation2 + $0xc0] sm:$0xff]
      %v2513 = vld [vmem:[#allocation2 + $0xc8] sm:$0xff]
      %v2514 = vld [vmem:[#allocation2 + $0xd0] sm:$0xff]
      %v2515 = vld [vmem:[#allocation2 + $0xd8] sm:$0xff]
      %v2516 = vld [vmem:[#allocation2 + $0xe0] sm:$0xff]
      %v2517 = vld [vmem:[#allocation2 + $0xe8] sm:$0xff]
      %v2518 = vld [vmem:[#allocation2 + $0xf0] sm:$0xff]
      %v2519 = vld [vmem:[#allocation2 + $0xf8] sm:$0xff]
      %v2520 = vadd.f32 %v2488, %v2330
      %v2521 = vadd.f32 %v2489, %v2335
      %v2522 = vadd.f32 %v2490, %v2340
      %v2523 = vadd.f32 %v2491, %v2345
      %v2524 = vadd.f32 %v2492, %v2350
      %v2525 = vadd.f32 %v2493, %v2355
      %v2526 = vadd.f32 %v2494, %v2360
      %v2527 = vadd.f32 %v2495, %v2365
      %v2528 = vadd.f32 %v2496, %v2370
      %v2529 = vadd.f32 %v2497, %v2375
      %v2530 = vadd.f32 %v2498, %v2380
      %v2531 = vadd.f32 %v2499, %v2385
      %v2532 = vadd.f32 %v2500, %v2390
      %v2533 = vadd.f32 %v2501, %v2395
      %v2534 = vadd.f32 %v2502, %v2400
      %v2535 = vadd.f32 %v2503, %v2405
      %v2536 = vadd.f32 %v2504, %v2410
      %v2537 = vadd.f32 %v2505, %v2415
      %v2538 = vadd.f32 %v2506, %v2420
      %v2539 = vadd.f32 %v2507, %v2425
      %v2540 = vadd.f32 %v2508, %v2430
      %v2541 = vadd.f32 %v2509, %v2435
      %v2542 = vadd.f32 %v2510, %v2440
      %v2543 = vadd.f32 %v2511, %v2445
      %v2544 = vadd.f32 %v2512, %v2450
      %v2545 = vadd.f32 %v2513, %v2455
      %v2546 = vadd.f32 %v2514, %v2460
      %v2547 = vadd.f32 %v2515, %v2465
      %v2548 = vadd.f32 %v2516, %v2470
      %v2549 = vadd.f32 %v2517, %v2475
      %v2550 = vadd.f32 %v2518, %v2480
      %v2551 = vadd.f32 %v2519, %v2485
      %2552 = vst [vmem:[#allocation2] sm:$0xff] %v2520
      %2553 = vst [vmem:[#allocation2 + $0x8] sm:$0xff] %v2521
      %2554 = vst [vmem:[#allocation2 + $0x10] sm:$0xff] %v2522
      %2555 = vst [vmem:[#allocation2 + $0x18] sm:$0xff] %v2523
      %2556 = vst [vmem:[#allocation2 + $0x20] sm:$0xff] %v2524
      %2557 = vst [vmem:[#allocation2 + $0x28] sm:$0xff] %v2525
      %2558 = vst [vmem:[#allocation2 + $0x30] sm:$0xff] %v2526
      %2559 = vst [vmem:[#allocation2 + $0x38] sm:$0xff] %v2527
      %2560 = vst [vmem:[#allocation2 + $0x40] sm:$0xff] %v2528
      %2561 = vst [vmem:[#allocation2 + $0x48] sm:$0xff] %v2529
      %2562 = vst [vmem:[#allocation2 + $0x50] sm:$0xff] %v2530
      %2563 = vst [vmem:[#allocation2 + $0x58] sm:$0xff] %v2531
      %2564 = vst [vmem:[#allocation2 + $0x60] sm:$0xff] %v2532
      %2565 = vst [vmem:[#allocation2 + $0x68] sm:$0xff] %v2533
      %2566 = vst [vmem:[#allocation2 + $0x70] sm:$0xff] %v2534
      %2567 = vst [vmem:[#allocation2 + $0x78] sm:$0xff] %v2535
      %2568 = vst [vmem:[#allocation2 + $0x80] sm:$0xff] %v2536
      %2569 = vst [vmem:[#allocation2 + $0x88] sm:$0xff] %v2537
      %2570 = vst [vmem:[#allocation2 + $0x90] sm:$0xff] %v2538
      %2571 = vst [vmem:[#allocation2 + $0x98] sm:$0xff] %v2539
      %2572 = vst [vmem:[#allocation2 + $0xa0] sm:$0xff] %v2540
      %2573 = vst [vmem:[#allocation2 + $0xa8] sm:$0xff] %v2541
      %2574 = vst [vmem:[#allocation2 + $0xb0] sm:$0xff] %v2542
      %2575 = vst [vmem:[#allocation2 + $0xb8] sm:$0xff] %v2543
      %2576 = vst [vmem:[#allocation2 + $0xc0] sm:$0xff] %v2544
      %2577 = vst [vmem:[#allocation2 + $0xc8] sm:$0xff] %v2545
      %2578 = vst [vmem:[#allocation2 + $0xd0] sm:$0xff] %v2546
      %2579 = vst [vmem:[#allocation2 + $0xd8] sm:$0xff] %v2547
      %2580 = vst [vmem:[#allocation2 + $0xe0] sm:$0xff] %v2548
      %2581 = vst [vmem:[#allocation2 + $0xe8] sm:$0xff] %v2549
      %2582 = vst [vmem:[#allocation2 + $0xf0] sm:$0xff] %v2550
      %2583 = vst [vmem:[#allocation2 + $0xf8] sm:$0xff] %v2551
      %v2584 = vld [vmem:[%s1681 + $0x2] sm:$0xff]
      %v2585 = vld [vmem:[%s1681 + $0xa] sm:$0xff]
      %v2586 = vld [vmem:[%s1681 + $0x1a] sm:$0xff]
      %v2587 = vld [vmem:[%s1681 + $0x22] sm:$0xff]
      %v2588 = vld [vmem:[%s1681 + $0x32] sm:$0xff]
      %v2589 = vld [vmem:[%s1681 + $0x3a] sm:$0xff]
      %v2590 = vld [vmem:[%s1681 + $0x4a] sm:$0xff]
      %v2591 = vld [vmem:[%s1681 + $0x52] sm:$0xff]
      %v2592 = vld [vmem:[%s1681 + $0x62] sm:$0xff]
      %v2593 = vld [vmem:[%s1681 + $0x6a] sm:$0xff]
      %v2594 = vld [vmem:[%s1681 + $0x7a] sm:$0xff]
      %v2595 = vld [vmem:[%s1681 + $0x82] sm:$0xff]
      %v2596 = vld [vmem:[%s1681 + $0x92] sm:$0xff]
      %v2597 = vld [vmem:[%s1681 + $0x9a] sm:$0xff]
      %v2598 = vld [vmem:[%s1681 + $0xaa] sm:$0xff]
      %v2599 = vld [vmem:[%s1681 + $0xb2] sm:$0xff]
      %v2600 = vld [vmem:[%s1681 + $0xc2] sm:$0xff]
      %v2601 = vld [vmem:[%s1681 + $0xca] sm:$0xff]
      %v2602 = vld [vmem:[%s1681 + $0xda] sm:$0xff]
      %v2603 = vld [vmem:[%s1681 + $0xe2] sm:$0xff]
      %v2604 = vld [vmem:[%s1681 + $0xf2] sm:$0xff]
      %v2605 = vld [vmem:[%s1681 + $0xfa] sm:$0xff]
      %v2606 = vld [vmem:[%s1681 + $0x10a] sm:$0xff]
      %v2607 = vld [vmem:[%s1681 + $0x112] sm:$0xff]
      %v2608 = vld [vmem:[%s1681 + $0x122] sm:$0xff]
      %v2609 = vld [vmem:[%s1681 + $0x12a] sm:$0xff]
      %v2610 = vld [vmem:[%s1681 + $0x13a] sm:$0xff]
      %v2611 = vld [vmem:[%s1681 + $0x142] sm:$0xff]
      %v2612 = vld [vmem:[%s1681 + $0x152] sm:$0xff]
      %v2613 = vld [vmem:[%s1681 + $0x15a] sm:$0xff]
      %v2614 = vld [vmem:[%s1681 + $0x16a] sm:$0xff]
      %v2615 = vld [vmem:[%s1681 + $0x172] sm:$0xff]
      %s2616 = scalar_lea.vmem %s2, 40
      %v2617 = vld [vmem:[%s2616] sm:$0xff]
      %v2619 = vsel %vm425, %v2584, 0
      %v2622 = vsel %vm425, %v2585, 0
      %v2625 = vsel %vm425, %v2586, 0
      %v2628 = vsel %vm425, %v2587, 0
      %v2631 = vsel %vm425, %v2588, 0
      %v2634 = vsel %vm425, %v2589, 0
      %v2637 = vsel %vm425, %v2590, 0
      %v2640 = vsel %vm425, %v2591, 0
      %v2643 = vsel %vm425, %v2592, 0
      %v2646 = vsel %vm425, %v2593, 0
      %v2649 = vsel %vm425, %v2594, 0
      %v2652 = vsel %vm425, %v2595, 0
      %v2655 = vsel %vm425, %v2596, 0
      %v2658 = vsel %vm425, %v2597, 0
      %v2661 = vsel %vm425, %v2598, 0
      %v2664 = vsel %vm425, %v2599, 0
      %v2667 = vsel %vm425, %v2600, 0
      %v2670 = vsel %vm425, %v2601, 0
      %v2673 = vsel %vm425, %v2602, 0
      %v2676 = vsel %vm425, %v2603, 0
      %v2679 = vsel %vm425, %v2604, 0
      %v2682 = vsel %vm425, %v2605, 0
      %v2685 = vsel %vm425, %v2606, 0
      %v2688 = vsel %vm425, %v2607, 0
      %v2691 = vsel %vm425, %v2608, 0
      %v2694 = vsel %vm425, %v2609, 0
      %v2697 = vsel %vm425, %v2610, 0
      %v2700 = vsel %vm425, %v2611, 0
      %v2703 = vsel %vm425, %v2612, 0
      %v2706 = vsel %vm425, %v2613, 0
      %v2709 = vsel %vm425, %v2614, 0
      %v2712 = vsel %vm425, %v2615, 0
      %2714 = vmatprep.subr.mxu0 0.0
      %2715 = vmatpush1.msra.mxu0 %v2617
      %2716 = vmatprep.subr.mxu0 0.0
      %2717 = vmatpush1.msra.mxu0 0.0
      %2718 = vmatprep.subr.mxu0 0.0
      %2719 = vmatpush1.msra.mxu0 0.0
      %2720 = vmatprep.subr.mxu0 0.0
      %2721 = vmatpush1.msra.mxu0 0.0
      %2722 = vmatprep.subr.mxu0 0.0
      %2723 = vmatpush1.msra.mxu0 0.0
      %2724 = vmatprep.subr.mxu0 0.0
      %2725 = vmatpush1.msra.mxu0 0.0
      %2726 = vmatprep.subr.mxu0 0.0
      %2727 = vmatpush1.msra.mxu0 0.0
      %2728 = vmatprep.subr.mxu0 0.0
      %2729 = vmatpush1.msra.mxu0 0.0
      %2730 = vmatprep.subr.mxu0 0.0
      %2731 = vmatpush1.msra.mxu0 0.0
      %2732 = vmatprep.subr.mxu0 0.0
      %2733 = vmatpush1.msra.mxu0 0.0
      %2734 = vmatprep.subr.mxu0 0.0
      %2735 = vmatpush1.msra.mxu0 0.0
      %2736 = vmatprep.subr.mxu0 0.0
      %2737 = vmatpush1.msra.mxu0 0.0
      %2738 = vmatprep.subr.mxu0 0.0
      %2739 = vmatpush1.msra.mxu0 0.0
      %2740 = vmatprep.subr.mxu0 0.0
      %2741 = vmatpush1.msra.mxu0 0.0
      %2742 = vmatprep.subr.mxu0 0.0
      %2743 = vmatpush1.msra.mxu0 0.0
      %2744 = vmatprep.subr.mxu0 0.0
      %2745 = vmatpush1.msra.mxu0 0.0
      %2746 = vmatprep.subr.mxu0 0.0
      %2747 = vmatpush1.msra.mxu0 0.0
      %2748 = vmatprep.subr.mxu0 0.0
      %2749 = vmatpush1.msra.mxu0 0.0
      %2750 = vmatprep.subr.mxu0 0.0
      %2751 = vmatpush1.msra.mxu0 0.0
      %2752 = vmatprep.subr.mxu0 0.0
      %2753 = vmatpush1.msra.mxu0 0.0
      %2754 = vmatprep.subr.mxu0 0.0
      %2755 = vmatpush1.msra.mxu0 0.0
      %2756 = vmatprep.subr.mxu0 0.0
      %2757 = vmatpush1.msra.mxu0 0.0
      %2758 = vmatprep.subr.mxu0 0.0
      %2759 = vmatpush1.msra.mxu0 0.0
      %2760 = vmatprep.subr.mxu0 0.0
      %2761 = vmatpush1.msra.mxu0 0.0
      %2762 = vmatprep.subr.mxu0 0.0
      %2763 = vmatpush1.msra.mxu0 0.0
      %2764 = vmatprep.subr.mxu0 0.0
      %2765 = vmatpush1.msra.mxu0 0.0
      %2766 = vmatprep.subr.mxu0 0.0
      %2767 = vmatpush1.msra.mxu0 0.0
      %2768 = vmatprep.subr.mxu0 0.0
      %2769 = vmatpush1.msra.mxu0 0.0
      %2770 = vmatprep.subr.mxu0 0.0
      %2771 = vmatpush1.msra.mxu0 0.0
      %2772 = vmatprep.subr.mxu0 0.0
      %2773 = vmatpush1.msra.mxu0 0.0
      %2774 = vmatprep.subr.mxu0 0.0
      %2775 = vmatpush1.msra.mxu0 0.0
      %2776 = vmatprep.subr.mxu0 0.0
      %2777 = vmatpush1.msra.mxu0 0.0
      %2778 = vmatprep.mubr.f32.mxu0 0.0
      %2779 = vmatmul.mubr.f32.gmra.mrb[0].mxu0 %v2619
      %v2780 = vpop.f32.mrb[0].mxu0
      %v2781 = vadd.f32 0.0, %v2780
      %v2782 = vpop.f32.mrb[0].mxu0
      %2783 = vmatprep.mubr.f32.mxu0 0.0
      %2784 = vmatmul.mubr.f32.gmra.mrb[0].mxu0 %v2622
      %v2785 = vpop.f32.mrb[0].mxu0
      %v2786 = vadd.f32 0.0, %v2785
      %v2787 = vpop.f32.mrb[0].mxu0
      %2788 = vmatprep.mubr.f32.mxu0 0.0
      %2789 = vmatmul.mubr.f32.gmra.mrb[0].mxu0 %v2625
      %v2790 = vpop.f32.mrb[0].mxu0
      %v2791 = vadd.f32 0.0, %v2790
      %v2792 = vpop.f32.mrb[0].mxu0
      %2793 = vmatprep.mubr.f32.mxu0 0.0
      %2794 = vmatmul.mubr.f32.gmra.mrb[0].mxu0 %v2628
      %v2795 = vpop.f32.mrb[0].mxu0
      %v2796 = vadd.f32 0.0, %v2795
      %v2797 = vpop.f32.mrb[0].mxu0
      %2798 = vmatprep.mubr.f32.mxu0 0.0
      %2799 = vmatmul.mubr.f32.gmra.mrb[0].mxu0 %v2631
      %v2800 = vpop.f32.mrb[0].mxu0
      %v2801 = vadd.f32 0.0, %v2800
      %v2802 = vpop.f32.mrb[0].mxu0
      %2803 = vmatprep.mubr.f32.mxu0 0.0
      %2804 = vmatmul.mubr.f32.gmra.mrb[0].mxu0 %v2634
      %v2805 = vpop.f32.mrb[0].mxu0
      %v2806 = vadd.f32 0.0, %v2805
      %v2807 = vpop.f32.mrb[0].mxu0
      %2808 = vmatprep.mubr.f32.mxu0 0.0
      %2809 = vmatmul.mubr.f32.gmra.mrb[0].mxu0 %v2637
      %v2810 = vpop.f32.mrb[0].mxu0
      %v2811 = vadd.f32 0.0, %v2810
      %v2812 = vpop.f32.mrb[0].mxu0
      %2813 = vmatprep.mubr.f32.mxu0 0.0
      %2814 = vmatmul.mubr.f32.gmra.mrb[0].mxu0 %v2640
      %v2815 = vpop.f32.mrb[0].mxu0
      %v2816 = vadd.f32 0.0, %v2815
      %v2817 = vpop.f32.mrb[0].mxu0
      %2818 = vmatprep.mubr.f32.mxu0 0.0
      %2819 = vmatmul.mubr.f32.gmra.mrb[0].mxu0 %v2643
      %v2820 = vpop.f32.mrb[0].mxu0
      %v2821 = vadd.f32 0.0, %v2820
      %v2822 = vpop.f32.mrb[0].mxu0
      %2823 = vmatprep.mubr.f32.mxu0 0.0
      %2824 = vmatmul.mubr.f32.gmra.mrb[0].mxu0 %v2646
      %v2825 = vpop.f32.mrb[0].mxu0
      %v2826 = vadd.f32 0.0, %v2825
      %v2827 = vpop.f32.mrb[0].mxu0
      %2828 = vmatprep.mubr.f32.mxu0 0.0
      %2829 = vmatmul.mubr.f32.gmra.mrb[0].mxu0 %v2649
      %v2830 = vpop.f32.mrb[0].mxu0
      %v2831 = vadd.f32 0.0, %v2830
      %v2832 = vpop.f32.mrb[0].mxu0
      %2833 = vmatprep.mubr.f32.mxu0 0.0
      %2834 = vmatmul.mubr.f32.gmra.mrb[0].mxu0 %v2652
      %v2835 = vpop.f32.mrb[0].mxu0
      %v2836 = vadd.f32 0.0, %v2835
      %v2837 = vpop.f32.mrb[0].mxu0
      %2838 = vmatprep.mubr.f32.mxu0 0.0
      %2839 = vmatmul.mubr.f32.gmra.mrb[0].mxu0 %v2655
      %v2840 = vpop.f32.mrb[0].mxu0
      %v2841 = vadd.f32 0.0, %v2840
      %v2842 = vpop.f32.mrb[0].mxu0
      %2843 = vmatprep.mubr.f32.mxu0 0.0
      %2844 = vmatmul.mubr.f32.gmra.mrb[0].mxu0 %v2658
      %v2845 = vpop.f32.mrb[0].mxu0
      %v2846 = vadd.f32 0.0, %v2845
      %v2847 = vpop.f32.mrb[0].mxu0
      %2848 = vmatprep.mubr.f32.mxu0 0.0
      %2849 = vmatmul.mubr.f32.gmra.mrb[0].mxu0 %v2661
      %v2850 = vpop.f32.mrb[0].mxu0
      %v2851 = vadd.f32 0.0, %v2850
      %v2852 = vpop.f32.mrb[0].mxu0
      %2853 = vmatprep.mubr.f32.mxu0 0.0
      %2854 = vmatmul.mubr.f32.gmra.mrb[0].mxu0 %v2664
      %v2855 = vpop.f32.mrb[0].mxu0
      %v2856 = vadd.f32 0.0, %v2855
      %v2857 = vpop.f32.mrb[0].mxu0
      %2858 = vmatprep.mubr.f32.mxu0 0.0
      %2859 = vmatmul.mubr.f32.gmra.mrb[0].mxu0 %v2667
      %v2860 = vpop.f32.mrb[0].mxu0
      %v2861 = vadd.f32 0.0, %v2860
      %v2862 = vpop.f32.mrb[0].mxu0
      %2863 = vmatprep.mubr.f32.mxu0 0.0
      %2864 = vmatmul.mubr.f32.gmra.mrb[0].mxu0 %v2670
      %v2865 = vpop.f32.mrb[0].mxu0
      %v2866 = vadd.f32 0.0, %v2865
      %v2867 = vpop.f32.mrb[0].mxu0
      %2868 = vmatprep.mubr.f32.mxu0 0.0
      %2869 = vmatmul.mubr.f32.gmra.mrb[0].mxu0 %v2673
      %v2870 = vpop.f32.mrb[0].mxu0
      %v2871 = vadd.f32 0.0, %v2870
      %v2872 = vpop.f32.mrb[0].mxu0
      %2873 = vmatprep.mubr.f32.mxu0 0.0
      %2874 = vmatmul.mubr.f32.gmra.mrb[0].mxu0 %v2676
      %v2875 = vpop.f32.mrb[0].mxu0
      %v2876 = vadd.f32 0.0, %v2875
      %v2877 = vpop.f32.mrb[0].mxu0
      %2878 = vmatprep.mubr.f32.mxu0 0.0
      %2879 = vmatmul.mubr.f32.gmra.mrb[0].mxu0 %v2679
      %v2880 = vpop.f32.mrb[0].mxu0
      %v2881 = vadd.f32 0.0, %v2880
      %v2882 = vpop.f32.mrb[0].mxu0
      %2883 = vmatprep.mubr.f32.mxu0 0.0
      %2884 = vmatmul.mubr.f32.gmra.mrb[0].mxu0 %v2682
      %v2885 = vpop.f32.mrb[0].mxu0
      %v2886 = vadd.f32 0.0, %v2885
      %v2887 = vpop.f32.mrb[0].mxu0
      %2888 = vmatprep.mubr.f32.mxu0 0.0
      %2889 = vmatmul.mubr.f32.gmra.mrb[0].mxu0 %v2685
      %v2890 = vpop.f32.mrb[0].mxu0
      %v2891 = vadd.f32 0.0, %v2890
      %v2892 = vpop.f32.mrb[0].mxu0
      %2893 = vmatprep.mubr.f32.mxu0 0.0
      %2894 = vmatmul.mubr.f32.gmra.mrb[0].mxu0 %v2688
      %v2895 = vpop.f32.mrb[0].mxu0
      %v2896 = vadd.f32 0.0, %v2895
      %v2897 = vpop.f32.mrb[0].mxu0
      %2898 = vmatprep.mubr.f32.mxu0 0.0
      %2899 = vmatmul.mubr.f32.gmra.mrb[0].mxu0 %v2691
      %v2900 = vpop.f32.mrb[0].mxu0
      %v2901 = vadd.f32 0.0, %v2900
      %v2902 = vpop.f32.mrb[0].mxu0
      %2903 = vmatprep.mubr.f32.mxu0 0.0
      %2904 = vmatmul.mubr.f32.gmra.mrb[0].mxu0 %v2694
      %v2905 = vpop.f32.mrb[0].mxu0
      %v2906 = vadd.f32 0.0, %v2905
      %v2907 = vpop.f32.mrb[0].mxu0
      %2908 = vmatprep.mubr.f32.mxu0 0.0
      %2909 = vmatmul.mubr.f32.gmra.mrb[0].mxu0 %v2697
      %v2910 = vpop.f32.mrb[0].mxu0
      %v2911 = vadd.f32 0.0, %v2910
      %v2912 = vpop.f32.mrb[0].mxu0
      %2913 = vmatprep.mubr.f32.mxu0 0.0
      %2914 = vmatmul.mubr.f32.gmra.mrb[0].mxu0 %v2700
      %v2915 = vpop.f32.mrb[0].mxu0
      %v2916 = vadd.f32 0.0, %v2915
      %v2917 = vpop.f32.mrb[0].mxu0
      %2918 = vmatprep.mubr.f32.mxu0 0.0
      %2919 = vmatmul.mubr.f32.gmra.mrb[0].mxu0 %v2703
      %v2920 = vpop.f32.mrb[0].mxu0
      %v2921 = vadd.f32 0.0, %v2920
      %v2922 = vpop.f32.mrb[0].mxu0
      %2923 = vmatprep.mubr.f32.mxu0 0.0
      %2924 = vmatmul.mubr.f32.gmra.mrb[0].mxu0 %v2706
      %v2925 = vpop.f32.mrb[0].mxu0
      %v2926 = vadd.f32 0.0, %v2925
      %v2927 = vpop.f32.mrb[0].mxu0
      %2928 = vmatprep.mubr.f32.mxu0 0.0
      %2929 = vmatmul.mubr.f32.gmra.mrb[0].mxu0 %v2709
      %v2930 = vpop.f32.mrb[0].mxu0
      %v2931 = vadd.f32 0.0, %v2930
      %v2932 = vpop.f32.mrb[0].mxu0
      %2933 = vmatprep.mubr.f32.mxu0 0.0
      %2934 = vmatmul.mubr.f32.gmra.mrb[0].mxu0 %v2712
      %v2935 = vpop.f32.mrb[0].mxu0
      %v2936 = vadd.f32 0.0, %v2935
      %v2937 = vpop.f32.mrb[0].mxu0
      %2938 = vdwg.mxu0
      %v2939 = vld [vmem:[#allocation2] sm:$0xff]
      %v2940 = vld [vmem:[#allocation2 + $0x8] sm:$0xff]
      %v2941 = vld [vmem:[#allocation2 + $0x10] sm:$0xff]
      %v2942 = vld [vmem:[#allocation2 + $0x18] sm:$0xff]
      %v2943 = vld [vmem:[#allocation2 + $0x20] sm:$0xff]
      %v2944 = vld [vmem:[#allocation2 + $0x28] sm:$0xff]
      %v2945 = vld [vmem:[#allocation2 + $0x30] sm:$0xff]
      %v2946 = vld [vmem:[#allocation2 + $0x38] sm:$0xff]
      %v2947 = vld [vmem:[#allocation2 + $0x40] sm:$0xff]
      %v2948 = vld [vmem:[#allocation2 + $0x48] sm:$0xff]
      %v2949 = vld [vmem:[#allocation2 + $0x50] sm:$0xff]
      %v2950 = vld [vmem:[#allocation2 + $0x58] sm:$0xff]
      %v2951 = vld [vmem:[#allocation2 + $0x60] sm:$0xff]
      %v2952 = vld [vmem:[#allocation2 + $0x68] sm:$0xff]
      %v2953 = vld [vmem:[#allocation2 + $0x70] sm:$0xff]
      %v2954 = vld [vmem:[#allocation2 + $0x78] sm:$0xff]
      %v2955 = vld [vmem:[#allocation2 + $0x80] sm:$0xff]
      %v2956 = vld [vmem:[#allocation2 + $0x88] sm:$0xff]
      %v2957 = vld [vmem:[#allocation2 + $0x90] sm:$0xff]
      %v2958 = vld [vmem:[#allocation2 + $0x98] sm:$0xff]
      %v2959 = vld [vmem:[#allocation2 + $0xa0] sm:$0xff]
      %v2960 = vld [vmem:[#allocation2 + $0xa8] sm:$0xff]
      %v2961 = vld [vmem:[#allocation2 + $0xb0] sm:$0xff]
      %v2962 = vld [vmem:[#allocation2 + $0xb8] sm:$0xff]
      %v2963 = vld [vmem:[#allocation2 + $0xc0] sm:$0xff]
      %v2964 = vld [vmem:[#allocation2 + $0xc8] sm:$0xff]
      %v2965 = vld [vmem:[#allocation2 + $0xd0] sm:$0xff]
      %v2966 = vld [vmem:[#allocation2 + $0xd8] sm:$0xff]
      %v2967 = vld [vmem:[#allocation2 + $0xe0] sm:$0xff]
      %v2968 = vld [vmem:[#allocation2 + $0xe8] sm:$0xff]
      %v2969 = vld [vmem:[#allocation2 + $0xf0] sm:$0xff]
      %v2970 = vld [vmem:[#allocation2 + $0xf8] sm:$0xff]
      %v2971 = vadd.f32 %v2939, %v2781
      %v2972 = vadd.f32 %v2940, %v2786
      %v2973 = vadd.f32 %v2941, %v2791
      %v2974 = vadd.f32 %v2942, %v2796
      %v2975 = vadd.f32 %v2943, %v2801
      %v2976 = vadd.f32 %v2944, %v2806
      %v2977 = vadd.f32 %v2945, %v2811
      %v2978 = vadd.f32 %v2946, %v2816
      %v2979 = vadd.f32 %v2947, %v2821
      %v2980 = vadd.f32 %v2948, %v2826
      %v2981 = vadd.f32 %v2949, %v2831
      %v2982 = vadd.f32 %v2950, %v2836
      %v2983 = vadd.f32 %v2951, %v2841
      %v2984 = vadd.f32 %v2952, %v2846
      %v2985 = vadd.f32 %v2953, %v2851
      %v2986 = vadd.f32 %v2954, %v2856
      %v2987 = vadd.f32 %v2955, %v2861
      %v2988 = vadd.f32 %v2956, %v2866
      %v2989 = vadd.f32 %v2957, %v2871
      %v2990 = vadd.f32 %v2958, %v2876
      %v2991 = vadd.f32 %v2959, %v2881
      %v2992 = vadd.f32 %v2960, %v2886
      %v2993 = vadd.f32 %v2961, %v2891
      %v2994 = vadd.f32 %v2962, %v2896
      %v2995 = vadd.f32 %v2963, %v2901
      %v2996 = vadd.f32 %v2964, %v2906
      %v2997 = vadd.f32 %v2965, %v2911
      %v2998 = vadd.f32 %v2966, %v2916
      %v2999 = vadd.f32 %v2967, %v2921
      %v3000 = vadd.f32 %v2968, %v2926
      %v3001 = vadd.f32 %v2969, %v2931
      %v3002 = vadd.f32 %v2970, %v2936
      %3003 = vst [vmem:[#allocation2] sm:$0xff] %v2971
      %3004 = vst [vmem:[#allocation2 + $0x8] sm:$0xff] %v2972
      %3005 = vst [vmem:[#allocation2 + $0x10] sm:$0xff] %v2973
      %3006 = vst [vmem:[#allocation2 + $0x18] sm:$0xff] %v2974
      %3007 = vst [vmem:[#allocation2 + $0x20] sm:$0xff] %v2975
      %3008 = vst [vmem:[#allocation2 + $0x28] sm:$0xff] %v2976
      %3009 = vst [vmem:[#allocation2 + $0x30] sm:$0xff] %v2977
      %3010 = vst [vmem:[#allocation2 + $0x38] sm:$0xff] %v2978
      %3011 = vst [vmem:[#allocation2 + $0x40] sm:$0xff] %v2979
      %3012 = vst [vmem:[#allocation2 + $0x48] sm:$0xff] %v2980
      %3013 = vst [vmem:[#allocation2 + $0x50] sm:$0xff] %v2981
      %3014 = vst [vmem:[#allocation2 + $0x58] sm:$0xff] %v2982
      %3015 = vst [vmem:[#allocation2 + $0x60] sm:$0xff] %v2983
      %3016 = vst [vmem:[#allocation2 + $0x68] sm:$0xff] %v2984
      %3017 = vst [vmem:[#allocation2 + $0x70] sm:$0xff] %v2985
      %3018 = vst [vmem:[#allocation2 + $0x78] sm:$0xff] %v2986
      %3019 = vst [vmem:[#allocation2 + $0x80] sm:$0xff] %v2987
      %3020 = vst [vmem:[#allocation2 + $0x88] sm:$0xff] %v2988
      %3021 = vst [vmem:[#allocation2 + $0x90] sm:$0xff] %v2989
      %3022 = vst [vmem:[#allocation2 + $0x98] sm:$0xff] %v2990
      %3023 = vst [vmem:[#allocation2 + $0xa0] sm:$0xff] %v2991
      %3024 = vst [vmem:[#allocation2 + $0xa8] sm:$0xff] %v2992
      %3025 = vst [vmem:[#allocation2 + $0xb0] sm:$0xff] %v2993
      %3026 = vst [vmem:[#allocation2 + $0xb8] sm:$0xff] %v2994
      %3027 = vst [vmem:[#allocation2 + $0xc0] sm:$0xff] %v2995
      %3028 = vst [vmem:[#allocation2 + $0xc8] sm:$0xff] %v2996
      %3029 = vst [vmem:[#allocation2 + $0xd0] sm:$0xff] %v2997
      %3030 = vst [vmem:[#allocation2 + $0xd8] sm:$0xff] %v2998
      %3031 = vst [vmem:[#allocation2 + $0xe0] sm:$0xff] %v2999
      %3032 = vst [vmem:[#allocation2 + $0xe8] sm:$0xff] %v3000
      %3033 = vst [vmem:[#allocation2 + $0xf0] sm:$0xff] %v3001
      %3034 = vst [vmem:[#allocation2 + $0xf8] sm:$0xff] %v3002
      %s3035 = scalar_lea.vmem %s376, 48
      %v3036 = vld [vmem:[%s3035] sm:$0xff]
      %v3037 = vld [vmem:[%s3035 + $0x8] sm:$0xff]
      %v3038 = vld [vmem:[%s3035 + $0x18] sm:$0xff]
      %v3039 = vld [vmem:[%s3035 + $0x20] sm:$0xff]
      %v3040 = vld [vmem:[%s3035 + $0x30] sm:$0xff]
      %v3041 = vld [vmem:[%s3035 + $0x38] sm:$0xff]
      %v3042 = vld [vmem:[%s3035 + $0x48] sm:$0xff]
      %v3043 = vld [vmem:[%s3035 + $0x50] sm:$0xff]
      %v3044 = vld [vmem:[%s3035 + $0x60] sm:$0xff]
      %v3045 = vld [vmem:[%s3035 + $0x68] sm:$0xff]
      %v3046 = vld [vmem:[%s3035 + $0x78] sm:$0xff]
      %v3047 = vld [vmem:[%s3035 + $0x80] sm:$0xff]
      %v3048 = vld [vmem:[%s3035 + $0x90] sm:$0xff]
      %v3049 = vld [vmem:[%s3035 + $0x98] sm:$0xff]
      %v3050 = vld [vmem:[%s3035 + $0xa8] sm:$0xff]
      %v3051 = vld [vmem:[%s3035 + $0xb0] sm:$0xff]
      %v3052 = vld [vmem:[%s3035 + $0xc0] sm:$0xff]
      %v3053 = vld [vmem:[%s3035 + $0xc8] sm:$0xff]
      %v3054 = vld [vmem:[%s3035 + $0xd8] sm:$0xff]
      %v3055 = vld [vmem:[%s3035 + $0xe0] sm:$0xff]
      %v3056 = vld [vmem:[%s3035 + $0xf0] sm:$0xff]
      %v3057 = vld [vmem:[%s3035 + $0xf8] sm:$0xff]
      %v3058 = vld [vmem:[%s3035 + $0x108] sm:$0xff]
      %v3059 = vld [vmem:[%s3035 + $0x110] sm:$0xff]
      %v3060 = vld [vmem:[%s3035 + $0x120] sm:$0xff]
      %v3061 = vld [vmem:[%s3035 + $0x128] sm:$0xff]
      %v3062 = vld [vmem:[%s3035 + $0x138] sm:$0xff]
      %v3063 = vld [vmem:[%s3035 + $0x140] sm:$0xff]
      %v3064 = vld [vmem:[%s3035 + $0x150] sm:$0xff]
      %v3065 = vld [vmem:[%s3035 + $0x158] sm:$0xff]
      %v3066 = vld [vmem:[%s3035 + $0x168] sm:$0xff]
      %v3067 = vld [vmem:[%s3035 + $0x170] sm:$0xff]
      %s3068 = scalar_lea.vmem %s2, 48
      %v3069 = vld [vmem:[%s3068] sm:$0xff]
      %v3071 = vsel %vm425, %v3036, 0
      %v3074 = vsel %vm425, %v3037, 0
      %v3077 = vsel %vm425, %v3038, 0
      %v3080 = vsel %vm425, %v3039, 0
      %v3083 = vsel %vm425, %v3040, 0
      %v3086 = vsel %vm425, %v3041, 0
      %v3089 = vsel %vm425, %v3042, 0
      %v3092 = vsel %vm425, %v3043, 0
      %v3095 = vsel %vm425, %v3044, 0
      %v3098 = vsel %vm425, %v3045, 0
      %v3101 = vsel %vm425, %v3046, 0
      %v3104 = vsel %vm425, %v3047, 0
      %v3107 = vsel %vm425, %v3048, 0
      %v3110 = vsel %vm425, %v3049, 0
      %v3113 = vsel %vm425, %v3050, 0
      %v3116 = vsel %vm425, %v3051, 0
      %v3119 = vsel %vm425, %v3052, 0
      %v3122 = vsel %vm425, %v3053, 0
      %v3125 = vsel %vm425, %v3054, 0
      %v3128 = vsel %vm425, %v3055, 0
      %v3131 = vsel %vm425, %v3056, 0
      %v3134 = vsel %vm425, %v3057, 0
      %v3137 = vsel %vm425, %v3058, 0
      %v3140 = vsel %vm425, %v3059, 0
      %v3143 = vsel %vm425, %v3060, 0
      %v3146 = vsel %vm425, %v3061, 0
      %v3149 = vsel %vm425, %v3062, 0
      %v3152 = vsel %vm425, %v3063, 0
      %v3155 = vsel %vm425, %v3064, 0
      %v3158 = vsel %vm425, %v3065, 0
      %v3161 = vsel %vm425, %v3066, 0
      %v3164 = vsel %vm425, %v3067, 0
      %3166 = vmatprep.subr.mxu0 0.0
      %3167 = vmatpush1.msra.mxu0 %v3069
      %3168 = vmatprep.subr.mxu0 0.0
      %3169 = vmatpush1.msra.mxu0 0.0
      %3170 = vmatprep.subr.mxu0 0.0
      %3171 = vmatpush1.msra.mxu0 0.0
      %3172 = vmatprep.subr.mxu0 0.0
      %3173 = vmatpush1.msra.mxu0 0.0
      %3174 = vmatprep.subr.mxu0 0.0
      %3175 = vmatpush1.msra.mxu0 0.0
      %3176 = vmatprep.subr.mxu0 0.0
      %3177 = vmatpush1.msra.mxu0 0.0
      %3178 = vmatprep.subr.mxu0 0.0
      %3179 = vmatpush1.msra.mxu0 0.0
      %3180 = vmatprep.subr.mxu0 0.0
      %3181 = vmatpush1.msra.mxu0 0.0
      %3182 = vmatprep.subr.mxu0 0.0
      %3183 = vmatpush1.msra.mxu0 0.0
      %3184 = vmatprep.subr.mxu0 0.0
      %3185 = vmatpush1.msra.mxu0 0.0
      %3186 = vmatprep.subr.mxu0 0.0
      %3187 = vmatpush1.msra.mxu0 0.0
      %3188 = vmatprep.subr.mxu0 0.0
      %3189 = vmatpush1.msra.mxu0 0.0
      %3190 = vmatprep.subr.mxu0 0.0
      %3191 = vmatpush1.msra.mxu0 0.0
      %3192 = vmatprep.subr.mxu0 0.0
      %3193 = vmatpush1.msra.mxu0 0.0
      %3194 = vmatprep.subr.mxu0 0.0
      %3195 = vmatpush1.msra.mxu0 0.0
      %3196 = vmatprep.subr.mxu0 0.0
      %3197 = vmatpush1.msra.mxu0 0.0
      %3198 = vmatprep.subr.mxu0 0.0
      %3199 = vmatpush1.msra.mxu0 0.0
      %3200 = vmatprep.subr.mxu0 0.0
      %3201 = vmatpush1.msra.mxu0 0.0
      %3202 = vmatprep.subr.mxu0 0.0
      %3203 = vmatpush1.msra.mxu0 0.0
      %3204 = vmatprep.subr.mxu0 0.0
      %3205 = vmatpush1.msra.mxu0 0.0
      %3206 = vmatprep.subr.mxu0 0.0
      %3207 = vmatpush1.msra.mxu0 0.0
      %3208 = vmatprep.subr.mxu0 0.0
      %3209 = vmatpush1.msra.mxu0 0.0
      %3210 = vmatprep.subr.mxu0 0.0
      %3211 = vmatpush1.msra.mxu0 0.0
      %3212 = vmatprep.subr.mxu0 0.0
      %3213 = vmatpush1.msra.mxu0 0.0
      %3214 = vmatprep.subr.mxu0 0.0
      %3215 = vmatpush1.msra.mxu0 0.0
      %3216 = vmatprep.subr.mxu0 0.0
      %3217 = vmatpush1.msra.mxu0 0.0
      %3218 = vmatprep.subr.mxu0 0.0
      %3219 = vmatpush1.msra.mxu0 0.0
      %3220 = vmatprep.subr.mxu0 0.0
      %3221 = vmatpush1.msra.mxu0 0.0
      %3222 = vmatprep.subr.mxu0 0.0
      %3223 = vmatpush1.msra.mxu0 0.0
      %3224 = vmatprep.subr.mxu0 0.0
      %3225 = vmatpush1.msra.mxu0 0.0
      %3226 = vmatprep.subr.mxu0 0.0
      %3227 = vmatpush1.msra.mxu0 0.0
      %3228 = vmatprep.subr.mxu0 0.0
      %3229 = vmatpush1.msra.mxu0 0.0
      %3230 = vmatprep.mubr.f32.mxu0 0.0
      %3231 = vmatmul.mubr.f32.gmra.mrb[0].mxu0 %v3071
      %v3232 = vpop.f32.mrb[0].mxu0
      %v3233 = vadd.f32 0.0, %v3232
      %v3234 = vpop.f32.mrb[0].mxu0
      %3235 = vmatprep.mubr.f32.mxu0 0.0
      %3236 = vmatmul.mubr.f32.gmra.mrb[0].mxu0 %v3074
      %v3237 = vpop.f32.mrb[0].mxu0
      %v3238 = vadd.f32 0.0, %v3237
      %v3239 = vpop.f32.mrb[0].mxu0
      %3240 = vmatprep.mubr.f32.mxu0 0.0
      %3241 = vmatmul.mubr.f32.gmra.mrb[0].mxu0 %v3077
      %v3242 = vpop.f32.mrb[0].mxu0
      %v3243 = vadd.f32 0.0, %v3242
      %v3244 = vpop.f32.mrb[0].mxu0
      %3245 = vmatprep.mubr.f32.mxu0 0.0
      %3246 = vmatmul.mubr.f32.gmra.mrb[0].mxu0 %v3080
      %v3247 = vpop.f32.mrb[0].mxu0
      %v3248 = vadd.f32 0.0, %v3247
      %v3249 = vpop.f32.mrb[0].mxu0
      %3250 = vmatprep.mubr.f32.mxu0 0.0
      %3251 = vmatmul.mubr.f32.gmra.mrb[0].mxu0 %v3083
      %v3252 = vpop.f32.mrb[0].mxu0
      %v3253 = vadd.f32 0.0, %v3252
      %v3254 = vpop.f32.mrb[0].mxu0
      %3255 = vmatprep.mubr.f32.mxu0 0.0
      %3256 = vmatmul.mubr.f32.gmra.mrb[0].mxu0 %v3086
      %v3257 = vpop.f32.mrb[0].mxu0
      %v3258 = vadd.f32 0.0, %v3257
      %v3259 = vpop.f32.mrb[0].mxu0
      %3260 = vmatprep.mubr.f32.mxu0 0.0
      %3261 = vmatmul.mubr.f32.gmra.mrb[0].mxu0 %v3089
      %v3262 = vpop.f32.mrb[0].mxu0
      %v3263 = vadd.f32 0.0, %v3262
      %v3264 = vpop.f32.mrb[0].mxu0
      %3265 = vmatprep.mubr.f32.mxu0 0.0
      %3266 = vmatmul.mubr.f32.gmra.mrb[0].mxu0 %v3092
      %v3267 = vpop.f32.mrb[0].mxu0
      %v3268 = vadd.f32 0.0, %v3267
      %v3269 = vpop.f32.mrb[0].mxu0
      %3270 = vmatprep.mubr.f32.mxu0 0.0
      %3271 = vmatmul.mubr.f32.gmra.mrb[0].mxu0 %v3095
      %v3272 = vpop.f32.mrb[0].mxu0
      %v3273 = vadd.f32 0.0, %v3272
      %v3274 = vpop.f32.mrb[0].mxu0
      %3275 = vmatprep.mubr.f32.mxu0 0.0
      %3276 = vmatmul.mubr.f32.gmra.mrb[0].mxu0 %v3098
      %v3277 = vpop.f32.mrb[0].mxu0
      %v3278 = vadd.f32 0.0, %v3277
      %v3279 = vpop.f32.mrb[0].mxu0
      %3280 = vmatprep.mubr.f32.mxu0 0.0
      %3281 = vmatmul.mubr.f32.gmra.mrb[0].mxu0 %v3101
      %v3282 = vpop.f32.mrb[0].mxu0
      %v3283 = vadd.f32 0.0, %v3282
      %v3284 = vpop.f32.mrb[0].mxu0
      %3285 = vmatprep.mubr.f32.mxu0 0.0
      %3286 = vmatmul.mubr.f32.gmra.mrb[0].mxu0 %v3104
      %v3287 = vpop.f32.mrb[0].mxu0
      %v3288 = vadd.f32 0.0, %v3287
      %v3289 = vpop.f32.mrb[0].mxu0
      %3290 = vmatprep.mubr.f32.mxu0 0.0
      %3291 = vmatmul.mubr.f32.gmra.mrb[0].mxu0 %v3107
      %v3292 = vpop.f32.mrb[0].mxu0
      %v3293 = vadd.f32 0.0, %v3292
      %v3294 = vpop.f32.mrb[0].mxu0
      %3295 = vmatprep.mubr.f32.mxu0 0.0
      %3296 = vmatmul.mubr.f32.gmra.mrb[0].mxu0 %v3110
      %v3297 = vpop.f32.mrb[0].mxu0
      %v3298 = vadd.f32 0.0, %v3297
      %v3299 = vpop.f32.mrb[0].mxu0
      %3300 = vmatprep.mubr.f32.mxu0 0.0
      %3301 = vmatmul.mubr.f32.gmra.mrb[0].mxu0 %v3113
      %v3302 = vpop.f32.mrb[0].mxu0
      %v3303 = vadd.f32 0.0, %v3302
      %v3304 = vpop.f32.mrb[0].mxu0
      %3305 = vmatprep.mubr.f32.mxu0 0.0
      %3306 = vmatmul.mubr.f32.gmra.mrb[0].mxu0 %v3116
      %v3307 = vpop.f32.mrb[0].mxu0
      %v3308 = vadd.f32 0.0, %v3307
      %v3309 = vpop.f32.mrb[0].mxu0
      %3310 = vmatprep.mubr.f32.mxu0 0.0
      %3311 = vmatmul.mubr.f32.gmra.mrb[0].mxu0 %v3119
      %v3312 = vpop.f32.mrb[0].mxu0
      %v3313 = vadd.f32 0.0, %v3312
      %v3314 = vpop.f32.mrb[0].mxu0
      %3315 = vmatprep.mubr.f32.mxu0 0.0
      %3316 = vmatmul.mubr.f32.gmra.mrb[0].mxu0 %v3122
      %v3317 = vpop.f32.mrb[0].mxu0
      %v3318 = vadd.f32 0.0, %v3317
      %v3319 = vpop.f32.mrb[0].mxu0
      %3320 = vmatprep.mubr.f32.mxu0 0.0
      %3321 = vmatmul.mubr.f32.gmra.mrb[0].mxu0 %v3125
      %v3322 = vpop.f32.mrb[0].mxu0
      %v3323 = vadd.f32 0.0, %v3322
      %v3324 = vpop.f32.mrb[0].mxu0
      %3325 = vmatprep.mubr.f32.mxu0 0.0
      %3326 = vmatmul.mubr.f32.gmra.mrb[0].mxu0 %v3128
      %v3327 = vpop.f32.mrb[0].mxu0
      %v3328 = vadd.f32 0.0, %v3327
      %v3329 = vpop.f32.mrb[0].mxu0
      %3330 = vmatprep.mubr.f32.mxu0 0.0
      %3331 = vmatmul.mubr.f32.gmra.mrb[0].mxu0 %v3131
      %v3332 = vpop.f32.mrb[0].mxu0
      %v3333 = vadd.f32 0.0, %v3332
      %v3334 = vpop.f32.mrb[0].mxu0
      %3335 = vmatprep.mubr.f32.mxu0 0.0
      %3336 = vmatmul.mubr.f32.gmra.mrb[0].mxu0 %v3134
      %v3337 = vpop.f32.mrb[0].mxu0
      %v3338 = vadd.f32 0.0, %v3337
      %v3339 = vpop.f32.mrb[0].mxu0
      %3340 = vmatprep.mubr.f32.mxu0 0.0
      %3341 = vmatmul.mubr.f32.gmra.mrb[0].mxu0 %v3137
      %v3342 = vpop.f32.mrb[0].mxu0
      %v3343 = vadd.f32 0.0, %v3342
      %v3344 = vpop.f32.mrb[0].mxu0
      %3345 = vmatprep.mubr.f32.mxu0 0.0
      %3346 = vmatmul.mubr.f32.gmra.mrb[0].mxu0 %v3140
      %v3347 = vpop.f32.mrb[0].mxu0
      %v3348 = vadd.f32 0.0, %v3347
      %v3349 = vpop.f32.mrb[0].mxu0
      %3350 = vmatprep.mubr.f32.mxu0 0.0
      %3351 = vmatmul.mubr.f32.gmra.mrb[0].mxu0 %v3143
      %v3352 = vpop.f32.mrb[0].mxu0
      %v3353 = vadd.f32 0.0, %v3352
      %v3354 = vpop.f32.mrb[0].mxu0
      %3355 = vmatprep.mubr.f32.mxu0 0.0
      %3356 = vmatmul.mubr.f32.gmra.mrb[0].mxu0 %v3146
      %v3357 = vpop.f32.mrb[0].mxu0
      %v3358 = vadd.f32 0.0, %v3357
      %v3359 = vpop.f32.mrb[0].mxu0
      %3360 = vmatprep.mubr.f32.mxu0 0.0
      %3361 = vmatmul.mubr.f32.gmra.mrb[0].mxu0 %v3149
      %v3362 = vpop.f32.mrb[0].mxu0
      %v3363 = vadd.f32 0.0, %v3362
      %v3364 = vpop.f32.mrb[0].mxu0
      %3365 = vmatprep.mubr.f32.mxu0 0.0
      %3366 = vmatmul.mubr.f32.gmra.mrb[0].mxu0 %v3152
      %v3367 = vpop.f32.mrb[0].mxu0
      %v3368 = vadd.f32 0.0, %v3367
      %v3369 = vpop.f32.mrb[0].mxu0
      %3370 = vmatprep.mubr.f32.mxu0 0.0
      %3371 = vmatmul.mubr.f32.gmra.mrb[0].mxu0 %v3155
      %v3372 = vpop.f32.mrb[0].mxu0
      %v3373 = vadd.f32 0.0, %v3372
      %v3374 = vpop.f32.mrb[0].mxu0
      %3375 = vmatprep.mubr.f32.mxu0 0.0
      %3376 = vmatmul.mubr.f32.gmra.mrb[0].mxu0 %v3158
      %v3377 = vpop.f32.mrb[0].mxu0
      %v3378 = vadd.f32 0.0, %v3377
      %v3379 = vpop.f32.mrb[0].mxu0
      %3380 = vmatprep.mubr.f32.mxu0 0.0
      %3381 = vmatmul.mubr.f32.gmra.mrb[0].mxu0 %v3161
      %v3382 = vpop.f32.mrb[0].mxu0
      %v3383 = vadd.f32 0.0, %v3382
      %v3384 = vpop.f32.mrb[0].mxu0
      %3385 = vmatprep.mubr.f32.mxu0 0.0
      %3386 = vmatmul.mubr.f32.gmra.mrb[0].mxu0 %v3164
      %v3387 = vpop.f32.mrb[0].mxu0
      %v3388 = vadd.f32 0.0, %v3387
      %v3389 = vpop.f32.mrb[0].mxu0
      %3390 = vdwg.mxu0
      %v3391 = vld [vmem:[#allocation2] sm:$0xff]
      %v3392 = vld [vmem:[#allocation2 + $0x8] sm:$0xff]
      %v3393 = vld [vmem:[#allocation2 + $0x10] sm:$0xff]
      %v3394 = vld [vmem:[#allocation2 + $0x18] sm:$0xff]
      %v3395 = vld [vmem:[#allocation2 + $0x20] sm:$0xff]
      %v3396 = vld [vmem:[#allocation2 + $0x28] sm:$0xff]
      %v3397 = vld [vmem:[#allocation2 + $0x30] sm:$0xff]
      %v3398 = vld [vmem:[#allocation2 + $0x38] sm:$0xff]
      %v3399 = vld [vmem:[#allocation2 + $0x40] sm:$0xff]
      %v3400 = vld [vmem:[#allocation2 + $0x48] sm:$0xff]
      %v3401 = vld [vmem:[#allocation2 + $0x50] sm:$0xff]
      %v3402 = vld [vmem:[#allocation2 + $0x58] sm:$0xff]
      %v3403 = vld [vmem:[#allocation2 + $0x60] sm:$0xff]
      %v3404 = vld [vmem:[#allocation2 + $0x68] sm:$0xff]
      %v3405 = vld [vmem:[#allocation2 + $0x70] sm:$0xff]
      %v3406 = vld [vmem:[#allocation2 + $0x78] sm:$0xff]
      %v3407 = vld [vmem:[#allocation2 + $0x80] sm:$0xff]
      %v3408 = vld [vmem:[#allocation2 + $0x88] sm:$0xff]
      %v3409 = vld [vmem:[#allocation2 + $0x90] sm:$0xff]
      %v3410 = vld [vmem:[#allocation2 + $0x98] sm:$0xff]
      %v3411 = vld [vmem:[#allocation2 + $0xa0] sm:$0xff]
      %v3412 = vld [vmem:[#allocation2 + $0xa8] sm:$0xff]
      %v3413 = vld [vmem:[#allocation2 + $0xb0] sm:$0xff]
      %v3414 = vld [vmem:[#allocation2 + $0xb8] sm:$0xff]
      %v3415 = vld [vmem:[#allocation2 + $0xc0] sm:$0xff]
      %v3416 = vld [vmem:[#allocation2 + $0xc8] sm:$0xff]
      %v3417 = vld [vmem:[#allocation2 + $0xd0] sm:$0xff]
      %v3418 = vld [vmem:[#allocation2 + $0xd8] sm:$0xff]
      %v3419 = vld [vmem:[#allocation2 + $0xe0] sm:$0xff]
      %v3420 = vld [vmem:[#allocation2 + $0xe8] sm:$0xff]
      %v3421 = vld [vmem:[#allocation2 + $0xf0] sm:$0xff]
      %v3422 = vld [vmem:[#allocation2 + $0xf8] sm:$0xff]
      %v3423 = vadd.f32 %v3391, %v3233
      %v3424 = vadd.f32 %v3392, %v3238
      %v3425 = vadd.f32 %v3393, %v3243
      %v3426 = vadd.f32 %v3394, %v3248
      %v3427 = vadd.f32 %v3395, %v3253
      %v3428 = vadd.f32 %v3396, %v3258
      %v3429 = vadd.f32 %v3397, %v3263
      %v3430 = vadd.f32 %v3398, %v3268
      %v3431 = vadd.f32 %v3399, %v3273
      %v3432 = vadd.f32 %v3400, %v3278
      %v3433 = vadd.f32 %v3401, %v3283
      %v3434 = vadd.f32 %v3402, %v3288
      %v3435 = vadd.f32 %v3403, %v3293
      %v3436 = vadd.f32 %v3404, %v3298
      %v3437 = vadd.f32 %v3405, %v3303
      %v3438 = vadd.f32 %v3406, %v3308
      %v3439 = vadd.f32 %v3407, %v3313
      %v3440 = vadd.f32 %v3408, %v3318
      %v3441 = vadd.f32 %v3409, %v3323
      %v3442 = vadd.f32 %v3410, %v3328
      %v3443 = vadd.f32 %v3411, %v3333
      %v3444 = vadd.f32 %v3412, %v3338
      %v3445 = vadd.f32 %v3413, %v3343
      %v3446 = vadd.f32 %v3414, %v3348
      %v3447 = vadd.f32 %v3415, %v3353
      %v3448 = vadd.f32 %v3416, %v3358
      %v3449 = vadd.f32 %v3417, %v3363
      %v3450 = vadd.f32 %v3418, %v3368
      %v3451 = vadd.f32 %v3419, %v3373
      %v3452 = vadd.f32 %v3420, %v3378
      %v3453 = vadd.f32 %v3421, %v3383
      %v3454 = vadd.f32 %v3422, %v3388
      %3455 = vst [vmem:[#allocation2] sm:$0xff] %v3423
      %3456 = vst [vmem:[#allocation2 + $0x8] sm:$0xff] %v3424
      %3457 = vst [vmem:[#allocation2 + $0x10] sm:$0xff] %v3425
      %3458 = vst [vmem:[#allocation2 + $0x18] sm:$0xff] %v3426
      %3459 = vst [vmem:[#allocation2 + $0x20] sm:$0xff] %v3427
      %3460 = vst [vmem:[#allocation2 + $0x28] sm:$0xff] %v3428
      %3461 = vst [vmem:[#allocation2 + $0x30] sm:$0xff] %v3429
      %3462 = vst [vmem:[#allocation2 + $0x38] sm:$0xff] %v3430
      %3463 = vst [vmem:[#allocation2 + $0x40] sm:$0xff] %v3431
      %3464 = vst [vmem:[#allocation2 + $0x48] sm:$0xff] %v3432
      %3465 = vst [vmem:[#allocation2 + $0x50] sm:$0xff] %v3433
      %3466 = vst [vmem:[#allocation2 + $0x58] sm:$0xff] %v3434
      %3467 = vst [vmem:[#allocation2 + $0x60] sm:$0xff] %v3435
      %3468 = vst [vmem:[#allocation2 + $0x68] sm:$0xff] %v3436
      %3469 = vst [vmem:[#allocation2 + $0x70] sm:$0xff] %v3437
      %3470 = vst [vmem:[#allocation2 + $0x78] sm:$0xff] %v3438
      %3471 = vst [vmem:[#allocation2 + $0x80] sm:$0xff] %v3439
      %3472 = vst [vmem:[#allocation2 + $0x88] sm:$0xff] %v3440
      %3473 = vst [vmem:[#allocation2 + $0x90] sm:$0xff] %v3441
      %3474 = vst [vmem:[#allocation2 + $0x98] sm:$0xff] %v3442
      %3475 = vst [vmem:[#allocation2 + $0xa0] sm:$0xff] %v3443
      %3476 = vst [vmem:[#allocation2 + $0xa8] sm:$0xff] %v3444
      %3477 = vst [vmem:[#allocation2 + $0xb0] sm:$0xff] %v3445
      %3478 = vst [vmem:[#allocation2 + $0xb8] sm:$0xff] %v3446
      %3479 = vst [vmem:[#allocation2 + $0xc0] sm:$0xff] %v3447
      %3480 = vst [vmem:[#allocation2 + $0xc8] sm:$0xff] %v3448
      %3481 = vst [vmem:[#allocation2 + $0xd0] sm:$0xff] %v3449
      %3482 = vst [vmem:[#allocation2 + $0xd8] sm:$0xff] %v3450
      %3483 = vst [vmem:[#allocation2 + $0xe0] sm:$0xff] %v3451
      %3484 = vst [vmem:[#allocation2 + $0xe8] sm:$0xff] %v3452
      %3485 = vst [vmem:[#allocation2 + $0xf0] sm:$0xff] %v3453
      %3486 = vst [vmem:[#allocation2 + $0xf8] sm:$0xff] %v3454
      %v3487 = vld [vmem:[%s3035 + $0x1] sm:$0xff]
      %v3488 = vld [vmem:[%s3035 + $0x9] sm:$0xff]
      %v3489 = vld [vmem:[%s3035 + $0x19] sm:$0xff]
      %v3490 = vld [vmem:[%s3035 + $0x21] sm:$0xff]
      %v3491 = vld [vmem:[%s3035 + $0x31] sm:$0xff]
      %v3492 = vld [vmem:[%s3035 + $0x39] sm:$0xff]
      %v3493 = vld [vmem:[%s3035 + $0x49] sm:$0xff]
      %v3494 = vld [vmem:[%s3035 + $0x51] sm:$0xff]
      %v3495 = vld [vmem:[%s3035 + $0x61] sm:$0xff]
      %v3496 = vld [vmem:[%s3035 + $0x69] sm:$0xff]
      %v3497 = vld [vmem:[%s3035 + $0x79] sm:$0xff]
      %v3498 = vld [vmem:[%s3035 + $0x81] sm:$0xff]
      %v3499 = vld [vmem:[%s3035 + $0x91] sm:$0xff]
      %v3500 = vld [vmem:[%s3035 + $0x99] sm:$0xff]
      %v3501 = vld [vmem:[%s3035 + $0xa9] sm:$0xff]
      %v3502 = vld [vmem:[%s3035 + $0xb1] sm:$0xff]
      %v3503 = vld [vmem:[%s3035 + $0xc1] sm:$0xff]
      %v3504 = vld [vmem:[%s3035 + $0xc9] sm:$0xff]
      %v3505 = vld [vmem:[%s3035 + $0xd9] sm:$0xff]
      %v3506 = vld [vmem:[%s3035 + $0xe1] sm:$0xff]
      %v3507 = vld [vmem:[%s3035 + $0xf1] sm:$0xff]
      %v3508 = vld [vmem:[%s3035 + $0xf9] sm:$0xff]
      %v3509 = vld [vmem:[%s3035 + $0x109] sm:$0xff]
      %v3510 = vld [vmem:[%s3035 + $0x111] sm:$0xff]
      %v3511 = vld [vmem:[%s3035 + $0x121] sm:$0xff]
      %v3512 = vld [vmem:[%s3035 + $0x129] sm:$0xff]
      %v3513 = vld [vmem:[%s3035 + $0x139] sm:$0xff]
      %v3514 = vld [vmem:[%s3035 + $0x141] sm:$0xff]
      %v3515 = vld [vmem:[%s3035 + $0x151] sm:$0xff]
      %v3516 = vld [vmem:[%s3035 + $0x159] sm:$0xff]
      %v3517 = vld [vmem:[%s3035 + $0x169] sm:$0xff]
      %v3518 = vld [vmem:[%s3035 + $0x171] sm:$0xff]
      %s3519 = scalar_lea.vmem %s2, 56
      %v3520 = vld [vmem:[%s3519] sm:$0xff]
      %v3522 = vsel %vm425, %v3487, 0
      %v3525 = vsel %vm425, %v3488, 0
      %v3528 = vsel %vm425, %v3489, 0
      %v3531 = vsel %vm425, %v3490, 0
      %v3534 = vsel %vm425, %v3491, 0
      %v3537 = vsel %vm425, %v3492, 0
      %v3540 = vsel %vm425, %v3493, 0
      %v3543 = vsel %vm425, %v3494, 0
      %v3546 = vsel %vm425, %v3495, 0
      %v3549 = vsel %vm425, %v3496, 0
      %v3552 = vsel %vm425, %v3497, 0
      %v3555 = vsel %vm425, %v3498, 0
      %v3558 = vsel %vm425, %v3499, 0
      %v3561 = vsel %vm425, %v3500, 0
      %v3564 = vsel %vm425, %v3501, 0
      %v3567 = vsel %vm425, %v3502, 0
      %v3570 = vsel %vm425, %v3503, 0
      %v3573 = vsel %vm425, %v3504, 0
      %v3576 = vsel %vm425, %v3505, 0
      %v3579 = vsel %vm425, %v3506, 0
      %v3582 = vsel %vm425, %v3507, 0
      %v3585 = vsel %vm425, %v3508, 0
      %v3588 = vsel %vm425, %v3509, 0
      %v3591 = vsel %vm425, %v3510, 0
      %v3594 = vsel %vm425, %v3511, 0
      %v3597 = vsel %vm425, %v3512, 0
      %v3600 = vsel %vm425, %v3513, 0
      %v3603 = vsel %vm425, %v3514, 0
      %v3606 = vsel %vm425, %v3515, 0
      %v3609 = vsel %vm425, %v3516, 0
      %v3612 = vsel %vm425, %v3517, 0
      %v3615 = vsel %vm425, %v3518, 0
      %3617 = vmatprep.subr.mxu0 0.0
      %3618 = vmatpush1.msra.mxu0 %v3520
      %3619 = vmatprep.subr.mxu0 0.0
      %3620 = vmatpush1.msra.mxu0 0.0
      %3621 = vmatprep.subr.mxu0 0.0
      %3622 = vmatpush1.msra.mxu0 0.0
      %3623 = vmatprep.subr.mxu0 0.0
      %3624 = vmatpush1.msra.mxu0 0.0
      %3625 = vmatprep.subr.mxu0 0.0
      %3626 = vmatpush1.msra.mxu0 0.0
      %3627 = vmatprep.subr.mxu0 0.0
      %3628 = vmatpush1.msra.mxu0 0.0
      %3629 = vmatprep.subr.mxu0 0.0
      %3630 = vmatpush1.msra.mxu0 0.0
      %3631 = vmatprep.subr.mxu0 0.0
      %3632 = vmatpush1.msra.mxu0 0.0
      %3633 = vmatprep.subr.mxu0 0.0
      %3634 = vmatpush1.msra.mxu0 0.0
      %3635 = vmatprep.subr.mxu0 0.0
      %3636 = vmatpush1.msra.mxu0 0.0
      %3637 = vmatprep.subr.mxu0 0.0
      %3638 = vmatpush1.msra.mxu0 0.0
      %3639 = vmatprep.subr.mxu0 0.0
      %3640 = vmatpush1.msra.mxu0 0.0
      %3641 = vmatprep.subr.mxu0 0.0
      %3642 = vmatpush1.msra.mxu0 0.0
      %3643 = vmatprep.subr.mxu0 0.0
      %3644 = vmatpush1.msra.mxu0 0.0
      %3645 = vmatprep.subr.mxu0 0.0
      %3646 = vmatpush1.msra.mxu0 0.0
      %3647 = vmatprep.subr.mxu0 0.0
      %3648 = vmatpush1.msra.mxu0 0.0
      %3649 = vmatprep.subr.mxu0 0.0
      %3650 = vmatpush1.msra.mxu0 0.0
      %3651 = vmatprep.subr.mxu0 0.0
      %3652 = vmatpush1.msra.mxu0 0.0
      %3653 = vmatprep.subr.mxu0 0.0
      %3654 = vmatpush1.msra.mxu0 0.0
      %3655 = vmatprep.subr.mxu0 0.0
      %3656 = vmatpush1.msra.mxu0 0.0
      %3657 = vmatprep.subr.mxu0 0.0
      %3658 = vmatpush1.msra.mxu0 0.0
      %3659 = vmatprep.subr.mxu0 0.0
      %3660 = vmatpush1.msra.mxu0 0.0
      %3661 = vmatprep.subr.mxu0 0.0
      %3662 = vmatpush1.msra.mxu0 0.0
      %3663 = vmatprep.subr.mxu0 0.0
      %3664 = vmatpush1.msra.mxu0 0.0
      %3665 = vmatprep.subr.mxu0 0.0
      %3666 = vmatpush1.msra.mxu0 0.0
      %3667 = vmatprep.subr.mxu0 0.0
      %3668 = vmatpush1.msra.mxu0 0.0
      %3669 = vmatprep.subr.mxu0 0.0
      %3670 = vmatpush1.msra.mxu0 0.0
      %3671 = vmatprep.subr.mxu0 0.0
      %3672 = vmatpush1.msra.mxu0 0.0
      %3673 = vmatprep.subr.mxu0 0.0
      %3674 = vmatpush1.msra.mxu0 0.0
      %3675 = vmatprep.subr.mxu0 0.0
      %3676 = vmatpush1.msra.mxu0 0.0
      %3677 = vmatprep.subr.mxu0 0.0
      %3678 = vmatpush1.msra.mxu0 0.0
      %3679 = vmatprep.subr.mxu0 0.0
      %3680 = vmatpush1.msra.mxu0 0.0
      %3681 = vmatprep.mubr.f32.mxu0 0.0
      %3682 = vmatmul.mubr.f32.gmra.mrb[0].mxu0 %v3522
      %v3683 = vpop.f32.mrb[0].mxu0
      %v3684 = vadd.f32 0.0, %v3683
      %v3685 = vpop.f32.mrb[0].mxu0
      %3686 = vmatprep.mubr.f32.mxu0 0.0
      %3687 = vmatmul.mubr.f32.gmra.mrb[0].mxu0 %v3525
      %v3688 = vpop.f32.mrb[0].mxu0
      %v3689 = vadd.f32 0.0, %v3688
      %v3690 = vpop.f32.mrb[0].mxu0
      %3691 = vmatprep.mubr.f32.mxu0 0.0
      %3692 = vmatmul.mubr.f32.gmra.mrb[0].mxu0 %v3528
      %v3693 = vpop.f32.mrb[0].mxu0
      %v3694 = vadd.f32 0.0, %v3693
      %v3695 = vpop.f32.mrb[0].mxu0
      %3696 = vmatprep.mubr.f32.mxu0 0.0
      %3697 = vmatmul.mubr.f32.gmra.mrb[0].mxu0 %v3531
      %v3698 = vpop.f32.mrb[0].mxu0
      %v3699 = vadd.f32 0.0, %v3698
      %v3700 = vpop.f32.mrb[0].mxu0
      %3701 = vmatprep.mubr.f32.mxu0 0.0
      %3702 = vmatmul.mubr.f32.gmra.mrb[0].mxu0 %v3534
      %v3703 = vpop.f32.mrb[0].mxu0
      %v3704 = vadd.f32 0.0, %v3703
      %v3705 = vpop.f32.mrb[0].mxu0
      %3706 = vmatprep.mubr.f32.mxu0 0.0
      %3707 = vmatmul.mubr.f32.gmra.mrb[0].mxu0 %v3537
      %v3708 = vpop.f32.mrb[0].mxu0
      %v3709 = vadd.f32 0.0, %v3708
      %v3710 = vpop.f32.mrb[0].mxu0
      %3711 = vmatprep.mubr.f32.mxu0 0.0
      %3712 = vmatmul.mubr.f32.gmra.mrb[0].mxu0 %v3540
      %v3713 = vpop.f32.mrb[0].mxu0
      %v3714 = vadd.f32 0.0, %v3713
      %v3715 = vpop.f32.mrb[0].mxu0
      %3716 = vmatprep.mubr.f32.mxu0 0.0
      %3717 = vmatmul.mubr.f32.gmra.mrb[0].mxu0 %v3543
      %v3718 = vpop.f32.mrb[0].mxu0
      %v3719 = vadd.f32 0.0, %v3718
      %v3720 = vpop.f32.mrb[0].mxu0
      %3721 = vmatprep.mubr.f32.mxu0 0.0
      %3722 = vmatmul.mubr.f32.gmra.mrb[0].mxu0 %v3546
      %v3723 = vpop.f32.mrb[0].mxu0
      %v3724 = vadd.f32 0.0, %v3723
      %v3725 = vpop.f32.mrb[0].mxu0
      %3726 = vmatprep.mubr.f32.mxu0 0.0
      %3727 = vmatmul.mubr.f32.gmra.mrb[0].mxu0 %v3549
      %v3728 = vpop.f32.mrb[0].mxu0
      %v3729 = vadd.f32 0.0, %v3728
      %v3730 = vpop.f32.mrb[0].mxu0
      %3731 = vmatprep.mubr.f32.mxu0 0.0
      %3732 = vmatmul.mubr.f32.gmra.mrb[0].mxu0 %v3552
      %v3733 = vpop.f32.mrb[0].mxu0
      %v3734 = vadd.f32 0.0, %v3733
      %v3735 = vpop.f32.mrb[0].mxu0
      %3736 = vmatprep.mubr.f32.mxu0 0.0
      %3737 = vmatmul.mubr.f32.gmra.mrb[0].mxu0 %v3555
      %v3738 = vpop.f32.mrb[0].mxu0
      %v3739 = vadd.f32 0.0, %v3738
      %v3740 = vpop.f32.mrb[0].mxu0
      %3741 = vmatprep.mubr.f32.mxu0 0.0
      %3742 = vmatmul.mubr.f32.gmra.mrb[0].mxu0 %v3558
      %v3743 = vpop.f32.mrb[0].mxu0
      %v3744 = vadd.f32 0.0, %v3743
      %v3745 = vpop.f32.mrb[0].mxu0
      %3746 = vmatprep.mubr.f32.mxu0 0.0
      %3747 = vmatmul.mubr.f32.gmra.mrb[0].mxu0 %v3561
      %v3748 = vpop.f32.mrb[0].mxu0
      %v3749 = vadd.f32 0.0, %v3748
      %v3750 = vpop.f32.mrb[0].mxu0
      %3751 = vmatprep.mubr.f32.mxu0 0.0
      %3752 = vmatmul.mubr.f32.gmra.mrb[0].mxu0 %v3564
      %v3753 = vpop.f32.mrb[0].mxu0
      %v3754 = vadd.f32 0.0, %v3753
      %v3755 = vpop.f32.mrb[0].mxu0
      %3756 = vmatprep.mubr.f32.mxu0 0.0
      %3757 = vmatmul.mubr.f32.gmra.mrb[0].mxu0 %v3567
      %v3758 = vpop.f32.mrb[0].mxu0
      %v3759 = vadd.f32 0.0, %v3758
      %v3760 = vpop.f32.mrb[0].mxu0
      %3761 = vmatprep.mubr.f32.mxu0 0.0
      %3762 = vmatmul.mubr.f32.gmra.mrb[0].mxu0 %v3570
      %v3763 = vpop.f32.mrb[0].mxu0
      %v3764 = vadd.f32 0.0, %v3763
      %v3765 = vpop.f32.mrb[0].mxu0
      %3766 = vmatprep.mubr.f32.mxu0 0.0
      %3767 = vmatmul.mubr.f32.gmra.mrb[0].mxu0 %v3573
      %v3768 = vpop.f32.mrb[0].mxu0
      %v3769 = vadd.f32 0.0, %v3768
      %v3770 = vpop.f32.mrb[0].mxu0
      %3771 = vmatprep.mubr.f32.mxu0 0.0
      %3772 = vmatmul.mubr.f32.gmra.mrb[0].mxu0 %v3576
      %v3773 = vpop.f32.mrb[0].mxu0
      %v3774 = vadd.f32 0.0, %v3773
      %v3775 = vpop.f32.mrb[0].mxu0
      %3776 = vmatprep.mubr.f32.mxu0 0.0
      %3777 = vmatmul.mubr.f32.gmra.mrb[0].mxu0 %v3579
      %v3778 = vpop.f32.mrb[0].mxu0
      %v3779 = vadd.f32 0.0, %v3778
      %v3780 = vpop.f32.mrb[0].mxu0
      %3781 = vmatprep.mubr.f32.mxu0 0.0
      %3782 = vmatmul.mubr.f32.gmra.mrb[0].mxu0 %v3582
      %v3783 = vpop.f32.mrb[0].mxu0
      %v3784 = vadd.f32 0.0, %v3783
      %v3785 = vpop.f32.mrb[0].mxu0
      %3786 = vmatprep.mubr.f32.mxu0 0.0
      %3787 = vmatmul.mubr.f32.gmra.mrb[0].mxu0 %v3585
      %v3788 = vpop.f32.mrb[0].mxu0
      %v3789 = vadd.f32 0.0, %v3788
      %v3790 = vpop.f32.mrb[0].mxu0
      %3791 = vmatprep.mubr.f32.mxu0 0.0
      %3792 = vmatmul.mubr.f32.gmra.mrb[0].mxu0 %v3588
      %v3793 = vpop.f32.mrb[0].mxu0
      %v3794 = vadd.f32 0.0, %v3793
      %v3795 = vpop.f32.mrb[0].mxu0
      %3796 = vmatprep.mubr.f32.mxu0 0.0
      %3797 = vmatmul.mubr.f32.gmra.mrb[0].mxu0 %v3591
      %v3798 = vpop.f32.mrb[0].mxu0
      %v3799 = vadd.f32 0.0, %v3798
      %v3800 = vpop.f32.mrb[0].mxu0
      %3801 = vmatprep.mubr.f32.mxu0 0.0
      %3802 = vmatmul.mubr.f32.gmra.mrb[0].mxu0 %v3594
      %v3803 = vpop.f32.mrb[0].mxu0
      %v3804 = vadd.f32 0.0, %v3803
      %v3805 = vpop.f32.mrb[0].mxu0
      %3806 = vmatprep.mubr.f32.mxu0 0.0
      %3807 = vmatmul.mubr.f32.gmra.mrb[0].mxu0 %v3597
      %v3808 = vpop.f32.mrb[0].mxu0
      %v3809 = vadd.f32 0.0, %v3808
      %v3810 = vpop.f32.mrb[0].mxu0
      %3811 = vmatprep.mubr.f32.mxu0 0.0
      %3812 = vmatmul.mubr.f32.gmra.mrb[0].mxu0 %v3600
      %v3813 = vpop.f32.mrb[0].mxu0
      %v3814 = vadd.f32 0.0, %v3813
      %v3815 = vpop.f32.mrb[0].mxu0
      %3816 = vmatprep.mubr.f32.mxu0 0.0
      %3817 = vmatmul.mubr.f32.gmra.mrb[0].mxu0 %v3603
      %v3818 = vpop.f32.mrb[0].mxu0
      %v3819 = vadd.f32 0.0, %v3818
      %v3820 = vpop.f32.mrb[0].mxu0
      %3821 = vmatprep.mubr.f32.mxu0 0.0
      %3822 = vmatmul.mubr.f32.gmra.mrb[0].mxu0 %v3606
      %v3823 = vpop.f32.mrb[0].mxu0
      %v3824 = vadd.f32 0.0, %v3823
      %v3825 = vpop.f32.mrb[0].mxu0
      %3826 = vmatprep.mubr.f32.mxu0 0.0
      %3827 = vmatmul.mubr.f32.gmra.mrb[0].mxu0 %v3609
      %v3828 = vpop.f32.mrb[0].mxu0
      %v3829 = vadd.f32 0.0, %v3828
      %v3830 = vpop.f32.mrb[0].mxu0
      %3831 = vmatprep.mubr.f32.mxu0 0.0
      %3832 = vmatmul.mubr.f32.gmra.mrb[0].mxu0 %v3612
      %v3833 = vpop.f32.mrb[0].mxu0
      %v3834 = vadd.f32 0.0, %v3833
      %v3835 = vpop.f32.mrb[0].mxu0
      %3836 = vmatprep.mubr.f32.mxu0 0.0
      %3837 = vmatmul.mubr.f32.gmra.mrb[0].mxu0 %v3615
      %v3838 = vpop.f32.mrb[0].mxu0
      %v3839 = vadd.f32 0.0, %v3838
      %v3840 = vpop.f32.mrb[0].mxu0
      %3841 = vdwg.mxu0
      %v3842 = vld [vmem:[#allocation2] sm:$0xff]
      %v3843 = vld [vmem:[#allocation2 + $0x8] sm:$0xff]
      %v3844 = vld [vmem:[#allocation2 + $0x10] sm:$0xff]
      %v3845 = vld [vmem:[#allocation2 + $0x18] sm:$0xff]
      %v3846 = vld [vmem:[#allocation2 + $0x20] sm:$0xff]
      %v3847 = vld [vmem:[#allocation2 + $0x28] sm:$0xff]
      %v3848 = vld [vmem:[#allocation2 + $0x30] sm:$0xff]
      %v3849 = vld [vmem:[#allocation2 + $0x38] sm:$0xff]
      %v3850 = vld [vmem:[#allocation2 + $0x40] sm:$0xff]
      %v3851 = vld [vmem:[#allocation2 + $0x48] sm:$0xff]
      %v3852 = vld [vmem:[#allocation2 + $0x50] sm:$0xff]
      %v3853 = vld [vmem:[#allocation2 + $0x58] sm:$0xff]
      %v3854 = vld [vmem:[#allocation2 + $0x60] sm:$0xff]
      %v3855 = vld [vmem:[#allocation2 + $0x68] sm:$0xff]
      %v3856 = vld [vmem:[#allocation2 + $0x70] sm:$0xff]
      %v3857 = vld [vmem:[#allocation2 + $0x78] sm:$0xff]
      %v3858 = vld [vmem:[#allocation2 + $0x80] sm:$0xff]
      %v3859 = vld [vmem:[#allocation2 + $0x88] sm:$0xff]
      %v3860 = vld [vmem:[#allocation2 + $0x90] sm:$0xff]
      %v3861 = vld [vmem:[#allocation2 + $0x98] sm:$0xff]
      %v3862 = vld [vmem:[#allocation2 + $0xa0] sm:$0xff]
      %v3863 = vld [vmem:[#allocation2 + $0xa8] sm:$0xff]
      %v3864 = vld [vmem:[#allocation2 + $0xb0] sm:$0xff]
      %v3865 = vld [vmem:[#allocation2 + $0xb8] sm:$0xff]
      %v3866 = vld [vmem:[#allocation2 + $0xc0] sm:$0xff]
      %v3867 = vld [vmem:[#allocation2 + $0xc8] sm:$0xff]
      %v3868 = vld [vmem:[#allocation2 + $0xd0] sm:$0xff]
      %v3869 = vld [vmem:[#allocation2 + $0xd8] sm:$0xff]
      %v3870 = vld [vmem:[#allocation2 + $0xe0] sm:$0xff]
      %v3871 = vld [vmem:[#allocation2 + $0xe8] sm:$0xff]
      %v3872 = vld [vmem:[#allocation2 + $0xf0] sm:$0xff]
      %v3873 = vld [vmem:[#allocation2 + $0xf8] sm:$0xff]
      %v3874 = vadd.f32 %v3842, %v3684
      %v3875 = vadd.f32 %v3843, %v3689
      %v3876 = vadd.f32 %v3844, %v3694
      %v3877 = vadd.f32 %v3845, %v3699
      %v3878 = vadd.f32 %v3846, %v3704
      %v3879 = vadd.f32 %v3847, %v3709
      %v3880 = vadd.f32 %v3848, %v3714
      %v3881 = vadd.f32 %v3849, %v3719
      %v3882 = vadd.f32 %v3850, %v3724
      %v3883 = vadd.f32 %v3851, %v3729
      %v3884 = vadd.f32 %v3852, %v3734
      %v3885 = vadd.f32 %v3853, %v3739
      %v3886 = vadd.f32 %v3854, %v3744
      %v3887 = vadd.f32 %v3855, %v3749
      %v3888 = vadd.f32 %v3856, %v3754
      %v3889 = vadd.f32 %v3857, %v3759
      %v3890 = vadd.f32 %v3858, %v3764
      %v3891 = vadd.f32 %v3859, %v3769
      %v3892 = vadd.f32 %v3860, %v3774
      %v3893 = vadd.f32 %v3861, %v3779
      %v3894 = vadd.f32 %v3862, %v3784
      %v3895 = vadd.f32 %v3863, %v3789
      %v3896 = vadd.f32 %v3864, %v3794
      %v3897 = vadd.f32 %v3865, %v3799
      %v3898 = vadd.f32 %v3866, %v3804
      %v3899 = vadd.f32 %v3867, %v3809
      %v3900 = vadd.f32 %v3868, %v3814
      %v3901 = vadd.f32 %v3869, %v3819
      %v3902 = vadd.f32 %v3870, %v3824
      %v3903 = vadd.f32 %v3871, %v3829
      %v3904 = vadd.f32 %v3872, %v3834
      %v3905 = vadd.f32 %v3873, %v3839
      %3906 = vst [vmem:[#allocation2] sm:$0xff] %v3874
      %3907 = vst [vmem:[#allocation2 + $0x8] sm:$0xff] %v3875
      %3908 = vst [vmem:[#allocation2 + $0x10] sm:$0xff] %v3876
      %3909 = vst [vmem:[#allocation2 + $0x18] sm:$0xff] %v3877
      %3910 = vst [vmem:[#allocation2 + $0x20] sm:$0xff] %v3878
      %3911 = vst [vmem:[#allocation2 + $0x28] sm:$0xff] %v3879
      %3912 = vst [vmem:[#allocation2 + $0x30] sm:$0xff] %v3880
      %3913 = vst [vmem:[#allocation2 + $0x38] sm:$0xff] %v3881
      %3914 = vst [vmem:[#allocation2 + $0x40] sm:$0xff] %v3882
      %3915 = vst [vmem:[#allocation2 + $0x48] sm:$0xff] %v3883
      %3916 = vst [vmem:[#allocation2 + $0x50] sm:$0xff] %v3884
      %3917 = vst [vmem:[#allocation2 + $0x58] sm:$0xff] %v3885
      %3918 = vst [vmem:[#allocation2 + $0x60] sm:$0xff] %v3886
      %3919 = vst [vmem:[#allocation2 + $0x68] sm:$0xff] %v3887
      %3920 = vst [vmem:[#allocation2 + $0x70] sm:$0xff] %v3888
      %3921 = vst [vmem:[#allocation2 + $0x78] sm:$0xff] %v3889
      %3922 = vst [vmem:[#allocation2 + $0x80] sm:$0xff] %v3890
      %3923 = vst [vmem:[#allocation2 + $0x88] sm:$0xff] %v3891
      %3924 = vst [vmem:[#allocation2 + $0x90] sm:$0xff] %v3892
      %3925 = vst [vmem:[#allocation2 + $0x98] sm:$0xff] %v3893
      %3926 = vst [vmem:[#allocation2 + $0xa0] sm:$0xff] %v3894
      %3927 = vst [vmem:[#allocation2 + $0xa8] sm:$0xff] %v3895
      %3928 = vst [vmem:[#allocation2 + $0xb0] sm:$0xff] %v3896
      %3929 = vst [vmem:[#allocation2 + $0xb8] sm:$0xff] %v3897
      %3930 = vst [vmem:[#allocation2 + $0xc0] sm:$0xff] %v3898
      %3931 = vst [vmem:[#allocation2 + $0xc8] sm:$0xff] %v3899
      %3932 = vst [vmem:[#allocation2 + $0xd0] sm:$0xff] %v3900
      %3933 = vst [vmem:[#allocation2 + $0xd8] sm:$0xff] %v3901
      %3934 = vst [vmem:[#allocation2 + $0xe0] sm:$0xff] %v3902
      %3935 = vst [vmem:[#allocation2 + $0xe8] sm:$0xff] %v3903
      %3936 = vst [vmem:[#allocation2 + $0xf0] sm:$0xff] %v3904
      %3937 = vst [vmem:[#allocation2 + $0xf8] sm:$0xff] %v3905
      %v3938 = vld [vmem:[%s3035 + $0x2] sm:$0xff]
      %v3939 = vld [vmem:[%s3035 + $0xa] sm:$0xff]
      %v3940 = vld [vmem:[%s3035 + $0x1a] sm:$0xff]
      %v3941 = vld [vmem:[%s3035 + $0x22] sm:$0xff]
      %v3942 = vld [vmem:[%s3035 + $0x32] sm:$0xff]
      %v3943 = vld [vmem:[%s3035 + $0x3a] sm:$0xff]
      %v3944 = vld [vmem:[%s3035 + $0x4a] sm:$0xff]
      %v3945 = vld [vmem:[%s3035 + $0x52] sm:$0xff]
      %v3946 = vld [vmem:[%s3035 + $0x62] sm:$0xff]
      %v3947 = vld [vmem:[%s3035 + $0x6a] sm:$0xff]
      %v3948 = vld [vmem:[%s3035 + $0x7a] sm:$0xff]
      %v3949 = vld [vmem:[%s3035 + $0x82] sm:$0xff]
      %v3950 = vld [vmem:[%s3035 + $0x92] sm:$0xff]
      %v3951 = vld [vmem:[%s3035 + $0x9a] sm:$0xff]
      %v3952 = vld [vmem:[%s3035 + $0xaa] sm:$0xff]
      %v3953 = vld [vmem:[%s3035 + $0xb2] sm:$0xff]
      %v3954 = vld [vmem:[%s3035 + $0xc2] sm:$0xff]
      %v3955 = vld [vmem:[%s3035 + $0xca] sm:$0xff]
      %v3956 = vld [vmem:[%s3035 + $0xda] sm:$0xff]
      %v3957 = vld [vmem:[%s3035 + $0xe2] sm:$0xff]
      %v3958 = vld [vmem:[%s3035 + $0xf2] sm:$0xff]
      %v3959 = vld [vmem:[%s3035 + $0xfa] sm:$0xff]
      %v3960 = vld [vmem:[%s3035 + $0x10a] sm:$0xff]
      %v3961 = vld [vmem:[%s3035 + $0x112] sm:$0xff]
      %v3962 = vld [vmem:[%s3035 + $0x122] sm:$0xff]
      %v3963 = vld [vmem:[%s3035 + $0x12a] sm:$0xff]
      %v3964 = vld [vmem:[%s3035 + $0x13a] sm:$0xff]
      %v3965 = vld [vmem:[%s3035 + $0x142] sm:$0xff]
      %v3966 = vld [vmem:[%s3035 + $0x152] sm:$0xff]
      %v3967 = vld [vmem:[%s3035 + $0x15a] sm:$0xff]
      %v3968 = vld [vmem:[%s3035 + $0x16a] sm:$0xff]
      %v3969 = vld [vmem:[%s3035 + $0x172] sm:$0xff]
      %s3970 = scalar_lea.vmem %s2, 64
      %v3971 = vld [vmem:[%s3970] sm:$0xff]
      %v3973 = vsel %vm425, %v3938, 0
      %v3976 = vsel %vm425, %v3939, 0
      %v3979 = vsel %vm425, %v3940, 0
      %v3982 = vsel %vm425, %v3941, 0
      %v3985 = vsel %vm425, %v3942, 0
      %v3988 = vsel %vm425, %v3943, 0
      %v3991 = vsel %vm425, %v3944, 0
      %v3994 = vsel %vm425, %v3945, 0
      %v3997 = vsel %vm425, %v3946, 0
      %v4000 = vsel %vm425, %v3947, 0
      %v4003 = vsel %vm425, %v3948, 0
      %v4006 = vsel %vm425, %v3949, 0
      %v4009 = vsel %vm425, %v3950, 0
      %v4012 = vsel %vm425, %v3951, 0
      %v4015 = vsel %vm425, %v3952, 0
      %v4018 = vsel %vm425, %v3953, 0
      %v4021 = vsel %vm425, %v3954, 0
      %v4024 = vsel %vm425, %v3955, 0
      %v4027 = vsel %vm425, %v3956, 0
      %v4030 = vsel %vm425, %v3957, 0
      %v4033 = vsel %vm425, %v3958, 0
      %v4036 = vsel %vm425, %v3959, 0
      %v4039 = vsel %vm425, %v3960, 0
      %v4042 = vsel %vm425, %v3961, 0
      %v4045 = vsel %vm425, %v3962, 0
      %v4048 = vsel %vm425, %v3963, 0
      %v4051 = vsel %vm425, %v3964, 0
      %v4054 = vsel %vm425, %v3965, 0
      %v4057 = vsel %vm425, %v3966, 0
      %v4060 = vsel %vm425, %v3967, 0
      %v4063 = vsel %vm425, %v3968, 0
      %v4066 = vsel %vm425, %v3969, 0
      %4068 = vmatprep.subr.mxu0 0.0
      %4069 = vmatpush1.msra.mxu0 %v3971
      %4070 = vmatprep.subr.mxu0 0.0
      %4071 = vmatpush1.msra.mxu0 0.0
      %4072 = vmatprep.subr.mxu0 0.0
      %4073 = vmatpush1.msra.mxu0 0.0
      %4074 = vmatprep.subr.mxu0 0.0
      %4075 = vmatpush1.msra.mxu0 0.0
      %4076 = vmatprep.subr.mxu0 0.0
      %4077 = vmatpush1.msra.mxu0 0.0
      %4078 = vmatprep.subr.mxu0 0.0
      %4079 = vmatpush1.msra.mxu0 0.0
      %4080 = vmatprep.subr.mxu0 0.0
      %4081 = vmatpush1.msra.mxu0 0.0
      %4082 = vmatprep.subr.mxu0 0.0
      %4083 = vmatpush1.msra.mxu0 0.0
      %4084 = vmatprep.subr.mxu0 0.0
      %4085 = vmatpush1.msra.mxu0 0.0
      %4086 = vmatprep.subr.mxu0 0.0
      %4087 = vmatpush1.msra.mxu0 0.0
      %4088 = vmatprep.subr.mxu0 0.0
      %4089 = vmatpush1.msra.mxu0 0.0
      %4090 = vmatprep.subr.mxu0 0.0
      %4091 = vmatpush1.msra.mxu0 0.0
      %4092 = vmatprep.subr.mxu0 0.0
      %4093 = vmatpush1.msra.mxu0 0.0
      %4094 = vmatprep.subr.mxu0 0.0
      %4095 = vmatpush1.msra.mxu0 0.0
      %4096 = vmatprep.subr.mxu0 0.0
      %4097 = vmatpush1.msra.mxu0 0.0
      %4098 = vmatprep.subr.mxu0 0.0
      %4099 = vmatpush1.msra.mxu0 0.0
      %4100 = vmatprep.subr.mxu0 0.0
      %4101 = vmatpush1.msra.mxu0 0.0
      %4102 = vmatprep.subr.mxu0 0.0
      %4103 = vmatpush1.msra.mxu0 0.0
      %4104 = vmatprep.subr.mxu0 0.0
      %4105 = vmatpush1.msra.mxu0 0.0
      %4106 = vmatprep.subr.mxu0 0.0
      %4107 = vmatpush1.msra.mxu0 0.0
      %4108 = vmatprep.subr.mxu0 0.0
      %4109 = vmatpush1.msra.mxu0 0.0
      %4110 = vmatprep.subr.mxu0 0.0
      %4111 = vmatpush1.msra.mxu0 0.0
      %4112 = vmatprep.subr.mxu0 0.0
      %4113 = vmatpush1.msra.mxu0 0.0
      %4114 = vmatprep.subr.mxu0 0.0
      %4115 = vmatpush1.msra.mxu0 0.0
      %4116 = vmatprep.subr.mxu0 0.0
      %4117 = vmatpush1.msra.mxu0 0.0
      %4118 = vmatprep.subr.mxu0 0.0
      %4119 = vmatpush1.msra.mxu0 0.0
      %4120 = vmatprep.subr.mxu0 0.0
      %4121 = vmatpush1.msra.mxu0 0.0
      %4122 = vmatprep.subr.mxu0 0.0
      %4123 = vmatpush1.msra.mxu0 0.0
      %4124 = vmatprep.subr.mxu0 0.0
      %4125 = vmatpush1.msra.mxu0 0.0
      %4126 = vmatprep.subr.mxu0 0.0
      %4127 = vmatpush1.msra.mxu0 0.0
      %4128 = vmatprep.subr.mxu0 0.0
      %4129 = vmatpush1.msra.mxu0 0.0
      %4130 = vmatprep.subr.mxu0 0.0
      %4131 = vmatpush1.msra.mxu0 0.0
      %4132 = vmatprep.mubr.f32.mxu0 0.0
      %4133 = vmatmul.mubr.f32.gmra.mrb[0].mxu0 %v3973
      %v4134 = vpop.f32.mrb[0].mxu0
      %v4135 = vadd.f32 0.0, %v4134
      %v4136 = vpop.f32.mrb[0].mxu0
      %4137 = vmatprep.mubr.f32.mxu0 0.0
      %4138 = vmatmul.mubr.f32.gmra.mrb[0].mxu0 %v3976
      %v4139 = vpop.f32.mrb[0].mxu0
      %v4140 = vadd.f32 0.0, %v4139
      %v4141 = vpop.f32.mrb[0].mxu0
      %4142 = vmatprep.mubr.f32.mxu0 0.0
      %4143 = vmatmul.mubr.f32.gmra.mrb[0].mxu0 %v3979
      %v4144 = vpop.f32.mrb[0].mxu0
      %v4145 = vadd.f32 0.0, %v4144
      %v4146 = vpop.f32.mrb[0].mxu0
      %4147 = vmatprep.mubr.f32.mxu0 0.0
      %4148 = vmatmul.mubr.f32.gmra.mrb[0].mxu0 %v3982
      %v4149 = vpop.f32.mrb[0].mxu0
      %v4150 = vadd.f32 0.0, %v4149
      %v4151 = vpop.f32.mrb[0].mxu0
      %4152 = vmatprep.mubr.f32.mxu0 0.0
      %4153 = vmatmul.mubr.f32.gmra.mrb[0].mxu0 %v3985
      %v4154 = vpop.f32.mrb[0].mxu0
      %v4155 = vadd.f32 0.0, %v4154
      %v4156 = vpop.f32.mrb[0].mxu0
      %4157 = vmatprep.mubr.f32.mxu0 0.0
      %4158 = vmatmul.mubr.f32.gmra.mrb[0].mxu0 %v3988
      %v4159 = vpop.f32.mrb[0].mxu0
      %v4160 = vadd.f32 0.0, %v4159
      %v4161 = vpop.f32.mrb[0].mxu0
      %4162 = vmatprep.mubr.f32.mxu0 0.0
      %4163 = vmatmul.mubr.f32.gmra.mrb[0].mxu0 %v3991
      %v4164 = vpop.f32.mrb[0].mxu0
      %v4165 = vadd.f32 0.0, %v4164
      %v4166 = vpop.f32.mrb[0].mxu0
      %4167 = vmatprep.mubr.f32.mxu0 0.0
      %4168 = vmatmul.mubr.f32.gmra.mrb[0].mxu0 %v3994
      %v4169 = vpop.f32.mrb[0].mxu0
      %v4170 = vadd.f32 0.0, %v4169
      %v4171 = vpop.f32.mrb[0].mxu0
      %4172 = vmatprep.mubr.f32.mxu0 0.0
      %4173 = vmatmul.mubr.f32.gmra.mrb[0].mxu0 %v3997
      %v4174 = vpop.f32.mrb[0].mxu0
      %v4175 = vadd.f32 0.0, %v4174
      %v4176 = vpop.f32.mrb[0].mxu0
      %4177 = vmatprep.mubr.f32.mxu0 0.0
      %4178 = vmatmul.mubr.f32.gmra.mrb[0].mxu0 %v4000
      %v4179 = vpop.f32.mrb[0].mxu0
      %v4180 = vadd.f32 0.0, %v4179
      %v4181 = vpop.f32.mrb[0].mxu0
      %4182 = vmatprep.mubr.f32.mxu0 0.0
      %4183 = vmatmul.mubr.f32.gmra.mrb[0].mxu0 %v4003
      %v4184 = vpop.f32.mrb[0].mxu0
      %v4185 = vadd.f32 0.0, %v4184
      %v4186 = vpop.f32.mrb[0].mxu0
      %4187 = vmatprep.mubr.f32.mxu0 0.0
      %4188 = vmatmul.mubr.f32.gmra.mrb[0].mxu0 %v4006
      %v4189 = vpop.f32.mrb[0].mxu0
      %v4190 = vadd.f32 0.0, %v4189
      %v4191 = vpop.f32.mrb[0].mxu0
      %4192 = vmatprep.mubr.f32.mxu0 0.0
      %4193 = vmatmul.mubr.f32.gmra.mrb[0].mxu0 %v4009
      %v4194 = vpop.f32.mrb[0].mxu0
      %v4195 = vadd.f32 0.0, %v4194
      %v4196 = vpop.f32.mrb[0].mxu0
      %4197 = vmatprep.mubr.f32.mxu0 0.0
      %4198 = vmatmul.mubr.f32.gmra.mrb[0].mxu0 %v4012
      %v4199 = vpop.f32.mrb[0].mxu0
      %v4200 = vadd.f32 0.0, %v4199
      %v4201 = vpop.f32.mrb[0].mxu0
      %4202 = vmatprep.mubr.f32.mxu0 0.0
      %4203 = vmatmul.mubr.f32.gmra.mrb[0].mxu0 %v4015
      %v4204 = vpop.f32.mrb[0].mxu0
      %v4205 = vadd.f32 0.0, %v4204
      %v4206 = vpop.f32.mrb[0].mxu0
      %4207 = vmatprep.mubr.f32.mxu0 0.0
      %4208 = vmatmul.mubr.f32.gmra.mrb[0].mxu0 %v4018
      %v4209 = vpop.f32.mrb[0].mxu0
      %v4210 = vadd.f32 0.0, %v4209
      %v4211 = vpop.f32.mrb[0].mxu0
      %4212 = vmatprep.mubr.f32.mxu0 0.0
      %4213 = vmatmul.mubr.f32.gmra.mrb[0].mxu0 %v4021
      %v4214 = vpop.f32.mrb[0].mxu0
      %v4215 = vadd.f32 0.0, %v4214
      %v4216 = vpop.f32.mrb[0].mxu0
      %4217 = vmatprep.mubr.f32.mxu0 0.0
      %4218 = vmatmul.mubr.f32.gmra.mrb[0].mxu0 %v4024
      %v4219 = vpop.f32.mrb[0].mxu0
      %v4220 = vadd.f32 0.0, %v4219
      %v4221 = vpop.f32.mrb[0].mxu0
      %4222 = vmatprep.mubr.f32.mxu0 0.0
      %4223 = vmatmul.mubr.f32.gmra.mrb[0].mxu0 %v4027
      %v4224 = vpop.f32.mrb[0].mxu0
      %v4225 = vadd.f32 0.0, %v4224
      %v4226 = vpop.f32.mrb[0].mxu0
      %4227 = vmatprep.mubr.f32.mxu0 0.0
      %4228 = vmatmul.mubr.f32.gmra.mrb[0].mxu0 %v4030
      %v4229 = vpop.f32.mrb[0].mxu0
      %v4230 = vadd.f32 0.0, %v4229
      %v4231 = vpop.f32.mrb[0].mxu0
      %4232 = vmatprep.mubr.f32.mxu0 0.0
      %4233 = vmatmul.mubr.f32.gmra.mrb[0].mxu0 %v4033
      %v4234 = vpop.f32.mrb[0].mxu0
      %v4235 = vadd.f32 0.0, %v4234
      %v4236 = vpop.f32.mrb[0].mxu0
      %4237 = vmatprep.mubr.f32.mxu0 0.0
      %4238 = vmatmul.mubr.f32.gmra.mrb[0].mxu0 %v4036
      %v4239 = vpop.f32.mrb[0].mxu0
      %v4240 = vadd.f32 0.0, %v4239
      %v4241 = vpop.f32.mrb[0].mxu0
      %4242 = vmatprep.mubr.f32.mxu0 0.0
      %4243 = vmatmul.mubr.f32.gmra.mrb[0].mxu0 %v4039
      %v4244 = vpop.f32.mrb[0].mxu0
      %v4245 = vadd.f32 0.0, %v4244
      %v4246 = vpop.f32.mrb[0].mxu0
      %4247 = vmatprep.mubr.f32.mxu0 0.0
      %4248 = vmatmul.mubr.f32.gmra.mrb[0].mxu0 %v4042
      %v4249 = vpop.f32.mrb[0].mxu0
      %v4250 = vadd.f32 0.0, %v4249
      %v4251 = vpop.f32.mrb[0].mxu0
      %4252 = vmatprep.mubr.f32.mxu0 0.0
      %4253 = vmatmul.mubr.f32.gmra.mrb[0].mxu0 %v4045
      %v4254 = vpop.f32.mrb[0].mxu0
      %v4255 = vadd.f32 0.0, %v4254
      %v4256 = vpop.f32.mrb[0].mxu0
      %4257 = vmatprep.mubr.f32.mxu0 0.0
      %4258 = vmatmul.mubr.f32.gmra.mrb[0].mxu0 %v4048
      %v4259 = vpop.f32.mrb[0].mxu0
      %v4260 = vadd.f32 0.0, %v4259
      %v4261 = vpop.f32.mrb[0].mxu0
      %4262 = vmatprep.mubr.f32.mxu0 0.0
      %4263 = vmatmul.mubr.f32.gmra.mrb[0].mxu0 %v4051
      %v4264 = vpop.f32.mrb[0].mxu0
      %v4265 = vadd.f32 0.0, %v4264
      %v4266 = vpop.f32.mrb[0].mxu0
      %4267 = vmatprep.mubr.f32.mxu0 0.0
      %4268 = vmatmul.mubr.f32.gmra.mrb[0].mxu0 %v4054
      %v4269 = vpop.f32.mrb[0].mxu0
      %v4270 = vadd.f32 0.0, %v4269
      %v4271 = vpop.f32.mrb[0].mxu0
      %4272 = vmatprep.mubr.f32.mxu0 0.0
      %4273 = vmatmul.mubr.f32.gmra.mrb[0].mxu0 %v4057
      %v4274 = vpop.f32.mrb[0].mxu0
      %v4275 = vadd.f32 0.0, %v4274
      %v4276 = vpop.f32.mrb[0].mxu0
      %4277 = vmatprep.mubr.f32.mxu0 0.0
      %4278 = vmatmul.mubr.f32.gmra.mrb[0].mxu0 %v4060
      %v4279 = vpop.f32.mrb[0].mxu0
      %v4280 = vadd.f32 0.0, %v4279
      %v4281 = vpop.f32.mrb[0].mxu0
      %4282 = vmatprep.mubr.f32.mxu0 0.0
      %4283 = vmatmul.mubr.f32.gmra.mrb[0].mxu0 %v4063
      %v4284 = vpop.f32.mrb[0].mxu0
      %v4285 = vadd.f32 0.0, %v4284
      %v4286 = vpop.f32.mrb[0].mxu0
      %4287 = vmatprep.mubr.f32.mxu0 0.0
      %4288 = vmatmul.mubr.f32.gmra.mrb[0].mxu0 %v4066
      %v4289 = vpop.f32.mrb[0].mxu0
      %v4290 = vadd.f32 0.0, %v4289
      %v4291 = vpop.f32.mrb[0].mxu0
      %4292 = vdwg.mxu0
      %v4293 = vld [vmem:[#allocation2] sm:$0xff]
      %v4294 = vld [vmem:[#allocation2 + $0x8] sm:$0xff]
      %v4295 = vld [vmem:[#allocation2 + $0x10] sm:$0xff]
      %v4296 = vld [vmem:[#allocation2 + $0x18] sm:$0xff]
      %v4297 = vld [vmem:[#allocation2 + $0x20] sm:$0xff]
      %v4298 = vld [vmem:[#allocation2 + $0x28] sm:$0xff]
      %v4299 = vld [vmem:[#allocation2 + $0x30] sm:$0xff]
      %v4300 = vld [vmem:[#allocation2 + $0x38] sm:$0xff]
      %v4301 = vld [vmem:[#allocation2 + $0x40] sm:$0xff]
      %v4302 = vld [vmem:[#allocation2 + $0x48] sm:$0xff]
      %v4303 = vld [vmem:[#allocation2 + $0x50] sm:$0xff]
      %v4304 = vld [vmem:[#allocation2 + $0x58] sm:$0xff]
      %v4305 = vld [vmem:[#allocation2 + $0x60] sm:$0xff]
      %v4306 = vld [vmem:[#allocation2 + $0x68] sm:$0xff]
      %v4307 = vld [vmem:[#allocation2 + $0x70] sm:$0xff]
      %v4308 = vld [vmem:[#allocation2 + $0x78] sm:$0xff]
      %v4309 = vld [vmem:[#allocation2 + $0x80] sm:$0xff]
      %v4310 = vld [vmem:[#allocation2 + $0x88] sm:$0xff]
      %v4311 = vld [vmem:[#allocation2 + $0x90] sm:$0xff]
      %v4312 = vld [vmem:[#allocation2 + $0x98] sm:$0xff]
      %v4313 = vld [vmem:[#allocation2 + $0xa0] sm:$0xff]
      %v4314 = vld [vmem:[#allocation2 + $0xa8] sm:$0xff]
      %v4315 = vld [vmem:[#allocation2 + $0xb0] sm:$0xff]
      %v4316 = vld [vmem:[#allocation2 + $0xb8] sm:$0xff]
      %v4317 = vld [vmem:[#allocation2 + $0xc0] sm:$0xff]
      %v4318 = vld [vmem:[#allocation2 + $0xc8] sm:$0xff]
      %v4319 = vld [vmem:[#allocation2 + $0xd0] sm:$0xff]
      %v4320 = vld [vmem:[#allocation2 + $0xd8] sm:$0xff]
      %v4321 = vld [vmem:[#allocation2 + $0xe0] sm:$0xff]
      %v4322 = vld [vmem:[#allocation2 + $0xe8] sm:$0xff]
      %v4323 = vld [vmem:[#allocation2 + $0xf0] sm:$0xff]
      %v4324 = vld [vmem:[#allocation2 + $0xf8] sm:$0xff]
      %v4325 = vadd.f32 %v4293, %v4135
      %v4326 = vadd.f32 %v4294, %v4140
      %v4327 = vadd.f32 %v4295, %v4145
      %v4328 = vadd.f32 %v4296, %v4150
      %v4329 = vadd.f32 %v4297, %v4155
      %v4330 = vadd.f32 %v4298, %v4160
      %v4331 = vadd.f32 %v4299, %v4165
      %v4332 = vadd.f32 %v4300, %v4170
      %v4333 = vadd.f32 %v4301, %v4175
      %v4334 = vadd.f32 %v4302, %v4180
      %v4335 = vadd.f32 %v4303, %v4185
      %v4336 = vadd.f32 %v4304, %v4190
      %v4337 = vadd.f32 %v4305, %v4195
      %v4338 = vadd.f32 %v4306, %v4200
      %v4339 = vadd.f32 %v4307, %v4205
      %v4340 = vadd.f32 %v4308, %v4210
      %v4341 = vadd.f32 %v4309, %v4215
      %v4342 = vadd.f32 %v4310, %v4220
      %v4343 = vadd.f32 %v4311, %v4225
      %v4344 = vadd.f32 %v4312, %v4230
      %v4345 = vadd.f32 %v4313, %v4235
      %v4346 = vadd.f32 %v4314, %v4240
      %v4347 = vadd.f32 %v4315, %v4245
      %v4348 = vadd.f32 %v4316, %v4250
      %v4349 = vadd.f32 %v4317, %v4255
      %v4350 = vadd.f32 %v4318, %v4260
      %v4351 = vadd.f32 %v4319, %v4265
      %v4352 = vadd.f32 %v4320, %v4270
      %v4353 = vadd.f32 %v4321, %v4275
      %v4354 = vadd.f32 %v4322, %v4280
      %v4355 = vadd.f32 %v4323, %v4285
      %v4356 = vadd.f32 %v4324, %v4290
      %4357 = vst [vmem:[#allocation2] sm:$0xff] %v4325
      %4358 = vst [vmem:[#allocation2 + $0x8] sm:$0xff] %v4326
      %4359 = vst [vmem:[#allocation2 + $0x10] sm:$0xff] %v4327
      %4360 = vst [vmem:[#allocation2 + $0x18] sm:$0xff] %v4328
      %4361 = vst [vmem:[#allocation2 + $0x20] sm:$0xff] %v4329
      %4362 = vst [vmem:[#allocation2 + $0x28] sm:$0xff] %v4330
      %4363 = vst [vmem:[#allocation2 + $0x30] sm:$0xff] %v4331
      %4364 = vst [vmem:[#allocation2 + $0x38] sm:$0xff] %v4332
      %4365 = vst [vmem:[#allocation2 + $0x40] sm:$0xff] %v4333
      %4366 = vst [vmem:[#allocation2 + $0x48] sm:$0xff] %v4334
      %4367 = vst [vmem:[#allocation2 + $0x50] sm:$0xff] %v4335
      %4368 = vst [vmem:[#allocation2 + $0x58] sm:$0xff] %v4336
      %4369 = vst [vmem:[#allocation2 + $0x60] sm:$0xff] %v4337
      %4370 = vst [vmem:[#allocation2 + $0x68] sm:$0xff] %v4338
      %4371 = vst [vmem:[#allocation2 + $0x70] sm:$0xff] %v4339
      %4372 = vst [vmem:[#allocation2 + $0x78] sm:$0xff] %v4340
      %4373 = vst [vmem:[#allocation2 + $0x80] sm:$0xff] %v4341
      %4374 = vst [vmem:[#allocation2 + $0x88] sm:$0xff] %v4342
      %4375 = vst [vmem:[#allocation2 + $0x90] sm:$0xff] %v4343
      %4376 = vst [vmem:[#allocation2 + $0x98] sm:$0xff] %v4344
      %4377 = vst [vmem:[#allocation2 + $0xa0] sm:$0xff] %v4345
      %4378 = vst [vmem:[#allocation2 + $0xa8] sm:$0xff] %v4346
      %4379 = vst [vmem:[#allocation2 + $0xb0] sm:$0xff] %v4347
      %4380 = vst [vmem:[#allocation2 + $0xb8] sm:$0xff] %v4348
      %4381 = vst [vmem:[#allocation2 + $0xc0] sm:$0xff] %v4349
      %4382 = vst [vmem:[#allocation2 + $0xc8] sm:$0xff] %v4350
      %4383 = vst [vmem:[#allocation2 + $0xd0] sm:$0xff] %v4351
      %4384 = vst [vmem:[#allocation2 + $0xd8] sm:$0xff] %v4352
      %4385 = vst [vmem:[#allocation2 + $0xe0] sm:$0xff] %v4353
      %4386 = vst [vmem:[#allocation2 + $0xe8] sm:$0xff] %v4354
      %4387 = vst [vmem:[#allocation2 + $0xf0] sm:$0xff] %v4355
      %4388 = vst [vmem:[#allocation2 + $0xf8] sm:$0xff] %v4356
      %v4389 = vld [vmem:[#allocation2] sm:$0xff]
      %v4390 = vld [vmem:[#allocation2 + $0x8] sm:$0xff]
      %v4391 = vld [vmem:[#allocation2 + $0x10] sm:$0xff]
      %v4392 = vld [vmem:[#allocation2 + $0x18] sm:$0xff]
      %v4393 = vld [vmem:[#allocation2 + $0x20] sm:$0xff]
      %v4394 = vld [vmem:[#allocation2 + $0x28] sm:$0xff]
      %v4395 = vld [vmem:[#allocation2 + $0x30] sm:$0xff]
      %v4396 = vld [vmem:[#allocation2 + $0x38] sm:$0xff]
      %v4397 = vld [vmem:[#allocation2 + $0x40] sm:$0xff]
      %v4398 = vld [vmem:[#allocation2 + $0x48] sm:$0xff]
      %v4399 = vld [vmem:[#allocation2 + $0x50] sm:$0xff]
      %v4400 = vld [vmem:[#allocation2 + $0x58] sm:$0xff]
      %v4401 = vld [vmem:[#allocation2 + $0x60] sm:$0xff]
      %v4402 = vld [vmem:[#allocation2 + $0x68] sm:$0xff]
      %v4403 = vld [vmem:[#allocation2 + $0x70] sm:$0xff]
      %v4404 = vld [vmem:[#allocation2 + $0x78] sm:$0xff]
      %v4405 = vld [vmem:[#allocation2 + $0x80] sm:$0xff]
      %v4406 = vld [vmem:[#allocation2 + $0x88] sm:$0xff]
      %v4407 = vld [vmem:[#allocation2 + $0x90] sm:$0xff]
      %v4408 = vld [vmem:[#allocation2 + $0x98] sm:$0xff]
      %v4409 = vld [vmem:[#allocation2 + $0xa0] sm:$0xff]
      %v4410 = vld [vmem:[#allocation2 + $0xa8] sm:$0xff]
      %v4411 = vld [vmem:[#allocation2 + $0xb0] sm:$0xff]
      %v4412 = vld [vmem:[#allocation2 + $0xb8] sm:$0xff]
      %v4413 = vld [vmem:[#allocation2 + $0xc0] sm:$0xff]
      %v4414 = vld [vmem:[#allocation2 + $0xc8] sm:$0xff]
      %v4415 = vld [vmem:[#allocation2 + $0xd0] sm:$0xff]
      %v4416 = vld [vmem:[#allocation2 + $0xd8] sm:$0xff]
      %v4417 = vld [vmem:[#allocation2 + $0xe0] sm:$0xff]
      %v4418 = vld [vmem:[#allocation2 + $0xe8] sm:$0xff]
      %v4419 = vld [vmem:[#allocation2 + $0xf0] sm:$0xff]
      %v4420 = vld [vmem:[#allocation2 + $0xf8] sm:$0xff]
      %v4421 = vld [vmem:[%s3] sm:$0x1]
      %v4423 = vlaneseq
      %v4424 = vshrl.u32 %v4423, 7
      %v4425 = vsub.s32 0, %v4424
      %v4426 = vrot.slane %v4421, %v4425
      %v4428 = vadd.f32 %v4389, %v4426
      %v4429 = vadd.f32 %v4390, %v4426
      %v4430 = vadd.f32 %v4391, %v4426
      %v4431 = vadd.f32 %v4392, %v4426
      %v4432 = vadd.f32 %v4393, %v4426
      %v4433 = vadd.f32 %v4394, %v4426
      %v4434 = vadd.f32 %v4395, %v4426
      %v4435 = vadd.f32 %v4396, %v4426
      %v4436 = vadd.f32 %v4397, %v4426
      %v4437 = vadd.f32 %v4398, %v4426
      %v4438 = vadd.f32 %v4399, %v4426
      %v4439 = vadd.f32 %v4400, %v4426
      %v4440 = vadd.f32 %v4401, %v4426
      %v4441 = vadd.f32 %v4402, %v4426
      %v4442 = vadd.f32 %v4403, %v4426
      %v4443 = vadd.f32 %v4404, %v4426
      %v4444 = vadd.f32 %v4405, %v4426
      %v4445 = vadd.f32 %v4406, %v4426
      %v4446 = vadd.f32 %v4407, %v4426
      %v4447 = vadd.f32 %v4408, %v4426
      %v4448 = vadd.f32 %v4409, %v4426
      %v4449 = vadd.f32 %v4410, %v4426
      %v4450 = vadd.f32 %v4411, %v4426
      %v4451 = vadd.f32 %v4412, %v4426
      %v4452 = vadd.f32 %v4413, %v4426
      %v4453 = vadd.f32 %v4414, %v4426
      %v4454 = vadd.f32 %v4415, %v4426
      %v4455 = vadd.f32 %v4416, %v4426
      %v4456 = vadd.f32 %v4417, %v4426
      %v4457 = vadd.f32 %v4418, %v4426
      %v4458 = vadd.f32 %v4419, %v4426
      %v4459 = vadd.f32 %v4420, %v4426
      %v4460 = vmax.f32 %v4428, 0.0
      %v4461 = vmax.f32 %v4429, 0.0
      %v4462 = vmax.f32 %v4430, 0.0
      %v4463 = vmax.f32 %v4431, 0.0
      %v4464 = vmax.f32 %v4432, 0.0
      %v4465 = vmax.f32 %v4433, 0.0
      %v4466 = vmax.f32 %v4434, 0.0
      %v4467 = vmax.f32 %v4435, 0.0
      %v4468 = vmax.f32 %v4436, 0.0
      %v4469 = vmax.f32 %v4437, 0.0
      %v4470 = vmax.f32 %v4438, 0.0
      %v4471 = vmax.f32 %v4439, 0.0
      %v4472 = vmax.f32 %v4440, 0.0
      %v4473 = vmax.f32 %v4441, 0.0
      %v4474 = vmax.f32 %v4442, 0.0
      %v4475 = vmax.f32 %v4443, 0.0
      %v4476 = vmax.f32 %v4444, 0.0
      %v4477 = vmax.f32 %v4445, 0.0
      %v4478 = vmax.f32 %v4446, 0.0
      %v4479 = vmax.f32 %v4447, 0.0
      %v4480 = vmax.f32 %v4448, 0.0
      %v4481 = vmax.f32 %v4449, 0.0
      %v4482 = vmax.f32 %v4450, 0.0
      %v4483 = vmax.f32 %v4451, 0.0
      %v4484 = vmax.f32 %v4452, 0.0
      %v4485 = vmax.f32 %v4453, 0.0
      %v4486 = vmax.f32 %v4454, 0.0
      %v4487 = vmax.f32 %v4455, 0.0
      %v4488 = vmax.f32 %v4456, 0.0
      %v4489 = vmax.f32 %v4457, 0.0
      %v4490 = vmax.f32 %v4458, 0.0
      %v4491 = vmax.f32 %v4459, 0.0
      %v4492 = vld [vmem:[%s379] sm:$0x1]
      %v4493 = vld [vmem:[%s4] sm:$0xff]
      %v4494 = vld [vmem:[%s5] sm:$0x1]
      %v4496 = vsel %vm425, %v4492, 0
      %4498 = vmatprep.subr.mxu0 0.0
      %4499 = vmatpush1.msra.mxu0 %v4493
      %4500 = vmatprep.subr.mxu0 0.0
      %4501 = vmatpush1.msra.mxu0 0.0
      %4502 = vmatprep.subr.mxu0 0.0
      %4503 = vmatpush1.msra.mxu0 0.0
      %4504 = vmatprep.subr.mxu0 0.0
      %4505 = vmatpush1.msra.mxu0 0.0
      %4506 = vmatprep.subr.mxu0 0.0
      %4507 = vmatpush1.msra.mxu0 0.0
      %4508 = vmatprep.subr.mxu0 0.0
      %4509 = vmatpush1.msra.mxu0 0.0
      %4510 = vmatprep.subr.mxu0 0.0
      %4511 = vmatpush1.msra.mxu0 0.0
      %4512 = vmatprep.subr.mxu0 0.0
      %4513 = vmatpush1.msra.mxu0 0.0
      %4514 = vmatprep.subr.mxu0 0.0
      %4515 = vmatpush1.msra.mxu0 0.0
      %4516 = vmatprep.subr.mxu0 0.0
      %4517 = vmatpush1.msra.mxu0 0.0
      %4518 = vmatprep.subr.mxu0 0.0
      %4519 = vmatpush1.msra.mxu0 0.0
      %4520 = vmatprep.subr.mxu0 0.0
      %4521 = vmatpush1.msra.mxu0 0.0
      %4522 = vmatprep.subr.mxu0 0.0
      %4523 = vmatpush1.msra.mxu0 0.0
      %4524 = vmatprep.subr.mxu0 0.0
      %4525 = vmatpush1.msra.mxu0 0.0
      %4526 = vmatprep.subr.mxu0 0.0
      %4527 = vmatpush1.msra.mxu0 0.0
      %4528 = vmatprep.subr.mxu0 0.0
      %4529 = vmatpush1.msra.mxu0 0.0
      %4530 = vmatprep.subr.mxu0 0.0
      %4531 = vmatpush1.msra.mxu0 0.0
      %4532 = vmatprep.subr.mxu0 0.0
      %4533 = vmatpush1.msra.mxu0 0.0
      %4534 = vmatprep.subr.mxu0 0.0
      %4535 = vmatpush1.msra.mxu0 0.0
      %4536 = vmatprep.subr.mxu0 0.0
      %4537 = vmatpush1.msra.mxu0 0.0
      %4538 = vmatprep.subr.mxu0 0.0
      %4539 = vmatpush1.msra.mxu0 0.0
      %4540 = vmatprep.subr.mxu0 0.0
      %4541 = vmatpush1.msra.mxu0 0.0
      %4542 = vmatprep.subr.mxu0 0.0
      %4543 = vmatpush1.msra.mxu0 0.0
      %4544 = vmatprep.subr.mxu0 0.0
      %4545 = vmatpush1.msra.mxu0 0.0
      %4546 = vmatprep.subr.mxu0 0.0
      %4547 = vmatpush1.msra.mxu0 0.0
      %4548 = vmatprep.subr.mxu0 0.0
      %4549 = vmatpush1.msra.mxu0 0.0
      %4550 = vmatprep.subr.mxu0 0.0
      %4551 = vmatpush1.msra.mxu0 0.0
      %4552 = vmatprep.subr.mxu0 0.0
      %4553 = vmatpush1.msra.mxu0 0.0
      %4554 = vmatprep.subr.mxu0 0.0
      %4555 = vmatpush1.msra.mxu0 0.0
      %4556 = vmatprep.subr.mxu0 0.0
      %4557 = vmatpush1.msra.mxu0 0.0
      %4558 = vmatprep.subr.mxu0 0.0
      %4559 = vmatpush1.msra.mxu0 0.0
      %4560 = vmatprep.subr.mxu0 0.0
      %4561 = vmatpush1.msra.mxu0 0.0
      %4562 = vmatprep.mubr.f32.mxu0 0.0
      %4563 = vmatmul.mubr.f32.gmra.mrb[0].mxu0 %v4496
      %v4564 = vpop.f32.mrb[0].mxu0
      %v4565 = vadd.f32 %v4494, %v4564
      %v4566 = vpop.f32.mrb[0].mxu0
      %4567 = vdwg.mxu0
      %v4568 = vmax.f32 %v4565, 0.0
      %v4569 = vlaneseq
      %v4570 = vshrl.u32 %v4569, 7
      %v4571 = vsub.s32 0, %v4570
      %v4572 = vrot.slane %v4568, %v4571
      %v4573 = vmul.f32 %v4460, %v4572
      %v4574 = vmul.f32 %v4461, %v4572
      %v4575 = vmul.f32 %v4462, %v4572
      %v4576 = vmul.f32 %v4463, %v4572
      %v4577 = vmul.f32 %v4464, %v4572
      %v4578 = vmul.f32 %v4465, %v4572
      %v4579 = vmul.f32 %v4466, %v4572
      %v4580 = vmul.f32 %v4467, %v4572
      %v4581 = vmul.f32 %v4468, %v4572
      %v4582 = vmul.f32 %v4469, %v4572
      %v4583 = vmul.f32 %v4470, %v4572
      %v4584 = vmul.f32 %v4471, %v4572
      %v4585 = vmul.f32 %v4472, %v4572
      %v4586 = vmul.f32 %v4473, %v4572
      %v4587 = vmul.f32 %v4474, %v4572
      %v4588 = vmul.f32 %v4475, %v4572
      %v4589 = vmul.f32 %v4476, %v4572
      %v4590 = vmul.f32 %v4477, %v4572
      %v4591 = vmul.f32 %v4478, %v4572
      %v4592 = vmul.f32 %v4479, %v4572
      %v4593 = vmul.f32 %v4480, %v4572
      %v4594 = vmul.f32 %v4481, %v4572
      %v4595 = vmul.f32 %v4482, %v4572
      %v4596 = vmul.f32 %v4483, %v4572
      %v4597 = vmul.f32 %v4484, %v4572
      %v4598 = vmul.f32 %v4485, %v4572
      %v4599 = vmul.f32 %v4486, %v4572
      %v4600 = vmul.f32 %v4487, %v4572
      %v4601 = vmul.f32 %v4488, %v4572
      %v4602 = vmul.f32 %v4489, %v4572
      %v4603 = vmul.f32 %v4490, %v4572
      %v4604 = vmul.f32 %v4491, %v4572
      %4605 = vst [vmem:[#allocation3] sm:$0xff] 0.0
      %4606 = vst [vmem:[#allocation3 + $0x8] sm:$0xff] 0.0
      %4607 = vst [vmem:[#allocation3 + $0x10] sm:$0x3] 0.0
      %4608 = vst [vmem:[#allocation3 + $0x18] sm:$0xff] 0.0
      %4609 = vst [vmem:[#allocation3 + $0x20] sm:$0xff] 0.0
      %4610 = vst [vmem:[#allocation3 + $0x28] sm:$0x3] 0.0
      %4611 = vst [vmem:[#allocation3 + $0x30] sm:$0xff] 0.0
      %4612 = vst [vmem:[#allocation3 + $0x38] sm:$0xff] 0.0
      %4613 = vst [vmem:[#allocation3 + $0x40] sm:$0x3] 0.0
      %4614 = vst [vmem:[#allocation3 + $0x48] sm:$0xff] 0.0
      %4615 = vst [vmem:[#allocation3 + $0x50] sm:$0xff] 0.0
      %4616 = vst [vmem:[#allocation3 + $0x58] sm:$0x3] 0.0
      %4617 = vst [vmem:[#allocation3 + $0x60] sm:$0xff] 0.0
      %4618 = vst [vmem:[#allocation3 + $0x68] sm:$0xff] 0.0
      %4619 = vst [vmem:[#allocation3 + $0x70] sm:$0x3] 0.0
      %4620 = vst [vmem:[#allocation3 + $0x78] sm:$0xff] 0.0
      %4621 = vst [vmem:[#allocation3 + $0x80] sm:$0xff] 0.0
      %4622 = vst [vmem:[#allocation3 + $0x88] sm:$0x3] 0.0
      %4623 = vst [vmem:[#allocation3 + $0x90] sm:$0xff] 0.0
      %4624 = vst [vmem:[#allocation3 + $0x98] sm:$0xff] 0.0
      %4625 = vst [vmem:[#allocation3 + $0xa0] sm:$0x3] 0.0
      %4626 = vst [vmem:[#allocation3 + $0xa8] sm:$0xff] 0.0
      %4627 = vst [vmem:[#allocation3 + $0xb0] sm:$0xff] 0.0
      %4628 = vst [vmem:[#allocation3 + $0xb8] sm:$0x3] 0.0
      %4629 = vst [vmem:[#allocation3 + $0xc0] sm:$0xff] 0.0
      %4630 = vst [vmem:[#allocation3 + $0xc8] sm:$0xff] 0.0
      %4631 = vst [vmem:[#allocation3 + $0xd0] sm:$0x3] 0.0
      %4632 = vst [vmem:[#allocation3 + $0xd8] sm:$0xff] 0.0
      %4633 = vst [vmem:[#allocation3 + $0xe0] sm:$0xff] 0.0
      %4634 = vst [vmem:[#allocation3 + $0xe8] sm:$0x3] 0.0
      %4635 = vst [vmem:[#allocation3 + $0xf0] sm:$0xff] 0.0
      %4636 = vst [vmem:[#allocation3 + $0xf8] sm:$0xff] 0.0
      %4637 = vst [vmem:[#allocation3 + $0x100] sm:$0x3] 0.0
      %4638 = vst [vmem:[#allocation3 + $0x108] sm:$0xff] 0.0
      %4639 = vst [vmem:[#allocation3 + $0x110] sm:$0xff] 0.0
      %4640 = vst [vmem:[#allocation3 + $0x118] sm:$0x3] 0.0
      %4641 = vst [vmem:[#allocation3 + $0x120] sm:$0xff] 0.0
      %4642 = vst [vmem:[#allocation3 + $0x128] sm:$0xff] 0.0
      %4643 = vst [vmem:[#allocation3 + $0x130] sm:$0x3] 0.0
      %4644 = vst [vmem:[#allocation3 + $0x138] sm:$0xff] 0.0
      %4645 = vst [vmem:[#allocation3 + $0x140] sm:$0xff] 0.0
      %4646 = vst [vmem:[#allocation3 + $0x148] sm:$0x3] 0.0
      %4647 = vst [vmem:[#allocation3 + $0x150] sm:$0xff] 0.0
      %4648 = vst [vmem:[#allocation3 + $0x158] sm:$0xff] 0.0
      %4649 = vst [vmem:[#allocation3 + $0x160] sm:$0x3] 0.0
      %4650 = vst [vmem:[#allocation3 + $0x168] sm:$0xff] 0.0
      %4651 = vst [vmem:[#allocation3 + $0x170] sm:$0xff] 0.0
      %4652 = vst [vmem:[#allocation3 + $0x178] sm:$0x3] 0.0
      %4653 = vst [vmem:[#allocation3 + $0x180] sm:$0xff] 0.0
      %4654 = vst [vmem:[#allocation3 + $0x188] sm:$0xff] 0.0
      %4655 = vst [vmem:[#allocation3 + $0x190] sm:$0x3] 0.0
      %4656 = vst [vmem:[#allocation3 + $0x198] sm:$0xff] 0.0
      %4657 = vst [vmem:[#allocation3 + $0x1a0] sm:$0xff] 0.0
      %4658 = vst [vmem:[#allocation3 + $0x1a8] sm:$0x3] 0.0
      %s4659 = scalar_lea.vmem [#allocation3], 24
      %4660 = vst [vmem:[%s4659 + $0x1] sm:$0xff] %v4573
      %4661 = vst [vmem:[%s4659 + $0x9] sm:$0xff] %v4574
      %4662 = vst [vmem:[%s4659 + $0x19] sm:$0xff] %v4575
      %4663 = vst [vmem:[%s4659 + $0x21] sm:$0xff] %v4576
      %4664 = vst [vmem:[%s4659 + $0x31] sm:$0xff] %v4577
      %4665 = vst [vmem:[%s4659 + $0x39] sm:$0xff] %v4578
      %4666 = vst [vmem:[%s4659 + $0x49] sm:$0xff] %v4579
      %4667 = vst [vmem:[%s4659 + $0x51] sm:$0xff] %v4580
      %4668 = vst [vmem:[%s4659 + $0x61] sm:$0xff] %v4581
      %4669 = vst [vmem:[%s4659 + $0x69] sm:$0xff] %v4582
      %4670 = vst [vmem:[%s4659 + $0x79] sm:$0xff] %v4583
      %4671 = vst [vmem:[%s4659 + $0x81] sm:$0xff] %v4584
      %4672 = vst [vmem:[%s4659 + $0x91] sm:$0xff] %v4585
      %4673 = vst [vmem:[%s4659 + $0x99] sm:$0xff] %v4586
      %4674 = vst [vmem:[%s4659 + $0xa9] sm:$0xff] %v4587
      %4675 = vst [vmem:[%s4659 + $0xb1] sm:$0xff] %v4588
      %4676 = vst [vmem:[%s4659 + $0xc1] sm:$0xff] %v4589
      %4677 = vst [vmem:[%s4659 + $0xc9] sm:$0xff] %v4590
      %4678 = vst [vmem:[%s4659 + $0xd9] sm:$0xff] %v4591
      %4679 = vst [vmem:[%s4659 + $0xe1] sm:$0xff] %v4592
      %4680 = vst [vmem:[%s4659 + $0xf1] sm:$0xff] %v4593
      %4681 = vst [vmem:[%s4659 + $0xf9] sm:$0xff] %v4594
      %4682 = vst [vmem:[%s4659 + $0x109] sm:$0xff] %v4595
      %4683 = vst [vmem:[%s4659 + $0x111] sm:$0xff] %v4596
      %4684 = vst [vmem:[%s4659 + $0x121] sm:$0xff] %v4597
      %4685 = vst [vmem:[%s4659 + $0x129] sm:$0xff] %v4598
      %4686 = vst [vmem:[%s4659 + $0x139] sm:$0xff] %v4599
      %4687 = vst [vmem:[%s4659 + $0x141] sm:$0xff] %v4600
      %4688 = vst [vmem:[%s4659 + $0x151] sm:$0xff] %v4601
      %4689 = vst [vmem:[%s4659 + $0x159] sm:$0xff] %v4602
      %4690 = vst [vmem:[%s4659 + $0x169] sm:$0xff] %v4603
      %4691 = vst [vmem:[%s4659 + $0x171] sm:$0xff] %v4604
      %v4692 = vld [vmem:[#allocation3] sm:$0xff]
      %v4693 = vld [vmem:[#allocation3 + $0x8] sm:$0xff]
      %v4694 = vld [vmem:[#allocation3 + $0x18] sm:$0xff]
      %v4695 = vld [vmem:[#allocation3 + $0x20] sm:$0xff]
      %v4696 = vld [vmem:[#allocation3 + $0x30] sm:$0xff]
      %v4697 = vld [vmem:[#allocation3 + $0x38] sm:$0xff]
      %v4698 = vld [vmem:[#allocation3 + $0x48] sm:$0xff]
      %v4699 = vld [vmem:[#allocation3 + $0x50] sm:$0xff]
      %v4700 = vld [vmem:[#allocation3 + $0x60] sm:$0xff]
      %v4701 = vld [vmem:[#allocation3 + $0x68] sm:$0xff]
      %v4702 = vld [vmem:[#allocation3 + $0x78] sm:$0xff]
      %v4703 = vld [vmem:[#allocation3 + $0x80] sm:$0xff]
      %v4704 = vld [vmem:[#allocation3 + $0x90] sm:$0xff]
      %v4705 = vld [vmem:[#allocation3 + $0x98] sm:$0xff]
      %v4706 = vld [vmem:[#allocation3 + $0xa8] sm:$0xff]
      %v4707 = vld [vmem:[#allocation3 + $0xb0] sm:$0xff]
      %v4708 = vld [vmem:[#allocation3 + $0xc0] sm:$0xff]
      %v4709 = vld [vmem:[#allocation3 + $0xc8] sm:$0xff]
      %v4710 = vld [vmem:[#allocation3 + $0xd8] sm:$0xff]
      %v4711 = vld [vmem:[#allocation3 + $0xe0] sm:$0xff]
      %v4712 = vld [vmem:[#allocation3 + $0xf0] sm:$0xff]
      %v4713 = vld [vmem:[#allocation3 + $0xf8] sm:$0xff]
      %v4714 = vld [vmem:[#allocation3 + $0x108] sm:$0xff]
      %v4715 = vld [vmem:[#allocation3 + $0x110] sm:$0xff]
      %v4716 = vld [vmem:[#allocation3 + $0x120] sm:$0xff]
      %v4717 = vld [vmem:[#allocation3 + $0x128] sm:$0xff]
      %v4718 = vld [vmem:[#allocation3 + $0x138] sm:$0xff]
      %v4719 = vld [vmem:[#allocation3 + $0x140] sm:$0xff]
      %v4720 = vld [vmem:[#allocation3 + $0x150] sm:$0xff]
      %v4721 = vld [vmem:[#allocation3 + $0x158] sm:$0xff]
      %v4722 = vld [vmem:[#allocation3 + $0x168] sm:$0xff]
      %v4723 = vld [vmem:[#allocation3 + $0x170] sm:$0xff]
      %v4724 = vld [vmem:[%s6] sm:$0xff]
      %v4725 = vld [vmem:[%s6 + $0x8] sm:$0xff]
      %v4726 = vld [vmem:[%s6 + $0x10] sm:$0xff]
      %v4727 = vld [vmem:[%s6 + $0x18] sm:$0xff]
      %v4728 = vld [vmem:[%s6 + $0x20] sm:$0xff]
      %v4729 = vld [vmem:[%s6 + $0x28] sm:$0xff]
      %v4730 = vld [vmem:[%s6 + $0x30] sm:$0xff]
      %v4731 = vld [vmem:[%s6 + $0x38] sm:$0xff]
      %v4732 = vld [vmem:[%s6 + $0x40] sm:$0xff]
      %v4733 = vld [vmem:[%s6 + $0x48] sm:$0xff]
      %v4734 = vld [vmem:[%s6 + $0x50] sm:$0xff]
      %v4735 = vld [vmem:[%s6 + $0x58] sm:$0xff]
      %v4736 = vld [vmem:[%s6 + $0x60] sm:$0xff]
      %v4737 = vld [vmem:[%s6 + $0x68] sm:$0xff]
      %v4738 = vld [vmem:[%s6 + $0x70] sm:$0xff]
      %v4739 = vld [vmem:[%s6 + $0x78] sm:$0xff]
      %4740 = vmatprep.subr.mxu0 0.0
      %4741 = vmatpush1.msra.mxu0 %v4724
      %4742 = vmatprep.subr.mxu0 0.0
      %4743 = vmatpush1.msra.mxu0 %v4725
      %4744 = vmatprep.subr.mxu0 0.0
      %4745 = vmatpush1.msra.mxu0 %v4726
      %4746 = vmatprep.subr.mxu0 0.0
      %4747 = vmatpush1.msra.mxu0 %v4727
      %4748 = vmatprep.subr.mxu0 0.0
      %4749 = vmatpush1.msra.mxu0 %v4728
      %4750 = vmatprep.subr.mxu0 0.0
      %4751 = vmatpush1.msra.mxu0 %v4729
      %4752 = vmatprep.subr.mxu0 0.0
      %4753 = vmatpush1.msra.mxu0 %v4730
      %4754 = vmatprep.subr.mxu0 0.0
      %4755 = vmatpush1.msra.mxu0 %v4731
      %4756 = vmatprep.subr.mxu0 0.0
      %4757 = vmatpush1.msra.mxu0 %v4732
      %4758 = vmatprep.subr.mxu0 0.0
      %4759 = vmatpush1.msra.mxu0 %v4733
      %4760 = vmatprep.subr.mxu0 0.0
      %4761 = vmatpush1.msra.mxu0 %v4734
      %4762 = vmatprep.subr.mxu0 0.0
      %4763 = vmatpush1.msra.mxu0 %v4735
      %4764 = vmatprep.subr.mxu0 0.0
      %4765 = vmatpush1.msra.mxu0 %v4736
      %4766 = vmatprep.subr.mxu0 0.0
      %4767 = vmatpush1.msra.mxu0 %v4737
      %4768 = vmatprep.subr.mxu0 0.0
      %4769 = vmatpush1.msra.mxu0 %v4738
      %4770 = vmatprep.subr.mxu0 0.0
      %4771 = vmatpush1.msra.mxu0 %v4739
      %4772 = vmatprep.subr.mxu0 0.0
      %4773 = vmatpush1.msra.mxu0 0.0
      %4774 = vmatprep.subr.mxu0 0.0
      %4775 = vmatpush1.msra.mxu0 0.0
      %4776 = vmatprep.subr.mxu0 0.0
      %4777 = vmatpush1.msra.mxu0 0.0
      %4778 = vmatprep.subr.mxu0 0.0
      %4779 = vmatpush1.msra.mxu0 0.0
      %4780 = vmatprep.subr.mxu0 0.0
      %4781 = vmatpush1.msra.mxu0 0.0
      %4782 = vmatprep.subr.mxu0 0.0
      %4783 = vmatpush1.msra.mxu0 0.0
      %4784 = vmatprep.subr.mxu0 0.0
      %4785 = vmatpush1.msra.mxu0 0.0
      %4786 = vmatprep.subr.mxu0 0.0
      %4787 = vmatpush1.msra.mxu0 0.0
      %4788 = vmatprep.subr.mxu0 0.0
      %4789 = vmatpush1.msra.mxu0 0.0
      %4790 = vmatprep.subr.mxu0 0.0
      %4791 = vmatpush1.msra.mxu0 0.0
      %4792 = vmatprep.subr.mxu0 0.0
      %4793 = vmatpush1.msra.mxu0 0.0
      %4794 = vmatprep.subr.mxu0 0.0
      %4795 = vmatpush1.msra.mxu0 0.0
      %4796 = vmatprep.subr.mxu0 0.0
      %4797 = vmatpush1.msra.mxu0 0.0
      %4798 = vmatprep.subr.mxu0 0.0
      %4799 = vmatpush1.msra.mxu0 0.0
      %4800 = vmatprep.subr.mxu0 0.0
      %4801 = vmatpush1.msra.mxu0 0.0
      %4802 = vmatprep.subr.mxu0 0.0
      %4803 = vmatpush1.msra.mxu0 0.0
      %4804 = vmatprep.mubr.f32.mxu0 0.0
      %4805 = vmatmul.mubr.f32.gmra.mrb[0].mxu0 %v4692
      %v4806 = vpop.f32.mrb[0].mxu0
      %v4807 = vadd.f32 0.0, %v4806
      %v4808 = vpop.f32.mrb[0].mxu0
      %4809 = vmatprep.mubr.f32.mxu0 0.0
      %4810 = vmatmul.mubr.f32.gmra.mrb[0].mxu0 %v4693
      %v4811 = vpop.f32.mrb[0].mxu0
      %v4812 = vadd.f32 0.0, %v4811
      %v4813 = vpop.f32.mrb[0].mxu0
      %4814 = vmatprep.mubr.f32.mxu0 0.0
      %4815 = vmatmul.mubr.f32.gmra.mrb[0].mxu0 %v4694
      %v4816 = vpop.f32.mrb[0].mxu0
      %v4817 = vadd.f32 0.0, %v4816
      %v4818 = vpop.f32.mrb[0].mxu0
      %4819 = vmatprep.mubr.f32.mxu0 0.0
      %4820 = vmatmul.mubr.f32.gmra.mrb[0].mxu0 %v4695
      %v4821 = vpop.f32.mrb[0].mxu0
      %v4822 = vadd.f32 0.0, %v4821
      %v4823 = vpop.f32.mrb[0].mxu0
      %4824 = vmatprep.mubr.f32.mxu0 0.0
      %4825 = vmatmul.mubr.f32.gmra.mrb[0].mxu0 %v4696
      %v4826 = vpop.f32.mrb[0].mxu0
      %v4827 = vadd.f32 0.0, %v4826
      %v4828 = vpop.f32.mrb[0].mxu0
      %4829 = vmatprep.mubr.f32.mxu0 0.0
      %4830 = vmatmul.mubr.f32.gmra.mrb[0].mxu0 %v4697
      %v4831 = vpop.f32.mrb[0].mxu0
      %v4832 = vadd.f32 0.0, %v4831
      %v4833 = vpop.f32.mrb[0].mxu0
      %4834 = vmatprep.mubr.f32.mxu0 0.0
      %4835 = vmatmul.mubr.f32.gmra.mrb[0].mxu0 %v4698
      %v4836 = vpop.f32.mrb[0].mxu0
      %v4837 = vadd.f32 0.0, %v4836
      %v4838 = vpop.f32.mrb[0].mxu0
      %4839 = vmatprep.mubr.f32.mxu0 0.0
      %4840 = vmatmul.mubr.f32.gmra.mrb[0].mxu0 %v4699
      %v4841 = vpop.f32.mrb[0].mxu0
      %v4842 = vadd.f32 0.0, %v4841
      %v4843 = vpop.f32.mrb[0].mxu0
      %4844 = vmatprep.mubr.f32.mxu0 0.0
      %4845 = vmatmul.mubr.f32.gmra.mrb[0].mxu0 %v4700
      %v4846 = vpop.f32.mrb[0].mxu0
      %v4847 = vadd.f32 0.0, %v4846
      %v4848 = vpop.f32.mrb[0].mxu0
      %4849 = vmatprep.mubr.f32.mxu0 0.0
      %4850 = vmatmul.mubr.f32.gmra.mrb[0].mxu0 %v4701
      %v4851 = vpop.f32.mrb[0].mxu0
      %v4852 = vadd.f32 0.0, %v4851
      %v4853 = vpop.f32.mrb[0].mxu0
      %4854 = vmatprep.mubr.f32.mxu0 0.0
      %4855 = vmatmul.mubr.f32.gmra.mrb[0].mxu0 %v4702
      %v4856 = vpop.f32.mrb[0].mxu0
      %v4857 = vadd.f32 0.0, %v4856
      %v4858 = vpop.f32.mrb[0].mxu0
      %4859 = vmatprep.mubr.f32.mxu0 0.0
      %4860 = vmatmul.mubr.f32.gmra.mrb[0].mxu0 %v4703
      %v4861 = vpop.f32.mrb[0].mxu0
      %v4862 = vadd.f32 0.0, %v4861
      %v4863 = vpop.f32.mrb[0].mxu0
      %4864 = vmatprep.mubr.f32.mxu0 0.0
      %4865 = vmatmul.mubr.f32.gmra.mrb[0].mxu0 %v4704
      %v4866 = vpop.f32.mrb[0].mxu0
      %v4867 = vadd.f32 0.0, %v4866
      %v4868 = vpop.f32.mrb[0].mxu0
      %4869 = vmatprep.mubr.f32.mxu0 0.0
      %4870 = vmatmul.mubr.f32.gmra.mrb[0].mxu0 %v4705
      %v4871 = vpop.f32.mrb[0].mxu0
      %v4872 = vadd.f32 0.0, %v4871
      %v4873 = vpop.f32.mrb[0].mxu0
      %4874 = vmatprep.mubr.f32.mxu0 0.0
      %4875 = vmatmul.mubr.f32.gmra.mrb[0].mxu0 %v4706
      %v4876 = vpop.f32.mrb[0].mxu0
      %v4877 = vadd.f32 0.0, %v4876
      %v4878 = vpop.f32.mrb[0].mxu0
      %4879 = vmatprep.mubr.f32.mxu0 0.0
      %4880 = vmatmul.mubr.f32.gmra.mrb[0].mxu0 %v4707
      %v4881 = vpop.f32.mrb[0].mxu0
      %v4882 = vadd.f32 0.0, %v4881
      %v4883 = vpop.f32.mrb[0].mxu0
      %4884 = vmatprep.mubr.f32.mxu0 0.0
      %4885 = vmatmul.mubr.f32.gmra.mrb[0].mxu0 %v4708
      %v4886 = vpop.f32.mrb[0].mxu0
      %v4887 = vadd.f32 0.0, %v4886
      %v4888 = vpop.f32.mrb[0].mxu0
      %4889 = vmatprep.mubr.f32.mxu0 0.0
      %4890 = vmatmul.mubr.f32.gmra.mrb[0].mxu0 %v4709
      %v4891 = vpop.f32.mrb[0].mxu0
      %v4892 = vadd.f32 0.0, %v4891
      %v4893 = vpop.f32.mrb[0].mxu0
      %4894 = vmatprep.mubr.f32.mxu0 0.0
      %4895 = vmatmul.mubr.f32.gmra.mrb[0].mxu0 %v4710
      %v4896 = vpop.f32.mrb[0].mxu0
      %v4897 = vadd.f32 0.0, %v4896
      %v4898 = vpop.f32.mrb[0].mxu0
      %4899 = vmatprep.mubr.f32.mxu0 0.0
      %4900 = vmatmul.mubr.f32.gmra.mrb[0].mxu0 %v4711
      %v4901 = vpop.f32.mrb[0].mxu0
      %v4902 = vadd.f32 0.0, %v4901
      %v4903 = vpop.f32.mrb[0].mxu0
      %4904 = vmatprep.mubr.f32.mxu0 0.0
      %4905 = vmatmul.mubr.f32.gmra.mrb[0].mxu0 %v4712
      %v4906 = vpop.f32.mrb[0].mxu0
      %v4907 = vadd.f32 0.0, %v4906
      %v4908 = vpop.f32.mrb[0].mxu0
      %4909 = vmatprep.mubr.f32.mxu0 0.0
      %4910 = vmatmul.mubr.f32.gmra.mrb[0].mxu0 %v4713
      %v4911 = vpop.f32.mrb[0].mxu0
      %v4912 = vadd.f32 0.0, %v4911
      %v4913 = vpop.f32.mrb[0].mxu0
      %4914 = vmatprep.mubr.f32.mxu0 0.0
      %4915 = vmatmul.mubr.f32.gmra.mrb[0].mxu0 %v4714
      %v4916 = vpop.f32.mrb[0].mxu0
      %v4917 = vadd.f32 0.0, %v4916
      %v4918 = vpop.f32.mrb[0].mxu0
      %4919 = vmatprep.mubr.f32.mxu0 0.0
      %4920 = vmatmul.mubr.f32.gmra.mrb[0].mxu0 %v4715
      %v4921 = vpop.f32.mrb[0].mxu0
      %v4922 = vadd.f32 0.0, %v4921
      %v4923 = vpop.f32.mrb[0].mxu0
      %4924 = vmatprep.mubr.f32.mxu0 0.0
      %4925 = vmatmul.mubr.f32.gmra.mrb[0].mxu0 %v4716
      %v4926 = vpop.f32.mrb[0].mxu0
      %v4927 = vadd.f32 0.0, %v4926
      %v4928 = vpop.f32.mrb[0].mxu0
      %4929 = vmatprep.mubr.f32.mxu0 0.0
      %4930 = vmatmul.mubr.f32.gmra.mrb[0].mxu0 %v4717
      %v4931 = vpop.f32.mrb[0].mxu0
      %v4932 = vadd.f32 0.0, %v4931
      %v4933 = vpop.f32.mrb[0].mxu0
      %4934 = vmatprep.mubr.f32.mxu0 0.0
      %4935 = vmatmul.mubr.f32.gmra.mrb[0].mxu0 %v4718
      %v4936 = vpop.f32.mrb[0].mxu0
      %v4937 = vadd.f32 0.0, %v4936
      %v4938 = vpop.f32.mrb[0].mxu0
      %4939 = vmatprep.mubr.f32.mxu0 0.0
      %4940 = vmatmul.mubr.f32.gmra.mrb[0].mxu0 %v4719
      %v4941 = vpop.f32.mrb[0].mxu0
      %v4942 = vadd.f32 0.0, %v4941
      %v4943 = vpop.f32.mrb[0].mxu0
      %4944 = vmatprep.mubr.f32.mxu0 0.0
      %4945 = vmatmul.mubr.f32.gmra.mrb[0].mxu0 %v4720
      %v4946 = vpop.f32.mrb[0].mxu0
      %v4947 = vadd.f32 0.0, %v4946
      %v4948 = vpop.f32.mrb[0].mxu0
      %4949 = vmatprep.mubr.f32.mxu0 0.0
      %4950 = vmatmul.mubr.f32.gmra.mrb[0].mxu0 %v4721
      %v4951 = vpop.f32.mrb[0].mxu0
      %v4952 = vadd.f32 0.0, %v4951
      %v4953 = vpop.f32.mrb[0].mxu0
      %4954 = vmatprep.mubr.f32.mxu0 0.0
      %4955 = vmatmul.mubr.f32.gmra.mrb[0].mxu0 %v4722
      %v4956 = vpop.f32.mrb[0].mxu0
      %v4957 = vadd.f32 0.0, %v4956
      %v4958 = vpop.f32.mrb[0].mxu0
      %4959 = vmatprep.mubr.f32.mxu0 0.0
      %4960 = vmatmul.mubr.f32.gmra.mrb[0].mxu0 %v4723
      %v4961 = vpop.f32.mrb[0].mxu0
      %v4962 = vadd.f32 0.0, %v4961
      %v4963 = vpop.f32.mrb[0].mxu0
      %4964 = vdwg.mxu0
      %4965 = vst [vmem:[#allocation2] sm:$0xff] %v4807
      %4966 = vst [vmem:[#allocation2 + $0x8] sm:$0xff] %v4812
      %4967 = vst [vmem:[#allocation2 + $0x10] sm:$0xff] %v4817
      %4968 = vst [vmem:[#allocation2 + $0x18] sm:$0xff] %v4822
      %4969 = vst [vmem:[#allocation2 + $0x20] sm:$0xff] %v4827
      %4970 = vst [vmem:[#allocation2 + $0x28] sm:$0xff] %v4832
      %4971 = vst [vmem:[#allocation2 + $0x30] sm:$0xff] %v4837
      %4972 = vst [vmem:[#allocation2 + $0x38] sm:$0xff] %v4842
      %4973 = vst [vmem:[#allocation2 + $0x40] sm:$0xff] %v4847
      %4974 = vst [vmem:[#allocation2 + $0x48] sm:$0xff] %v4852
      %4975 = vst [vmem:[#allocation2 + $0x50] sm:$0xff] %v4857
      %4976 = vst [vmem:[#allocation2 + $0x58] sm:$0xff] %v4862
      %4977 = vst [vmem:[#allocation2 + $0x60] sm:$0xff] %v4867
      %4978 = vst [vmem:[#allocation2 + $0x68] sm:$0xff] %v4872
      %4979 = vst [vmem:[#allocation2 + $0x70] sm:$0xff] %v4877
      %4980 = vst [vmem:[#allocation2 + $0x78] sm:$0xff] %v4882
      %4981 = vst [vmem:[#allocation2 + $0x80] sm:$0xff] %v4887
      %4982 = vst [vmem:[#allocation2 + $0x88] sm:$0xff] %v4892
      %4983 = vst [vmem:[#allocation2 + $0x90] sm:$0xff] %v4897
      %4984 = vst [vmem:[#allocation2 + $0x98] sm:$0xff] %v4902
      %4985 = vst [vmem:[#allocation2 + $0xa0] sm:$0xff] %v4907
      %4986 = vst [vmem:[#allocation2 + $0xa8] sm:$0xff] %v4912
      %4987 = vst [vmem:[#allocation2 + $0xb0] sm:$0xff] %v4917
      %4988 = vst [vmem:[#allocation2 + $0xb8] sm:$0xff] %v4922
      %4989 = vst [vmem:[#allocation2 + $0xc0] sm:$0xff] %v4927
      %4990 = vst [vmem:[#allocation2 + $0xc8] sm:$0xff] %v4932
      %4991 = vst [vmem:[#allocation2 + $0xd0] sm:$0xff] %v4937
      %4992 = vst [vmem:[#allocation2 + $0xd8] sm:$0xff] %v4942
      %4993 = vst [vmem:[#allocation2 + $0xe0] sm:$0xff] %v4947
      %4994 = vst [vmem:[#allocation2 + $0xe8] sm:$0xff] %v4952
      %4995 = vst [vmem:[#allocation2 + $0xf0] sm:$0xff] %v4957
      %4996 = vst [vmem:[#allocation2 + $0xf8] sm:$0xff] %v4962
      %v4997 = vld [vmem:[#allocation3 + $0x1] sm:$0xff]
      %v4998 = vld [vmem:[#allocation3 + $0x9] sm:$0xff]
      %v4999 = vld [vmem:[#allocation3 + $0x19] sm:$0xff]
      %v5000 = vld [vmem:[#allocation3 + $0x21] sm:$0xff]
      %v5001 = vld [vmem:[#allocation3 + $0x31] sm:$0xff]
      %v5002 = vld [vmem:[#allocation3 + $0x39] sm:$0xff]
      %v5003 = vld [vmem:[#allocation3 + $0x49] sm:$0xff]
      %v5004 = vld [vmem:[#allocation3 + $0x51] sm:$0xff]
      %v5005 = vld [vmem:[#allocation3 + $0x61] sm:$0xff]
      %v5006 = vld [vmem:[#allocation3 + $0x69] sm:$0xff]
      %v5007 = vld [vmem:[#allocation3 + $0x79] sm:$0xff]
      %v5008 = vld [vmem:[#allocation3 + $0x81] sm:$0xff]
      %v5009 = vld [vmem:[#allocation3 + $0x91] sm:$0xff]
      %v5010 = vld [vmem:[#allocation3 + $0x99] sm:$0xff]
      %v5011 = vld [vmem:[#allocation3 + $0xa9] sm:$0xff]
      %v5012 = vld [vmem:[#allocation3 + $0xb1] sm:$0xff]
      %v5013 = vld [vmem:[#allocation3 + $0xc1] sm:$0xff]
      %v5014 = vld [vmem:[#allocation3 + $0xc9] sm:$0xff]
      %v5015 = vld [vmem:[#allocation3 + $0xd9] sm:$0xff]
      %v5016 = vld [vmem:[#allocation3 + $0xe1] sm:$0xff]
      %v5017 = vld [vmem:[#allocation3 + $0xf1] sm:$0xff]
      %v5018 = vld [vmem:[#allocation3 + $0xf9] sm:$0xff]
      %v5019 = vld [vmem:[#allocation3 + $0x109] sm:$0xff]
      %v5020 = vld [vmem:[#allocation3 + $0x111] sm:$0xff]
      %v5021 = vld [vmem:[#allocation3 + $0x121] sm:$0xff]
      %v5022 = vld [vmem:[#allocation3 + $0x129] sm:$0xff]
      %v5023 = vld [vmem:[#allocation3 + $0x139] sm:$0xff]
      %v5024 = vld [vmem:[#allocation3 + $0x141] sm:$0xff]
      %v5025 = vld [vmem:[#allocation3 + $0x151] sm:$0xff]
      %v5026 = vld [vmem:[#allocation3 + $0x159] sm:$0xff]
      %v5027 = vld [vmem:[#allocation3 + $0x169] sm:$0xff]
      %v5028 = vld [vmem:[#allocation3 + $0x171] sm:$0xff]
      %s5029 = scalar_lea.vmem %s6, 128
      %v5030 = vld [vmem:[%s5029] sm:$0xff]
      %v5031 = vld [vmem:[%s5029 + $0x8] sm:$0xff]
      %v5032 = vld [vmem:[%s5029 + $0x10] sm:$0xff]
      %v5033 = vld [vmem:[%s5029 + $0x18] sm:$0xff]
      %v5034 = vld [vmem:[%s5029 + $0x20] sm:$0xff]
      %v5035 = vld [vmem:[%s5029 + $0x28] sm:$0xff]
      %v5036 = vld [vmem:[%s5029 + $0x30] sm:$0xff]
      %v5037 = vld [vmem:[%s5029 + $0x38] sm:$0xff]
      %v5038 = vld [vmem:[%s5029 + $0x40] sm:$0xff]
      %v5039 = vld [vmem:[%s5029 + $0x48] sm:$0xff]
      %v5040 = vld [vmem:[%s5029 + $0x50] sm:$0xff]
      %v5041 = vld [vmem:[%s5029 + $0x58] sm:$0xff]
      %v5042 = vld [vmem:[%s5029 + $0x60] sm:$0xff]
      %v5043 = vld [vmem:[%s5029 + $0x68] sm:$0xff]
      %v5044 = vld [vmem:[%s5029 + $0x70] sm:$0xff]
      %v5045 = vld [vmem:[%s5029 + $0x78] sm:$0xff]
      %5046 = vmatprep.subr.mxu0 0.0
      %5047 = vmatpush1.msra.mxu0 %v5030
      %5048 = vmatprep.subr.mxu0 0.0
      %5049 = vmatpush1.msra.mxu0 %v5031
      %5050 = vmatprep.subr.mxu0 0.0
      %5051 = vmatpush1.msra.mxu0 %v5032
      %5052 = vmatprep.subr.mxu0 0.0
      %5053 = vmatpush1.msra.mxu0 %v5033
      %5054 = vmatprep.subr.mxu0 0.0
      %5055 = vmatpush1.msra.mxu0 %v5034
      %5056 = vmatprep.subr.mxu0 0.0
      %5057 = vmatpush1.msra.mxu0 %v5035
      %5058 = vmatprep.subr.mxu0 0.0
      %5059 = vmatpush1.msra.mxu0 %v5036
      %5060 = vmatprep.subr.mxu0 0.0
      %5061 = vmatpush1.msra.mxu0 %v5037
      %5062 = vmatprep.subr.mxu0 0.0
      %5063 = vmatpush1.msra.mxu0 %v5038
      %5064 = vmatprep.subr.mxu0 0.0
      %5065 = vmatpush1.msra.mxu0 %v5039
      %5066 = vmatprep.subr.mxu0 0.0
      %5067 = vmatpush1.msra.mxu0 %v5040
      %5068 = vmatprep.subr.mxu0 0.0
      %5069 = vmatpush1.msra.mxu0 %v5041
      %5070 = vmatprep.subr.mxu0 0.0
      %5071 = vmatpush1.msra.mxu0 %v5042
      %5072 = vmatprep.subr.mxu0 0.0
      %5073 = vmatpush1.msra.mxu0 %v5043
      %5074 = vmatprep.subr.mxu0 0.0
      %5075 = vmatpush1.msra.mxu0 %v5044
      %5076 = vmatprep.subr.mxu0 0.0
      %5077 = vmatpush1.msra.mxu0 %v5045
      %5078 = vmatprep.subr.mxu0 0.0
      %5079 = vmatpush1.msra.mxu0 0.0
      %5080 = vmatprep.subr.mxu0 0.0
      %5081 = vmatpush1.msra.mxu0 0.0
      %5082 = vmatprep.subr.mxu0 0.0
      %5083 = vmatpush1.msra.mxu0 0.0
      %5084 = vmatprep.subr.mxu0 0.0
      %5085 = vmatpush1.msra.mxu0 0.0
      %5086 = vmatprep.subr.mxu0 0.0
      %5087 = vmatpush1.msra.mxu0 0.0
      %5088 = vmatprep.subr.mxu0 0.0
      %5089 = vmatpush1.msra.mxu0 0.0
      %5090 = vmatprep.subr.mxu0 0.0
      %5091 = vmatpush1.msra.mxu0 0.0
      %5092 = vmatprep.subr.mxu0 0.0
      %5093 = vmatpush1.msra.mxu0 0.0
      %5094 = vmatprep.subr.mxu0 0.0
      %5095 = vmatpush1.msra.mxu0 0.0
      %5096 = vmatprep.subr.mxu0 0.0
      %5097 = vmatpush1.msra.mxu0 0.0
      %5098 = vmatprep.subr.mxu0 0.0
      %5099 = vmatpush1.msra.mxu0 0.0
      %5100 = vmatprep.subr.mxu0 0.0
      %5101 = vmatpush1.msra.mxu0 0.0
      %5102 = vmatprep.subr.mxu0 0.0
      %5103 = vmatpush1.msra.mxu0 0.0
      %5104 = vmatprep.subr.mxu0 0.0
      %5105 = vmatpush1.msra.mxu0 0.0
      %5106 = vmatprep.subr.mxu0 0.0
      %5107 = vmatpush1.msra.mxu0 0.0
      %5108 = vmatprep.subr.mxu0 0.0
      %5109 = vmatpush1.msra.mxu0 0.0
      %5110 = vmatprep.mubr.f32.mxu0 0.0
      %5111 = vmatmul.mubr.f32.gmra.mrb[0].mxu0 %v4997
      %v5112 = vpop.f32.mrb[0].mxu0
      %v5113 = vadd.f32 0.0, %v5112
      %v5114 = vpop.f32.mrb[0].mxu0
      %5115 = vmatprep.mubr.f32.mxu0 0.0
      %5116 = vmatmul.mubr.f32.gmra.mrb[0].mxu0 %v4998
      %v5117 = vpop.f32.mrb[0].mxu0
      %v5118 = vadd.f32 0.0, %v5117
      %v5119 = vpop.f32.mrb[0].mxu0
      %5120 = vmatprep.mubr.f32.mxu0 0.0
      %5121 = vmatmul.mubr.f32.gmra.mrb[0].mxu0 %v4999
      %v5122 = vpop.f32.mrb[0].mxu0
      %v5123 = vadd.f32 0.0, %v5122
      %v5124 = vpop.f32.mrb[0].mxu0
      %5125 = vmatprep.mubr.f32.mxu0 0.0
      %5126 = vmatmul.mubr.f32.gmra.mrb[0].mxu0 %v5000
      %v5127 = vpop.f32.mrb[0].mxu0
      %v5128 = vadd.f32 0.0, %v5127
      %v5129 = vpop.f32.mrb[0].mxu0
      %5130 = vmatprep.mubr.f32.mxu0 0.0
      %5131 = vmatmul.mubr.f32.gmra.mrb[0].mxu0 %v5001
      %v5132 = vpop.f32.mrb[0].mxu0
      %v5133 = vadd.f32 0.0, %v5132
      %v5134 = vpop.f32.mrb[0].mxu0
      %5135 = vmatprep.mubr.f32.mxu0 0.0
      %5136 = vmatmul.mubr.f32.gmra.mrb[0].mxu0 %v5002
      %v5137 = vpop.f32.mrb[0].mxu0
      %v5138 = vadd.f32 0.0, %v5137
      %v5139 = vpop.f32.mrb[0].mxu0
      %5140 = vmatprep.mubr.f32.mxu0 0.0
      %5141 = vmatmul.mubr.f32.gmra.mrb[0].mxu0 %v5003
      %v5142 = vpop.f32.mrb[0].mxu0
      %v5143 = vadd.f32 0.0, %v5142
      %v5144 = vpop.f32.mrb[0].mxu0
      %5145 = vmatprep.mubr.f32.mxu0 0.0
      %5146 = vmatmul.mubr.f32.gmra.mrb[0].mxu0 %v5004
      %v5147 = vpop.f32.mrb[0].mxu0
      %v5148 = vadd.f32 0.0, %v5147
      %v5149 = vpop.f32.mrb[0].mxu0
      %5150 = vmatprep.mubr.f32.mxu0 0.0
      %5151 = vmatmul.mubr.f32.gmra.mrb[0].mxu0 %v5005
      %v5152 = vpop.f32.mrb[0].mxu0
      %v5153 = vadd.f32 0.0, %v5152
      %v5154 = vpop.f32.mrb[0].mxu0
      %5155 = vmatprep.mubr.f32.mxu0 0.0
      %5156 = vmatmul.mubr.f32.gmra.mrb[0].mxu0 %v5006
      %v5157 = vpop.f32.mrb[0].mxu0
      %v5158 = vadd.f32 0.0, %v5157
      %v5159 = vpop.f32.mrb[0].mxu0
      %5160 = vmatprep.mubr.f32.mxu0 0.0
      %5161 = vmatmul.mubr.f32.gmra.mrb[0].mxu0 %v5007
      %v5162 = vpop.f32.mrb[0].mxu0
      %v5163 = vadd.f32 0.0, %v5162
      %v5164 = vpop.f32.mrb[0].mxu0
      %5165 = vmatprep.mubr.f32.mxu0 0.0
      %5166 = vmatmul.mubr.f32.gmra.mrb[0].mxu0 %v5008
      %v5167 = vpop.f32.mrb[0].mxu0
      %v5168 = vadd.f32 0.0, %v5167
      %v5169 = vpop.f32.mrb[0].mxu0
      %5170 = vmatprep.mubr.f32.mxu0 0.0
      %5171 = vmatmul.mubr.f32.gmra.mrb[0].mxu0 %v5009
      %v5172 = vpop.f32.mrb[0].mxu0
      %v5173 = vadd.f32 0.0, %v5172
      %v5174 = vpop.f32.mrb[0].mxu0
      %5175 = vmatprep.mubr.f32.mxu0 0.0
      %5176 = vmatmul.mubr.f32.gmra.mrb[0].mxu0 %v5010
      %v5177 = vpop.f32.mrb[0].mxu0
      %v5178 = vadd.f32 0.0, %v5177
      %v5179 = vpop.f32.mrb[0].mxu0
      %5180 = vmatprep.mubr.f32.mxu0 0.0
      %5181 = vmatmul.mubr.f32.gmra.mrb[0].mxu0 %v5011
      %v5182 = vpop.f32.mrb[0].mxu0
      %v5183 = vadd.f32 0.0, %v5182
      %v5184 = vpop.f32.mrb[0].mxu0
      %5185 = vmatprep.mubr.f32.mxu0 0.0
      %5186 = vmatmul.mubr.f32.gmra.mrb[0].mxu0 %v5012
      %v5187 = vpop.f32.mrb[0].mxu0
      %v5188 = vadd.f32 0.0, %v5187
      %v5189 = vpop.f32.mrb[0].mxu0
      %5190 = vmatprep.mubr.f32.mxu0 0.0
      %5191 = vmatmul.mubr.f32.gmra.mrb[0].mxu0 %v5013
      %v5192 = vpop.f32.mrb[0].mxu0
      %v5193 = vadd.f32 0.0, %v5192
      %v5194 = vpop.f32.mrb[0].mxu0
      %5195 = vmatprep.mubr.f32.mxu0 0.0
      %5196 = vmatmul.mubr.f32.gmra.mrb[0].mxu0 %v5014
      %v5197 = vpop.f32.mrb[0].mxu0
      %v5198 = vadd.f32 0.0, %v5197
      %v5199 = vpop.f32.mrb[0].mxu0
      %5200 = vmatprep.mubr.f32.mxu0 0.0
      %5201 = vmatmul.mubr.f32.gmra.mrb[0].mxu0 %v5015
      %v5202 = vpop.f32.mrb[0].mxu0
      %v5203 = vadd.f32 0.0, %v5202
      %v5204 = vpop.f32.mrb[0].mxu0
      %5205 = vmatprep.mubr.f32.mxu0 0.0
      %5206 = vmatmul.mubr.f32.gmra.mrb[0].mxu0 %v5016
      %v5207 = vpop.f32.mrb[0].mxu0
      %v5208 = vadd.f32 0.0, %v5207
      %v5209 = vpop.f32.mrb[0].mxu0
      %5210 = vmatprep.mubr.f32.mxu0 0.0
      %5211 = vmatmul.mubr.f32.gmra.mrb[0].mxu0 %v5017
      %v5212 = vpop.f32.mrb[0].mxu0
      %v5213 = vadd.f32 0.0, %v5212
      %v5214 = vpop.f32.mrb[0].mxu0
      %5215 = vmatprep.mubr.f32.mxu0 0.0
      %5216 = vmatmul.mubr.f32.gmra.mrb[0].mxu0 %v5018
      %v5217 = vpop.f32.mrb[0].mxu0
      %v5218 = vadd.f32 0.0, %v5217
      %v5219 = vpop.f32.mrb[0].mxu0
      %5220 = vmatprep.mubr.f32.mxu0 0.0
      %5221 = vmatmul.mubr.f32.gmra.mrb[0].mxu0 %v5019
      %v5222 = vpop.f32.mrb[0].mxu0
      %v5223 = vadd.f32 0.0, %v5222
      %v5224 = vpop.f32.mrb[0].mxu0
      %5225 = vmatprep.mubr.f32.mxu0 0.0
      %5226 = vmatmul.mubr.f32.gmra.mrb[0].mxu0 %v5020
      %v5227 = vpop.f32.mrb[0].mxu0
      %v5228 = vadd.f32 0.0, %v5227
      %v5229 = vpop.f32.mrb[0].mxu0
      %5230 = vmatprep.mubr.f32.mxu0 0.0
      %5231 = vmatmul.mubr.f32.gmra.mrb[0].mxu0 %v5021
      %v5232 = vpop.f32.mrb[0].mxu0
      %v5233 = vadd.f32 0.0, %v5232
      %v5234 = vpop.f32.mrb[0].mxu0
      %5235 = vmatprep.mubr.f32.mxu0 0.0
      %5236 = vmatmul.mubr.f32.gmra.mrb[0].mxu0 %v5022
      %v5237 = vpop.f32.mrb[0].mxu0
      %v5238 = vadd.f32 0.0, %v5237
      %v5239 = vpop.f32.mrb[0].mxu0
      %5240 = vmatprep.mubr.f32.mxu0 0.0
      %5241 = vmatmul.mubr.f32.gmra.mrb[0].mxu0 %v5023
      %v5242 = vpop.f32.mrb[0].mxu0
      %v5243 = vadd.f32 0.0, %v5242
      %v5244 = vpop.f32.mrb[0].mxu0
      %5245 = vmatprep.mubr.f32.mxu0 0.0
      %5246 = vmatmul.mubr.f32.gmra.mrb[0].mxu0 %v5024
      %v5247 = vpop.f32.mrb[0].mxu0
      %v5248 = vadd.f32 0.0, %v5247
      %v5249 = vpop.f32.mrb[0].mxu0
      %5250 = vmatprep.mubr.f32.mxu0 0.0
      %5251 = vmatmul.mubr.f32.gmra.mrb[0].mxu0 %v5025
      %v5252 = vpop.f32.mrb[0].mxu0
      %v5253 = vadd.f32 0.0, %v5252
      %v5254 = vpop.f32.mrb[0].mxu0
      %5255 = vmatprep.mubr.f32.mxu0 0.0
      %5256 = vmatmul.mubr.f32.gmra.mrb[0].mxu0 %v5026
      %v5257 = vpop.f32.mrb[0].mxu0
      %v5258 = vadd.f32 0.0, %v5257
      %v5259 = vpop.f32.mrb[0].mxu0
      %5260 = vmatprep.mubr.f32.mxu0 0.0
      %5261 = vmatmul.mubr.f32.gmra.mrb[0].mxu0 %v5027
      %v5262 = vpop.f32.mrb[0].mxu0
      %v5263 = vadd.f32 0.0, %v5262
      %v5264 = vpop.f32.mrb[0].mxu0
      %5265 = vmatprep.mubr.f32.mxu0 0.0
      %5266 = vmatmul.mubr.f32.gmra.mrb[0].mxu0 %v5028
      %v5267 = vpop.f32.mrb[0].mxu0
      %v5268 = vadd.f32 0.0, %v5267
      %v5269 = vpop.f32.mrb[0].mxu0
      %5270 = vdwg.mxu0
      %v5271 = vld [vmem:[#allocation2] sm:$0xff]
      %v5272 = vld [vmem:[#allocation2 + $0x8] sm:$0xff]
      %v5273 = vld [vmem:[#allocation2 + $0x10] sm:$0xff]
      %v5274 = vld [vmem:[#allocation2 + $0x18] sm:$0xff]
      %v5275 = vld [vmem:[#allocation2 + $0x20] sm:$0xff]
      %v5276 = vld [vmem:[#allocation2 + $0x28] sm:$0xff]
      %v5277 = vld [vmem:[#allocation2 + $0x30] sm:$0xff]
      %v5278 = vld [vmem:[#allocation2 + $0x38] sm:$0xff]
      %v5279 = vld [vmem:[#allocation2 + $0x40] sm:$0xff]
      %v5280 = vld [vmem:[#allocation2 + $0x48] sm:$0xff]
      %v5281 = vld [vmem:[#allocation2 + $0x50] sm:$0xff]
      %v5282 = vld [vmem:[#allocation2 + $0x58] sm:$0xff]
      %v5283 = vld [vmem:[#allocation2 + $0x60] sm:$0xff]
      %v5284 = vld [vmem:[#allocation2 + $0x68] sm:$0xff]
      %v5285 = vld [vmem:[#allocation2 + $0x70] sm:$0xff]
      %v5286 = vld [vmem:[#allocation2 + $0x78] sm:$0xff]
      %v5287 = vld [vmem:[#allocation2 + $0x80] sm:$0xff]
      %v5288 = vld [vmem:[#allocation2 + $0x88] sm:$0xff]
      %v5289 = vld [vmem:[#allocation2 + $0x90] sm:$0xff]
      %v5290 = vld [vmem:[#allocation2 + $0x98] sm:$0xff]
      %v5291 = vld [vmem:[#allocation2 + $0xa0] sm:$0xff]
      %v5292 = vld [vmem:[#allocation2 + $0xa8] sm:$0xff]
      %v5293 = vld [vmem:[#allocation2 + $0xb0] sm:$0xff]
      %v5294 = vld [vmem:[#allocation2 + $0xb8] sm:$0xff]
      %v5295 = vld [vmem:[#allocation2 + $0xc0] sm:$0xff]
      %v5296 = vld [vmem:[#allocation2 + $0xc8] sm:$0xff]
      %v5297 = vld [vmem:[#allocation2 + $0xd0] sm:$0xff]
      %v5298 = vld [vmem:[#allocation2 + $0xd8] sm:$0xff]
      %v5299 = vld [vmem:[#allocation2 + $0xe0] sm:$0xff]
      %v5300 = vld [vmem:[#allocation2 + $0xe8] sm:$0xff]
      %v5301 = vld [vmem:[#allocation2 + $0xf0] sm:$0xff]
      %v5302 = vld [vmem:[#allocation2 + $0xf8] sm:$0xff]
      %v5303 = vadd.f32 %v5271, %v5113
      %v5304 = vadd.f32 %v5272, %v5118
      %v5305 = vadd.f32 %v5273, %v5123
      %v5306 = vadd.f32 %v5274, %v5128
      %v5307 = vadd.f32 %v5275, %v5133
      %v5308 = vadd.f32 %v5276, %v5138
      %v5309 = vadd.f32 %v5277, %v5143
      %v5310 = vadd.f32 %v5278, %v5148
      %v5311 = vadd.f32 %v5279, %v5153
      %v5312 = vadd.f32 %v5280, %v5158
      %v5313 = vadd.f32 %v5281, %v5163
      %v5314 = vadd.f32 %v5282, %v5168
      %v5315 = vadd.f32 %v5283, %v5173
      %v5316 = vadd.f32 %v5284, %v5178
      %v5317 = vadd.f32 %v5285, %v5183
      %v5318 = vadd.f32 %v5286, %v5188
      %v5319 = vadd.f32 %v5287, %v5193
      %v5320 = vadd.f32 %v5288, %v5198
      %v5321 = vadd.f32 %v5289, %v5203
      %v5322 = vadd.f32 %v5290, %v5208
      %v5323 = vadd.f32 %v5291, %v5213
      %v5324 = vadd.f32 %v5292, %v5218
      %v5325 = vadd.f32 %v5293, %v5223
      %v5326 = vadd.f32 %v5294, %v5228
      %v5327 = vadd.f32 %v5295, %v5233
      %v5328 = vadd.f32 %v5296, %v5238
      %v5329 = vadd.f32 %v5297, %v5243
      %v5330 = vadd.f32 %v5298, %v5248
      %v5331 = vadd.f32 %v5299, %v5253
      %v5332 = vadd.f32 %v5300, %v5258
      %v5333 = vadd.f32 %v5301, %v5263
      %v5334 = vadd.f32 %v5302, %v5268
      %5335 = vst [vmem:[#allocation2] sm:$0xff] %v5303
      %5336 = vst [vmem:[#allocation2 + $0x8] sm:$0xff] %v5304
      %5337 = vst [vmem:[#allocation2 + $0x10] sm:$0xff] %v5305
      %5338 = vst [vmem:[#allocation2 + $0x18] sm:$0xff] %v5306
      %5339 = vst [vmem:[#allocation2 + $0x20] sm:$0xff] %v5307
      %5340 = vst [vmem:[#allocation2 + $0x28] sm:$0xff] %v5308
      %5341 = vst [vmem:[#allocation2 + $0x30] sm:$0xff] %v5309
      %5342 = vst [vmem:[#allocation2 + $0x38] sm:$0xff] %v5310
      %5343 = vst [vmem:[#allocation2 + $0x40] sm:$0xff] %v5311
      %5344 = vst [vmem:[#allocation2 + $0x48] sm:$0xff] %v5312
      %5345 = vst [vmem:[#allocation2 + $0x50] sm:$0xff] %v5313
      %5346 = vst [vmem:[#allocation2 + $0x58] sm:$0xff] %v5314
      %5347 = vst [vmem:[#allocation2 + $0x60] sm:$0xff] %v5315
      %5348 = vst [vmem:[#allocation2 + $0x68] sm:$0xff] %v5316
      %5349 = vst [vmem:[#allocation2 + $0x70] sm:$0xff] %v5317
      %5350 = vst [vmem:[#allocation2 + $0x78] sm:$0xff] %v5318
      %5351 = vst [vmem:[#allocation2 + $0x80] sm:$0xff] %v5319
      %5352 = vst [vmem:[#allocation2 + $0x88] sm:$0xff] %v5320
      %5353 = vst [vmem:[#allocation2 + $0x90] sm:$0xff] %v5321
      %5354 = vst [vmem:[#allocation2 + $0x98] sm:$0xff] %v5322
      %5355 = vst [vmem:[#allocation2 + $0xa0] sm:$0xff] %v5323
      %5356 = vst [vmem:[#allocation2 + $0xa8] sm:$0xff] %v5324
      %5357 = vst [vmem:[#allocation2 + $0xb0] sm:$0xff] %v5325
      %5358 = vst [vmem:[#allocation2 + $0xb8] sm:$0xff] %v5326
      %5359 = vst [vmem:[#allocation2 + $0xc0] sm:$0xff] %v5327
      %5360 = vst [vmem:[#allocation2 + $0xc8] sm:$0xff] %v5328
      %5361 = vst [vmem:[#allocation2 + $0xd0] sm:$0xff] %v5329
      %5362 = vst [vmem:[#allocation2 + $0xd8] sm:$0xff] %v5330
      %5363 = vst [vmem:[#allocation2 + $0xe0] sm:$0xff] %v5331
      %5364 = vst [vmem:[#allocation2 + $0xe8] sm:$0xff] %v5332
      %5365 = vst [vmem:[#allocation2 + $0xf0] sm:$0xff] %v5333
      %5366 = vst [vmem:[#allocation2 + $0xf8] sm:$0xff] %v5334
      %v5367 = vld [vmem:[#allocation3 + $0x2] sm:$0xff]
      %v5368 = vld [vmem:[#allocation3 + $0xa] sm:$0xff]
      %v5369 = vld [vmem:[#allocation3 + $0x1a] sm:$0xff]
      %v5370 = vld [vmem:[#allocation3 + $0x22] sm:$0xff]
      %v5371 = vld [vmem:[#allocation3 + $0x32] sm:$0xff]
      %v5372 = vld [vmem:[#allocation3 + $0x3a] sm:$0xff]
      %v5373 = vld [vmem:[#allocation3 + $0x4a] sm:$0xff]
      %v5374 = vld [vmem:[#allocation3 + $0x52] sm:$0xff]
      %v5375 = vld [vmem:[#allocation3 + $0x62] sm:$0xff]
      %v5376 = vld [vmem:[#allocation3 + $0x6a] sm:$0xff]
      %v5377 = vld [vmem:[#allocation3 + $0x7a] sm:$0xff]
      %v5378 = vld [vmem:[#allocation3 + $0x82] sm:$0xff]
      %v5379 = vld [vmem:[#allocation3 + $0x92] sm:$0xff]
      %v5380 = vld [vmem:[#allocation3 + $0x9a] sm:$0xff]
      %v5381 = vld [vmem:[#allocation3 + $0xaa] sm:$0xff]
      %v5382 = vld [vmem:[#allocation3 + $0xb2] sm:$0xff]
      %v5383 = vld [vmem:[#allocation3 + $0xc2] sm:$0xff]
      %v5384 = vld [vmem:[#allocation3 + $0xca] sm:$0xff]
      %v5385 = vld [vmem:[#allocation3 + $0xda] sm:$0xff]
      %v5386 = vld [vmem:[#allocation3 + $0xe2] sm:$0xff]
      %v5387 = vld [vmem:[#allocation3 + $0xf2] sm:$0xff]
      %v5388 = vld [vmem:[#allocation3 + $0xfa] sm:$0xff]
      %v5389 = vld [vmem:[#allocation3 + $0x10a] sm:$0xff]
      %v5390 = vld [vmem:[#allocation3 + $0x112] sm:$0xff]
      %v5391 = vld [vmem:[#allocation3 + $0x122] sm:$0xff]
      %v5392 = vld [vmem:[#allocation3 + $0x12a] sm:$0xff]
      %v5393 = vld [vmem:[#allocation3 + $0x13a] sm:$0xff]
      %v5394 = vld [vmem:[#allocation3 + $0x142] sm:$0xff]
      %v5395 = vld [vmem:[#allocation3 + $0x152] sm:$0xff]
      %v5396 = vld [vmem:[#allocation3 + $0x15a] sm:$0xff]
      %v5397 = vld [vmem:[#allocation3 + $0x16a] sm:$0xff]
      %v5398 = vld [vmem:[#allocation3 + $0x172] sm:$0xff]
      %s5399 = scalar_lea.vmem %s6, 256
      %v5400 = vld [vmem:[%s5399] sm:$0xff]
      %v5401 = vld [vmem:[%s5399 + $0x8] sm:$0xff]
      %v5402 = vld [vmem:[%s5399 + $0x10] sm:$0xff]
      %v5403 = vld [vmem:[%s5399 + $0x18] sm:$0xff]
      %v5404 = vld [vmem:[%s5399 + $0x20] sm:$0xff]
      %v5405 = vld [vmem:[%s5399 + $0x28] sm:$0xff]
      %v5406 = vld [vmem:[%s5399 + $0x30] sm:$0xff]
      %v5407 = vld [vmem:[%s5399 + $0x38] sm:$0xff]
      %v5408 = vld [vmem:[%s5399 + $0x40] sm:$0xff]
      %v5409 = vld [vmem:[%s5399 + $0x48] sm:$0xff]
      %v5410 = vld [vmem:[%s5399 + $0x50] sm:$0xff]
      %v5411 = vld [vmem:[%s5399 + $0x58] sm:$0xff]
      %v5412 = vld [vmem:[%s5399 + $0x60] sm:$0xff]
      %v5413 = vld [vmem:[%s5399 + $0x68] sm:$0xff]
      %v5414 = vld [vmem:[%s5399 + $0x70] sm:$0xff]
      %v5415 = vld [vmem:[%s5399 + $0x78] sm:$0xff]
      %5416 = vmatprep.subr.mxu0 0.0
      %5417 = vmatpush1.msra.mxu0 %v5400
      %5418 = vmatprep.subr.mxu0 0.0
      %5419 = vmatpush1.msra.mxu0 %v5401
      %5420 = vmatprep.subr.mxu0 0.0
      %5421 = vmatpush1.msra.mxu0 %v5402
      %5422 = vmatprep.subr.mxu0 0.0
      %5423 = vmatpush1.msra.mxu0 %v5403
      %5424 = vmatprep.subr.mxu0 0.0
      %5425 = vmatpush1.msra.mxu0 %v5404
      %5426 = vmatprep.subr.mxu0 0.0
      %5427 = vmatpush1.msra.mxu0 %v5405
      %5428 = vmatprep.subr.mxu0 0.0
      %5429 = vmatpush1.msra.mxu0 %v5406
      %5430 = vmatprep.subr.mxu0 0.0
      %5431 = vmatpush1.msra.mxu0 %v5407
      %5432 = vmatprep.subr.mxu0 0.0
      %5433 = vmatpush1.msra.mxu0 %v5408
      %5434 = vmatprep.subr.mxu0 0.0
      %5435 = vmatpush1.msra.mxu0 %v5409
      %5436 = vmatprep.subr.mxu0 0.0
      %5437 = vmatpush1.msra.mxu0 %v5410
      %5438 = vmatprep.subr.mxu0 0.0
      %5439 = vmatpush1.msra.mxu0 %v5411
      %5440 = vmatprep.subr.mxu0 0.0
      %5441 = vmatpush1.msra.mxu0 %v5412
      %5442 = vmatprep.subr.mxu0 0.0
      %5443 = vmatpush1.msra.mxu0 %v5413
      %5444 = vmatprep.subr.mxu0 0.0
      %5445 = vmatpush1.msra.mxu0 %v5414
      %5446 = vmatprep.subr.mxu0 0.0
      %5447 = vmatpush1.msra.mxu0 %v5415
      %5448 = vmatprep.subr.mxu0 0.0
      %5449 = vmatpush1.msra.mxu0 0.0
      %5450 = vmatprep.subr.mxu0 0.0
      %5451 = vmatpush1.msra.mxu0 0.0
      %5452 = vmatprep.subr.mxu0 0.0
      %5453 = vmatpush1.msra.mxu0 0.0
      %5454 = vmatprep.subr.mxu0 0.0
      %5455 = vmatpush1.msra.mxu0 0.0
      %5456 = vmatprep.subr.mxu0 0.0
      %5457 = vmatpush1.msra.mxu0 0.0
      %5458 = vmatprep.subr.mxu0 0.0
      %5459 = vmatpush1.msra.mxu0 0.0
      %5460 = vmatprep.subr.mxu0 0.0
      %5461 = vmatpush1.msra.mxu0 0.0
      %5462 = vmatprep.subr.mxu0 0.0
      %5463 = vmatpush1.msra.mxu0 0.0
      %5464 = vmatprep.subr.mxu0 0.0
      %5465 = vmatpush1.msra.mxu0 0.0
      %5466 = vmatprep.subr.mxu0 0.0
      %5467 = vmatpush1.msra.mxu0 0.0
      %5468 = vmatprep.subr.mxu0 0.0
      %5469 = vmatpush1.msra.mxu0 0.0
      %5470 = vmatprep.subr.mxu0 0.0
      %5471 = vmatpush1.msra.mxu0 0.0
      %5472 = vmatprep.subr.mxu0 0.0
      %5473 = vmatpush1.msra.mxu0 0.0
      %5474 = vmatprep.subr.mxu0 0.0
      %5475 = vmatpush1.msra.mxu0 0.0
      %5476 = vmatprep.subr.mxu0 0.0
      %5477 = vmatpush1.msra.mxu0 0.0
      %5478 = vmatprep.subr.mxu0 0.0
      %5479 = vmatpush1.msra.mxu0 0.0
      %5480 = vmatprep.mubr.f32.mxu0 0.0
      %5481 = vmatmul.mubr.f32.gmra.mrb[0].mxu0 %v5367
      %v5482 = vpop.f32.mrb[0].mxu0
      %v5483 = vadd.f32 0.0, %v5482
      %v5484 = vpop.f32.mrb[0].mxu0
      %5485 = vmatprep.mubr.f32.mxu0 0.0
      %5486 = vmatmul.mubr.f32.gmra.mrb[0].mxu0 %v5368
      %v5487 = vpop.f32.mrb[0].mxu0
      %v5488 = vadd.f32 0.0, %v5487
      %v5489 = vpop.f32.mrb[0].mxu0
      %5490 = vmatprep.mubr.f32.mxu0 0.0
      %5491 = vmatmul.mubr.f32.gmra.mrb[0].mxu0 %v5369
      %v5492 = vpop.f32.mrb[0].mxu0
      %v5493 = vadd.f32 0.0, %v5492
      %v5494 = vpop.f32.mrb[0].mxu0
      %5495 = vmatprep.mubr.f32.mxu0 0.0
      %5496 = vmatmul.mubr.f32.gmra.mrb[0].mxu0 %v5370
      %v5497 = vpop.f32.mrb[0].mxu0
      %v5498 = vadd.f32 0.0, %v5497
      %v5499 = vpop.f32.mrb[0].mxu0
      %5500 = vmatprep.mubr.f32.mxu0 0.0
      %5501 = vmatmul.mubr.f32.gmra.mrb[0].mxu0 %v5371
      %v5502 = vpop.f32.mrb[0].mxu0
      %v5503 = vadd.f32 0.0, %v5502
      %v5504 = vpop.f32.mrb[0].mxu0
      %5505 = vmatprep.mubr.f32.mxu0 0.0
      %5506 = vmatmul.mubr.f32.gmra.mrb[0].mxu0 %v5372
      %v5507 = vpop.f32.mrb[0].mxu0
      %v5508 = vadd.f32 0.0, %v5507
      %v5509 = vpop.f32.mrb[0].mxu0
      %5510 = vmatprep.mubr.f32.mxu0 0.0
      %5511 = vmatmul.mubr.f32.gmra.mrb[0].mxu0 %v5373
      %v5512 = vpop.f32.mrb[0].mxu0
      %v5513 = vadd.f32 0.0, %v5512
      %v5514 = vpop.f32.mrb[0].mxu0
      %5515 = vmatprep.mubr.f32.mxu0 0.0
      %5516 = vmatmul.mubr.f32.gmra.mrb[0].mxu0 %v5374
      %v5517 = vpop.f32.mrb[0].mxu0
      %v5518 = vadd.f32 0.0, %v5517
      %v5519 = vpop.f32.mrb[0].mxu0
      %5520 = vmatprep.mubr.f32.mxu0 0.0
      %5521 = vmatmul.mubr.f32.gmra.mrb[0].mxu0 %v5375
      %v5522 = vpop.f32.mrb[0].mxu0
      %v5523 = vadd.f32 0.0, %v5522
      %v5524 = vpop.f32.mrb[0].mxu0
      %5525 = vmatprep.mubr.f32.mxu0 0.0
      %5526 = vmatmul.mubr.f32.gmra.mrb[0].mxu0 %v5376
      %v5527 = vpop.f32.mrb[0].mxu0
      %v5528 = vadd.f32 0.0, %v5527
      %v5529 = vpop.f32.mrb[0].mxu0
      %5530 = vmatprep.mubr.f32.mxu0 0.0
      %5531 = vmatmul.mubr.f32.gmra.mrb[0].mxu0 %v5377
      %v5532 = vpop.f32.mrb[0].mxu0
      %v5533 = vadd.f32 0.0, %v5532
      %v5534 = vpop.f32.mrb[0].mxu0
      %5535 = vmatprep.mubr.f32.mxu0 0.0
      %5536 = vmatmul.mubr.f32.gmra.mrb[0].mxu0 %v5378
      %v5537 = vpop.f32.mrb[0].mxu0
      %v5538 = vadd.f32 0.0, %v5537
      %v5539 = vpop.f32.mrb[0].mxu0
      %5540 = vmatprep.mubr.f32.mxu0 0.0
      %5541 = vmatmul.mubr.f32.gmra.mrb[0].mxu0 %v5379
      %v5542 = vpop.f32.mrb[0].mxu0
      %v5543 = vadd.f32 0.0, %v5542
      %v5544 = vpop.f32.mrb[0].mxu0
      %5545 = vmatprep.mubr.f32.mxu0 0.0
      %5546 = vmatmul.mubr.f32.gmra.mrb[0].mxu0 %v5380
      %v5547 = vpop.f32.mrb[0].mxu0
      %v5548 = vadd.f32 0.0, %v5547
      %v5549 = vpop.f32.mrb[0].mxu0
      %5550 = vmatprep.mubr.f32.mxu0 0.0
      %5551 = vmatmul.mubr.f32.gmra.mrb[0].mxu0 %v5381
      %v5552 = vpop.f32.mrb[0].mxu0
      %v5553 = vadd.f32 0.0, %v5552
      %v5554 = vpop.f32.mrb[0].mxu0
      %5555 = vmatprep.mubr.f32.mxu0 0.0
      %5556 = vmatmul.mubr.f32.gmra.mrb[0].mxu0 %v5382
      %v5557 = vpop.f32.mrb[0].mxu0
      %v5558 = vadd.f32 0.0, %v5557
      %v5559 = vpop.f32.mrb[0].mxu0
      %5560 = vmatprep.mubr.f32.mxu0 0.0
      %5561 = vmatmul.mubr.f32.gmra.mrb[0].mxu0 %v5383
      %v5562 = vpop.f32.mrb[0].mxu0
      %v5563 = vadd.f32 0.0, %v5562
      %v5564 = vpop.f32.mrb[0].mxu0
      %5565 = vmatprep.mubr.f32.mxu0 0.0
      %5566 = vmatmul.mubr.f32.gmra.mrb[0].mxu0 %v5384
      %v5567 = vpop.f32.mrb[0].mxu0
      %v5568 = vadd.f32 0.0, %v5567
      %v5569 = vpop.f32.mrb[0].mxu0
      %5570 = vmatprep.mubr.f32.mxu0 0.0
      %5571 = vmatmul.mubr.f32.gmra.mrb[0].mxu0 %v5385
      %v5572 = vpop.f32.mrb[0].mxu0
      %v5573 = vadd.f32 0.0, %v5572
      %v5574 = vpop.f32.mrb[0].mxu0
      %5575 = vmatprep.mubr.f32.mxu0 0.0
      %5576 = vmatmul.mubr.f32.gmra.mrb[0].mxu0 %v5386
      %v5577 = vpop.f32.mrb[0].mxu0
      %v5578 = vadd.f32 0.0, %v5577
      %v5579 = vpop.f32.mrb[0].mxu0
      %5580 = vmatprep.mubr.f32.mxu0 0.0
      %5581 = vmatmul.mubr.f32.gmra.mrb[0].mxu0 %v5387
      %v5582 = vpop.f32.mrb[0].mxu0
      %v5583 = vadd.f32 0.0, %v5582
      %v5584 = vpop.f32.mrb[0].mxu0
      %5585 = vmatprep.mubr.f32.mxu0 0.0
      %5586 = vmatmul.mubr.f32.gmra.mrb[0].mxu0 %v5388
      %v5587 = vpop.f32.mrb[0].mxu0
      %v5588 = vadd.f32 0.0, %v5587
      %v5589 = vpop.f32.mrb[0].mxu0
      %5590 = vmatprep.mubr.f32.mxu0 0.0
      %5591 = vmatmul.mubr.f32.gmra.mrb[0].mxu0 %v5389
      %v5592 = vpop.f32.mrb[0].mxu0
      %v5593 = vadd.f32 0.0, %v5592
      %v5594 = vpop.f32.mrb[0].mxu0
      %5595 = vmatprep.mubr.f32.mxu0 0.0
      %5596 = vmatmul.mubr.f32.gmra.mrb[0].mxu0 %v5390
      %v5597 = vpop.f32.mrb[0].mxu0
      %v5598 = vadd.f32 0.0, %v5597
      %v5599 = vpop.f32.mrb[0].mxu0
      %5600 = vmatprep.mubr.f32.mxu0 0.0
      %5601 = vmatmul.mubr.f32.gmra.mrb[0].mxu0 %v5391
      %v5602 = vpop.f32.mrb[0].mxu0
      %v5603 = vadd.f32 0.0, %v5602
      %v5604 = vpop.f32.mrb[0].mxu0
      %5605 = vmatprep.mubr.f32.mxu0 0.0
      %5606 = vmatmul.mubr.f32.gmra.mrb[0].mxu0 %v5392
      %v5607 = vpop.f32.mrb[0].mxu0
      %v5608 = vadd.f32 0.0, %v5607
      %v5609 = vpop.f32.mrb[0].mxu0
      %5610 = vmatprep.mubr.f32.mxu0 0.0
      %5611 = vmatmul.mubr.f32.gmra.mrb[0].mxu0 %v5393
      %v5612 = vpop.f32.mrb[0].mxu0
      %v5613 = vadd.f32 0.0, %v5612
      %v5614 = vpop.f32.mrb[0].mxu0
      %5615 = vmatprep.mubr.f32.mxu0 0.0
      %5616 = vmatmul.mubr.f32.gmra.mrb[0].mxu0 %v5394
      %v5617 = vpop.f32.mrb[0].mxu0
      %v5618 = vadd.f32 0.0, %v5617
      %v5619 = vpop.f32.mrb[0].mxu0
      %5620 = vmatprep.mubr.f32.mxu0 0.0
      %5621 = vmatmul.mubr.f32.gmra.mrb[0].mxu0 %v5395
      %v5622 = vpop.f32.mrb[0].mxu0
      %v5623 = vadd.f32 0.0, %v5622
      %v5624 = vpop.f32.mrb[0].mxu0
      %5625 = vmatprep.mubr.f32.mxu0 0.0
      %5626 = vmatmul.mubr.f32.gmra.mrb[0].mxu0 %v5396
      %v5627 = vpop.f32.mrb[0].mxu0
      %v5628 = vadd.f32 0.0, %v5627
      %v5629 = vpop.f32.mrb[0].mxu0
      %5630 = vmatprep.mubr.f32.mxu0 0.0
      %5631 = vmatmul.mubr.f32.gmra.mrb[0].mxu0 %v5397
      %v5632 = vpop.f32.mrb[0].mxu0
      %v5633 = vadd.f32 0.0, %v5632
      %v5634 = vpop.f32.mrb[0].mxu0
      %5635 = vmatprep.mubr.f32.mxu0 0.0
      %5636 = vmatmul.mubr.f32.gmra.mrb[0].mxu0 %v5398
      %v5637 = vpop.f32.mrb[0].mxu0
      %v5638 = vadd.f32 0.0, %v5637
      %v5639 = vpop.f32.mrb[0].mxu0
      %5640 = vdwg.mxu0
      %v5641 = vld [vmem:[#allocation2] sm:$0xff]
      %v5642 = vld [vmem:[#allocation2 + $0x8] sm:$0xff]
      %v5643 = vld [vmem:[#allocation2 + $0x10] sm:$0xff]
      %v5644 = vld [vmem:[#allocation2 + $0x18] sm:$0xff]
      %v5645 = vld [vmem:[#allocation2 + $0x20] sm:$0xff]
      %v5646 = vld [vmem:[#allocation2 + $0x28] sm:$0xff]
      %v5647 = vld [vmem:[#allocation2 + $0x30] sm:$0xff]
      %v5648 = vld [vmem:[#allocation2 + $0x38] sm:$0xff]
      %v5649 = vld [vmem:[#allocation2 + $0x40] sm:$0xff]
      %v5650 = vld [vmem:[#allocation2 + $0x48] sm:$0xff]
      %v5651 = vld [vmem:[#allocation2 + $0x50] sm:$0xff]
      %v5652 = vld [vmem:[#allocation2 + $0x58] sm:$0xff]
      %v5653 = vld [vmem:[#allocation2 + $0x60] sm:$0xff]
      %v5654 = vld [vmem:[#allocation2 + $0x68] sm:$0xff]
      %v5655 = vld [vmem:[#allocation2 + $0x70] sm:$0xff]
      %v5656 = vld [vmem:[#allocation2 + $0x78] sm:$0xff]
      %v5657 = vld [vmem:[#allocation2 + $0x80] sm:$0xff]
      %v5658 = vld [vmem:[#allocation2 + $0x88] sm:$0xff]
      %v5659 = vld [vmem:[#allocation2 + $0x90] sm:$0xff]
      %v5660 = vld [vmem:[#allocation2 + $0x98] sm:$0xff]
      %v5661 = vld [vmem:[#allocation2 + $0xa0] sm:$0xff]
      %v5662 = vld [vmem:[#allocation2 + $0xa8] sm:$0xff]
      %v5663 = vld [vmem:[#allocation2 + $0xb0] sm:$0xff]
      %v5664 = vld [vmem:[#allocation2 + $0xb8] sm:$0xff]
      %v5665 = vld [vmem:[#allocation2 + $0xc0] sm:$0xff]
      %v5666 = vld [vmem:[#allocation2 + $0xc8] sm:$0xff]
      %v5667 = vld [vmem:[#allocation2 + $0xd0] sm:$0xff]
      %v5668 = vld [vmem:[#allocation2 + $0xd8] sm:$0xff]
      %v5669 = vld [vmem:[#allocation2 + $0xe0] sm:$0xff]
      %v5670 = vld [vmem:[#allocation2 + $0xe8] sm:$0xff]
      %v5671 = vld [vmem:[#allocation2 + $0xf0] sm:$0xff]
      %v5672 = vld [vmem:[#allocation2 + $0xf8] sm:$0xff]
      %v5673 = vadd.f32 %v5641, %v5483
      %v5674 = vadd.f32 %v5642, %v5488
      %v5675 = vadd.f32 %v5643, %v5493
      %v5676 = vadd.f32 %v5644, %v5498
      %v5677 = vadd.f32 %v5645, %v5503
      %v5678 = vadd.f32 %v5646, %v5508
      %v5679 = vadd.f32 %v5647, %v5513
      %v5680 = vadd.f32 %v5648, %v5518
      %v5681 = vadd.f32 %v5649, %v5523
      %v5682 = vadd.f32 %v5650, %v5528
      %v5683 = vadd.f32 %v5651, %v5533
      %v5684 = vadd.f32 %v5652, %v5538
      %v5685 = vadd.f32 %v5653, %v5543
      %v5686 = vadd.f32 %v5654, %v5548
      %v5687 = vadd.f32 %v5655, %v5553
      %v5688 = vadd.f32 %v5656, %v5558
      %v5689 = vadd.f32 %v5657, %v5563
      %v5690 = vadd.f32 %v5658, %v5568
      %v5691 = vadd.f32 %v5659, %v5573
      %v5692 = vadd.f32 %v5660, %v5578
      %v5693 = vadd.f32 %v5661, %v5583
      %v5694 = vadd.f32 %v5662, %v5588
      %v5695 = vadd.f32 %v5663, %v5593
      %v5696 = vadd.f32 %v5664, %v5598
      %v5697 = vadd.f32 %v5665, %v5603
      %v5698 = vadd.f32 %v5666, %v5608
      %v5699 = vadd.f32 %v5667, %v5613
      %v5700 = vadd.f32 %v5668, %v5618
      %v5701 = vadd.f32 %v5669, %v5623
      %v5702 = vadd.f32 %v5670, %v5628
      %v5703 = vadd.f32 %v5671, %v5633
      %v5704 = vadd.f32 %v5672, %v5638
      %5705 = vst [vmem:[#allocation2] sm:$0xff] %v5673
      %5706 = vst [vmem:[#allocation2 + $0x8] sm:$0xff] %v5674
      %5707 = vst [vmem:[#allocation2 + $0x10] sm:$0xff] %v5675
      %5708 = vst [vmem:[#allocation2 + $0x18] sm:$0xff] %v5676
      %5709 = vst [vmem:[#allocation2 + $0x20] sm:$0xff] %v5677
      %5710 = vst [vmem:[#allocation2 + $0x28] sm:$0xff] %v5678
      %5711 = vst [vmem:[#allocation2 + $0x30] sm:$0xff] %v5679
      %5712 = vst [vmem:[#allocation2 + $0x38] sm:$0xff] %v5680
      %5713 = vst [vmem:[#allocation2 + $0x40] sm:$0xff] %v5681
      %5714 = vst [vmem:[#allocation2 + $0x48] sm:$0xff] %v5682
      %5715 = vst [vmem:[#allocation2 + $0x50] sm:$0xff] %v5683
      %5716 = vst [vmem:[#allocation2 + $0x58] sm:$0xff] %v5684
      %5717 = vst [vmem:[#allocation2 + $0x60] sm:$0xff] %v5685
      %5718 = vst [vmem:[#allocation2 + $0x68] sm:$0xff] %v5686
      %5719 = vst [vmem:[#allocation2 + $0x70] sm:$0xff] %v5687
      %5720 = vst [vmem:[#allocation2 + $0x78] sm:$0xff] %v5688
      %5721 = vst [vmem:[#allocation2 + $0x80] sm:$0xff] %v5689
      %5722 = vst [vmem:[#allocation2 + $0x88] sm:$0xff] %v5690
      %5723 = vst [vmem:[#allocation2 + $0x90] sm:$0xff] %v5691
      %5724 = vst [vmem:[#allocation2 + $0x98] sm:$0xff] %v5692
      %5725 = vst [vmem:[#allocation2 + $0xa0] sm:$0xff] %v5693
      %5726 = vst [vmem:[#allocation2 + $0xa8] sm:$0xff] %v5694
      %5727 = vst [vmem:[#allocation2 + $0xb0] sm:$0xff] %v5695
      %5728 = vst [vmem:[#allocation2 + $0xb8] sm:$0xff] %v5696
      %5729 = vst [vmem:[#allocation2 + $0xc0] sm:$0xff] %v5697
      %5730 = vst [vmem:[#allocation2 + $0xc8] sm:$0xff] %v5698
      %5731 = vst [vmem:[#allocation2 + $0xd0] sm:$0xff] %v5699
      %5732 = vst [vmem:[#allocation2 + $0xd8] sm:$0xff] %v5700
      %5733 = vst [vmem:[#allocation2 + $0xe0] sm:$0xff] %v5701
      %5734 = vst [vmem:[#allocation2 + $0xe8] sm:$0xff] %v5702
      %5735 = vst [vmem:[#allocation2 + $0xf0] sm:$0xff] %v5703
      %5736 = vst [vmem:[#allocation2 + $0xf8] sm:$0xff] %v5704
      %v5737 = vld [vmem:[%s4659] sm:$0xff]
      %v5738 = vld [vmem:[%s4659 + $0x8] sm:$0xff]
      %v5739 = vld [vmem:[%s4659 + $0x18] sm:$0xff]
      %v5740 = vld [vmem:[%s4659 + $0x20] sm:$0xff]
      %v5741 = vld [vmem:[%s4659 + $0x30] sm:$0xff]
      %v5742 = vld [vmem:[%s4659 + $0x38] sm:$0xff]
      %v5743 = vld [vmem:[%s4659 + $0x48] sm:$0xff]
      %v5744 = vld [vmem:[%s4659 + $0x50] sm:$0xff]
      %v5745 = vld [vmem:[%s4659 + $0x60] sm:$0xff]
      %v5746 = vld [vmem:[%s4659 + $0x68] sm:$0xff]
      %v5747 = vld [vmem:[%s4659 + $0x78] sm:$0xff]
      %v5748 = vld [vmem:[%s4659 + $0x80] sm:$0xff]
      %v5749 = vld [vmem:[%s4659 + $0x90] sm:$0xff]
      %v5750 = vld [vmem:[%s4659 + $0x98] sm:$0xff]
      %v5751 = vld [vmem:[%s4659 + $0xa8] sm:$0xff]
      %v5752 = vld [vmem:[%s4659 + $0xb0] sm:$0xff]
      %v5753 = vld [vmem:[%s4659 + $0xc0] sm:$0xff]
      %v5754 = vld [vmem:[%s4659 + $0xc8] sm:$0xff]
      %v5755 = vld [vmem:[%s4659 + $0xd8] sm:$0xff]
      %v5756 = vld [vmem:[%s4659 + $0xe0] sm:$0xff]
      %v5757 = vld [vmem:[%s4659 + $0xf0] sm:$0xff]
      %v5758 = vld [vmem:[%s4659 + $0xf8] sm:$0xff]
      %v5759 = vld [vmem:[%s4659 + $0x108] sm:$0xff]
      %v5760 = vld [vmem:[%s4659 + $0x110] sm:$0xff]
      %v5761 = vld [vmem:[%s4659 + $0x120] sm:$0xff]
      %v5762 = vld [vmem:[%s4659 + $0x128] sm:$0xff]
      %v5763 = vld [vmem:[%s4659 + $0x138] sm:$0xff]
      %v5764 = vld [vmem:[%s4659 + $0x140] sm:$0xff]
      %v5765 = vld [vmem:[%s4659 + $0x150] sm:$0xff]
      %v5766 = vld [vmem:[%s4659 + $0x158] sm:$0xff]
      %v5767 = vld [vmem:[%s4659 + $0x168] sm:$0xff]
      %v5768 = vld [vmem:[%s4659 + $0x170] sm:$0xff]
      %s5769 = scalar_lea.vmem %s6, 384
      %v5770 = vld [vmem:[%s5769] sm:$0xff]
      %v5771 = vld [vmem:[%s5769 + $0x8] sm:$0xff]
      %v5772 = vld [vmem:[%s5769 + $0x10] sm:$0xff]
      %v5773 = vld [vmem:[%s5769 + $0x18] sm:$0xff]
      %v5774 = vld [vmem:[%s5769 + $0x20] sm:$0xff]
      %v5775 = vld [vmem:[%s5769 + $0x28] sm:$0xff]
      %v5776 = vld [vmem:[%s5769 + $0x30] sm:$0xff]
      %v5777 = vld [vmem:[%s5769 + $0x38] sm:$0xff]
      %v5778 = vld [vmem:[%s5769 + $0x40] sm:$0xff]
      %v5779 = vld [vmem:[%s5769 + $0x48] sm:$0xff]
      %v5780 = vld [vmem:[%s5769 + $0x50] sm:$0xff]
      %v5781 = vld [vmem:[%s5769 + $0x58] sm:$0xff]
      %v5782 = vld [vmem:[%s5769 + $0x60] sm:$0xff]
      %v5783 = vld [vmem:[%s5769 + $0x68] sm:$0xff]
      %v5784 = vld [vmem:[%s5769 + $0x70] sm:$0xff]
      %v5785 = vld [vmem:[%s5769 + $0x78] sm:$0xff]
      %5786 = vmatprep.subr.mxu0 0.0
      %5787 = vmatpush1.msra.mxu0 %v5770
      %5788 = vmatprep.subr.mxu0 0.0
      %5789 = vmatpush1.msra.mxu0 %v5771
      %5790 = vmatprep.subr.mxu0 0.0
      %5791 = vmatpush1.msra.mxu0 %v5772
      %5792 = vmatprep.subr.mxu0 0.0
      %5793 = vmatpush1.msra.mxu0 %v5773
      %5794 = vmatprep.subr.mxu0 0.0
      %5795 = vmatpush1.msra.mxu0 %v5774
      %5796 = vmatprep.subr.mxu0 0.0
      %5797 = vmatpush1.msra.mxu0 %v5775
      %5798 = vmatprep.subr.mxu0 0.0
      %5799 = vmatpush1.msra.mxu0 %v5776
      %5800 = vmatprep.subr.mxu0 0.0
      %5801 = vmatpush1.msra.mxu0 %v5777
      %5802 = vmatprep.subr.mxu0 0.0
      %5803 = vmatpush1.msra.mxu0 %v5778
      %5804 = vmatprep.subr.mxu0 0.0
      %5805 = vmatpush1.msra.mxu0 %v5779
      %5806 = vmatprep.subr.mxu0 0.0
      %5807 = vmatpush1.msra.mxu0 %v5780
      %5808 = vmatprep.subr.mxu0 0.0
      %5809 = vmatpush1.msra.mxu0 %v5781
      %5810 = vmatprep.subr.mxu0 0.0
      %5811 = vmatpush1.msra.mxu0 %v5782
      %5812 = vmatprep.subr.mxu0 0.0
      %5813 = vmatpush1.msra.mxu0 %v5783
      %5814 = vmatprep.subr.mxu0 0.0
      %5815 = vmatpush1.msra.mxu0 %v5784
      %5816 = vmatprep.subr.mxu0 0.0
      %5817 = vmatpush1.msra.mxu0 %v5785
      %5818 = vmatprep.subr.mxu0 0.0
      %5819 = vmatpush1.msra.mxu0 0.0
      %5820 = vmatprep.subr.mxu0 0.0
      %5821 = vmatpush1.msra.mxu0 0.0
      %5822 = vmatprep.subr.mxu0 0.0
      %5823 = vmatpush1.msra.mxu0 0.0
      %5824 = vmatprep.subr.mxu0 0.0
      %5825 = vmatpush1.msra.mxu0 0.0
      %5826 = vmatprep.subr.mxu0 0.0
      %5827 = vmatpush1.msra.mxu0 0.0
      %5828 = vmatprep.subr.mxu0 0.0
      %5829 = vmatpush1.msra.mxu0 0.0
      %5830 = vmatprep.subr.mxu0 0.0
      %5831 = vmatpush1.msra.mxu0 0.0
      %5832 = vmatprep.subr.mxu0 0.0
      %5833 = vmatpush1.msra.mxu0 0.0
      %5834 = vmatprep.subr.mxu0 0.0
      %5835 = vmatpush1.msra.mxu0 0.0
      %5836 = vmatprep.subr.mxu0 0.0
      %5837 = vmatpush1.msra.mxu0 0.0
      %5838 = vmatprep.subr.mxu0 0.0
      %5839 = vmatpush1.msra.mxu0 0.0
      %5840 = vmatprep.subr.mxu0 0.0
      %5841 = vmatpush1.msra.mxu0 0.0
      %5842 = vmatprep.subr.mxu0 0.0
      %5843 = vmatpush1.msra.mxu0 0.0
      %5844 = vmatprep.subr.mxu0 0.0
      %5845 = vmatpush1.msra.mxu0 0.0
      %5846 = vmatprep.subr.mxu0 0.0
      %5847 = vmatpush1.msra.mxu0 0.0
      %5848 = vmatprep.subr.mxu0 0.0
      %5849 = vmatpush1.msra.mxu0 0.0
      %5850 = vmatprep.mubr.f32.mxu0 0.0
      %5851 = vmatmul.mubr.f32.gmra.mrb[0].mxu0 %v5737
      %v5852 = vpop.f32.mrb[0].mxu0
      %v5853 = vadd.f32 0.0, %v5852
      %v5854 = vpop.f32.mrb[0].mxu0
      %5855 = vmatprep.mubr.f32.mxu0 0.0
      %5856 = vmatmul.mubr.f32.gmra.mrb[0].mxu0 %v5738
      %v5857 = vpop.f32.mrb[0].mxu0
      %v5858 = vadd.f32 0.0, %v5857
      %v5859 = vpop.f32.mrb[0].mxu0
      %5860 = vmatprep.mubr.f32.mxu0 0.0
      %5861 = vmatmul.mubr.f32.gmra.mrb[0].mxu0 %v5739
      %v5862 = vpop.f32.mrb[0].mxu0
      %v5863 = vadd.f32 0.0, %v5862
      %v5864 = vpop.f32.mrb[0].mxu0
      %5865 = vmatprep.mubr.f32.mxu0 0.0
      %5866 = vmatmul.mubr.f32.gmra.mrb[0].mxu0 %v5740
      %v5867 = vpop.f32.mrb[0].mxu0
      %v5868 = vadd.f32 0.0, %v5867
      %v5869 = vpop.f32.mrb[0].mxu0
      %5870 = vmatprep.mubr.f32.mxu0 0.0
      %5871 = vmatmul.mubr.f32.gmra.mrb[0].mxu0 %v5741
      %v5872 = vpop.f32.mrb[0].mxu0
      %v5873 = vadd.f32 0.0, %v5872
      %v5874 = vpop.f32.mrb[0].mxu0
      %5875 = vmatprep.mubr.f32.mxu0 0.0
      %5876 = vmatmul.mubr.f32.gmra.mrb[0].mxu0 %v5742
      %v5877 = vpop.f32.mrb[0].mxu0
      %v5878 = vadd.f32 0.0, %v5877
      %v5879 = vpop.f32.mrb[0].mxu0
      %5880 = vmatprep.mubr.f32.mxu0 0.0
      %5881 = vmatmul.mubr.f32.gmra.mrb[0].mxu0 %v5743
      %v5882 = vpop.f32.mrb[0].mxu0
      %v5883 = vadd.f32 0.0, %v5882
      %v5884 = vpop.f32.mrb[0].mxu0
      %5885 = vmatprep.mubr.f32.mxu0 0.0
      %5886 = vmatmul.mubr.f32.gmra.mrb[0].mxu0 %v5744
      %v5887 = vpop.f32.mrb[0].mxu0
      %v5888 = vadd.f32 0.0, %v5887
      %v5889 = vpop.f32.mrb[0].mxu0
      %5890 = vmatprep.mubr.f32.mxu0 0.0
      %5891 = vmatmul.mubr.f32.gmra.mrb[0].mxu0 %v5745
      %v5892 = vpop.f32.mrb[0].mxu0
      %v5893 = vadd.f32 0.0, %v5892
      %v5894 = vpop.f32.mrb[0].mxu0
      %5895 = vmatprep.mubr.f32.mxu0 0.0
      %5896 = vmatmul.mubr.f32.gmra.mrb[0].mxu0 %v5746
      %v5897 = vpop.f32.mrb[0].mxu0
      %v5898 = vadd.f32 0.0, %v5897
      %v5899 = vpop.f32.mrb[0].mxu0
      %5900 = vmatprep.mubr.f32.mxu0 0.0
      %5901 = vmatmul.mubr.f32.gmra.mrb[0].mxu0 %v5747
      %v5902 = vpop.f32.mrb[0].mxu0
      %v5903 = vadd.f32 0.0, %v5902
      %v5904 = vpop.f32.mrb[0].mxu0
      %5905 = vmatprep.mubr.f32.mxu0 0.0
      %5906 = vmatmul.mubr.f32.gmra.mrb[0].mxu0 %v5748
      %v5907 = vpop.f32.mrb[0].mxu0
      %v5908 = vadd.f32 0.0, %v5907
      %v5909 = vpop.f32.mrb[0].mxu0
      %5910 = vmatprep.mubr.f32.mxu0 0.0
      %5911 = vmatmul.mubr.f32.gmra.mrb[0].mxu0 %v5749
      %v5912 = vpop.f32.mrb[0].mxu0
      %v5913 = vadd.f32 0.0, %v5912
      %v5914 = vpop.f32.mrb[0].mxu0
      %5915 = vmatprep.mubr.f32.mxu0 0.0
      %5916 = vmatmul.mubr.f32.gmra.mrb[0].mxu0 %v5750
      %v5917 = vpop.f32.mrb[0].mxu0
      %v5918 = vadd.f32 0.0, %v5917
      %v5919 = vpop.f32.mrb[0].mxu0
      %5920 = vmatprep.mubr.f32.mxu0 0.0
      %5921 = vmatmul.mubr.f32.gmra.mrb[0].mxu0 %v5751
      %v5922 = vpop.f32.mrb[0].mxu0
      %v5923 = vadd.f32 0.0, %v5922
      %v5924 = vpop.f32.mrb[0].mxu0
      %5925 = vmatprep.mubr.f32.mxu0 0.0
      %5926 = vmatmul.mubr.f32.gmra.mrb[0].mxu0 %v5752
      %v5927 = vpop.f32.mrb[0].mxu0
      %v5928 = vadd.f32 0.0, %v5927
      %v5929 = vpop.f32.mrb[0].mxu0
      %5930 = vmatprep.mubr.f32.mxu0 0.0
      %5931 = vmatmul.mubr.f32.gmra.mrb[0].mxu0 %v5753
      %v5932 = vpop.f32.mrb[0].mxu0
      %v5933 = vadd.f32 0.0, %v5932
      %v5934 = vpop.f32.mrb[0].mxu0
      %5935 = vmatprep.mubr.f32.mxu0 0.0
      %5936 = vmatmul.mubr.f32.gmra.mrb[0].mxu0 %v5754
      %v5937 = vpop.f32.mrb[0].mxu0
      %v5938 = vadd.f32 0.0, %v5937
      %v5939 = vpop.f32.mrb[0].mxu0
      %5940 = vmatprep.mubr.f32.mxu0 0.0
      %5941 = vmatmul.mubr.f32.gmra.mrb[0].mxu0 %v5755
      %v5942 = vpop.f32.mrb[0].mxu0
      %v5943 = vadd.f32 0.0, %v5942
      %v5944 = vpop.f32.mrb[0].mxu0
      %5945 = vmatprep.mubr.f32.mxu0 0.0
      %5946 = vmatmul.mubr.f32.gmra.mrb[0].mxu0 %v5756
      %v5947 = vpop.f32.mrb[0].mxu0
      %v5948 = vadd.f32 0.0, %v5947
      %v5949 = vpop.f32.mrb[0].mxu0
      %5950 = vmatprep.mubr.f32.mxu0 0.0
      %5951 = vmatmul.mubr.f32.gmra.mrb[0].mxu0 %v5757
      %v5952 = vpop.f32.mrb[0].mxu0
      %v5953 = vadd.f32 0.0, %v5952
      %v5954 = vpop.f32.mrb[0].mxu0
      %5955 = vmatprep.mubr.f32.mxu0 0.0
      %5956 = vmatmul.mubr.f32.gmra.mrb[0].mxu0 %v5758
      %v5957 = vpop.f32.mrb[0].mxu0
      %v5958 = vadd.f32 0.0, %v5957
      %v5959 = vpop.f32.mrb[0].mxu0
      %5960 = vmatprep.mubr.f32.mxu0 0.0
      %5961 = vmatmul.mubr.f32.gmra.mrb[0].mxu0 %v5759
      %v5962 = vpop.f32.mrb[0].mxu0
      %v5963 = vadd.f32 0.0, %v5962
      %v5964 = vpop.f32.mrb[0].mxu0
      %5965 = vmatprep.mubr.f32.mxu0 0.0
      %5966 = vmatmul.mubr.f32.gmra.mrb[0].mxu0 %v5760
      %v5967 = vpop.f32.mrb[0].mxu0
      %v5968 = vadd.f32 0.0, %v5967
      %v5969 = vpop.f32.mrb[0].mxu0
      %5970 = vmatprep.mubr.f32.mxu0 0.0
      %5971 = vmatmul.mubr.f32.gmra.mrb[0].mxu0 %v5761
      %v5972 = vpop.f32.mrb[0].mxu0
      %v5973 = vadd.f32 0.0, %v5972
      %v5974 = vpop.f32.mrb[0].mxu0
      %5975 = vmatprep.mubr.f32.mxu0 0.0
      %5976 = vmatmul.mubr.f32.gmra.mrb[0].mxu0 %v5762
      %v5977 = vpop.f32.mrb[0].mxu0
      %v5978 = vadd.f32 0.0, %v5977
      %v5979 = vpop.f32.mrb[0].mxu0
      %5980 = vmatprep.mubr.f32.mxu0 0.0
      %5981 = vmatmul.mubr.f32.gmra.mrb[0].mxu0 %v5763
      %v5982 = vpop.f32.mrb[0].mxu0
      %v5983 = vadd.f32 0.0, %v5982
      %v5984 = vpop.f32.mrb[0].mxu0
      %5985 = vmatprep.mubr.f32.mxu0 0.0
      %5986 = vmatmul.mubr.f32.gmra.mrb[0].mxu0 %v5764
      %v5987 = vpop.f32.mrb[0].mxu0
      %v5988 = vadd.f32 0.0, %v5987
      %v5989 = vpop.f32.mrb[0].mxu0
      %5990 = vmatprep.mubr.f32.mxu0 0.0
      %5991 = vmatmul.mubr.f32.gmra.mrb[0].mxu0 %v5765
      %v5992 = vpop.f32.mrb[0].mxu0
      %v5993 = vadd.f32 0.0, %v5992
      %v5994 = vpop.f32.mrb[0].mxu0
      %5995 = vmatprep.mubr.f32.mxu0 0.0
      %5996 = vmatmul.mubr.f32.gmra.mrb[0].mxu0 %v5766
      %v5997 = vpop.f32.mrb[0].mxu0
      %v5998 = vadd.f32 0.0, %v5997
      %v5999 = vpop.f32.mrb[0].mxu0
      %6000 = vmatprep.mubr.f32.mxu0 0.0
      %6001 = vmatmul.mubr.f32.gmra.mrb[0].mxu0 %v5767
      %v6002 = vpop.f32.mrb[0].mxu0
      %v6003 = vadd.f32 0.0, %v6002
      %v6004 = vpop.f32.mrb[0].mxu0
      %6005 = vmatprep.mubr.f32.mxu0 0.0
      %6006 = vmatmul.mubr.f32.gmra.mrb[0].mxu0 %v5768
      %v6007 = vpop.f32.mrb[0].mxu0
      %v6008 = vadd.f32 0.0, %v6007
      %v6009 = vpop.f32.mrb[0].mxu0
      %6010 = vdwg.mxu0
      %v6011 = vld [vmem:[#allocation2] sm:$0xff]
      %v6012 = vld [vmem:[#allocation2 + $0x8] sm:$0xff]
      %v6013 = vld [vmem:[#allocation2 + $0x10] sm:$0xff]
      %v6014 = vld [vmem:[#allocation2 + $0x18] sm:$0xff]
      %v6015 = vld [vmem:[#allocation2 + $0x20] sm:$0xff]
      %v6016 = vld [vmem:[#allocation2 + $0x28] sm:$0xff]
      %v6017 = vld [vmem:[#allocation2 + $0x30] sm:$0xff]
      %v6018 = vld [vmem:[#allocation2 + $0x38] sm:$0xff]
      %v6019 = vld [vmem:[#allocation2 + $0x40] sm:$0xff]
      %v6020 = vld [vmem:[#allocation2 + $0x48] sm:$0xff]
      %v6021 = vld [vmem:[#allocation2 + $0x50] sm:$0xff]
      %v6022 = vld [vmem:[#allocation2 + $0x58] sm:$0xff]
      %v6023 = vld [vmem:[#allocation2 + $0x60] sm:$0xff]
      %v6024 = vld [vmem:[#allocation2 + $0x68] sm:$0xff]
      %v6025 = vld [vmem:[#allocation2 + $0x70] sm:$0xff]
      %v6026 = vld [vmem:[#allocation2 + $0x78] sm:$0xff]
      %v6027 = vld [vmem:[#allocation2 + $0x80] sm:$0xff]
      %v6028 = vld [vmem:[#allocation2 + $0x88] sm:$0xff]
      %v6029 = vld [vmem:[#allocation2 + $0x90] sm:$0xff]
      %v6030 = vld [vmem:[#allocation2 + $0x98] sm:$0xff]
      %v6031 = vld [vmem:[#allocation2 + $0xa0] sm:$0xff]
      %v6032 = vld [vmem:[#allocation2 + $0xa8] sm:$0xff]
      %v6033 = vld [vmem:[#allocation2 + $0xb0] sm:$0xff]
      %v6034 = vld [vmem:[#allocation2 + $0xb8] sm:$0xff]
      %v6035 = vld [vmem:[#allocation2 + $0xc0] sm:$0xff]
      %v6036 = vld [vmem:[#allocation2 + $0xc8] sm:$0xff]
      %v6037 = vld [vmem:[#allocation2 + $0xd0] sm:$0xff]
      %v6038 = vld [vmem:[#allocation2 + $0xd8] sm:$0xff]
      %v6039 = vld [vmem:[#allocation2 + $0xe0] sm:$0xff]
      %v6040 = vld [vmem:[#allocation2 + $0xe8] sm:$0xff]
      %v6041 = vld [vmem:[#allocation2 + $0xf0] sm:$0xff]
      %v6042 = vld [vmem:[#allocation2 + $0xf8] sm:$0xff]
      %v6043 = vadd.f32 %v6011, %v5853
      %v6044 = vadd.f32 %v6012, %v5858
      %v6045 = vadd.f32 %v6013, %v5863
      %v6046 = vadd.f32 %v6014, %v5868
      %v6047 = vadd.f32 %v6015, %v5873
      %v6048 = vadd.f32 %v6016, %v5878
      %v6049 = vadd.f32 %v6017, %v5883
      %v6050 = vadd.f32 %v6018, %v5888
      %v6051 = vadd.f32 %v6019, %v5893
      %v6052 = vadd.f32 %v6020, %v5898
      %v6053 = vadd.f32 %v6021, %v5903
      %v6054 = vadd.f32 %v6022, %v5908
      %v6055 = vadd.f32 %v6023, %v5913
      %v6056 = vadd.f32 %v6024, %v5918
      %v6057 = vadd.f32 %v6025, %v5923
      %v6058 = vadd.f32 %v6026, %v5928
      %v6059 = vadd.f32 %v6027, %v5933
      %v6060 = vadd.f32 %v6028, %v5938
      %v6061 = vadd.f32 %v6029, %v5943
      %v6062 = vadd.f32 %v6030, %v5948
      %v6063 = vadd.f32 %v6031, %v5953
      %v6064 = vadd.f32 %v6032, %v5958
      %v6065 = vadd.f32 %v6033, %v5963
      %v6066 = vadd.f32 %v6034, %v5968
      %v6067 = vadd.f32 %v6035, %v5973
      %v6068 = vadd.f32 %v6036, %v5978
      %v6069 = vadd.f32 %v6037, %v5983
      %v6070 = vadd.f32 %v6038, %v5988
      %v6071 = vadd.f32 %v6039, %v5993
      %v6072 = vadd.f32 %v6040, %v5998
      %v6073 = vadd.f32 %v6041, %v6003
      %v6074 = vadd.f32 %v6042, %v6008
      %6075 = vst [vmem:[#allocation2] sm:$0xff] %v6043
      %6076 = vst [vmem:[#allocation2 + $0x8] sm:$0xff] %v6044
      %6077 = vst [vmem:[#allocation2 + $0x10] sm:$0xff] %v6045
      %6078 = vst [vmem:[#allocation2 + $0x18] sm:$0xff] %v6046
      %6079 = vst [vmem:[#allocation2 + $0x20] sm:$0xff] %v6047
      %6080 = vst [vmem:[#allocation2 + $0x28] sm:$0xff] %v6048
      %6081 = vst [vmem:[#allocation2 + $0x30] sm:$0xff] %v6049
      %6082 = vst [vmem:[#allocation2 + $0x38] sm:$0xff] %v6050
      %6083 = vst [vmem:[#allocation2 + $0x40] sm:$0xff] %v6051
      %6084 = vst [vmem:[#allocation2 + $0x48] sm:$0xff] %v6052
      %6085 = vst [vmem:[#allocation2 + $0x50] sm:$0xff] %v6053
      %6086 = vst [vmem:[#allocation2 + $0x58] sm:$0xff] %v6054
      %6087 = vst [vmem:[#allocation2 + $0x60] sm:$0xff] %v6055
      %6088 = vst [vmem:[#allocation2 + $0x68] sm:$0xff] %v6056
      %6089 = vst [vmem:[#allocation2 + $0x70] sm:$0xff] %v6057
      %6090 = vst [vmem:[#allocation2 + $0x78] sm:$0xff] %v6058
      %6091 = vst [vmem:[#allocation2 + $0x80] sm:$0xff] %v6059
      %6092 = vst [vmem:[#allocation2 + $0x88] sm:$0xff] %v6060
      %6093 = vst [vmem:[#allocation2 + $0x90] sm:$0xff] %v6061
      %6094 = vst [vmem:[#allocation2 + $0x98] sm:$0xff] %v6062
      %6095 = vst [vmem:[#allocation2 + $0xa0] sm:$0xff] %v6063
      %6096 = vst [vmem:[#allocation2 + $0xa8] sm:$0xff] %v6064
      %6097 = vst [vmem:[#allocation2 + $0xb0] sm:$0xff] %v6065
      %6098 = vst [vmem:[#allocation2 + $0xb8] sm:$0xff] %v6066
      %6099 = vst [vmem:[#allocation2 + $0xc0] sm:$0xff] %v6067
      %6100 = vst [vmem:[#allocation2 + $0xc8] sm:$0xff] %v6068
      %6101 = vst [vmem:[#allocation2 + $0xd0] sm:$0xff] %v6069
      %6102 = vst [vmem:[#allocation2 + $0xd8] sm:$0xff] %v6070
      %6103 = vst [vmem:[#allocation2 + $0xe0] sm:$0xff] %v6071
      %6104 = vst [vmem:[#allocation2 + $0xe8] sm:$0xff] %v6072
      %6105 = vst [vmem:[#allocation2 + $0xf0] sm:$0xff] %v6073
      %6106 = vst [vmem:[#allocation2 + $0xf8] sm:$0xff] %v6074
      %v6107 = vld [vmem:[%s4659 + $0x1] sm:$0xff]
      %v6108 = vld [vmem:[%s4659 + $0x9] sm:$0xff]
      %v6109 = vld [vmem:[%s4659 + $0x19] sm:$0xff]
      %v6110 = vld [vmem:[%s4659 + $0x21] sm:$0xff]
      %v6111 = vld [vmem:[%s4659 + $0x31] sm:$0xff]
      %v6112 = vld [vmem:[%s4659 + $0x39] sm:$0xff]
      %v6113 = vld [vmem:[%s4659 + $0x49] sm:$0xff]
      %v6114 = vld [vmem:[%s4659 + $0x51] sm:$0xff]
      %v6115 = vld [vmem:[%s4659 + $0x61] sm:$0xff]
      %v6116 = vld [vmem:[%s4659 + $0x69] sm:$0xff]
      %v6117 = vld [vmem:[%s4659 + $0x79] sm:$0xff]
      %v6118 = vld [vmem:[%s4659 + $0x81] sm:$0xff]
      %v6119 = vld [vmem:[%s4659 + $0x91] sm:$0xff]
      %v6120 = vld [vmem:[%s4659 + $0x99] sm:$0xff]
      %v6121 = vld [vmem:[%s4659 + $0xa9] sm:$0xff]
      %v6122 = vld [vmem:[%s4659 + $0xb1] sm:$0xff]
      %v6123 = vld [vmem:[%s4659 + $0xc1] sm:$0xff]
      %v6124 = vld [vmem:[%s4659 + $0xc9] sm:$0xff]
      %v6125 = vld [vmem:[%s4659 + $0xd9] sm:$0xff]
      %v6126 = vld [vmem:[%s4659 + $0xe1] sm:$0xff]
      %v6127 = vld [vmem:[%s4659 + $0xf1] sm:$0xff]
      %v6128 = vld [vmem:[%s4659 + $0xf9] sm:$0xff]
      %v6129 = vld [vmem:[%s4659 + $0x109] sm:$0xff]
      %v6130 = vld [vmem:[%s4659 + $0x111] sm:$0xff]
      %v6131 = vld [vmem:[%s4659 + $0x121] sm:$0xff]
      %v6132 = vld [vmem:[%s4659 + $0x129] sm:$0xff]
      %v6133 = vld [vmem:[%s4659 + $0x139] sm:$0xff]
      %v6134 = vld [vmem:[%s4659 + $0x141] sm:$0xff]
      %v6135 = vld [vmem:[%s4659 + $0x151] sm:$0xff]
      %v6136 = vld [vmem:[%s4659 + $0x159] sm:$0xff]
      %v6137 = vld [vmem:[%s4659 + $0x169] sm:$0xff]
      %v6138 = vld [vmem:[%s4659 + $0x171] sm:$0xff]
      %s6139 = scalar_lea.vmem %s6, 512
      %v6140 = vld [vmem:[%s6139] sm:$0xff]
      %v6141 = vld [vmem:[%s6139 + $0x8] sm:$0xff]
      %v6142 = vld [vmem:[%s6139 + $0x10] sm:$0xff]
      %v6143 = vld [vmem:[%s6139 + $0x18] sm:$0xff]
      %v6144 = vld [vmem:[%s6139 + $0x20] sm:$0xff]
      %v6145 = vld [vmem:[%s6139 + $0x28] sm:$0xff]
      %v6146 = vld [vmem:[%s6139 + $0x30] sm:$0xff]
      %v6147 = vld [vmem:[%s6139 + $0x38] sm:$0xff]
      %v6148 = vld [vmem:[%s6139 + $0x40] sm:$0xff]
      %v6149 = vld [vmem:[%s6139 + $0x48] sm:$0xff]
      %v6150 = vld [vmem:[%s6139 + $0x50] sm:$0xff]
      %v6151 = vld [vmem:[%s6139 + $0x58] sm:$0xff]
      %v6152 = vld [vmem:[%s6139 + $0x60] sm:$0xff]
      %v6153 = vld [vmem:[%s6139 + $0x68] sm:$0xff]
      %v6154 = vld [vmem:[%s6139 + $0x70] sm:$0xff]
      %v6155 = vld [vmem:[%s6139 + $0x78] sm:$0xff]
      %6156 = vmatprep.subr.mxu0 0.0
      %6157 = vmatpush1.msra.mxu0 %v6140
      %6158 = vmatprep.subr.mxu0 0.0
      %6159 = vmatpush1.msra.mxu0 %v6141
      %6160 = vmatprep.subr.mxu0 0.0
      %6161 = vmatpush1.msra.mxu0 %v6142
      %6162 = vmatprep.subr.mxu0 0.0
      %6163 = vmatpush1.msra.mxu0 %v6143
      %6164 = vmatprep.subr.mxu0 0.0
      %6165 = vmatpush1.msra.mxu0 %v6144
      %6166 = vmatprep.subr.mxu0 0.0
      %6167 = vmatpush1.msra.mxu0 %v6145
      %6168 = vmatprep.subr.mxu0 0.0
      %6169 = vmatpush1.msra.mxu0 %v6146
      %6170 = vmatprep.subr.mxu0 0.0
      %6171 = vmatpush1.msra.mxu0 %v6147
      %6172 = vmatprep.subr.mxu0 0.0
      %6173 = vmatpush1.msra.mxu0 %v6148
      %6174 = vmatprep.subr.mxu0 0.0
      %6175 = vmatpush1.msra.mxu0 %v6149
      %6176 = vmatprep.subr.mxu0 0.0
      %6177 = vmatpush1.msra.mxu0 %v6150
      %6178 = vmatprep.subr.mxu0 0.0
      %6179 = vmatpush1.msra.mxu0 %v6151
      %6180 = vmatprep.subr.mxu0 0.0
      %6181 = vmatpush1.msra.mxu0 %v6152
      %6182 = vmatprep.subr.mxu0 0.0
      %6183 = vmatpush1.msra.mxu0 %v6153
      %6184 = vmatprep.subr.mxu0 0.0
      %6185 = vmatpush1.msra.mxu0 %v6154
      %6186 = vmatprep.subr.mxu0 0.0
      %6187 = vmatpush1.msra.mxu0 %v6155
      %6188 = vmatprep.subr.mxu0 0.0
      %6189 = vmatpush1.msra.mxu0 0.0
      %6190 = vmatprep.subr.mxu0 0.0
      %6191 = vmatpush1.msra.mxu0 0.0
      %6192 = vmatprep.subr.mxu0 0.0
      %6193 = vmatpush1.msra.mxu0 0.0
      %6194 = vmatprep.subr.mxu0 0.0
      %6195 = vmatpush1.msra.mxu0 0.0
      %6196 = vmatprep.subr.mxu0 0.0
      %6197 = vmatpush1.msra.mxu0 0.0
      %6198 = vmatprep.subr.mxu0 0.0
      %6199 = vmatpush1.msra.mxu0 0.0
      %6200 = vmatprep.subr.mxu0 0.0
      %6201 = vmatpush1.msra.mxu0 0.0
      %6202 = vmatprep.subr.mxu0 0.0
      %6203 = vmatpush1.msra.mxu0 0.0
      %6204 = vmatprep.subr.mxu0 0.0
      %6205 = vmatpush1.msra.mxu0 0.0
      %6206 = vmatprep.subr.mxu0 0.0
      %6207 = vmatpush1.msra.mxu0 0.0
      %6208 = vmatprep.subr.mxu0 0.0
      %6209 = vmatpush1.msra.mxu0 0.0
      %6210 = vmatprep.subr.mxu0 0.0
      %6211 = vmatpush1.msra.mxu0 0.0
      %6212 = vmatprep.subr.mxu0 0.0
      %6213 = vmatpush1.msra.mxu0 0.0
      %6214 = vmatprep.subr.mxu0 0.0
      %6215 = vmatpush1.msra.mxu0 0.0
      %6216 = vmatprep.subr.mxu0 0.0
      %6217 = vmatpush1.msra.mxu0 0.0
      %6218 = vmatprep.subr.mxu0 0.0
      %6219 = vmatpush1.msra.mxu0 0.0
      %6220 = vmatprep.mubr.f32.mxu0 0.0
      %6221 = vmatmul.mubr.f32.gmra.mrb[0].mxu0 %v6107
      %v6222 = vpop.f32.mrb[0].mxu0
      %v6223 = vadd.f32 0.0, %v6222
      %v6224 = vpop.f32.mrb[0].mxu0
      %6225 = vmatprep.mubr.f32.mxu0 0.0
      %6226 = vmatmul.mubr.f32.gmra.mrb[0].mxu0 %v6108
      %v6227 = vpop.f32.mrb[0].mxu0
      %v6228 = vadd.f32 0.0, %v6227
      %v6229 = vpop.f32.mrb[0].mxu0
      %6230 = vmatprep.mubr.f32.mxu0 0.0
      %6231 = vmatmul.mubr.f32.gmra.mrb[0].mxu0 %v6109
      %v6232 = vpop.f32.mrb[0].mxu0
      %v6233 = vadd.f32 0.0, %v6232
      %v6234 = vpop.f32.mrb[0].mxu0
      %6235 = vmatprep.mubr.f32.mxu0 0.0
      %6236 = vmatmul.mubr.f32.gmra.mrb[0].mxu0 %v6110
      %v6237 = vpop.f32.mrb[0].mxu0
      %v6238 = vadd.f32 0.0, %v6237
      %v6239 = vpop.f32.mrb[0].mxu0
      %6240 = vmatprep.mubr.f32.mxu0 0.0
      %6241 = vmatmul.mubr.f32.gmra.mrb[0].mxu0 %v6111
      %v6242 = vpop.f32.mrb[0].mxu0
      %v6243 = vadd.f32 0.0, %v6242
      %v6244 = vpop.f32.mrb[0].mxu0
      %6245 = vmatprep.mubr.f32.mxu0 0.0
      %6246 = vmatmul.mubr.f32.gmra.mrb[0].mxu0 %v6112
      %v6247 = vpop.f32.mrb[0].mxu0
      %v6248 = vadd.f32 0.0, %v6247
      %v6249 = vpop.f32.mrb[0].mxu0
      %6250 = vmatprep.mubr.f32.mxu0 0.0
      %6251 = vmatmul.mubr.f32.gmra.mrb[0].mxu0 %v6113
      %v6252 = vpop.f32.mrb[0].mxu0
      %v6253 = vadd.f32 0.0, %v6252
      %v6254 = vpop.f32.mrb[0].mxu0
      %6255 = vmatprep.mubr.f32.mxu0 0.0
      %6256 = vmatmul.mubr.f32.gmra.mrb[0].mxu0 %v6114
      %v6257 = vpop.f32.mrb[0].mxu0
      %v6258 = vadd.f32 0.0, %v6257
      %v6259 = vpop.f32.mrb[0].mxu0
      %6260 = vmatprep.mubr.f32.mxu0 0.0
      %6261 = vmatmul.mubr.f32.gmra.mrb[0].mxu0 %v6115
      %v6262 = vpop.f32.mrb[0].mxu0
      %v6263 = vadd.f32 0.0, %v6262
      %v6264 = vpop.f32.mrb[0].mxu0
      %6265 = vmatprep.mubr.f32.mxu0 0.0
      %6266 = vmatmul.mubr.f32.gmra.mrb[0].mxu0 %v6116
      %v6267 = vpop.f32.mrb[0].mxu0
      %v6268 = vadd.f32 0.0, %v6267
      %v6269 = vpop.f32.mrb[0].mxu0
      %6270 = vmatprep.mubr.f32.mxu0 0.0
      %6271 = vmatmul.mubr.f32.gmra.mrb[0].mxu0 %v6117
      %v6272 = vpop.f32.mrb[0].mxu0
      %v6273 = vadd.f32 0.0, %v6272
      %v6274 = vpop.f32.mrb[0].mxu0
      %6275 = vmatprep.mubr.f32.mxu0 0.0
      %6276 = vmatmul.mubr.f32.gmra.mrb[0].mxu0 %v6118
      %v6277 = vpop.f32.mrb[0].mxu0
      %v6278 = vadd.f32 0.0, %v6277
      %v6279 = vpop.f32.mrb[0].mxu0
      %6280 = vmatprep.mubr.f32.mxu0 0.0
      %6281 = vmatmul.mubr.f32.gmra.mrb[0].mxu0 %v6119
      %v6282 = vpop.f32.mrb[0].mxu0
      %v6283 = vadd.f32 0.0, %v6282
      %v6284 = vpop.f32.mrb[0].mxu0
      %6285 = vmatprep.mubr.f32.mxu0 0.0
      %6286 = vmatmul.mubr.f32.gmra.mrb[0].mxu0 %v6120
      %v6287 = vpop.f32.mrb[0].mxu0
      %v6288 = vadd.f32 0.0, %v6287
      %v6289 = vpop.f32.mrb[0].mxu0
      %6290 = vmatprep.mubr.f32.mxu0 0.0
      %6291 = vmatmul.mubr.f32.gmra.mrb[0].mxu0 %v6121
      %v6292 = vpop.f32.mrb[0].mxu0
      %v6293 = vadd.f32 0.0, %v6292
      %v6294 = vpop.f32.mrb[0].mxu0
      %6295 = vmatprep.mubr.f32.mxu0 0.0
      %6296 = vmatmul.mubr.f32.gmra.mrb[0].mxu0 %v6122
      %v6297 = vpop.f32.mrb[0].mxu0
      %v6298 = vadd.f32 0.0, %v6297
      %v6299 = vpop.f32.mrb[0].mxu0
      %6300 = vmatprep.mubr.f32.mxu0 0.0
      %6301 = vmatmul.mubr.f32.gmra.mrb[0].mxu0 %v6123
      %v6302 = vpop.f32.mrb[0].mxu0
      %v6303 = vadd.f32 0.0, %v6302
      %v6304 = vpop.f32.mrb[0].mxu0
      %6305 = vmatprep.mubr.f32.mxu0 0.0
      %6306 = vmatmul.mubr.f32.gmra.mrb[0].mxu0 %v6124
      %v6307 = vpop.f32.mrb[0].mxu0
      %v6308 = vadd.f32 0.0, %v6307
      %v6309 = vpop.f32.mrb[0].mxu0
      %6310 = vmatprep.mubr.f32.mxu0 0.0
      %6311 = vmatmul.mubr.f32.gmra.mrb[0].mxu0 %v6125
      %v6312 = vpop.f32.mrb[0].mxu0
      %v6313 = vadd.f32 0.0, %v6312
      %v6314 = vpop.f32.mrb[0].mxu0
      %6315 = vmatprep.mubr.f32.mxu0 0.0
      %6316 = vmatmul.mubr.f32.gmra.mrb[0].mxu0 %v6126
      %v6317 = vpop.f32.mrb[0].mxu0
      %v6318 = vadd.f32 0.0, %v6317
      %v6319 = vpop.f32.mrb[0].mxu0
      %6320 = vmatprep.mubr.f32.mxu0 0.0
      %6321 = vmatmul.mubr.f32.gmra.mrb[0].mxu0 %v6127
      %v6322 = vpop.f32.mrb[0].mxu0
      %v6323 = vadd.f32 0.0, %v6322
      %v6324 = vpop.f32.mrb[0].mxu0
      %6325 = vmatprep.mubr.f32.mxu0 0.0
      %6326 = vmatmul.mubr.f32.gmra.mrb[0].mxu0 %v6128
      %v6327 = vpop.f32.mrb[0].mxu0
      %v6328 = vadd.f32 0.0, %v6327
      %v6329 = vpop.f32.mrb[0].mxu0
      %6330 = vmatprep.mubr.f32.mxu0 0.0
      %6331 = vmatmul.mubr.f32.gmra.mrb[0].mxu0 %v6129
      %v6332 = vpop.f32.mrb[0].mxu0
      %v6333 = vadd.f32 0.0, %v6332
      %v6334 = vpop.f32.mrb[0].mxu0
      %6335 = vmatprep.mubr.f32.mxu0 0.0
      %6336 = vmatmul.mubr.f32.gmra.mrb[0].mxu0 %v6130
      %v6337 = vpop.f32.mrb[0].mxu0
      %v6338 = vadd.f32 0.0, %v6337
      %v6339 = vpop.f32.mrb[0].mxu0
      %6340 = vmatprep.mubr.f32.mxu0 0.0
      %6341 = vmatmul.mubr.f32.gmra.mrb[0].mxu0 %v6131
      %v6342 = vpop.f32.mrb[0].mxu0
      %v6343 = vadd.f32 0.0, %v6342
      %v6344 = vpop.f32.mrb[0].mxu0
      %6345 = vmatprep.mubr.f32.mxu0 0.0
      %6346 = vmatmul.mubr.f32.gmra.mrb[0].mxu0 %v6132
      %v6347 = vpop.f32.mrb[0].mxu0
      %v6348 = vadd.f32 0.0, %v6347
      %v6349 = vpop.f32.mrb[0].mxu0
      %6350 = vmatprep.mubr.f32.mxu0 0.0
      %6351 = vmatmul.mubr.f32.gmra.mrb[0].mxu0 %v6133
      %v6352 = vpop.f32.mrb[0].mxu0
      %v6353 = vadd.f32 0.0, %v6352
      %v6354 = vpop.f32.mrb[0].mxu0
      %6355 = vmatprep.mubr.f32.mxu0 0.0
      %6356 = vmatmul.mubr.f32.gmra.mrb[0].mxu0 %v6134
      %v6357 = vpop.f32.mrb[0].mxu0
      %v6358 = vadd.f32 0.0, %v6357
      %v6359 = vpop.f32.mrb[0].mxu0
      %6360 = vmatprep.mubr.f32.mxu0 0.0
      %6361 = vmatmul.mubr.f32.gmra.mrb[0].mxu0 %v6135
      %v6362 = vpop.f32.mrb[0].mxu0
      %v6363 = vadd.f32 0.0, %v6362
      %v6364 = vpop.f32.mrb[0].mxu0
      %6365 = vmatprep.mubr.f32.mxu0 0.0
      %6366 = vmatmul.mubr.f32.gmra.mrb[0].mxu0 %v6136
      %v6367 = vpop.f32.mrb[0].mxu0
      %v6368 = vadd.f32 0.0, %v6367
      %v6369 = vpop.f32.mrb[0].mxu0
      %6370 = vmatprep.mubr.f32.mxu0 0.0
      %6371 = vmatmul.mubr.f32.gmra.mrb[0].mxu0 %v6137
      %v6372 = vpop.f32.mrb[0].mxu0
      %v6373 = vadd.f32 0.0, %v6372
      %v6374 = vpop.f32.mrb[0].mxu0
      %6375 = vmatprep.mubr.f32.mxu0 0.0
      %6376 = vmatmul.mubr.f32.gmra.mrb[0].mxu0 %v6138
      %v6377 = vpop.f32.mrb[0].mxu0
      %v6378 = vadd.f32 0.0, %v6377
      %v6379 = vpop.f32.mrb[0].mxu0
      %6380 = vdwg.mxu0
      %v6381 = vld [vmem:[#allocation2] sm:$0xff]
      %v6382 = vld [vmem:[#allocation2 + $0x8] sm:$0xff]
      %v6383 = vld [vmem:[#allocation2 + $0x10] sm:$0xff]
      %v6384 = vld [vmem:[#allocation2 + $0x18] sm:$0xff]
      %v6385 = vld [vmem:[#allocation2 + $0x20] sm:$0xff]
      %v6386 = vld [vmem:[#allocation2 + $0x28] sm:$0xff]
      %v6387 = vld [vmem:[#allocation2 + $0x30] sm:$0xff]
      %v6388 = vld [vmem:[#allocation2 + $0x38] sm:$0xff]
      %v6389 = vld [vmem:[#allocation2 + $0x40] sm:$0xff]
      %v6390 = vld [vmem:[#allocation2 + $0x48] sm:$0xff]
      %v6391 = vld [vmem:[#allocation2 + $0x50] sm:$0xff]
      %v6392 = vld [vmem:[#allocation2 + $0x58] sm:$0xff]
      %v6393 = vld [vmem:[#allocation2 + $0x60] sm:$0xff]
      %v6394 = vld [vmem:[#allocation2 + $0x68] sm:$0xff]
      %v6395 = vld [vmem:[#allocation2 + $0x70] sm:$0xff]
      %v6396 = vld [vmem:[#allocation2 + $0x78] sm:$0xff]
      %v6397 = vld [vmem:[#allocation2 + $0x80] sm:$0xff]
      %v6398 = vld [vmem:[#allocation2 + $0x88] sm:$0xff]
      %v6399 = vld [vmem:[#allocation2 + $0x90] sm:$0xff]
      %v6400 = vld [vmem:[#allocation2 + $0x98] sm:$0xff]
      %v6401 = vld [vmem:[#allocation2 + $0xa0] sm:$0xff]
      %v6402 = vld [vmem:[#allocation2 + $0xa8] sm:$0xff]
      %v6403 = vld [vmem:[#allocation2 + $0xb0] sm:$0xff]
      %v6404 = vld [vmem:[#allocation2 + $0xb8] sm:$0xff]
      %v6405 = vld [vmem:[#allocation2 + $0xc0] sm:$0xff]
      %v6406 = vld [vmem:[#allocation2 + $0xc8] sm:$0xff]
      %v6407 = vld [vmem:[#allocation2 + $0xd0] sm:$0xff]
      %v6408 = vld [vmem:[#allocation2 + $0xd8] sm:$0xff]
      %v6409 = vld [vmem:[#allocation2 + $0xe0] sm:$0xff]
      %v6410 = vld [vmem:[#allocation2 + $0xe8] sm:$0xff]
      %v6411 = vld [vmem:[#allocation2 + $0xf0] sm:$0xff]
      %v6412 = vld [vmem:[#allocation2 + $0xf8] sm:$0xff]
      %v6413 = vadd.f32 %v6381, %v6223
      %v6414 = vadd.f32 %v6382, %v6228
      %v6415 = vadd.f32 %v6383, %v6233
      %v6416 = vadd.f32 %v6384, %v6238
      %v6417 = vadd.f32 %v6385, %v6243
      %v6418 = vadd.f32 %v6386, %v6248
      %v6419 = vadd.f32 %v6387, %v6253
      %v6420 = vadd.f32 %v6388, %v6258
      %v6421 = vadd.f32 %v6389, %v6263
      %v6422 = vadd.f32 %v6390, %v6268
      %v6423 = vadd.f32 %v6391, %v6273
      %v6424 = vadd.f32 %v6392, %v6278
      %v6425 = vadd.f32 %v6393, %v6283
      %v6426 = vadd.f32 %v6394, %v6288
      %v6427 = vadd.f32 %v6395, %v6293
      %v6428 = vadd.f32 %v6396, %v6298
      %v6429 = vadd.f32 %v6397, %v6303
      %v6430 = vadd.f32 %v6398, %v6308
      %v6431 = vadd.f32 %v6399, %v6313
      %v6432 = vadd.f32 %v6400, %v6318
      %v6433 = vadd.f32 %v6401, %v6323
      %v6434 = vadd.f32 %v6402, %v6328
      %v6435 = vadd.f32 %v6403, %v6333
      %v6436 = vadd.f32 %v6404, %v6338
      %v6437 = vadd.f32 %v6405, %v6343
      %v6438 = vadd.f32 %v6406, %v6348
      %v6439 = vadd.f32 %v6407, %v6353
      %v6440 = vadd.f32 %v6408, %v6358
      %v6441 = vadd.f32 %v6409, %v6363
      %v6442 = vadd.f32 %v6410, %v6368
      %v6443 = vadd.f32 %v6411, %v6373
      %v6444 = vadd.f32 %v6412, %v6378
      %6445 = vst [vmem:[#allocation2] sm:$0xff] %v6413
      %6446 = vst [vmem:[#allocation2 + $0x8] sm:$0xff] %v6414
      %6447 = vst [vmem:[#allocation2 + $0x10] sm:$0xff] %v6415
      %6448 = vst [vmem:[#allocation2 + $0x18] sm:$0xff] %v6416
      %6449 = vst [vmem:[#allocation2 + $0x20] sm:$0xff] %v6417
      %6450 = vst [vmem:[#allocation2 + $0x28] sm:$0xff] %v6418
      %6451 = vst [vmem:[#allocation2 + $0x30] sm:$0xff] %v6419
      %6452 = vst [vmem:[#allocation2 + $0x38] sm:$0xff] %v6420
      %6453 = vst [vmem:[#allocation2 + $0x40] sm:$0xff] %v6421
      %6454 = vst [vmem:[#allocation2 + $0x48] sm:$0xff] %v6422
      %6455 = vst [vmem:[#allocation2 + $0x50] sm:$0xff] %v6423
      %6456 = vst [vmem:[#allocation2 + $0x58] sm:$0xff] %v6424
      %6457 = vst [vmem:[#allocation2 + $0x60] sm:$0xff] %v6425
      %6458 = vst [vmem:[#allocation2 + $0x68] sm:$0xff] %v6426
      %6459 = vst [vmem:[#allocation2 + $0x70] sm:$0xff] %v6427
      %6460 = vst [vmem:[#allocation2 + $0x78] sm:$0xff] %v6428
      %6461 = vst [vmem:[#allocation2 + $0x80] sm:$0xff] %v6429
      %6462 = vst [vmem:[#allocation2 + $0x88] sm:$0xff] %v6430
      %6463 = vst [vmem:[#allocation2 + $0x90] sm:$0xff] %v6431
      %6464 = vst [vmem:[#allocation2 + $0x98] sm:$0xff] %v6432
      %6465 = vst [vmem:[#allocation2 + $0xa0] sm:$0xff] %v6433
      %6466 = vst [vmem:[#allocation2 + $0xa8] sm:$0xff] %v6434
      %6467 = vst [vmem:[#allocation2 + $0xb0] sm:$0xff] %v6435
      %6468 = vst [vmem:[#allocation2 + $0xb8] sm:$0xff] %v6436
      %6469 = vst [vmem:[#allocation2 + $0xc0] sm:$0xff] %v6437
      %6470 = vst [vmem:[#allocation2 + $0xc8] sm:$0xff] %v6438
      %6471 = vst [vmem:[#allocation2 + $0xd0] sm:$0xff] %v6439
      %6472 = vst [vmem:[#allocation2 + $0xd8] sm:$0xff] %v6440
      %6473 = vst [vmem:[#allocation2 + $0xe0] sm:$0xff] %v6441
      %6474 = vst [vmem:[#allocation2 + $0xe8] sm:$0xff] %v6442
      %6475 = vst [vmem:[#allocation2 + $0xf0] sm:$0xff] %v6443
      %6476 = vst [vmem:[#allocation2 + $0xf8] sm:$0xff] %v6444
      %v6477 = vld [vmem:[%s4659 + $0x2] sm:$0xff]
      %v6478 = vld [vmem:[%s4659 + $0xa] sm:$0xff]
      %v6479 = vld [vmem:[%s4659 + $0x1a] sm:$0xff]
      %v6480 = vld [vmem:[%s4659 + $0x22] sm:$0xff]
      %v6481 = vld [vmem:[%s4659 + $0x32] sm:$0xff]
      %v6482 = vld [vmem:[%s4659 + $0x3a] sm:$0xff]
      %v6483 = vld [vmem:[%s4659 + $0x4a] sm:$0xff]
      %v6484 = vld [vmem:[%s4659 + $0x52] sm:$0xff]
      %v6485 = vld [vmem:[%s4659 + $0x62] sm:$0xff]
      %v6486 = vld [vmem:[%s4659 + $0x6a] sm:$0xff]
      %v6487 = vld [vmem:[%s4659 + $0x7a] sm:$0xff]
      %v6488 = vld [vmem:[%s4659 + $0x82] sm:$0xff]
      %v6489 = vld [vmem:[%s4659 + $0x92] sm:$0xff]
      %v6490 = vld [vmem:[%s4659 + $0x9a] sm:$0xff]
      %v6491 = vld [vmem:[%s4659 + $0xaa] sm:$0xff]
      %v6492 = vld [vmem:[%s4659 + $0xb2] sm:$0xff]
      %v6493 = vld [vmem:[%s4659 + $0xc2] sm:$0xff]
      %v6494 = vld [vmem:[%s4659 + $0xca] sm:$0xff]
      %v6495 = vld [vmem:[%s4659 + $0xda] sm:$0xff]
      %v6496 = vld [vmem:[%s4659 + $0xe2] sm:$0xff]
      %v6497 = vld [vmem:[%s4659 + $0xf2] sm:$0xff]
      %v6498 = vld [vmem:[%s4659 + $0xfa] sm:$0xff]
      %v6499 = vld [vmem:[%s4659 + $0x10a] sm:$0xff]
      %v6500 = vld [vmem:[%s4659 + $0x112] sm:$0xff]
      %v6501 = vld [vmem:[%s4659 + $0x122] sm:$0xff]
      %v6502 = vld [vmem:[%s4659 + $0x12a] sm:$0xff]
      %v6503 = vld [vmem:[%s4659 + $0x13a] sm:$0xff]
      %v6504 = vld [vmem:[%s4659 + $0x142] sm:$0xff]
      %v6505 = vld [vmem:[%s4659 + $0x152] sm:$0xff]
      %v6506 = vld [vmem:[%s4659 + $0x15a] sm:$0xff]
      %v6507 = vld [vmem:[%s4659 + $0x16a] sm:$0xff]
      %v6508 = vld [vmem:[%s4659 + $0x172] sm:$0xff]
      %s6509 = scalar_lea.vmem %s6, 640
      %v6510 = vld [vmem:[%s6509] sm:$0xff]
      %v6511 = vld [vmem:[%s6509 + $0x8] sm:$0xff]
      %v6512 = vld [vmem:[%s6509 + $0x10] sm:$0xff]
      %v6513 = vld [vmem:[%s6509 + $0x18] sm:$0xff]
      %v6514 = vld [vmem:[%s6509 + $0x20] sm:$0xff]
      %v6515 = vld [vmem:[%s6509 + $0x28] sm:$0xff]
      %v6516 = vld [vmem:[%s6509 + $0x30] sm:$0xff]
      %v6517 = vld [vmem:[%s6509 + $0x38] sm:$0xff]
      %v6518 = vld [vmem:[%s6509 + $0x40] sm:$0xff]
      %v6519 = vld [vmem:[%s6509 + $0x48] sm:$0xff]
      %v6520 = vld [vmem:[%s6509 + $0x50] sm:$0xff]
      %v6521 = vld [vmem:[%s6509 + $0x58] sm:$0xff]
      %v6522 = vld [vmem:[%s6509 + $0x60] sm:$0xff]
      %v6523 = vld [vmem:[%s6509 + $0x68] sm:$0xff]
      %v6524 = vld [vmem:[%s6509 + $0x70] sm:$0xff]
      %v6525 = vld [vmem:[%s6509 + $0x78] sm:$0xff]
      %6526 = vmatprep.subr.mxu0 0.0
      %6527 = vmatpush1.msra.mxu0 %v6510
      %6528 = vmatprep.subr.mxu0 0.0
      %6529 = vmatpush1.msra.mxu0 %v6511
      %6530 = vmatprep.subr.mxu0 0.0
      %6531 = vmatpush1.msra.mxu0 %v6512
      %6532 = vmatprep.subr.mxu0 0.0
      %6533 = vmatpush1.msra.mxu0 %v6513
      %6534 = vmatprep.subr.mxu0 0.0
      %6535 = vmatpush1.msra.mxu0 %v6514
      %6536 = vmatprep.subr.mxu0 0.0
      %6537 = vmatpush1.msra.mxu0 %v6515
      %6538 = vmatprep.subr.mxu0 0.0
      %6539 = vmatpush1.msra.mxu0 %v6516
      %6540 = vmatprep.subr.mxu0 0.0
      %6541 = vmatpush1.msra.mxu0 %v6517
      %6542 = vmatprep.subr.mxu0 0.0
      %6543 = vmatpush1.msra.mxu0 %v6518
      %6544 = vmatprep.subr.mxu0 0.0
      %6545 = vmatpush1.msra.mxu0 %v6519
      %6546 = vmatprep.subr.mxu0 0.0
      %6547 = vmatpush1.msra.mxu0 %v6520
      %6548 = vmatprep.subr.mxu0 0.0
      %6549 = vmatpush1.msra.mxu0 %v6521
      %6550 = vmatprep.subr.mxu0 0.0
      %6551 = vmatpush1.msra.mxu0 %v6522
      %6552 = vmatprep.subr.mxu0 0.0
      %6553 = vmatpush1.msra.mxu0 %v6523
      %6554 = vmatprep.subr.mxu0 0.0
      %6555 = vmatpush1.msra.mxu0 %v6524
      %6556 = vmatprep.subr.mxu0 0.0
      %6557 = vmatpush1.msra.mxu0 %v6525
      %6558 = vmatprep.subr.mxu0 0.0
      %6559 = vmatpush1.msra.mxu0 0.0
      %6560 = vmatprep.subr.mxu0 0.0
      %6561 = vmatpush1.msra.mxu0 0.0
      %6562 = vmatprep.subr.mxu0 0.0
      %6563 = vmatpush1.msra.mxu0 0.0
      %6564 = vmatprep.subr.mxu0 0.0
      %6565 = vmatpush1.msra.mxu0 0.0
      %6566 = vmatprep.subr.mxu0 0.0
      %6567 = vmatpush1.msra.mxu0 0.0
      %6568 = vmatprep.subr.mxu0 0.0
      %6569 = vmatpush1.msra.mxu0 0.0
      %6570 = vmatprep.subr.mxu0 0.0
      %6571 = vmatpush1.msra.mxu0 0.0
      %6572 = vmatprep.subr.mxu0 0.0
      %6573 = vmatpush1.msra.mxu0 0.0
      %6574 = vmatprep.subr.mxu0 0.0
      %6575 = vmatpush1.msra.mxu0 0.0
      %6576 = vmatprep.subr.mxu0 0.0
      %6577 = vmatpush1.msra.mxu0 0.0
      %6578 = vmatprep.subr.mxu0 0.0
      %6579 = vmatpush1.msra.mxu0 0.0
      %6580 = vmatprep.subr.mxu0 0.0
      %6581 = vmatpush1.msra.mxu0 0.0
      %6582 = vmatprep.subr.mxu0 0.0
      %6583 = vmatpush1.msra.mxu0 0.0
      %6584 = vmatprep.subr.mxu0 0.0
      %6585 = vmatpush1.msra.mxu0 0.0
      %6586 = vmatprep.subr.mxu0 0.0
      %6587 = vmatpush1.msra.mxu0 0.0
      %6588 = vmatprep.subr.mxu0 0.0
      %6589 = vmatpush1.msra.mxu0 0.0
      %6590 = vmatprep.mubr.f32.mxu0 0.0
      %6591 = vmatmul.mubr.f32.gmra.mrb[0].mxu0 %v6477
      %v6592 = vpop.f32.mrb[0].mxu0
      %v6593 = vadd.f32 0.0, %v6592
      %v6594 = vpop.f32.mrb[0].mxu0
      %6595 = vmatprep.mubr.f32.mxu0 0.0
      %6596 = vmatmul.mubr.f32.gmra.mrb[0].mxu0 %v6478
      %v6597 = vpop.f32.mrb[0].mxu0
      %v6598 = vadd.f32 0.0, %v6597
      %v6599 = vpop.f32.mrb[0].mxu0
      %6600 = vmatprep.mubr.f32.mxu0 0.0
      %6601 = vmatmul.mubr.f32.gmra.mrb[0].mxu0 %v6479
      %v6602 = vpop.f32.mrb[0].mxu0
      %v6603 = vadd.f32 0.0, %v6602
      %v6604 = vpop.f32.mrb[0].mxu0
      %6605 = vmatprep.mubr.f32.mxu0 0.0
      %6606 = vmatmul.mubr.f32.gmra.mrb[0].mxu0 %v6480
      %v6607 = vpop.f32.mrb[0].mxu0
      %v6608 = vadd.f32 0.0, %v6607
      %v6609 = vpop.f32.mrb[0].mxu0
      %6610 = vmatprep.mubr.f32.mxu0 0.0
      %6611 = vmatmul.mubr.f32.gmra.mrb[0].mxu0 %v6481
      %v6612 = vpop.f32.mrb[0].mxu0
      %v6613 = vadd.f32 0.0, %v6612
      %v6614 = vpop.f32.mrb[0].mxu0
      %6615 = vmatprep.mubr.f32.mxu0 0.0
      %6616 = vmatmul.mubr.f32.gmra.mrb[0].mxu0 %v6482
      %v6617 = vpop.f32.mrb[0].mxu0
      %v6618 = vadd.f32 0.0, %v6617
      %v6619 = vpop.f32.mrb[0].mxu0
      %6620 = vmatprep.mubr.f32.mxu0 0.0
      %6621 = vmatmul.mubr.f32.gmra.mrb[0].mxu0 %v6483
      %v6622 = vpop.f32.mrb[0].mxu0
      %v6623 = vadd.f32 0.0, %v6622
      %v6624 = vpop.f32.mrb[0].mxu0
      %6625 = vmatprep.mubr.f32.mxu0 0.0
      %6626 = vmatmul.mubr.f32.gmra.mrb[0].mxu0 %v6484
      %v6627 = vpop.f32.mrb[0].mxu0
      %v6628 = vadd.f32 0.0, %v6627
      %v6629 = vpop.f32.mrb[0].mxu0
      %6630 = vmatprep.mubr.f32.mxu0 0.0
      %6631 = vmatmul.mubr.f32.gmra.mrb[0].mxu0 %v6485
      %v6632 = vpop.f32.mrb[0].mxu0
      %v6633 = vadd.f32 0.0, %v6632
      %v6634 = vpop.f32.mrb[0].mxu0
      %6635 = vmatprep.mubr.f32.mxu0 0.0
      %6636 = vmatmul.mubr.f32.gmra.mrb[0].mxu0 %v6486
      %v6637 = vpop.f32.mrb[0].mxu0
      %v6638 = vadd.f32 0.0, %v6637
      %v6639 = vpop.f32.mrb[0].mxu0
      %6640 = vmatprep.mubr.f32.mxu0 0.0
      %6641 = vmatmul.mubr.f32.gmra.mrb[0].mxu0 %v6487
      %v6642 = vpop.f32.mrb[0].mxu0
      %v6643 = vadd.f32 0.0, %v6642
      %v6644 = vpop.f32.mrb[0].mxu0
      %6645 = vmatprep.mubr.f32.mxu0 0.0
      %6646 = vmatmul.mubr.f32.gmra.mrb[0].mxu0 %v6488
      %v6647 = vpop.f32.mrb[0].mxu0
      %v6648 = vadd.f32 0.0, %v6647
      %v6649 = vpop.f32.mrb[0].mxu0
      %6650 = vmatprep.mubr.f32.mxu0 0.0
      %6651 = vmatmul.mubr.f32.gmra.mrb[0].mxu0 %v6489
      %v6652 = vpop.f32.mrb[0].mxu0
      %v6653 = vadd.f32 0.0, %v6652
      %v6654 = vpop.f32.mrb[0].mxu0
      %6655 = vmatprep.mubr.f32.mxu0 0.0
      %6656 = vmatmul.mubr.f32.gmra.mrb[0].mxu0 %v6490
      %v6657 = vpop.f32.mrb[0].mxu0
      %v6658 = vadd.f32 0.0, %v6657
      %v6659 = vpop.f32.mrb[0].mxu0
      %6660 = vmatprep.mubr.f32.mxu0 0.0
      %6661 = vmatmul.mubr.f32.gmra.mrb[0].mxu0 %v6491
      %v6662 = vpop.f32.mrb[0].mxu0
      %v6663 = vadd.f32 0.0, %v6662
      %v6664 = vpop.f32.mrb[0].mxu0
      %6665 = vmatprep.mubr.f32.mxu0 0.0
      %6666 = vmatmul.mubr.f32.gmra.mrb[0].mxu0 %v6492
      %v6667 = vpop.f32.mrb[0].mxu0
      %v6668 = vadd.f32 0.0, %v6667
      %v6669 = vpop.f32.mrb[0].mxu0
      %6670 = vmatprep.mubr.f32.mxu0 0.0
      %6671 = vmatmul.mubr.f32.gmra.mrb[0].mxu0 %v6493
      %v6672 = vpop.f32.mrb[0].mxu0
      %v6673 = vadd.f32 0.0, %v6672
      %v6674 = vpop.f32.mrb[0].mxu0
      %6675 = vmatprep.mubr.f32.mxu0 0.0
      %6676 = vmatmul.mubr.f32.gmra.mrb[0].mxu0 %v6494
      %v6677 = vpop.f32.mrb[0].mxu0
      %v6678 = vadd.f32 0.0, %v6677
      %v6679 = vpop.f32.mrb[0].mxu0
      %6680 = vmatprep.mubr.f32.mxu0 0.0
      %6681 = vmatmul.mubr.f32.gmra.mrb[0].mxu0 %v6495
      %v6682 = vpop.f32.mrb[0].mxu0
      %v6683 = vadd.f32 0.0, %v6682
      %v6684 = vpop.f32.mrb[0].mxu0
      %6685 = vmatprep.mubr.f32.mxu0 0.0
      %6686 = vmatmul.mubr.f32.gmra.mrb[0].mxu0 %v6496
      %v6687 = vpop.f32.mrb[0].mxu0
      %v6688 = vadd.f32 0.0, %v6687
      %v6689 = vpop.f32.mrb[0].mxu0
      %6690 = vmatprep.mubr.f32.mxu0 0.0
      %6691 = vmatmul.mubr.f32.gmra.mrb[0].mxu0 %v6497
      %v6692 = vpop.f32.mrb[0].mxu0
      %v6693 = vadd.f32 0.0, %v6692
      %v6694 = vpop.f32.mrb[0].mxu0
      %6695 = vmatprep.mubr.f32.mxu0 0.0
      %6696 = vmatmul.mubr.f32.gmra.mrb[0].mxu0 %v6498
      %v6697 = vpop.f32.mrb[0].mxu0
      %v6698 = vadd.f32 0.0, %v6697
      %v6699 = vpop.f32.mrb[0].mxu0
      %6700 = vmatprep.mubr.f32.mxu0 0.0
      %6701 = vmatmul.mubr.f32.gmra.mrb[0].mxu0 %v6499
      %v6702 = vpop.f32.mrb[0].mxu0
      %v6703 = vadd.f32 0.0, %v6702
      %v6704 = vpop.f32.mrb[0].mxu0
      %6705 = vmatprep.mubr.f32.mxu0 0.0
      %6706 = vmatmul.mubr.f32.gmra.mrb[0].mxu0 %v6500
      %v6707 = vpop.f32.mrb[0].mxu0
      %v6708 = vadd.f32 0.0, %v6707
      %v6709 = vpop.f32.mrb[0].mxu0
      %6710 = vmatprep.mubr.f32.mxu0 0.0
      %6711 = vmatmul.mubr.f32.gmra.mrb[0].mxu0 %v6501
      %v6712 = vpop.f32.mrb[0].mxu0
      %v6713 = vadd.f32 0.0, %v6712
      %v6714 = vpop.f32.mrb[0].mxu0
      %6715 = vmatprep.mubr.f32.mxu0 0.0
      %6716 = vmatmul.mubr.f32.gmra.mrb[0].mxu0 %v6502
      %v6717 = vpop.f32.mrb[0].mxu0
      %v6718 = vadd.f32 0.0, %v6717
      %v6719 = vpop.f32.mrb[0].mxu0
      %6720 = vmatprep.mubr.f32.mxu0 0.0
      %6721 = vmatmul.mubr.f32.gmra.mrb[0].mxu0 %v6503
      %v6722 = vpop.f32.mrb[0].mxu0
      %v6723 = vadd.f32 0.0, %v6722
      %v6724 = vpop.f32.mrb[0].mxu0
      %6725 = vmatprep.mubr.f32.mxu0 0.0
      %6726 = vmatmul.mubr.f32.gmra.mrb[0].mxu0 %v6504
      %v6727 = vpop.f32.mrb[0].mxu0
      %v6728 = vadd.f32 0.0, %v6727
      %v6729 = vpop.f32.mrb[0].mxu0
      %6730 = vmatprep.mubr.f32.mxu0 0.0
      %6731 = vmatmul.mubr.f32.gmra.mrb[0].mxu0 %v6505
      %v6732 = vpop.f32.mrb[0].mxu0
      %v6733 = vadd.f32 0.0, %v6732
      %v6734 = vpop.f32.mrb[0].mxu0
      %6735 = vmatprep.mubr.f32.mxu0 0.0
      %6736 = vmatmul.mubr.f32.gmra.mrb[0].mxu0 %v6506
      %v6737 = vpop.f32.mrb[0].mxu0
      %v6738 = vadd.f32 0.0, %v6737
      %v6739 = vpop.f32.mrb[0].mxu0
      %6740 = vmatprep.mubr.f32.mxu0 0.0
      %6741 = vmatmul.mubr.f32.gmra.mrb[0].mxu0 %v6507
      %v6742 = vpop.f32.mrb[0].mxu0
      %v6743 = vadd.f32 0.0, %v6742
      %v6744 = vpop.f32.mrb[0].mxu0
      %6745 = vmatprep.mubr.f32.mxu0 0.0
      %6746 = vmatmul.mubr.f32.gmra.mrb[0].mxu0 %v6508
      %v6747 = vpop.f32.mrb[0].mxu0
      %v6748 = vadd.f32 0.0, %v6747
      %v6749 = vpop.f32.mrb[0].mxu0
      %6750 = vdwg.mxu0
      %v6751 = vld [vmem:[#allocation2] sm:$0xff]
      %v6752 = vld [vmem:[#allocation2 + $0x8] sm:$0xff]
      %v6753 = vld [vmem:[#allocation2 + $0x10] sm:$0xff]
      %v6754 = vld [vmem:[#allocation2 + $0x18] sm:$0xff]
      %v6755 = vld [vmem:[#allocation2 + $0x20] sm:$0xff]
      %v6756 = vld [vmem:[#allocation2 + $0x28] sm:$0xff]
      %v6757 = vld [vmem:[#allocation2 + $0x30] sm:$0xff]
      %v6758 = vld [vmem:[#allocation2 + $0x38] sm:$0xff]
      %v6759 = vld [vmem:[#allocation2 + $0x40] sm:$0xff]
      %v6760 = vld [vmem:[#allocation2 + $0x48] sm:$0xff]
      %v6761 = vld [vmem:[#allocation2 + $0x50] sm:$0xff]
      %v6762 = vld [vmem:[#allocation2 + $0x58] sm:$0xff]
      %v6763 = vld [vmem:[#allocation2 + $0x60] sm:$0xff]
      %v6764 = vld [vmem:[#allocation2 + $0x68] sm:$0xff]
      %v6765 = vld [vmem:[#allocation2 + $0x70] sm:$0xff]
      %v6766 = vld [vmem:[#allocation2 + $0x78] sm:$0xff]
      %v6767 = vld [vmem:[#allocation2 + $0x80] sm:$0xff]
      %v6768 = vld [vmem:[#allocation2 + $0x88] sm:$0xff]
      %v6769 = vld [vmem:[#allocation2 + $0x90] sm:$0xff]
      %v6770 = vld [vmem:[#allocation2 + $0x98] sm:$0xff]
      %v6771 = vld [vmem:[#allocation2 + $0xa0] sm:$0xff]
      %v6772 = vld [vmem:[#allocation2 + $0xa8] sm:$0xff]
      %v6773 = vld [vmem:[#allocation2 + $0xb0] sm:$0xff]
      %v6774 = vld [vmem:[#allocation2 + $0xb8] sm:$0xff]
      %v6775 = vld [vmem:[#allocation2 + $0xc0] sm:$0xff]
      %v6776 = vld [vmem:[#allocation2 + $0xc8] sm:$0xff]
      %v6777 = vld [vmem:[#allocation2 + $0xd0] sm:$0xff]
      %v6778 = vld [vmem:[#allocation2 + $0xd8] sm:$0xff]
      %v6779 = vld [vmem:[#allocation2 + $0xe0] sm:$0xff]
      %v6780 = vld [vmem:[#allocation2 + $0xe8] sm:$0xff]
      %v6781 = vld [vmem:[#allocation2 + $0xf0] sm:$0xff]
      %v6782 = vld [vmem:[#allocation2 + $0xf8] sm:$0xff]
      %v6783 = vadd.f32 %v6751, %v6593
      %v6784 = vadd.f32 %v6752, %v6598
      %v6785 = vadd.f32 %v6753, %v6603
      %v6786 = vadd.f32 %v6754, %v6608
      %v6787 = vadd.f32 %v6755, %v6613
      %v6788 = vadd.f32 %v6756, %v6618
      %v6789 = vadd.f32 %v6757, %v6623
      %v6790 = vadd.f32 %v6758, %v6628
      %v6791 = vadd.f32 %v6759, %v6633
      %v6792 = vadd.f32 %v6760, %v6638
      %v6793 = vadd.f32 %v6761, %v6643
      %v6794 = vadd.f32 %v6762, %v6648
      %v6795 = vadd.f32 %v6763, %v6653
      %v6796 = vadd.f32 %v6764, %v6658
      %v6797 = vadd.f32 %v6765, %v6663
      %v6798 = vadd.f32 %v6766, %v6668
      %v6799 = vadd.f32 %v6767, %v6673
      %v6800 = vadd.f32 %v6768, %v6678
      %v6801 = vadd.f32 %v6769, %v6683
      %v6802 = vadd.f32 %v6770, %v6688
      %v6803 = vadd.f32 %v6771, %v6693
      %v6804 = vadd.f32 %v6772, %v6698
      %v6805 = vadd.f32 %v6773, %v6703
      %v6806 = vadd.f32 %v6774, %v6708
      %v6807 = vadd.f32 %v6775, %v6713
      %v6808 = vadd.f32 %v6776, %v6718
      %v6809 = vadd.f32 %v6777, %v6723
      %v6810 = vadd.f32 %v6778, %v6728
      %v6811 = vadd.f32 %v6779, %v6733
      %v6812 = vadd.f32 %v6780, %v6738
      %v6813 = vadd.f32 %v6781, %v6743
      %v6814 = vadd.f32 %v6782, %v6748
      %6815 = vst [vmem:[#allocation2] sm:$0xff] %v6783
      %6816 = vst [vmem:[#allocation2 + $0x8] sm:$0xff] %v6784
      %6817 = vst [vmem:[#allocation2 + $0x10] sm:$0xff] %v6785
      %6818 = vst [vmem:[#allocation2 + $0x18] sm:$0xff] %v6786
      %6819 = vst [vmem:[#allocation2 + $0x20] sm:$0xff] %v6787
      %6820 = vst [vmem:[#allocation2 + $0x28] sm:$0xff] %v6788
      %6821 = vst [vmem:[#allocation2 + $0x30] sm:$0xff] %v6789
      %6822 = vst [vmem:[#allocation2 + $0x38] sm:$0xff] %v6790
      %6823 = vst [vmem:[#allocation2 + $0x40] sm:$0xff] %v6791
      %6824 = vst [vmem:[#allocation2 + $0x48] sm:$0xff] %v6792
      %6825 = vst [vmem:[#allocation2 + $0x50] sm:$0xff] %v6793
      %6826 = vst [vmem:[#allocation2 + $0x58] sm:$0xff] %v6794
      %6827 = vst [vmem:[#allocation2 + $0x60] sm:$0xff] %v6795
      %6828 = vst [vmem:[#allocation2 + $0x68] sm:$0xff] %v6796
      %6829 = vst [vmem:[#allocation2 + $0x70] sm:$0xff] %v6797
      %6830 = vst [vmem:[#allocation2 + $0x78] sm:$0xff] %v6798
      %6831 = vst [vmem:[#allocation2 + $0x80] sm:$0xff] %v6799
      %6832 = vst [vmem:[#allocation2 + $0x88] sm:$0xff] %v6800
      %6833 = vst [vmem:[#allocation2 + $0x90] sm:$0xff] %v6801
      %6834 = vst [vmem:[#allocation2 + $0x98] sm:$0xff] %v6802
      %6835 = vst [vmem:[#allocation2 + $0xa0] sm:$0xff] %v6803
      %6836 = vst [vmem:[#allocation2 + $0xa8] sm:$0xff] %v6804
      %6837 = vst [vmem:[#allocation2 + $0xb0] sm:$0xff] %v6805
      %6838 = vst [vmem:[#allocation2 + $0xb8] sm:$0xff] %v6806
      %6839 = vst [vmem:[#allocation2 + $0xc0] sm:$0xff] %v6807
      %6840 = vst [vmem:[#allocation2 + $0xc8] sm:$0xff] %v6808
      %6841 = vst [vmem:[#allocation2 + $0xd0] sm:$0xff] %v6809
      %6842 = vst [vmem:[#allocation2 + $0xd8] sm:$0xff] %v6810
      %6843 = vst [vmem:[#allocation2 + $0xe0] sm:$0xff] %v6811
      %6844 = vst [vmem:[#allocation2 + $0xe8] sm:$0xff] %v6812
      %6845 = vst [vmem:[#allocation2 + $0xf0] sm:$0xff] %v6813
      %6846 = vst [vmem:[#allocation2 + $0xf8] sm:$0xff] %v6814
      %s6847 = scalar_lea.vmem [#allocation3], 48
      %v6848 = vld [vmem:[%s6847] sm:$0xff]
      %v6849 = vld [vmem:[%s6847 + $0x8] sm:$0xff]
      %v6850 = vld [vmem:[%s6847 + $0x18] sm:$0xff]
      %v6851 = vld [vmem:[%s6847 + $0x20] sm:$0xff]
      %v6852 = vld [vmem:[%s6847 + $0x30] sm:$0xff]
      %v6853 = vld [vmem:[%s6847 + $0x38] sm:$0xff]
      %v6854 = vld [vmem:[%s6847 + $0x48] sm:$0xff]
      %v6855 = vld [vmem:[%s6847 + $0x50] sm:$0xff]
      %v6856 = vld [vmem:[%s6847 + $0x60] sm:$0xff]
      %v6857 = vld [vmem:[%s6847 + $0x68] sm:$0xff]
      %v6858 = vld [vmem:[%s6847 + $0x78] sm:$0xff]
      %v6859 = vld [vmem:[%s6847 + $0x80] sm:$0xff]
      %v6860 = vld [vmem:[%s6847 + $0x90] sm:$0xff]
      %v6861 = vld [vmem:[%s6847 + $0x98] sm:$0xff]
      %v6862 = vld [vmem:[%s6847 + $0xa8] sm:$0xff]
      %v6863 = vld [vmem:[%s6847 + $0xb0] sm:$0xff]
      %v6864 = vld [vmem:[%s6847 + $0xc0] sm:$0xff]
      %v6865 = vld [vmem:[%s6847 + $0xc8] sm:$0xff]
      %v6866 = vld [vmem:[%s6847 + $0xd8] sm:$0xff]
      %v6867 = vld [vmem:[%s6847 + $0xe0] sm:$0xff]
      %v6868 = vld [vmem:[%s6847 + $0xf0] sm:$0xff]
      %v6869 = vld [vmem:[%s6847 + $0xf8] sm:$0xff]
      %v6870 = vld [vmem:[%s6847 + $0x108] sm:$0xff]
      %v6871 = vld [vmem:[%s6847 + $0x110] sm:$0xff]
      %v6872 = vld [vmem:[%s6847 + $0x120] sm:$0xff]
      %v6873 = vld [vmem:[%s6847 + $0x128] sm:$0xff]
      %v6874 = vld [vmem:[%s6847 + $0x138] sm:$0xff]
      %v6875 = vld [vmem:[%s6847 + $0x140] sm:$0xff]
      %v6876 = vld [vmem:[%s6847 + $0x150] sm:$0xff]
      %v6877 = vld [vmem:[%s6847 + $0x158] sm:$0xff]
      %v6878 = vld [vmem:[%s6847 + $0x168] sm:$0xff]
      %v6879 = vld [vmem:[%s6847 + $0x170] sm:$0xff]
      %s6880 = scalar_lea.vmem %s6, 768
      %v6881 = vld [vmem:[%s6880] sm:$0xff]
      %v6882 = vld [vmem:[%s6880 + $0x8] sm:$0xff]
      %v6883 = vld [vmem:[%s6880 + $0x10] sm:$0xff]
      %v6884 = vld [vmem:[%s6880 + $0x18] sm:$0xff]
      %v6885 = vld [vmem:[%s6880 + $0x20] sm:$0xff]
      %v6886 = vld [vmem:[%s6880 + $0x28] sm:$0xff]
      %v6887 = vld [vmem:[%s6880 + $0x30] sm:$0xff]
      %v6888 = vld [vmem:[%s6880 + $0x38] sm:$0xff]
      %v6889 = vld [vmem:[%s6880 + $0x40] sm:$0xff]
      %v6890 = vld [vmem:[%s6880 + $0x48] sm:$0xff]
      %v6891 = vld [vmem:[%s6880 + $0x50] sm:$0xff]
      %v6892 = vld [vmem:[%s6880 + $0x58] sm:$0xff]
      %v6893 = vld [vmem:[%s6880 + $0x60] sm:$0xff]
      %v6894 = vld [vmem:[%s6880 + $0x68] sm:$0xff]
      %v6895 = vld [vmem:[%s6880 + $0x70] sm:$0xff]
      %v6896 = vld [vmem:[%s6880 + $0x78] sm:$0xff]
      %6897 = vmatprep.subr.mxu0 0.0
      %6898 = vmatpush1.msra.mxu0 %v6881
      %6899 = vmatprep.subr.mxu0 0.0
      %6900 = vmatpush1.msra.mxu0 %v6882
      %6901 = vmatprep.subr.mxu0 0.0
      %6902 = vmatpush1.msra.mxu0 %v6883
      %6903 = vmatprep.subr.mxu0 0.0
      %6904 = vmatpush1.msra.mxu0 %v6884
      %6905 = vmatprep.subr.mxu0 0.0
      %6906 = vmatpush1.msra.mxu0 %v6885
      %6907 = vmatprep.subr.mxu0 0.0
      %6908 = vmatpush1.msra.mxu0 %v6886
      %6909 = vmatprep.subr.mxu0 0.0
      %6910 = vmatpush1.msra.mxu0 %v6887
      %6911 = vmatprep.subr.mxu0 0.0
      %6912 = vmatpush1.msra.mxu0 %v6888
      %6913 = vmatprep.subr.mxu0 0.0
      %6914 = vmatpush1.msra.mxu0 %v6889
      %6915 = vmatprep.subr.mxu0 0.0
      %6916 = vmatpush1.msra.mxu0 %v6890
      %6917 = vmatprep.subr.mxu0 0.0
      %6918 = vmatpush1.msra.mxu0 %v6891
      %6919 = vmatprep.subr.mxu0 0.0
      %6920 = vmatpush1.msra.mxu0 %v6892
      %6921 = vmatprep.subr.mxu0 0.0
      %6922 = vmatpush1.msra.mxu0 %v6893
      %6923 = vmatprep.subr.mxu0 0.0
      %6924 = vmatpush1.msra.mxu0 %v6894
      %6925 = vmatprep.subr.mxu0 0.0
      %6926 = vmatpush1.msra.mxu0 %v6895
      %6927 = vmatprep.subr.mxu0 0.0
      %6928 = vmatpush1.msra.mxu0 %v6896
      %6929 = vmatprep.subr.mxu0 0.0
      %6930 = vmatpush1.msra.mxu0 0.0
      %6931 = vmatprep.subr.mxu0 0.0
      %6932 = vmatpush1.msra.mxu0 0.0
      %6933 = vmatprep.subr.mxu0 0.0
      %6934 = vmatpush1.msra.mxu0 0.0
      %6935 = vmatprep.subr.mxu0 0.0
      %6936 = vmatpush1.msra.mxu0 0.0
      %6937 = vmatprep.subr.mxu0 0.0
      %6938 = vmatpush1.msra.mxu0 0.0
      %6939 = vmatprep.subr.mxu0 0.0
      %6940 = vmatpush1.msra.mxu0 0.0
      %6941 = vmatprep.subr.mxu0 0.0
      %6942 = vmatpush1.msra.mxu0 0.0
      %6943 = vmatprep.subr.mxu0 0.0
      %6944 = vmatpush1.msra.mxu0 0.0
      %6945 = vmatprep.subr.mxu0 0.0
      %6946 = vmatpush1.msra.mxu0 0.0
      %6947 = vmatprep.subr.mxu0 0.0
      %6948 = vmatpush1.msra.mxu0 0.0
      %6949 = vmatprep.subr.mxu0 0.0
      %6950 = vmatpush1.msra.mxu0 0.0
      %6951 = vmatprep.subr.mxu0 0.0
      %6952 = vmatpush1.msra.mxu0 0.0
      %6953 = vmatprep.subr.mxu0 0.0
      %6954 = vmatpush1.msra.mxu0 0.0
      %6955 = vmatprep.subr.mxu0 0.0
      %6956 = vmatpush1.msra.mxu0 0.0
      %6957 = vmatprep.subr.mxu0 0.0
      %6958 = vmatpush1.msra.mxu0 0.0
      %6959 = vmatprep.subr.mxu0 0.0
      %6960 = vmatpush1.msra.mxu0 0.0
      %6961 = vmatprep.mubr.f32.mxu0 0.0
      %6962 = vmatmul.mubr.f32.gmra.mrb[0].mxu0 %v6848
      %v6963 = vpop.f32.mrb[0].mxu0
      %v6964 = vadd.f32 0.0, %v6963
      %v6965 = vpop.f32.mrb[0].mxu0
      %6966 = vmatprep.mubr.f32.mxu0 0.0
      %6967 = vmatmul.mubr.f32.gmra.mrb[0].mxu0 %v6849
      %v6968 = vpop.f32.mrb[0].mxu0
      %v6969 = vadd.f32 0.0, %v6968
      %v6970 = vpop.f32.mrb[0].mxu0
      %6971 = vmatprep.mubr.f32.mxu0 0.0
      %6972 = vmatmul.mubr.f32.gmra.mrb[0].mxu0 %v6850
      %v6973 = vpop.f32.mrb[0].mxu0
      %v6974 = vadd.f32 0.0, %v6973
      %v6975 = vpop.f32.mrb[0].mxu0
      %6976 = vmatprep.mubr.f32.mxu0 0.0
      %6977 = vmatmul.mubr.f32.gmra.mrb[0].mxu0 %v6851
      %v6978 = vpop.f32.mrb[0].mxu0
      %v6979 = vadd.f32 0.0, %v6978
      %v6980 = vpop.f32.mrb[0].mxu0
      %6981 = vmatprep.mubr.f32.mxu0 0.0
      %6982 = vmatmul.mubr.f32.gmra.mrb[0].mxu0 %v6852
      %v6983 = vpop.f32.mrb[0].mxu0
      %v6984 = vadd.f32 0.0, %v6983
      %v6985 = vpop.f32.mrb[0].mxu0
      %6986 = vmatprep.mubr.f32.mxu0 0.0
      %6987 = vmatmul.mubr.f32.gmra.mrb[0].mxu0 %v6853
      %v6988 = vpop.f32.mrb[0].mxu0
      %v6989 = vadd.f32 0.0, %v6988
      %v6990 = vpop.f32.mrb[0].mxu0
      %6991 = vmatprep.mubr.f32.mxu0 0.0
      %6992 = vmatmul.mubr.f32.gmra.mrb[0].mxu0 %v6854
      %v6993 = vpop.f32.mrb[0].mxu0
      %v6994 = vadd.f32 0.0, %v6993
      %v6995 = vpop.f32.mrb[0].mxu0
      %6996 = vmatprep.mubr.f32.mxu0 0.0
      %6997 = vmatmul.mubr.f32.gmra.mrb[0].mxu0 %v6855
      %v6998 = vpop.f32.mrb[0].mxu0
      %v6999 = vadd.f32 0.0, %v6998
      %v7000 = vpop.f32.mrb[0].mxu0
      %7001 = vmatprep.mubr.f32.mxu0 0.0
      %7002 = vmatmul.mubr.f32.gmra.mrb[0].mxu0 %v6856
      %v7003 = vpop.f32.mrb[0].mxu0
      %v7004 = vadd.f32 0.0, %v7003
      %v7005 = vpop.f32.mrb[0].mxu0
      %7006 = vmatprep.mubr.f32.mxu0 0.0
      %7007 = vmatmul.mubr.f32.gmra.mrb[0].mxu0 %v6857
      %v7008 = vpop.f32.mrb[0].mxu0
      %v7009 = vadd.f32 0.0, %v7008
      %v7010 = vpop.f32.mrb[0].mxu0
      %7011 = vmatprep.mubr.f32.mxu0 0.0
      %7012 = vmatmul.mubr.f32.gmra.mrb[0].mxu0 %v6858
      %v7013 = vpop.f32.mrb[0].mxu0
      %v7014 = vadd.f32 0.0, %v7013
      %v7015 = vpop.f32.mrb[0].mxu0
      %7016 = vmatprep.mubr.f32.mxu0 0.0
      %7017 = vmatmul.mubr.f32.gmra.mrb[0].mxu0 %v6859
      %v7018 = vpop.f32.mrb[0].mxu0
      %v7019 = vadd.f32 0.0, %v7018
      %v7020 = vpop.f32.mrb[0].mxu0
      %7021 = vmatprep.mubr.f32.mxu0 0.0
      %7022 = vmatmul.mubr.f32.gmra.mrb[0].mxu0 %v6860
      %v7023 = vpop.f32.mrb[0].mxu0
      %v7024 = vadd.f32 0.0, %v7023
      %v7025 = vpop.f32.mrb[0].mxu0
      %7026 = vmatprep.mubr.f32.mxu0 0.0
      %7027 = vmatmul.mubr.f32.gmra.mrb[0].mxu0 %v6861
      %v7028 = vpop.f32.mrb[0].mxu0
      %v7029 = vadd.f32 0.0, %v7028
      %v7030 = vpop.f32.mrb[0].mxu0
      %7031 = vmatprep.mubr.f32.mxu0 0.0
      %7032 = vmatmul.mubr.f32.gmra.mrb[0].mxu0 %v6862
      %v7033 = vpop.f32.mrb[0].mxu0
      %v7034 = vadd.f32 0.0, %v7033
      %v7035 = vpop.f32.mrb[0].mxu0
      %7036 = vmatprep.mubr.f32.mxu0 0.0
      %7037 = vmatmul.mubr.f32.gmra.mrb[0].mxu0 %v6863
      %v7038 = vpop.f32.mrb[0].mxu0
      %v7039 = vadd.f32 0.0, %v7038
      %v7040 = vpop.f32.mrb[0].mxu0
      %7041 = vmatprep.mubr.f32.mxu0 0.0
      %7042 = vmatmul.mubr.f32.gmra.mrb[0].mxu0 %v6864
      %v7043 = vpop.f32.mrb[0].mxu0
      %v7044 = vadd.f32 0.0, %v7043
      %v7045 = vpop.f32.mrb[0].mxu0
      %7046 = vmatprep.mubr.f32.mxu0 0.0
      %7047 = vmatmul.mubr.f32.gmra.mrb[0].mxu0 %v6865
      %v7048 = vpop.f32.mrb[0].mxu0
      %v7049 = vadd.f32 0.0, %v7048
      %v7050 = vpop.f32.mrb[0].mxu0
      %7051 = vmatprep.mubr.f32.mxu0 0.0
      %7052 = vmatmul.mubr.f32.gmra.mrb[0].mxu0 %v6866
      %v7053 = vpop.f32.mrb[0].mxu0
      %v7054 = vadd.f32 0.0, %v7053
      %v7055 = vpop.f32.mrb[0].mxu0
      %7056 = vmatprep.mubr.f32.mxu0 0.0
      %7057 = vmatmul.mubr.f32.gmra.mrb[0].mxu0 %v6867
      %v7058 = vpop.f32.mrb[0].mxu0
      %v7059 = vadd.f32 0.0, %v7058
      %v7060 = vpop.f32.mrb[0].mxu0
      %7061 = vmatprep.mubr.f32.mxu0 0.0
      %7062 = vmatmul.mubr.f32.gmra.mrb[0].mxu0 %v6868
      %v7063 = vpop.f32.mrb[0].mxu0
      %v7064 = vadd.f32 0.0, %v7063
      %v7065 = vpop.f32.mrb[0].mxu0
      %7066 = vmatprep.mubr.f32.mxu0 0.0
      %7067 = vmatmul.mubr.f32.gmra.mrb[0].mxu0 %v6869
      %v7068 = vpop.f32.mrb[0].mxu0
      %v7069 = vadd.f32 0.0, %v7068
      %v7070 = vpop.f32.mrb[0].mxu0
      %7071 = vmatprep.mubr.f32.mxu0 0.0
      %7072 = vmatmul.mubr.f32.gmra.mrb[0].mxu0 %v6870
      %v7073 = vpop.f32.mrb[0].mxu0
      %v7074 = vadd.f32 0.0, %v7073
      %v7075 = vpop.f32.mrb[0].mxu0
      %7076 = vmatprep.mubr.f32.mxu0 0.0
      %7077 = vmatmul.mubr.f32.gmra.mrb[0].mxu0 %v6871
      %v7078 = vpop.f32.mrb[0].mxu0
      %v7079 = vadd.f32 0.0, %v7078
      %v7080 = vpop.f32.mrb[0].mxu0
      %7081 = vmatprep.mubr.f32.mxu0 0.0
      %7082 = vmatmul.mubr.f32.gmra.mrb[0].mxu0 %v6872
      %v7083 = vpop.f32.mrb[0].mxu0
      %v7084 = vadd.f32 0.0, %v7083
      %v7085 = vpop.f32.mrb[0].mxu0
      %7086 = vmatprep.mubr.f32.mxu0 0.0
      %7087 = vmatmul.mubr.f32.gmra.mrb[0].mxu0 %v6873
      %v7088 = vpop.f32.mrb[0].mxu0
      %v7089 = vadd.f32 0.0, %v7088
      %v7090 = vpop.f32.mrb[0].mxu0
      %7091 = vmatprep.mubr.f32.mxu0 0.0
      %7092 = vmatmul.mubr.f32.gmra.mrb[0].mxu0 %v6874
      %v7093 = vpop.f32.mrb[0].mxu0
      %v7094 = vadd.f32 0.0, %v7093
      %v7095 = vpop.f32.mrb[0].mxu0
      %7096 = vmatprep.mubr.f32.mxu0 0.0
      %7097 = vmatmul.mubr.f32.gmra.mrb[0].mxu0 %v6875
      %v7098 = vpop.f32.mrb[0].mxu0
      %v7099 = vadd.f32 0.0, %v7098
      %v7100 = vpop.f32.mrb[0].mxu0
      %7101 = vmatprep.mubr.f32.mxu0 0.0
      %7102 = vmatmul.mubr.f32.gmra.mrb[0].mxu0 %v6876
      %v7103 = vpop.f32.mrb[0].mxu0
      %v7104 = vadd.f32 0.0, %v7103
      %v7105 = vpop.f32.mrb[0].mxu0
      %7106 = vmatprep.mubr.f32.mxu0 0.0
      %7107 = vmatmul.mubr.f32.gmra.mrb[0].mxu0 %v6877
      %v7108 = vpop.f32.mrb[0].mxu0
      %v7109 = vadd.f32 0.0, %v7108
      %v7110 = vpop.f32.mrb[0].mxu0
      %7111 = vmatprep.mubr.f32.mxu0 0.0
      %7112 = vmatmul.mubr.f32.gmra.mrb[0].mxu0 %v6878
      %v7113 = vpop.f32.mrb[0].mxu0
      %v7114 = vadd.f32 0.0, %v7113
      %v7115 = vpop.f32.mrb[0].mxu0
      %7116 = vmatprep.mubr.f32.mxu0 0.0
      %7117 = vmatmul.mubr.f32.gmra.mrb[0].mxu0 %v6879
      %v7118 = vpop.f32.mrb[0].mxu0
      %v7119 = vadd.f32 0.0, %v7118
      %v7120 = vpop.f32.mrb[0].mxu0
      %7121 = vdwg.mxu0
      %v7122 = vld [vmem:[#allocation2] sm:$0xff]
      %v7123 = vld [vmem:[#allocation2 + $0x8] sm:$0xff]
      %v7124 = vld [vmem:[#allocation2 + $0x10] sm:$0xff]
      %v7125 = vld [vmem:[#allocation2 + $0x18] sm:$0xff]
      %v7126 = vld [vmem:[#allocation2 + $0x20] sm:$0xff]
      %v7127 = vld [vmem:[#allocation2 + $0x28] sm:$0xff]
      %v7128 = vld [vmem:[#allocation2 + $0x30] sm:$0xff]
      %v7129 = vld [vmem:[#allocation2 + $0x38] sm:$0xff]
      %v7130 = vld [vmem:[#allocation2 + $0x40] sm:$0xff]
      %v7131 = vld [vmem:[#allocation2 + $0x48] sm:$0xff]
      %v7132 = vld [vmem:[#allocation2 + $0x50] sm:$0xff]
      %v7133 = vld [vmem:[#allocation2 + $0x58] sm:$0xff]
      %v7134 = vld [vmem:[#allocation2 + $0x60] sm:$0xff]
      %v7135 = vld [vmem:[#allocation2 + $0x68] sm:$0xff]
      %v7136 = vld [vmem:[#allocation2 + $0x70] sm:$0xff]
      %v7137 = vld [vmem:[#allocation2 + $0x78] sm:$0xff]
      %v7138 = vld [vmem:[#allocation2 + $0x80] sm:$0xff]
      %v7139 = vld [vmem:[#allocation2 + $0x88] sm:$0xff]
      %v7140 = vld [vmem:[#allocation2 + $0x90] sm:$0xff]
      %v7141 = vld [vmem:[#allocation2 + $0x98] sm:$0xff]
      %v7142 = vld [vmem:[#allocation2 + $0xa0] sm:$0xff]
      %v7143 = vld [vmem:[#allocation2 + $0xa8] sm:$0xff]
      %v7144 = vld [vmem:[#allocation2 + $0xb0] sm:$0xff]
      %v7145 = vld [vmem:[#allocation2 + $0xb8] sm:$0xff]
      %v7146 = vld [vmem:[#allocation2 + $0xc0] sm:$0xff]
      %v7147 = vld [vmem:[#allocation2 + $0xc8] sm:$0xff]
      %v7148 = vld [vmem:[#allocation2 + $0xd0] sm:$0xff]
      %v7149 = vld [vmem:[#allocation2 + $0xd8] sm:$0xff]
      %v7150 = vld [vmem:[#allocation2 + $0xe0] sm:$0xff]
      %v7151 = vld [vmem:[#allocation2 + $0xe8] sm:$0xff]
      %v7152 = vld [vmem:[#allocation2 + $0xf0] sm:$0xff]
      %v7153 = vld [vmem:[#allocation2 + $0xf8] sm:$0xff]
      %v7154 = vadd.f32 %v7122, %v6964
      %v7155 = vadd.f32 %v7123, %v6969
      %v7156 = vadd.f32 %v7124, %v6974
      %v7157 = vadd.f32 %v7125, %v6979
      %v7158 = vadd.f32 %v7126, %v6984
      %v7159 = vadd.f32 %v7127, %v6989
      %v7160 = vadd.f32 %v7128, %v6994
      %v7161 = vadd.f32 %v7129, %v6999
      %v7162 = vadd.f32 %v7130, %v7004
      %v7163 = vadd.f32 %v7131, %v7009
      %v7164 = vadd.f32 %v7132, %v7014
      %v7165 = vadd.f32 %v7133, %v7019
      %v7166 = vadd.f32 %v7134, %v7024
      %v7167 = vadd.f32 %v7135, %v7029
      %v7168 = vadd.f32 %v7136, %v7034
      %v7169 = vadd.f32 %v7137, %v7039
      %v7170 = vadd.f32 %v7138, %v7044
      %v7171 = vadd.f32 %v7139, %v7049
      %v7172 = vadd.f32 %v7140, %v7054
      %v7173 = vadd.f32 %v7141, %v7059
      %v7174 = vadd.f32 %v7142, %v7064
      %v7175 = vadd.f32 %v7143, %v7069
      %v7176 = vadd.f32 %v7144, %v7074
      %v7177 = vadd.f32 %v7145, %v7079
      %v7178 = vadd.f32 %v7146, %v7084
      %v7179 = vadd.f32 %v7147, %v7089
      %v7180 = vadd.f32 %v7148, %v7094
      %v7181 = vadd.f32 %v7149, %v7099
      %v7182 = vadd.f32 %v7150, %v7104
      %v7183 = vadd.f32 %v7151, %v7109
      %v7184 = vadd.f32 %v7152, %v7114
      %v7185 = vadd.f32 %v7153, %v7119
      %7186 = vst [vmem:[#allocation2] sm:$0xff] %v7154
      %7187 = vst [vmem:[#allocation2 + $0x8] sm:$0xff] %v7155
      %7188 = vst [vmem:[#allocation2 + $0x10] sm:$0xff] %v7156
      %7189 = vst [vmem:[#allocation2 + $0x18] sm:$0xff] %v7157
      %7190 = vst [vmem:[#allocation2 + $0x20] sm:$0xff] %v7158
      %7191 = vst [vmem:[#allocation2 + $0x28] sm:$0xff] %v7159
      %7192 = vst [vmem:[#allocation2 + $0x30] sm:$0xff] %v7160
      %7193 = vst [vmem:[#allocation2 + $0x38] sm:$0xff] %v7161
      %7194 = vst [vmem:[#allocation2 + $0x40] sm:$0xff] %v7162
      %7195 = vst [vmem:[#allocation2 + $0x48] sm:$0xff] %v7163
      %7196 = vst [vmem:[#allocation2 + $0x50] sm:$0xff] %v7164
      %7197 = vst [vmem:[#allocation2 + $0x58] sm:$0xff] %v7165
      %7198 = vst [vmem:[#allocation2 + $0x60] sm:$0xff] %v7166
      %7199 = vst [vmem:[#allocation2 + $0x68] sm:$0xff] %v7167
      %7200 = vst [vmem:[#allocation2 + $0x70] sm:$0xff] %v7168
      %7201 = vst [vmem:[#allocation2 + $0x78] sm:$0xff] %v7169
      %7202 = vst [vmem:[#allocation2 + $0x80] sm:$0xff] %v7170
      %7203 = vst [vmem:[#allocation2 + $0x88] sm:$0xff] %v7171
      %7204 = vst [vmem:[#allocation2 + $0x90] sm:$0xff] %v7172
      %7205 = vst [vmem:[#allocation2 + $0x98] sm:$0xff] %v7173
      %7206 = vst [vmem:[#allocation2 + $0xa0] sm:$0xff] %v7174
      %7207 = vst [vmem:[#allocation2 + $0xa8] sm:$0xff] %v7175
      %7208 = vst [vmem:[#allocation2 + $0xb0] sm:$0xff] %v7176
      %7209 = vst [vmem:[#allocation2 + $0xb8] sm:$0xff] %v7177
      %7210 = vst [vmem:[#allocation2 + $0xc0] sm:$0xff] %v7178
      %7211 = vst [vmem:[#allocation2 + $0xc8] sm:$0xff] %v7179
      %7212 = vst [vmem:[#allocation2 + $0xd0] sm:$0xff] %v7180
      %7213 = vst [vmem:[#allocation2 + $0xd8] sm:$0xff] %v7181
      %7214 = vst [vmem:[#allocation2 + $0xe0] sm:$0xff] %v7182
      %7215 = vst [vmem:[#allocation2 + $0xe8] sm:$0xff] %v7183
      %7216 = vst [vmem:[#allocation2 + $0xf0] sm:$0xff] %v7184
      %7217 = vst [vmem:[#allocation2 + $0xf8] sm:$0xff] %v7185
      %v7218 = vld [vmem:[%s6847 + $0x1] sm:$0xff]
      %v7219 = vld [vmem:[%s6847 + $0x9] sm:$0xff]
      %v7220 = vld [vmem:[%s6847 + $0x19] sm:$0xff]
      %v7221 = vld [vmem:[%s6847 + $0x21] sm:$0xff]
      %v7222 = vld [vmem:[%s6847 + $0x31] sm:$0xff]
      %v7223 = vld [vmem:[%s6847 + $0x39] sm:$0xff]
      %v7224 = vld [vmem:[%s6847 + $0x49] sm:$0xff]
      %v7225 = vld [vmem:[%s6847 + $0x51] sm:$0xff]
      %v7226 = vld [vmem:[%s6847 + $0x61] sm:$0xff]
      %v7227 = vld [vmem:[%s6847 + $0x69] sm:$0xff]
      %v7228 = vld [vmem:[%s6847 + $0x79] sm:$0xff]
      %v7229 = vld [vmem:[%s6847 + $0x81] sm:$0xff]
      %v7230 = vld [vmem:[%s6847 + $0x91] sm:$0xff]
      %v7231 = vld [vmem:[%s6847 + $0x99] sm:$0xff]
      %v7232 = vld [vmem:[%s6847 + $0xa9] sm:$0xff]
      %v7233 = vld [vmem:[%s6847 + $0xb1] sm:$0xff]
      %v7234 = vld [vmem:[%s6847 + $0xc1] sm:$0xff]
      %v7235 = vld [vmem:[%s6847 + $0xc9] sm:$0xff]
      %v7236 = vld [vmem:[%s6847 + $0xd9] sm:$0xff]
      %v7237 = vld [vmem:[%s6847 + $0xe1] sm:$0xff]
      %v7238 = vld [vmem:[%s6847 + $0xf1] sm:$0xff]
      %v7239 = vld [vmem:[%s6847 + $0xf9] sm:$0xff]
      %v7240 = vld [vmem:[%s6847 + $0x109] sm:$0xff]
      %v7241 = vld [vmem:[%s6847 + $0x111] sm:$0xff]
      %v7242 = vld [vmem:[%s6847 + $0x121] sm:$0xff]
      %v7243 = vld [vmem:[%s6847 + $0x129] sm:$0xff]
      %v7244 = vld [vmem:[%s6847 + $0x139] sm:$0xff]
      %v7245 = vld [vmem:[%s6847 + $0x141] sm:$0xff]
      %v7246 = vld [vmem:[%s6847 + $0x151] sm:$0xff]
      %v7247 = vld [vmem:[%s6847 + $0x159] sm:$0xff]
      %v7248 = vld [vmem:[%s6847 + $0x169] sm:$0xff]
      %v7249 = vld [vmem:[%s6847 + $0x171] sm:$0xff]
      %s7250 = scalar_lea.vmem %s6, 896
      %v7251 = vld [vmem:[%s7250] sm:$0xff]
      %v7252 = vld [vmem:[%s7250 + $0x8] sm:$0xff]
      %v7253 = vld [vmem:[%s7250 + $0x10] sm:$0xff]
      %v7254 = vld [vmem:[%s7250 + $0x18] sm:$0xff]
      %v7255 = vld [vmem:[%s7250 + $0x20] sm:$0xff]
      %v7256 = vld [vmem:[%s7250 + $0x28] sm:$0xff]
      %v7257 = vld [vmem:[%s7250 + $0x30] sm:$0xff]
      %v7258 = vld [vmem:[%s7250 + $0x38] sm:$0xff]
      %v7259 = vld [vmem:[%s7250 + $0x40] sm:$0xff]
      %v7260 = vld [vmem:[%s7250 + $0x48] sm:$0xff]
      %v7261 = vld [vmem:[%s7250 + $0x50] sm:$0xff]
      %v7262 = vld [vmem:[%s7250 + $0x58] sm:$0xff]
      %v7263 = vld [vmem:[%s7250 + $0x60] sm:$0xff]
      %v7264 = vld [vmem:[%s7250 + $0x68] sm:$0xff]
      %v7265 = vld [vmem:[%s7250 + $0x70] sm:$0xff]
      %v7266 = vld [vmem:[%s7250 + $0x78] sm:$0xff]
      %7267 = vmatprep.subr.mxu0 0.0
      %7268 = vmatpush1.msra.mxu0 %v7251
      %7269 = vmatprep.subr.mxu0 0.0
      %7270 = vmatpush1.msra.mxu0 %v7252
      %7271 = vmatprep.subr.mxu0 0.0
      %7272 = vmatpush1.msra.mxu0 %v7253
      %7273 = vmatprep.subr.mxu0 0.0
      %7274 = vmatpush1.msra.mxu0 %v7254
      %7275 = vmatprep.subr.mxu0 0.0
      %7276 = vmatpush1.msra.mxu0 %v7255
      %7277 = vmatprep.subr.mxu0 0.0
      %7278 = vmatpush1.msra.mxu0 %v7256
      %7279 = vmatprep.subr.mxu0 0.0
      %7280 = vmatpush1.msra.mxu0 %v7257
      %7281 = vmatprep.subr.mxu0 0.0
      %7282 = vmatpush1.msra.mxu0 %v7258
      %7283 = vmatprep.subr.mxu0 0.0
      %7284 = vmatpush1.msra.mxu0 %v7259
      %7285 = vmatprep.subr.mxu0 0.0
      %7286 = vmatpush1.msra.mxu0 %v7260
      %7287 = vmatprep.subr.mxu0 0.0
      %7288 = vmatpush1.msra.mxu0 %v7261
      %7289 = vmatprep.subr.mxu0 0.0
      %7290 = vmatpush1.msra.mxu0 %v7262
      %7291 = vmatprep.subr.mxu0 0.0
      %7292 = vmatpush1.msra.mxu0 %v7263
      %7293 = vmatprep.subr.mxu0 0.0
      %7294 = vmatpush1.msra.mxu0 %v7264
      %7295 = vmatprep.subr.mxu0 0.0
      %7296 = vmatpush1.msra.mxu0 %v7265
      %7297 = vmatprep.subr.mxu0 0.0
      %7298 = vmatpush1.msra.mxu0 %v7266
      %7299 = vmatprep.subr.mxu0 0.0
      %7300 = vmatpush1.msra.mxu0 0.0
      %7301 = vmatprep.subr.mxu0 0.0
      %7302 = vmatpush1.msra.mxu0 0.0
      %7303 = vmatprep.subr.mxu0 0.0
      %7304 = vmatpush1.msra.mxu0 0.0
      %7305 = vmatprep.subr.mxu0 0.0
      %7306 = vmatpush1.msra.mxu0 0.0
      %7307 = vmatprep.subr.mxu0 0.0
      %7308 = vmatpush1.msra.mxu0 0.0
      %7309 = vmatprep.subr.mxu0 0.0
      %7310 = vmatpush1.msra.mxu0 0.0
      %7311 = vmatprep.subr.mxu0 0.0
      %7312 = vmatpush1.msra.mxu0 0.0
      %7313 = vmatprep.subr.mxu0 0.0
      %7314 = vmatpush1.msra.mxu0 0.0
      %7315 = vmatprep.subr.mxu0 0.0
      %7316 = vmatpush1.msra.mxu0 0.0
      %7317 = vmatprep.subr.mxu0 0.0
      %7318 = vmatpush1.msra.mxu0 0.0
      %7319 = vmatprep.subr.mxu0 0.0
      %7320 = vmatpush1.msra.mxu0 0.0
      %7321 = vmatprep.subr.mxu0 0.0
      %7322 = vmatpush1.msra.mxu0 0.0
      %7323 = vmatprep.subr.mxu0 0.0
      %7324 = vmatpush1.msra.mxu0 0.0
      %7325 = vmatprep.subr.mxu0 0.0
      %7326 = vmatpush1.msra.mxu0 0.0
      %7327 = vmatprep.subr.mxu0 0.0
      %7328 = vmatpush1.msra.mxu0 0.0
      %7329 = vmatprep.subr.mxu0 0.0
      %7330 = vmatpush1.msra.mxu0 0.0
      %7331 = vmatprep.mubr.f32.mxu0 0.0
      %7332 = vmatmul.mubr.f32.gmra.mrb[0].mxu0 %v7218
      %v7333 = vpop.f32.mrb[0].mxu0
      %v7334 = vadd.f32 0.0, %v7333
      %v7335 = vpop.f32.mrb[0].mxu0
      %7336 = vmatprep.mubr.f32.mxu0 0.0
      %7337 = vmatmul.mubr.f32.gmra.mrb[0].mxu0 %v7219
      %v7338 = vpop.f32.mrb[0].mxu0
      %v7339 = vadd.f32 0.0, %v7338
      %v7340 = vpop.f32.mrb[0].mxu0
      %7341 = vmatprep.mubr.f32.mxu0 0.0
      %7342 = vmatmul.mubr.f32.gmra.mrb[0].mxu0 %v7220
      %v7343 = vpop.f32.mrb[0].mxu0
      %v7344 = vadd.f32 0.0, %v7343
      %v7345 = vpop.f32.mrb[0].mxu0
      %7346 = vmatprep.mubr.f32.mxu0 0.0
      %7347 = vmatmul.mubr.f32.gmra.mrb[0].mxu0 %v7221
      %v7348 = vpop.f32.mrb[0].mxu0
      %v7349 = vadd.f32 0.0, %v7348
      %v7350 = vpop.f32.mrb[0].mxu0
      %7351 = vmatprep.mubr.f32.mxu0 0.0
      %7352 = vmatmul.mubr.f32.gmra.mrb[0].mxu0 %v7222
      %v7353 = vpop.f32.mrb[0].mxu0
      %v7354 = vadd.f32 0.0, %v7353
      %v7355 = vpop.f32.mrb[0].mxu0
      %7356 = vmatprep.mubr.f32.mxu0 0.0
      %7357 = vmatmul.mubr.f32.gmra.mrb[0].mxu0 %v7223
      %v7358 = vpop.f32.mrb[0].mxu0
      %v7359 = vadd.f32 0.0, %v7358
      %v7360 = vpop.f32.mrb[0].mxu0
      %7361 = vmatprep.mubr.f32.mxu0 0.0
      %7362 = vmatmul.mubr.f32.gmra.mrb[0].mxu0 %v7224
      %v7363 = vpop.f32.mrb[0].mxu0
      %v7364 = vadd.f32 0.0, %v7363
      %v7365 = vpop.f32.mrb[0].mxu0
      %7366 = vmatprep.mubr.f32.mxu0 0.0
      %7367 = vmatmul.mubr.f32.gmra.mrb[0].mxu0 %v7225
      %v7368 = vpop.f32.mrb[0].mxu0
      %v7369 = vadd.f32 0.0, %v7368
      %v7370 = vpop.f32.mrb[0].mxu0
      %7371 = vmatprep.mubr.f32.mxu0 0.0
      %7372 = vmatmul.mubr.f32.gmra.mrb[0].mxu0 %v7226
      %v7373 = vpop.f32.mrb[0].mxu0
      %v7374 = vadd.f32 0.0, %v7373
      %v7375 = vpop.f32.mrb[0].mxu0
      %7376 = vmatprep.mubr.f32.mxu0 0.0
      %7377 = vmatmul.mubr.f32.gmra.mrb[0].mxu0 %v7227
      %v7378 = vpop.f32.mrb[0].mxu0
      %v7379 = vadd.f32 0.0, %v7378
      %v7380 = vpop.f32.mrb[0].mxu0
      %7381 = vmatprep.mubr.f32.mxu0 0.0
      %7382 = vmatmul.mubr.f32.gmra.mrb[0].mxu0 %v7228
      %v7383 = vpop.f32.mrb[0].mxu0
      %v7384 = vadd.f32 0.0, %v7383
      %v7385 = vpop.f32.mrb[0].mxu0
      %7386 = vmatprep.mubr.f32.mxu0 0.0
      %7387 = vmatmul.mubr.f32.gmra.mrb[0].mxu0 %v7229
      %v7388 = vpop.f32.mrb[0].mxu0
      %v7389 = vadd.f32 0.0, %v7388
      %v7390 = vpop.f32.mrb[0].mxu0
      %7391 = vmatprep.mubr.f32.mxu0 0.0
      %7392 = vmatmul.mubr.f32.gmra.mrb[0].mxu0 %v7230
      %v7393 = vpop.f32.mrb[0].mxu0
      %v7394 = vadd.f32 0.0, %v7393
      %v7395 = vpop.f32.mrb[0].mxu0
      %7396 = vmatprep.mubr.f32.mxu0 0.0
      %7397 = vmatmul.mubr.f32.gmra.mrb[0].mxu0 %v7231
      %v7398 = vpop.f32.mrb[0].mxu0
      %v7399 = vadd.f32 0.0, %v7398
      %v7400 = vpop.f32.mrb[0].mxu0
      %7401 = vmatprep.mubr.f32.mxu0 0.0
      %7402 = vmatmul.mubr.f32.gmra.mrb[0].mxu0 %v7232
      %v7403 = vpop.f32.mrb[0].mxu0
      %v7404 = vadd.f32 0.0, %v7403
      %v7405 = vpop.f32.mrb[0].mxu0
      %7406 = vmatprep.mubr.f32.mxu0 0.0
      %7407 = vmatmul.mubr.f32.gmra.mrb[0].mxu0 %v7233
      %v7408 = vpop.f32.mrb[0].mxu0
      %v7409 = vadd.f32 0.0, %v7408
      %v7410 = vpop.f32.mrb[0].mxu0
      %7411 = vmatprep.mubr.f32.mxu0 0.0
      %7412 = vmatmul.mubr.f32.gmra.mrb[0].mxu0 %v7234
      %v7413 = vpop.f32.mrb[0].mxu0
      %v7414 = vadd.f32 0.0, %v7413
      %v7415 = vpop.f32.mrb[0].mxu0
      %7416 = vmatprep.mubr.f32.mxu0 0.0
      %7417 = vmatmul.mubr.f32.gmra.mrb[0].mxu0 %v7235
      %v7418 = vpop.f32.mrb[0].mxu0
      %v7419 = vadd.f32 0.0, %v7418
      %v7420 = vpop.f32.mrb[0].mxu0
      %7421 = vmatprep.mubr.f32.mxu0 0.0
      %7422 = vmatmul.mubr.f32.gmra.mrb[0].mxu0 %v7236
      %v7423 = vpop.f32.mrb[0].mxu0
      %v7424 = vadd.f32 0.0, %v7423
      %v7425 = vpop.f32.mrb[0].mxu0
      %7426 = vmatprep.mubr.f32.mxu0 0.0
      %7427 = vmatmul.mubr.f32.gmra.mrb[0].mxu0 %v7237
      %v7428 = vpop.f32.mrb[0].mxu0
      %v7429 = vadd.f32 0.0, %v7428
      %v7430 = vpop.f32.mrb[0].mxu0
      %7431 = vmatprep.mubr.f32.mxu0 0.0
      %7432 = vmatmul.mubr.f32.gmra.mrb[0].mxu0 %v7238
      %v7433 = vpop.f32.mrb[0].mxu0
      %v7434 = vadd.f32 0.0, %v7433
      %v7435 = vpop.f32.mrb[0].mxu0
      %7436 = vmatprep.mubr.f32.mxu0 0.0
      %7437 = vmatmul.mubr.f32.gmra.mrb[0].mxu0 %v7239
      %v7438 = vpop.f32.mrb[0].mxu0
      %v7439 = vadd.f32 0.0, %v7438
      %v7440 = vpop.f32.mrb[0].mxu0
      %7441 = vmatprep.mubr.f32.mxu0 0.0
      %7442 = vmatmul.mubr.f32.gmra.mrb[0].mxu0 %v7240
      %v7443 = vpop.f32.mrb[0].mxu0
      %v7444 = vadd.f32 0.0, %v7443
      %v7445 = vpop.f32.mrb[0].mxu0
      %7446 = vmatprep.mubr.f32.mxu0 0.0
      %7447 = vmatmul.mubr.f32.gmra.mrb[0].mxu0 %v7241
      %v7448 = vpop.f32.mrb[0].mxu0
      %v7449 = vadd.f32 0.0, %v7448
      %v7450 = vpop.f32.mrb[0].mxu0
      %7451 = vmatprep.mubr.f32.mxu0 0.0
      %7452 = vmatmul.mubr.f32.gmra.mrb[0].mxu0 %v7242
      %v7453 = vpop.f32.mrb[0].mxu0
      %v7454 = vadd.f32 0.0, %v7453
      %v7455 = vpop.f32.mrb[0].mxu0
      %7456 = vmatprep.mubr.f32.mxu0 0.0
      %7457 = vmatmul.mubr.f32.gmra.mrb[0].mxu0 %v7243
      %v7458 = vpop.f32.mrb[0].mxu0
      %v7459 = vadd.f32 0.0, %v7458
      %v7460 = vpop.f32.mrb[0].mxu0
      %7461 = vmatprep.mubr.f32.mxu0 0.0
      %7462 = vmatmul.mubr.f32.gmra.mrb[0].mxu0 %v7244
      %v7463 = vpop.f32.mrb[0].mxu0
      %v7464 = vadd.f32 0.0, %v7463
      %v7465 = vpop.f32.mrb[0].mxu0
      %7466 = vmatprep.mubr.f32.mxu0 0.0
      %7467 = vmatmul.mubr.f32.gmra.mrb[0].mxu0 %v7245
      %v7468 = vpop.f32.mrb[0].mxu0
      %v7469 = vadd.f32 0.0, %v7468
      %v7470 = vpop.f32.mrb[0].mxu0
      %7471 = vmatprep.mubr.f32.mxu0 0.0
      %7472 = vmatmul.mubr.f32.gmra.mrb[0].mxu0 %v7246
      %v7473 = vpop.f32.mrb[0].mxu0
      %v7474 = vadd.f32 0.0, %v7473
      %v7475 = vpop.f32.mrb[0].mxu0
      %7476 = vmatprep.mubr.f32.mxu0 0.0
      %7477 = vmatmul.mubr.f32.gmra.mrb[0].mxu0 %v7247
      %v7478 = vpop.f32.mrb[0].mxu0
      %v7479 = vadd.f32 0.0, %v7478
      %v7480 = vpop.f32.mrb[0].mxu0
      %7481 = vmatprep.mubr.f32.mxu0 0.0
      %7482 = vmatmul.mubr.f32.gmra.mrb[0].mxu0 %v7248
      %v7483 = vpop.f32.mrb[0].mxu0
      %v7484 = vadd.f32 0.0, %v7483
      %v7485 = vpop.f32.mrb[0].mxu0
      %7486 = vmatprep.mubr.f32.mxu0 0.0
      %7487 = vmatmul.mubr.f32.gmra.mrb[0].mxu0 %v7249
      %v7488 = vpop.f32.mrb[0].mxu0
      %v7489 = vadd.f32 0.0, %v7488
      %v7490 = vpop.f32.mrb[0].mxu0
      %7491 = vdwg.mxu0
      %v7492 = vld [vmem:[#allocation2] sm:$0xff]
      %v7493 = vld [vmem:[#allocation2 + $0x8] sm:$0xff]
      %v7494 = vld [vmem:[#allocation2 + $0x10] sm:$0xff]
      %v7495 = vld [vmem:[#allocation2 + $0x18] sm:$0xff]
      %v7496 = vld [vmem:[#allocation2 + $0x20] sm:$0xff]
      %v7497 = vld [vmem:[#allocation2 + $0x28] sm:$0xff]
      %v7498 = vld [vmem:[#allocation2 + $0x30] sm:$0xff]
      %v7499 = vld [vmem:[#allocation2 + $0x38] sm:$0xff]
      %v7500 = vld [vmem:[#allocation2 + $0x40] sm:$0xff]
      %v7501 = vld [vmem:[#allocation2 + $0x48] sm:$0xff]
      %v7502 = vld [vmem:[#allocation2 + $0x50] sm:$0xff]
      %v7503 = vld [vmem:[#allocation2 + $0x58] sm:$0xff]
      %v7504 = vld [vmem:[#allocation2 + $0x60] sm:$0xff]
      %v7505 = vld [vmem:[#allocation2 + $0x68] sm:$0xff]
      %v7506 = vld [vmem:[#allocation2 + $0x70] sm:$0xff]
      %v7507 = vld [vmem:[#allocation2 + $0x78] sm:$0xff]
      %v7508 = vld [vmem:[#allocation2 + $0x80] sm:$0xff]
      %v7509 = vld [vmem:[#allocation2 + $0x88] sm:$0xff]
      %v7510 = vld [vmem:[#allocation2 + $0x90] sm:$0xff]
      %v7511 = vld [vmem:[#allocation2 + $0x98] sm:$0xff]
      %v7512 = vld [vmem:[#allocation2 + $0xa0] sm:$0xff]
      %v7513 = vld [vmem:[#allocation2 + $0xa8] sm:$0xff]
      %v7514 = vld [vmem:[#allocation2 + $0xb0] sm:$0xff]
      %v7515 = vld [vmem:[#allocation2 + $0xb8] sm:$0xff]
      %v7516 = vld [vmem:[#allocation2 + $0xc0] sm:$0xff]
      %v7517 = vld [vmem:[#allocation2 + $0xc8] sm:$0xff]
      %v7518 = vld [vmem:[#allocation2 + $0xd0] sm:$0xff]
      %v7519 = vld [vmem:[#allocation2 + $0xd8] sm:$0xff]
      %v7520 = vld [vmem:[#allocation2 + $0xe0] sm:$0xff]
      %v7521 = vld [vmem:[#allocation2 + $0xe8] sm:$0xff]
      %v7522 = vld [vmem:[#allocation2 + $0xf0] sm:$0xff]
      %v7523 = vld [vmem:[#allocation2 + $0xf8] sm:$0xff]
      %v7524 = vadd.f32 %v7492, %v7334
      %v7525 = vadd.f32 %v7493, %v7339
      %v7526 = vadd.f32 %v7494, %v7344
      %v7527 = vadd.f32 %v7495, %v7349
      %v7528 = vadd.f32 %v7496, %v7354
      %v7529 = vadd.f32 %v7497, %v7359
      %v7530 = vadd.f32 %v7498, %v7364
      %v7531 = vadd.f32 %v7499, %v7369
      %v7532 = vadd.f32 %v7500, %v7374
      %v7533 = vadd.f32 %v7501, %v7379
      %v7534 = vadd.f32 %v7502, %v7384
      %v7535 = vadd.f32 %v7503, %v7389
      %v7536 = vadd.f32 %v7504, %v7394
      %v7537 = vadd.f32 %v7505, %v7399
      %v7538 = vadd.f32 %v7506, %v7404
      %v7539 = vadd.f32 %v7507, %v7409
      %v7540 = vadd.f32 %v7508, %v7414
      %v7541 = vadd.f32 %v7509, %v7419
      %v7542 = vadd.f32 %v7510, %v7424
      %v7543 = vadd.f32 %v7511, %v7429
      %v7544 = vadd.f32 %v7512, %v7434
      %v7545 = vadd.f32 %v7513, %v7439
      %v7546 = vadd.f32 %v7514, %v7444
      %v7547 = vadd.f32 %v7515, %v7449
      %v7548 = vadd.f32 %v7516, %v7454
      %v7549 = vadd.f32 %v7517, %v7459
      %v7550 = vadd.f32 %v7518, %v7464
      %v7551 = vadd.f32 %v7519, %v7469
      %v7552 = vadd.f32 %v7520, %v7474
      %v7553 = vadd.f32 %v7521, %v7479
      %v7554 = vadd.f32 %v7522, %v7484
      %v7555 = vadd.f32 %v7523, %v7489
      %7556 = vst [vmem:[#allocation2] sm:$0xff] %v7524
      %7557 = vst [vmem:[#allocation2 + $0x8] sm:$0xff] %v7525
      %7558 = vst [vmem:[#allocation2 + $0x10] sm:$0xff] %v7526
      %7559 = vst [vmem:[#allocation2 + $0x18] sm:$0xff] %v7527
      %7560 = vst [vmem:[#allocation2 + $0x20] sm:$0xff] %v7528
      %7561 = vst [vmem:[#allocation2 + $0x28] sm:$0xff] %v7529
      %7562 = vst [vmem:[#allocation2 + $0x30] sm:$0xff] %v7530
      %7563 = vst [vmem:[#allocation2 + $0x38] sm:$0xff] %v7531
      %7564 = vst [vmem:[#allocation2 + $0x40] sm:$0xff] %v7532
      %7565 = vst [vmem:[#allocation2 + $0x48] sm:$0xff] %v7533
      %7566 = vst [vmem:[#allocation2 + $0x50] sm:$0xff] %v7534
      %7567 = vst [vmem:[#allocation2 + $0x58] sm:$0xff] %v7535
      %7568 = vst [vmem:[#allocation2 + $0x60] sm:$0xff] %v7536
      %7569 = vst [vmem:[#allocation2 + $0x68] sm:$0xff] %v7537
      %7570 = vst [vmem:[#allocation2 + $0x70] sm:$0xff] %v7538
      %7571 = vst [vmem:[#allocation2 + $0x78] sm:$0xff] %v7539
      %7572 = vst [vmem:[#allocation2 + $0x80] sm:$0xff] %v7540
      %7573 = vst [vmem:[#allocation2 + $0x88] sm:$0xff] %v7541
      %7574 = vst [vmem:[#allocation2 + $0x90] sm:$0xff] %v7542
      %7575 = vst [vmem:[#allocation2 + $0x98] sm:$0xff] %v7543
      %7576 = vst [vmem:[#allocation2 + $0xa0] sm:$0xff] %v7544
      %7577 = vst [vmem:[#allocation2 + $0xa8] sm:$0xff] %v7545
      %7578 = vst [vmem:[#allocation2 + $0xb0] sm:$0xff] %v7546
      %7579 = vst [vmem:[#allocation2 + $0xb8] sm:$0xff] %v7547
      %7580 = vst [vmem:[#allocation2 + $0xc0] sm:$0xff] %v7548
      %7581 = vst [vmem:[#allocation2 + $0xc8] sm:$0xff] %v7549
      %7582 = vst [vmem:[#allocation2 + $0xd0] sm:$0xff] %v7550
      %7583 = vst [vmem:[#allocation2 + $0xd8] sm:$0xff] %v7551
      %7584 = vst [vmem:[#allocation2 + $0xe0] sm:$0xff] %v7552
      %7585 = vst [vmem:[#allocation2 + $0xe8] sm:$0xff] %v7553
      %7586 = vst [vmem:[#allocation2 + $0xf0] sm:$0xff] %v7554
      %7587 = vst [vmem:[#allocation2 + $0xf8] sm:$0xff] %v7555
      %v7588 = vld [vmem:[%s6847 + $0x2] sm:$0xff]
      %v7589 = vld [vmem:[%s6847 + $0xa] sm:$0xff]
      %v7590 = vld [vmem:[%s6847 + $0x1a] sm:$0xff]
      %v7591 = vld [vmem:[%s6847 + $0x22] sm:$0xff]
      %v7592 = vld [vmem:[%s6847 + $0x32] sm:$0xff]
      %v7593 = vld [vmem:[%s6847 + $0x3a] sm:$0xff]
      %v7594 = vld [vmem:[%s6847 + $0x4a] sm:$0xff]
      %v7595 = vld [vmem:[%s6847 + $0x52] sm:$0xff]
      %v7596 = vld [vmem:[%s6847 + $0x62] sm:$0xff]
      %v7597 = vld [vmem:[%s6847 + $0x6a] sm:$0xff]
      %v7598 = vld [vmem:[%s6847 + $0x7a] sm:$0xff]
      %v7599 = vld [vmem:[%s6847 + $0x82] sm:$0xff]
      %v7600 = vld [vmem:[%s6847 + $0x92] sm:$0xff]
      %v7601 = vld [vmem:[%s6847 + $0x9a] sm:$0xff]
      %v7602 = vld [vmem:[%s6847 + $0xaa] sm:$0xff]
      %v7603 = vld [vmem:[%s6847 + $0xb2] sm:$0xff]
      %v7604 = vld [vmem:[%s6847 + $0xc2] sm:$0xff]
      %v7605 = vld [vmem:[%s6847 + $0xca] sm:$0xff]
      %v7606 = vld [vmem:[%s6847 + $0xda] sm:$0xff]
      %v7607 = vld [vmem:[%s6847 + $0xe2] sm:$0xff]
      %v7608 = vld [vmem:[%s6847 + $0xf2] sm:$0xff]
      %v7609 = vld [vmem:[%s6847 + $0xfa] sm:$0xff]
      %v7610 = vld [vmem:[%s6847 + $0x10a] sm:$0xff]
      %v7611 = vld [vmem:[%s6847 + $0x112] sm:$0xff]
      %v7612 = vld [vmem:[%s6847 + $0x122] sm:$0xff]
      %v7613 = vld [vmem:[%s6847 + $0x12a] sm:$0xff]
      %v7614 = vld [vmem:[%s6847 + $0x13a] sm:$0xff]
      %v7615 = vld [vmem:[%s6847 + $0x142] sm:$0xff]
      %v7616 = vld [vmem:[%s6847 + $0x152] sm:$0xff]
      %v7617 = vld [vmem:[%s6847 + $0x15a] sm:$0xff]
      %v7618 = vld [vmem:[%s6847 + $0x16a] sm:$0xff]
      %v7619 = vld [vmem:[%s6847 + $0x172] sm:$0xff]
      %s7620 = scalar_lea.vmem %s6, 1024
      %v7621 = vld [vmem:[%s7620] sm:$0xff]
      %v7622 = vld [vmem:[%s7620 + $0x8] sm:$0xff]
      %v7623 = vld [vmem:[%s7620 + $0x10] sm:$0xff]
      %v7624 = vld [vmem:[%s7620 + $0x18] sm:$0xff]
      %v7625 = vld [vmem:[%s7620 + $0x20] sm:$0xff]
      %v7626 = vld [vmem:[%s7620 + $0x28] sm:$0xff]
      %v7627 = vld [vmem:[%s7620 + $0x30] sm:$0xff]
      %v7628 = vld [vmem:[%s7620 + $0x38] sm:$0xff]
      %v7629 = vld [vmem:[%s7620 + $0x40] sm:$0xff]
      %v7630 = vld [vmem:[%s7620 + $0x48] sm:$0xff]
      %v7631 = vld [vmem:[%s7620 + $0x50] sm:$0xff]
      %v7632 = vld [vmem:[%s7620 + $0x58] sm:$0xff]
      %v7633 = vld [vmem:[%s7620 + $0x60] sm:$0xff]
      %v7634 = vld [vmem:[%s7620 + $0x68] sm:$0xff]
      %v7635 = vld [vmem:[%s7620 + $0x70] sm:$0xff]
      %v7636 = vld [vmem:[%s7620 + $0x78] sm:$0xff]
      %7637 = vmatprep.subr.mxu0 0.0
      %7638 = vmatpush1.msra.mxu0 %v7621
      %7639 = vmatprep.subr.mxu0 0.0
      %7640 = vmatpush1.msra.mxu0 %v7622
      %7641 = vmatprep.subr.mxu0 0.0
      %7642 = vmatpush1.msra.mxu0 %v7623
      %7643 = vmatprep.subr.mxu0 0.0
      %7644 = vmatpush1.msra.mxu0 %v7624
      %7645 = vmatprep.subr.mxu0 0.0
      %7646 = vmatpush1.msra.mxu0 %v7625
      %7647 = vmatprep.subr.mxu0 0.0
      %7648 = vmatpush1.msra.mxu0 %v7626
      %7649 = vmatprep.subr.mxu0 0.0
      %7650 = vmatpush1.msra.mxu0 %v7627
      %7651 = vmatprep.subr.mxu0 0.0
      %7652 = vmatpush1.msra.mxu0 %v7628
      %7653 = vmatprep.subr.mxu0 0.0
      %7654 = vmatpush1.msra.mxu0 %v7629
      %7655 = vmatprep.subr.mxu0 0.0
      %7656 = vmatpush1.msra.mxu0 %v7630
      %7657 = vmatprep.subr.mxu0 0.0
      %7658 = vmatpush1.msra.mxu0 %v7631
      %7659 = vmatprep.subr.mxu0 0.0
      %7660 = vmatpush1.msra.mxu0 %v7632
      %7661 = vmatprep.subr.mxu0 0.0
      %7662 = vmatpush1.msra.mxu0 %v7633
      %7663 = vmatprep.subr.mxu0 0.0
      %7664 = vmatpush1.msra.mxu0 %v7634
      %7665 = vmatprep.subr.mxu0 0.0
      %7666 = vmatpush1.msra.mxu0 %v7635
      %7667 = vmatprep.subr.mxu0 0.0
      %7668 = vmatpush1.msra.mxu0 %v7636
      %7669 = vmatprep.subr.mxu0 0.0
      %7670 = vmatpush1.msra.mxu0 0.0
      %7671 = vmatprep.subr.mxu0 0.0
      %7672 = vmatpush1.msra.mxu0 0.0
      %7673 = vmatprep.subr.mxu0 0.0
      %7674 = vmatpush1.msra.mxu0 0.0
      %7675 = vmatprep.subr.mxu0 0.0
      %7676 = vmatpush1.msra.mxu0 0.0
      %7677 = vmatprep.subr.mxu0 0.0
      %7678 = vmatpush1.msra.mxu0 0.0
      %7679 = vmatprep.subr.mxu0 0.0
      %7680 = vmatpush1.msra.mxu0 0.0
      %7681 = vmatprep.subr.mxu0 0.0
      %7682 = vmatpush1.msra.mxu0 0.0
      %7683 = vmatprep.subr.mxu0 0.0
      %7684 = vmatpush1.msra.mxu0 0.0
      %7685 = vmatprep.subr.mxu0 0.0
      %7686 = vmatpush1.msra.mxu0 0.0
      %7687 = vmatprep.subr.mxu0 0.0
      %7688 = vmatpush1.msra.mxu0 0.0
      %7689 = vmatprep.subr.mxu0 0.0
      %7690 = vmatpush1.msra.mxu0 0.0
      %7691 = vmatprep.subr.mxu0 0.0
      %7692 = vmatpush1.msra.mxu0 0.0
      %7693 = vmatprep.subr.mxu0 0.0
      %7694 = vmatpush1.msra.mxu0 0.0
      %7695 = vmatprep.subr.mxu0 0.0
      %7696 = vmatpush1.msra.mxu0 0.0
      %7697 = vmatprep.subr.mxu0 0.0
      %7698 = vmatpush1.msra.mxu0 0.0
      %7699 = vmatprep.subr.mxu0 0.0
      %7700 = vmatpush1.msra.mxu0 0.0
      %7701 = vmatprep.mubr.f32.mxu0 0.0
      %7702 = vmatmul.mubr.f32.gmra.mrb[0].mxu0 %v7588
      %v7703 = vpop.f32.mrb[0].mxu0
      %v7704 = vadd.f32 0.0, %v7703
      %v7705 = vpop.f32.mrb[0].mxu0
      %7706 = vmatprep.mubr.f32.mxu0 0.0
      %7707 = vmatmul.mubr.f32.gmra.mrb[0].mxu0 %v7589
      %v7708 = vpop.f32.mrb[0].mxu0
      %v7709 = vadd.f32 0.0, %v7708
      %v7710 = vpop.f32.mrb[0].mxu0
      %7711 = vmatprep.mubr.f32.mxu0 0.0
      %7712 = vmatmul.mubr.f32.gmra.mrb[0].mxu0 %v7590
      %v7713 = vpop.f32.mrb[0].mxu0
      %v7714 = vadd.f32 0.0, %v7713
      %v7715 = vpop.f32.mrb[0].mxu0
      %7716 = vmatprep.mubr.f32.mxu0 0.0
      %7717 = vmatmul.mubr.f32.gmra.mrb[0].mxu0 %v7591
      %v7718 = vpop.f32.mrb[0].mxu0
      %v7719 = vadd.f32 0.0, %v7718
      %v7720 = vpop.f32.mrb[0].mxu0
      %7721 = vmatprep.mubr.f32.mxu0 0.0
      %7722 = vmatmul.mubr.f32.gmra.mrb[0].mxu0 %v7592
      %v7723 = vpop.f32.mrb[0].mxu0
      %v7724 = vadd.f32 0.0, %v7723
      %v7725 = vpop.f32.mrb[0].mxu0
      %7726 = vmatprep.mubr.f32.mxu0 0.0
      %7727 = vmatmul.mubr.f32.gmra.mrb[0].mxu0 %v7593
      %v7728 = vpop.f32.mrb[0].mxu0
      %v7729 = vadd.f32 0.0, %v7728
      %v7730 = vpop.f32.mrb[0].mxu0
      %7731 = vmatprep.mubr.f32.mxu0 0.0
      %7732 = vmatmul.mubr.f32.gmra.mrb[0].mxu0 %v7594
      %v7733 = vpop.f32.mrb[0].mxu0
      %v7734 = vadd.f32 0.0, %v7733
      %v7735 = vpop.f32.mrb[0].mxu0
      %7736 = vmatprep.mubr.f32.mxu0 0.0
      %7737 = vmatmul.mubr.f32.gmra.mrb[0].mxu0 %v7595
      %v7738 = vpop.f32.mrb[0].mxu0
      %v7739 = vadd.f32 0.0, %v7738
      %v7740 = vpop.f32.mrb[0].mxu0
      %7741 = vmatprep.mubr.f32.mxu0 0.0
      %7742 = vmatmul.mubr.f32.gmra.mrb[0].mxu0 %v7596
      %v7743 = vpop.f32.mrb[0].mxu0
      %v7744 = vadd.f32 0.0, %v7743
      %v7745 = vpop.f32.mrb[0].mxu0
      %7746 = vmatprep.mubr.f32.mxu0 0.0
      %7747 = vmatmul.mubr.f32.gmra.mrb[0].mxu0 %v7597
      %v7748 = vpop.f32.mrb[0].mxu0
      %v7749 = vadd.f32 0.0, %v7748
      %v7750 = vpop.f32.mrb[0].mxu0
      %7751 = vmatprep.mubr.f32.mxu0 0.0
      %7752 = vmatmul.mubr.f32.gmra.mrb[0].mxu0 %v7598
      %v7753 = vpop.f32.mrb[0].mxu0
      %v7754 = vadd.f32 0.0, %v7753
      %v7755 = vpop.f32.mrb[0].mxu0
      %7756 = vmatprep.mubr.f32.mxu0 0.0
      %7757 = vmatmul.mubr.f32.gmra.mrb[0].mxu0 %v7599
      %v7758 = vpop.f32.mrb[0].mxu0
      %v7759 = vadd.f32 0.0, %v7758
      %v7760 = vpop.f32.mrb[0].mxu0
      %7761 = vmatprep.mubr.f32.mxu0 0.0
      %7762 = vmatmul.mubr.f32.gmra.mrb[0].mxu0 %v7600
      %v7763 = vpop.f32.mrb[0].mxu0
      %v7764 = vadd.f32 0.0, %v7763
      %v7765 = vpop.f32.mrb[0].mxu0
      %7766 = vmatprep.mubr.f32.mxu0 0.0
      %7767 = vmatmul.mubr.f32.gmra.mrb[0].mxu0 %v7601
      %v7768 = vpop.f32.mrb[0].mxu0
      %v7769 = vadd.f32 0.0, %v7768
      %v7770 = vpop.f32.mrb[0].mxu0
      %7771 = vmatprep.mubr.f32.mxu0 0.0
      %7772 = vmatmul.mubr.f32.gmra.mrb[0].mxu0 %v7602
      %v7773 = vpop.f32.mrb[0].mxu0
      %v7774 = vadd.f32 0.0, %v7773
      %v7775 = vpop.f32.mrb[0].mxu0
      %7776 = vmatprep.mubr.f32.mxu0 0.0
      %7777 = vmatmul.mubr.f32.gmra.mrb[0].mxu0 %v7603
      %v7778 = vpop.f32.mrb[0].mxu0
      %v7779 = vadd.f32 0.0, %v7778
      %v7780 = vpop.f32.mrb[0].mxu0
      %7781 = vmatprep.mubr.f32.mxu0 0.0
      %7782 = vmatmul.mubr.f32.gmra.mrb[0].mxu0 %v7604
      %v7783 = vpop.f32.mrb[0].mxu0
      %v7784 = vadd.f32 0.0, %v7783
      %v7785 = vpop.f32.mrb[0].mxu0
      %7786 = vmatprep.mubr.f32.mxu0 0.0
      %7787 = vmatmul.mubr.f32.gmra.mrb[0].mxu0 %v7605
      %v7788 = vpop.f32.mrb[0].mxu0
      %v7789 = vadd.f32 0.0, %v7788
      %v7790 = vpop.f32.mrb[0].mxu0
      %7791 = vmatprep.mubr.f32.mxu0 0.0
      %7792 = vmatmul.mubr.f32.gmra.mrb[0].mxu0 %v7606
      %v7793 = vpop.f32.mrb[0].mxu0
      %v7794 = vadd.f32 0.0, %v7793
      %v7795 = vpop.f32.mrb[0].mxu0
      %7796 = vmatprep.mubr.f32.mxu0 0.0
      %7797 = vmatmul.mubr.f32.gmra.mrb[0].mxu0 %v7607
      %v7798 = vpop.f32.mrb[0].mxu0
      %v7799 = vadd.f32 0.0, %v7798
      %v7800 = vpop.f32.mrb[0].mxu0
      %7801 = vmatprep.mubr.f32.mxu0 0.0
      %7802 = vmatmul.mubr.f32.gmra.mrb[0].mxu0 %v7608
      %v7803 = vpop.f32.mrb[0].mxu0
      %v7804 = vadd.f32 0.0, %v7803
      %v7805 = vpop.f32.mrb[0].mxu0
      %7806 = vmatprep.mubr.f32.mxu0 0.0
      %7807 = vmatmul.mubr.f32.gmra.mrb[0].mxu0 %v7609
      %v7808 = vpop.f32.mrb[0].mxu0
      %v7809 = vadd.f32 0.0, %v7808
      %v7810 = vpop.f32.mrb[0].mxu0
      %7811 = vmatprep.mubr.f32.mxu0 0.0
      %7812 = vmatmul.mubr.f32.gmra.mrb[0].mxu0 %v7610
      %v7813 = vpop.f32.mrb[0].mxu0
      %v7814 = vadd.f32 0.0, %v7813
      %v7815 = vpop.f32.mrb[0].mxu0
      %7816 = vmatprep.mubr.f32.mxu0 0.0
      %7817 = vmatmul.mubr.f32.gmra.mrb[0].mxu0 %v7611
      %v7818 = vpop.f32.mrb[0].mxu0
      %v7819 = vadd.f32 0.0, %v7818
      %v7820 = vpop.f32.mrb[0].mxu0
      %7821 = vmatprep.mubr.f32.mxu0 0.0
      %7822 = vmatmul.mubr.f32.gmra.mrb[0].mxu0 %v7612
      %v7823 = vpop.f32.mrb[0].mxu0
      %v7824 = vadd.f32 0.0, %v7823
      %v7825 = vpop.f32.mrb[0].mxu0
      %7826 = vmatprep.mubr.f32.mxu0 0.0
      %7827 = vmatmul.mubr.f32.gmra.mrb[0].mxu0 %v7613
      %v7828 = vpop.f32.mrb[0].mxu0
      %v7829 = vadd.f32 0.0, %v7828
      %v7830 = vpop.f32.mrb[0].mxu0
      %7831 = vmatprep.mubr.f32.mxu0 0.0
      %7832 = vmatmul.mubr.f32.gmra.mrb[0].mxu0 %v7614
      %v7833 = vpop.f32.mrb[0].mxu0
      %v7834 = vadd.f32 0.0, %v7833
      %v7835 = vpop.f32.mrb[0].mxu0
      %7836 = vmatprep.mubr.f32.mxu0 0.0
      %7837 = vmatmul.mubr.f32.gmra.mrb[0].mxu0 %v7615
      %v7838 = vpop.f32.mrb[0].mxu0
      %v7839 = vadd.f32 0.0, %v7838
      %v7840 = vpop.f32.mrb[0].mxu0
      %7841 = vmatprep.mubr.f32.mxu0 0.0
      %7842 = vmatmul.mubr.f32.gmra.mrb[0].mxu0 %v7616
      %v7843 = vpop.f32.mrb[0].mxu0
      %v7844 = vadd.f32 0.0, %v7843
      %v7845 = vpop.f32.mrb[0].mxu0
      %7846 = vmatprep.mubr.f32.mxu0 0.0
      %7847 = vmatmul.mubr.f32.gmra.mrb[0].mxu0 %v7617
      %v7848 = vpop.f32.mrb[0].mxu0
      %v7849 = vadd.f32 0.0, %v7848
      %v7850 = vpop.f32.mrb[0].mxu0
      %7851 = vmatprep.mubr.f32.mxu0 0.0
      %7852 = vmatmul.mubr.f32.gmra.mrb[0].mxu0 %v7618
      %v7853 = vpop.f32.mrb[0].mxu0
      %v7854 = vadd.f32 0.0, %v7853
      %v7855 = vpop.f32.mrb[0].mxu0
      %7856 = vmatprep.mubr.f32.mxu0 0.0
      %7857 = vmatmul.mubr.f32.gmra.mrb[0].mxu0 %v7619
      %v7858 = vpop.f32.mrb[0].mxu0
      %v7859 = vadd.f32 0.0, %v7858
      %v7860 = vpop.f32.mrb[0].mxu0
      %7861 = vdwg.mxu0
      %v7862 = vld [vmem:[#allocation2] sm:$0xff]
      %v7863 = vld [vmem:[#allocation2 + $0x8] sm:$0xff]
      %v7864 = vld [vmem:[#allocation2 + $0x10] sm:$0xff]
      %v7865 = vld [vmem:[#allocation2 + $0x18] sm:$0xff]
      %v7866 = vld [vmem:[#allocation2 + $0x20] sm:$0xff]
      %v7867 = vld [vmem:[#allocation2 + $0x28] sm:$0xff]
      %v7868 = vld [vmem:[#allocation2 + $0x30] sm:$0xff]
      %v7869 = vld [vmem:[#allocation2 + $0x38] sm:$0xff]
      %v7870 = vld [vmem:[#allocation2 + $0x40] sm:$0xff]
      %v7871 = vld [vmem:[#allocation2 + $0x48] sm:$0xff]
      %v7872 = vld [vmem:[#allocation2 + $0x50] sm:$0xff]
      %v7873 = vld [vmem:[#allocation2 + $0x58] sm:$0xff]
      %v7874 = vld [vmem:[#allocation2 + $0x60] sm:$0xff]
      %v7875 = vld [vmem:[#allocation2 + $0x68] sm:$0xff]
      %v7876 = vld [vmem:[#allocation2 + $0x70] sm:$0xff]
      %v7877 = vld [vmem:[#allocation2 + $0x78] sm:$0xff]
      %v7878 = vld [vmem:[#allocation2 + $0x80] sm:$0xff]
      %v7879 = vld [vmem:[#allocation2 + $0x88] sm:$0xff]
      %v7880 = vld [vmem:[#allocation2 + $0x90] sm:$0xff]
      %v7881 = vld [vmem:[#allocation2 + $0x98] sm:$0xff]
      %v7882 = vld [vmem:[#allocation2 + $0xa0] sm:$0xff]
      %v7883 = vld [vmem:[#allocation2 + $0xa8] sm:$0xff]
      %v7884 = vld [vmem:[#allocation2 + $0xb0] sm:$0xff]
      %v7885 = vld [vmem:[#allocation2 + $0xb8] sm:$0xff]
      %v7886 = vld [vmem:[#allocation2 + $0xc0] sm:$0xff]
      %v7887 = vld [vmem:[#allocation2 + $0xc8] sm:$0xff]
      %v7888 = vld [vmem:[#allocation2 + $0xd0] sm:$0xff]
      %v7889 = vld [vmem:[#allocation2 + $0xd8] sm:$0xff]
      %v7890 = vld [vmem:[#allocation2 + $0xe0] sm:$0xff]
      %v7891 = vld [vmem:[#allocation2 + $0xe8] sm:$0xff]
      %v7892 = vld [vmem:[#allocation2 + $0xf0] sm:$0xff]
      %v7893 = vld [vmem:[#allocation2 + $0xf8] sm:$0xff]
      %v7894 = vadd.f32 %v7862, %v7704
      %v7895 = vadd.f32 %v7863, %v7709
      %v7896 = vadd.f32 %v7864, %v7714
      %v7897 = vadd.f32 %v7865, %v7719
      %v7898 = vadd.f32 %v7866, %v7724
      %v7899 = vadd.f32 %v7867, %v7729
      %v7900 = vadd.f32 %v7868, %v7734
      %v7901 = vadd.f32 %v7869, %v7739
      %v7902 = vadd.f32 %v7870, %v7744
      %v7903 = vadd.f32 %v7871, %v7749
      %v7904 = vadd.f32 %v7872, %v7754
      %v7905 = vadd.f32 %v7873, %v7759
      %v7906 = vadd.f32 %v7874, %v7764
      %v7907 = vadd.f32 %v7875, %v7769
      %v7908 = vadd.f32 %v7876, %v7774
      %v7909 = vadd.f32 %v7877, %v7779
      %v7910 = vadd.f32 %v7878, %v7784
      %v7911 = vadd.f32 %v7879, %v7789
      %v7912 = vadd.f32 %v7880, %v7794
      %v7913 = vadd.f32 %v7881, %v7799
      %v7914 = vadd.f32 %v7882, %v7804
      %v7915 = vadd.f32 %v7883, %v7809
      %v7916 = vadd.f32 %v7884, %v7814
      %v7917 = vadd.f32 %v7885, %v7819
      %v7918 = vadd.f32 %v7886, %v7824
      %v7919 = vadd.f32 %v7887, %v7829
      %v7920 = vadd.f32 %v7888, %v7834
      %v7921 = vadd.f32 %v7889, %v7839
      %v7922 = vadd.f32 %v7890, %v7844
      %v7923 = vadd.f32 %v7891, %v7849
      %v7924 = vadd.f32 %v7892, %v7854
      %v7925 = vadd.f32 %v7893, %v7859
      %7926 = vst [vmem:[#allocation2] sm:$0xff] %v7894
      %7927 = vst [vmem:[#allocation2 + $0x8] sm:$0xff] %v7895
      %7928 = vst [vmem:[#allocation2 + $0x10] sm:$0xff] %v7896
      %7929 = vst [vmem:[#allocation2 + $0x18] sm:$0xff] %v7897
      %7930 = vst [vmem:[#allocation2 + $0x20] sm:$0xff] %v7898
      %7931 = vst [vmem:[#allocation2 + $0x28] sm:$0xff] %v7899
      %7932 = vst [vmem:[#allocation2 + $0x30] sm:$0xff] %v7900
      %7933 = vst [vmem:[#allocation2 + $0x38] sm:$0xff] %v7901
      %7934 = vst [vmem:[#allocation2 + $0x40] sm:$0xff] %v7902
      %7935 = vst [vmem:[#allocation2 + $0x48] sm:$0xff] %v7903
      %7936 = vst [vmem:[#allocation2 + $0x50] sm:$0xff] %v7904
      %7937 = vst [vmem:[#allocation2 + $0x58] sm:$0xff] %v7905
      %7938 = vst [vmem:[#allocation2 + $0x60] sm:$0xff] %v7906
      %7939 = vst [vmem:[#allocation2 + $0x68] sm:$0xff] %v7907
      %7940 = vst [vmem:[#allocation2 + $0x70] sm:$0xff] %v7908
      %7941 = vst [vmem:[#allocation2 + $0x78] sm:$0xff] %v7909
      %7942 = vst [vmem:[#allocation2 + $0x80] sm:$0xff] %v7910
      %7943 = vst [vmem:[#allocation2 + $0x88] sm:$0xff] %v7911
      %7944 = vst [vmem:[#allocation2 + $0x90] sm:$0xff] %v7912
      %7945 = vst [vmem:[#allocation2 + $0x98] sm:$0xff] %v7913
      %7946 = vst [vmem:[#allocation2 + $0xa0] sm:$0xff] %v7914
      %7947 = vst [vmem:[#allocation2 + $0xa8] sm:$0xff] %v7915
      %7948 = vst [vmem:[#allocation2 + $0xb0] sm:$0xff] %v7916
      %7949 = vst [vmem:[#allocation2 + $0xb8] sm:$0xff] %v7917
      %7950 = vst [vmem:[#allocation2 + $0xc0] sm:$0xff] %v7918
      %7951 = vst [vmem:[#allocation2 + $0xc8] sm:$0xff] %v7919
      %7952 = vst [vmem:[#allocation2 + $0xd0] sm:$0xff] %v7920
      %7953 = vst [vmem:[#allocation2 + $0xd8] sm:$0xff] %v7921
      %7954 = vst [vmem:[#allocation2 + $0xe0] sm:$0xff] %v7922
      %7955 = vst [vmem:[#allocation2 + $0xe8] sm:$0xff] %v7923
      %7956 = vst [vmem:[#allocation2 + $0xf0] sm:$0xff] %v7924
      %7957 = vst [vmem:[#allocation2 + $0xf8] sm:$0xff] %v7925
      %v7958 = vld [vmem:[#allocation2] sm:$0xff]
      %v7959 = vld [vmem:[#allocation2 + $0x8] sm:$0xff]
      %v7960 = vld [vmem:[#allocation2 + $0x10] sm:$0xff]
      %v7961 = vld [vmem:[#allocation2 + $0x18] sm:$0xff]
      %v7962 = vld [vmem:[#allocation2 + $0x20] sm:$0xff]
      %v7963 = vld [vmem:[#allocation2 + $0x28] sm:$0xff]
      %v7964 = vld [vmem:[#allocation2 + $0x30] sm:$0xff]
      %v7965 = vld [vmem:[#allocation2 + $0x38] sm:$0xff]
      %v7966 = vld [vmem:[#allocation2 + $0x40] sm:$0xff]
      %v7967 = vld [vmem:[#allocation2 + $0x48] sm:$0xff]
      %v7968 = vld [vmem:[#allocation2 + $0x50] sm:$0xff]
      %v7969 = vld [vmem:[#allocation2 + $0x58] sm:$0xff]
      %v7970 = vld [vmem:[#allocation2 + $0x60] sm:$0xff]
      %v7971 = vld [vmem:[#allocation2 + $0x68] sm:$0xff]
      %v7972 = vld [vmem:[#allocation2 + $0x70] sm:$0xff]
      %v7973 = vld [vmem:[#allocation2 + $0x78] sm:$0xff]
      %v7974 = vld [vmem:[#allocation2 + $0x80] sm:$0xff]
      %v7975 = vld [vmem:[#allocation2 + $0x88] sm:$0xff]
      %v7976 = vld [vmem:[#allocation2 + $0x90] sm:$0xff]
      %v7977 = vld [vmem:[#allocation2 + $0x98] sm:$0xff]
      %v7978 = vld [vmem:[#allocation2 + $0xa0] sm:$0xff]
      %v7979 = vld [vmem:[#allocation2 + $0xa8] sm:$0xff]
      %v7980 = vld [vmem:[#allocation2 + $0xb0] sm:$0xff]
      %v7981 = vld [vmem:[#allocation2 + $0xb8] sm:$0xff]
      %v7982 = vld [vmem:[#allocation2 + $0xc0] sm:$0xff]
      %v7983 = vld [vmem:[#allocation2 + $0xc8] sm:$0xff]
      %v7984 = vld [vmem:[#allocation2 + $0xd0] sm:$0xff]
      %v7985 = vld [vmem:[#allocation2 + $0xd8] sm:$0xff]
      %v7986 = vld [vmem:[#allocation2 + $0xe0] sm:$0xff]
      %v7987 = vld [vmem:[#allocation2 + $0xe8] sm:$0xff]
      %v7988 = vld [vmem:[#allocation2 + $0xf0] sm:$0xff]
      %v7989 = vld [vmem:[#allocation2 + $0xf8] sm:$0xff]
      %v7990 = vld [vmem:[%s7] sm:$0x1]
      %v7992 = vlaneseq
      %v7993 = vshrl.u32 %v7992, 7
      %v7994 = vsub.s32 0, %v7993
      %v7995 = vrot.slane %v7990, %v7994
      %v7997 = vadd.f32 %v7958, %v7995
      %v7998 = vadd.f32 %v7959, %v7995
      %v7999 = vadd.f32 %v7960, %v7995
      %v8000 = vadd.f32 %v7961, %v7995
      %v8001 = vadd.f32 %v7962, %v7995
      %v8002 = vadd.f32 %v7963, %v7995
      %v8003 = vadd.f32 %v7964, %v7995
      %v8004 = vadd.f32 %v7965, %v7995
      %v8005 = vadd.f32 %v7966, %v7995
      %v8006 = vadd.f32 %v7967, %v7995
      %v8007 = vadd.f32 %v7968, %v7995
      %v8008 = vadd.f32 %v7969, %v7995
      %v8009 = vadd.f32 %v7970, %v7995
      %v8010 = vadd.f32 %v7971, %v7995
      %v8011 = vadd.f32 %v7972, %v7995
      %v8012 = vadd.f32 %v7973, %v7995
      %v8013 = vadd.f32 %v7974, %v7995
      %v8014 = vadd.f32 %v7975, %v7995
      %v8015 = vadd.f32 %v7976, %v7995
      %v8016 = vadd.f32 %v7977, %v7995
      %v8017 = vadd.f32 %v7978, %v7995
      %v8018 = vadd.f32 %v7979, %v7995
      %v8019 = vadd.f32 %v7980, %v7995
      %v8020 = vadd.f32 %v7981, %v7995
      %v8021 = vadd.f32 %v7982, %v7995
      %v8022 = vadd.f32 %v7983, %v7995
      %v8023 = vadd.f32 %v7984, %v7995
      %v8024 = vadd.f32 %v7985, %v7995
      %v8025 = vadd.f32 %v7986, %v7995
      %v8026 = vadd.f32 %v7987, %v7995
      %v8027 = vadd.f32 %v7988, %v7995
      %v8028 = vadd.f32 %v7989, %v7995
      %v8029 = vadd.f32 %v7997, %v4573
      %v8030 = vadd.f32 %v7998, %v4574
      %v8031 = vadd.f32 %v7999, %v4575
      %v8032 = vadd.f32 %v8000, %v4576
      %v8033 = vadd.f32 %v8001, %v4577
      %v8034 = vadd.f32 %v8002, %v4578
      %v8035 = vadd.f32 %v8003, %v4579
      %v8036 = vadd.f32 %v8004, %v4580
      %v8037 = vadd.f32 %v8005, %v4581
      %v8038 = vadd.f32 %v8006, %v4582
      %v8039 = vadd.f32 %v8007, %v4583
      %v8040 = vadd.f32 %v8008, %v4584
      %v8041 = vadd.f32 %v8009, %v4585
      %v8042 = vadd.f32 %v8010, %v4586
      %v8043 = vadd.f32 %v8011, %v4587
      %v8044 = vadd.f32 %v8012, %v4588
      %v8045 = vadd.f32 %v8013, %v4589
      %v8046 = vadd.f32 %v8014, %v4590
      %v8047 = vadd.f32 %v8015, %v4591
      %v8048 = vadd.f32 %v8016, %v4592
      %v8049 = vadd.f32 %v8017, %v4593
      %v8050 = vadd.f32 %v8018, %v4594
      %v8051 = vadd.f32 %v8019, %v4595
      %v8052 = vadd.f32 %v8020, %v4596
      %v8053 = vadd.f32 %v8021, %v4597
      %v8054 = vadd.f32 %v8022, %v4598
      %v8055 = vadd.f32 %v8023, %v4599
      %v8056 = vadd.f32 %v8024, %v4600
      %v8057 = vadd.f32 %v8025, %v4601
      %v8058 = vadd.f32 %v8026, %v4602
      %v8059 = vadd.f32 %v8027, %v4603
      %v8060 = vadd.f32 %v8028, %v4604
      %8061 = vst [vmem:[%s384] sm:$0xff] %v8029
      %8062 = vst [vmem:[%s384 + $0x8] sm:$0xff] %v8030
      %8063 = vst [vmem:[%s384 + $0x10] sm:$0xff] %v8031
      %8064 = vst [vmem:[%s384 + $0x18] sm:$0xff] %v8032
      %8065 = vst [vmem:[%s384 + $0x20] sm:$0xff] %v8033
      %8066 = vst [vmem:[%s384 + $0x28] sm:$0xff] %v8034
      %8067 = vst [vmem:[%s384 + $0x30] sm:$0xff] %v8035
      %8068 = vst [vmem:[%s384 + $0x38] sm:$0xff] %v8036
      %8069 = vst [vmem:[%s384 + $0x40] sm:$0xff] %v8037
      %8070 = vst [vmem:[%s384 + $0x48] sm:$0xff] %v8038
      %8071 = vst [vmem:[%s384 + $0x50] sm:$0xff] %v8039
      %8072 = vst [vmem:[%s384 + $0x58] sm:$0xff] %v8040
      %8073 = vst [vmem:[%s384 + $0x60] sm:$0xff] %v8041
      %8074 = vst [vmem:[%s384 + $0x68] sm:$0xff] %v8042
      %8075 = vst [vmem:[%s384 + $0x70] sm:$0xff] %v8043
      %8076 = vst [vmem:[%s384 + $0x78] sm:$0xff] %v8044
      %8077 = vst [vmem:[%s384 + $0x80] sm:$0xff] %v8045
      %8078 = vst [vmem:[%s384 + $0x88] sm:$0xff] %v8046
      %8079 = vst [vmem:[%s384 + $0x90] sm:$0xff] %v8047
      %8080 = vst [vmem:[%s384 + $0x98] sm:$0xff] %v8048
      %8081 = vst [vmem:[%s384 + $0xa0] sm:$0xff] %v8049
      %8082 = vst [vmem:[%s384 + $0xa8] sm:$0xff] %v8050
      %8083 = vst [vmem:[%s384 + $0xb0] sm:$0xff] %v8051
      %8084 = vst [vmem:[%s384 + $0xb8] sm:$0xff] %v8052
      %8085 = vst [vmem:[%s384 + $0xc0] sm:$0xff] %v8053
      %8086 = vst [vmem:[%s384 + $0xc8] sm:$0xff] %v8054
      %8087 = vst [vmem:[%s384 + $0xd0] sm:$0xff] %v8055
      %8088 = vst [vmem:[%s384 + $0xd8] sm:$0xff] %v8056
      %8089 = vst [vmem:[%s384 + $0xe0] sm:$0xff] %v8057
      %8090 = vst [vmem:[%s384 + $0xe8] sm:$0xff] %v8058
      %8091 = vst [vmem:[%s384 + $0xf0] sm:$0xff] %v8059
      %8092 = vst [vmem:[%s384 + $0xf8] sm:$0xff] %v8060
      %v8093 = vadd.f32 %v8029, %v8030
      %v8094 = vadd.f32 %v8093, %v8031
      %v8095 = vadd.f32 %v8094, %v8032
      %v8096 = vadd.f32 %v8095, %v8033
      %v8097 = vadd.f32 %v8096, %v8034
      %v8098 = vadd.f32 %v8097, %v8035
      %v8099 = vadd.f32 %v8098, %v8036
      %v8100 = vadd.f32 %v8099, %v8037
      %v8101 = vadd.f32 %v8100, %v8038
      %v8102 = vadd.f32 %v8101, %v8039
      %v8103 = vadd.f32 %v8102, %v8040
      %v8104 = vadd.f32 %v8103, %v8041
      %v8105 = vadd.f32 %v8104, %v8042
      %v8106 = vadd.f32 %v8105, %v8043
      %v8107 = vadd.f32 %v8106, %v8044
      %v8108 = vadd.f32 %v8107, %v8045
      %v8109 = vadd.f32 %v8108, %v8046
      %v8110 = vadd.f32 %v8109, %v8047
      %v8111 = vadd.f32 %v8110, %v8048
      %v8112 = vadd.f32 %v8111, %v8049
      %v8113 = vadd.f32 %v8112, %v8050
      %v8114 = vadd.f32 %v8113, %v8051
      %v8115 = vadd.f32 %v8114, %v8052
      %v8116 = vadd.f32 %v8115, %v8053
      %v8117 = vadd.f32 %v8116, %v8054
      %v8118 = vadd.f32 %v8117, %v8055
      %v8119 = vadd.f32 %v8118, %v8056
      %v8120 = vadd.f32 %v8119, %v8057
      %v8121 = vadd.f32 %v8120, %v8058
      %v8122 = vadd.f32 %v8121, %v8059
      %v8123 = vadd.f32 %v8122, %v8060
      %v8124 = vrot.slane %v8123, 4
      %v8125 = vadd.f32 %v8123, %v8124
      %v8126 = vrot.slane %v8125, 2
      %v8127 = vadd.f32 %v8125, %v8126
      %v8128 = vrot.slane %v8127, 1
      %v8129 = vadd.f32 %v8127, %v8128
      %8130 = vst [vmem:[%s388] sm:$0x1] %v8129
      %v8131 = vmul.f32 %v8029, %v8029
      %v8132 = vmul.f32 %v8030, %v8030
      %v8133 = vmul.f32 %v8031, %v8031
      %v8134 = vmul.f32 %v8032, %v8032
      %v8135 = vmul.f32 %v8033, %v8033
      %v8136 = vmul.f32 %v8034, %v8034
      %v8137 = vmul.f32 %v8035, %v8035
      %v8138 = vmul.f32 %v8036, %v8036
      %v8139 = vmul.f32 %v8037, %v8037
      %v8140 = vmul.f32 %v8038, %v8038
      %v8141 = vmul.f32 %v8039, %v8039
      %v8142 = vmul.f32 %v8040, %v8040
      %v8143 = vmul.f32 %v8041, %v8041
      %v8144 = vmul.f32 %v8042, %v8042
      %v8145 = vmul.f32 %v8043, %v8043
      %v8146 = vmul.f32 %v8044, %v8044
      %v8147 = vmul.f32 %v8045, %v8045
      %v8148 = vmul.f32 %v8046, %v8046
      %v8149 = vmul.f32 %v8047, %v8047
      %v8150 = vmul.f32 %v8048, %v8048
      %v8151 = vmul.f32 %v8049, %v8049
      %v8152 = vmul.f32 %v8050, %v8050
      %v8153 = vmul.f32 %v8051, %v8051
      %v8154 = vmul.f32 %v8052, %v8052
      %v8155 = vmul.f32 %v8053, %v8053
      %v8156 = vmul.f32 %v8054, %v8054
      %v8157 = vmul.f32 %v8055, %v8055
      %v8158 = vmul.f32 %v8056, %v8056
      %v8159 = vmul.f32 %v8057, %v8057
      %v8160 = vmul.f32 %v8058, %v8058
      %v8161 = vmul.f32 %v8059, %v8059
      %v8162 = vmul.f32 %v8060, %v8060
      %v8163 = vadd.f32 %v8131, %v8132
      %v8164 = vadd.f32 %v8163, %v8133
      %v8165 = vadd.f32 %v8164, %v8134
      %v8166 = vadd.f32 %v8165, %v8135
      %v8167 = vadd.f32 %v8166, %v8136
      %v8168 = vadd.f32 %v8167, %v8137
      %v8169 = vadd.f32 %v8168, %v8138
      %v8170 = vadd.f32 %v8169, %v8139
      %v8171 = vadd.f32 %v8170, %v8140
      %v8172 = vadd.f32 %v8171, %v8141
      %v8173 = vadd.f32 %v8172, %v8142
      %v8174 = vadd.f32 %v8173, %v8143
      %v8175 = vadd.f32 %v8174, %v8144
      %v8176 = vadd.f32 %v8175, %v8145
      %v8177 = vadd.f32 %v8176, %v8146
      %v8178 = vadd.f32 %v8177, %v8147
      %v8179 = vadd.f32 %v8178, %v8148
      %v8180 = vadd.f32 %v8179, %v8149
      %v8181 = vadd.f32 %v8180, %v8150
      %v8182 = vadd.f32 %v8181, %v8151
      %v8183 = vadd.f32 %v8182, %v8152
      %v8184 = vadd.f32 %v8183, %v8153
      %v8185 = vadd.f32 %v8184, %v8154
      %v8186 = vadd.f32 %v8185, %v8155
      %v8187 = vadd.f32 %v8186, %v8156
      %v8188 = vadd.f32 %v8187, %v8157
      %v8189 = vadd.f32 %v8188, %v8158
      %v8190 = vadd.f32 %v8189, %v8159
      %v8191 = vadd.f32 %v8190, %v8160
      %v8192 = vadd.f32 %v8191, %v8161
      %v8193 = vadd.f32 %v8192, %v8162
      %v8194 = vrot.slane %v8193, 4
      %v8195 = vadd.f32 %v8193, %v8194
      %v8196 = vrot.slane %v8195, 2
      %v8197 = vadd.f32 %v8195, %v8196
      %v8198 = vrot.slane %v8197, 1
      %v8199 = vadd.f32 %v8197, %v8198
      %8200 = vst [vmem:[%s391] sm:$0x1] %v8199
      %s8201 = smul.u32 32, %s22
      %p8202 = scmp.lt.s32.totalorder %s8201, 63
      %s8203 = scalar_select %p8202, %s8201, 63
      %s8204 = smul.addr %s8203, 8
      %s8205 = scalar_lea.vmem %s8, %s8204
      %p8206 = scmp.lt.s32.totalorder %s22, 1
      %s8207 = scalar_select %p8206, %s22, 1
      %s8208 = scalar_lea.vmem %s9, %s8207
      %p8209 = scmp.lt.s32.totalorder %s22, 1
      %s8210 = scalar_select %p8209, %s22, 1
      %s8211 = scalar_lea.vmem %s10, %s8210
      // Predicated region
      $region53: #{time_embedding_forward.2} parent=51 // pred_check
        %p8212 = pneg %p218
      $region54: #{time_embedding_forward.2} parent=51 // pred_check_branch
        %8214 = sbr.rel (%p8212) target = $region56
      $region55: #{time_embedding_forward.2} parent=51 // pred_region
        %s8215 = smul.u32 32, %s22
      $region56: #{time_embedding_forward.2} parent=51 // pred_fallthru
        _
      // Predicated region
      $region57: #{time_embedding_forward.2} parent=51 // pred_check
        %p8216 = pneg %p244
      $region58: #{time_embedding_forward.2} parent=51 // pred_check_branch
        %8218 = sbr.rel (%p8216) target = $region60
      $region59: #{time_embedding_forward.2} parent=51 // pred_region
        _
      $region60: #{time_embedding_forward.2} parent=51 // pred_fallthru
        _
      // Predicated region
      $region61: #{time_embedding_forward.2} parent=51 // pred_check
        %p8219 = pneg %p270
      $region62: #{time_embedding_forward.2} parent=51 // pred_check_branch
        %8221 = sbr.rel (%p8219) target = $region64
      $region63: #{time_embedding_forward.2} parent=51 // pred_region
        _
      $region64: #{time_embedding_forward.2} parent=51 // pred_fallthru
        _
    $region52: #{time_embedding_forward.2} parent=5 // pred_fallthru
      _
    %p8222 = scmp.le.s32.totalorder 2, %s17
    // Predicated region
    $region65: #{time_embedding_forward.2} parent=5 // pred_check
      %p8223 = pneg %p8222
    $region66: #{time_embedding_forward.2} parent=5 // pred_check_branch
      %8225 = sbr.rel (%p8223) target = $region68
    $region67: #{time_embedding_forward.2} parent=5 // pred_region
      %s8226 = ssub.s32 %s17, 2
      // Predicated region
      $region69: #{time_embedding_forward.2} parent=67 // pred_check
        %p8227 = pneg %p224
      $region70: #{time_embedding_forward.2} parent=67 // pred_check_branch
        %8229 = sbr.rel (%p8227) target = $region72
      $region71: #{time_embedding_forward.2} parent=67 // pred_region
        %s8230 = smul.u32 32, %s23
        %p8231 = scmp.lt.s32.totalorder %s8230, 63
        %s8232 = scalar_select %p8231, %s8230, 63
        %s8233 = smul.addr %s8232, 8
        %s8234 = scalar_lea.vmem %s8, %s8233
      $region72: #{time_embedding_forward.2} parent=67 // pred_fallthru
        _
      // Predicated region
      $region73: #{time_embedding_forward.2} parent=67 // pred_check
        %p8235 = pneg %p250
      $region74: #{time_embedding_forward.2} parent=67 // pred_check_branch
        %8237 = sbr.rel (%p8235) target = $region76
      $region75: #{time_embedding_forward.2} parent=67 // pred_region
        %p8238 = scmp.lt.s32.totalorder %s23, 1
        %s8239 = scalar_select %p8238, %s23, 1
        %s8240 = scalar_lea.vmem %s9, %s8239
      $region76: #{time_embedding_forward.2} parent=67 // pred_fallthru
        _
      // Predicated region
      $region77: #{time_embedding_forward.2} parent=67 // pred_check
        %p8241 = pneg %p276
      $region78: #{time_embedding_forward.2} parent=67 // pred_check_branch
        %8243 = sbr.rel (%p8241) target = $region80
      $region79: #{time_embedding_forward.2} parent=67 // pred_region
        %p8244 = scmp.lt.s32.totalorder %s23, 1
        %s8245 = scalar_select %p8244, %s23, 1
        %s8246 = scalar_lea.vmem %s10, %s8245
      $region80: #{time_embedding_forward.2} parent=67 // pred_fallthru
        _
    $region68: #{time_embedding_forward.2} parent=5 // pred_fallthru
      _
  $region6: #{time_embedding_forward.2} parent=0 // loop_footer
    %s21 = sadd.s32 1, %s17
  $region7: #{time_embedding_forward.2} parent=0 // loop_footer_branch
    %16 = sbr.rel target = $region3
  $region8: #{time_embedding_forward.2} parent=0 // loop_exit
    _

</llo_original>
